<compile_context>
chip_gen: v7x
topology: tpu7x:2x2x1
jax: 0.10.0
libtpu: 0.0.40
codegen_flags: <defaults>
</compile_context>

<pallas_src>
import functools

import jax
import jax.numpy as jnp
import numpy as np
from jax.experimental import pallas as pl
from jax.experimental.pallas import tpu as pltpu

K = 7             # conv kernel size
POOL = 3          # MaxPool1d(3)
EPS = 1e-5        # BatchNorm eps
PAD = (K - 1) // 2
CPAD = 128        # every channel dim padded to one 128-lane tile
ALIGN = 8         # valid region starts at a sublane-aligned row in scratch


# ------------------------------- fused kernel --------------------------------
def _fused_kernel(x_ref,
                  wc1_ref, sc1_ref, sh1_ref,
                  wc2_ref, sc2_ref, sh2_ref,
                  wc3_ref, sc3_ref, sh3_ref,
                  w1_ref, s1_ref, t1_ref,
                  w2_ref, s2_ref, t2_ref,
                  o_ref,
                  scr2, scr3, ybuf,
                  *, B, L0):
    L1 = L0 // POOL
    L2 = L1 // POOL
    L3 = L2 // POOL

    def conv_block(xwins, w_ref, sc_ref, sh_ref, L):
        """Conv1d(k=7,'same') + folded BN + ReLU + MaxPool1d(3), batch-stacked.

        xwins: list of B bf16 padded windows, each (L + 2*PAD, CPAD).
        Returns the pooled (B * L//3, CPAD) f32 value (samples stacked on
        sublanes).
        """
        # im2col: lane-concat the K shifted windows per sample, stack samples
        # along sublanes -> (B*L, K*CPAD) bf16, ONE MXU dot.
        lhs = jnp.concatenate(
            [jnp.concatenate([xw[k:k + L, :] for k in range(K)], axis=1)
             for xw in xwins], axis=0)
        acc = jnp.dot(lhs, w_ref[...],
                      preferred_element_type=jnp.float32)        # (B*L, CPAD)
        y = jnp.maximum(acc * sc_ref[...] + sh_ref[...], 0.0)    # bias+BN,ReLU
        # MaxPool1d(3): max of three shifted slices, one store, one stride-3
        # read.  Rows near a sample boundary that would mix samples are never
        # at a multiple-of-3 offset (L % 3 == 0), so they are never read.
        n = B * L
        m = jnp.maximum(jnp.maximum(y[0:n - 2, :], y[1:n - 1, :]), y[2:n, :])
        ybuf[pl.ds(0, n - 2), :] = m
        return ybuf[pl.ds(0, n // POOL, stride=POOL), :]          # (B*L//3,CPAD)

    # ---- block 1: input already length/lane zero-padded (bf16) by wrapper ----
    p1 = conv_block([x_ref[b] for b in range(B)],
                    wc1_ref, sc1_ref, sh1_ref, L0)                # (B*L1, CPAD)

    # ---- block 2: store pooled rows at aligned offset, zero only the halos ----
    zero_halo = jnp.zeros((PAD, CPAD), jnp.float32)
    for b in range(B):
        scr2[b, pl.ds(ALIGN - PAD, PAD), :] = zero_halo
        scr2[b, pl.ds(ALIGN + L1, PAD), :] = zero_halo
        scr2[b, pl.ds(ALIGN, L1), :] = p1[b * L1:(b + 1) * L1, :]
    p2 = conv_block(
        [scr2[b, pl.ds(ALIGN - PAD, L1 + 2 * PAD), :].astype(jnp.bfloat16)
         for b in range(B)],
        wc2_ref, sc2_ref, sh2_ref, L1)                            # (B*L2, CPAD)

    # ---- block 3 ----
    for b in range(B):
        scr3[b, pl.ds(ALIGN - PAD, PAD), :] = zero_halo
        scr3[b, pl.ds(ALIGN + L2, PAD), :] = zero_halo
        scr3[b, pl.ds(ALIGN, L2), :] = p2[b * L2:(b + 1) * L2, :]
    p3 = conv_block(
        [scr3[b, pl.ds(ALIGN - PAD, L2 + 2 * PAD), :].astype(jnp.bfloat16)
         for b in range(B)],
        wc3_ref, sc3_ref, sh3_ref, L2)                            # (B*L3, CPAD)

    # ---- MLP over the whole batch (M = B). NCL flatten order is baked into
    # ---- w1's row order, so we just lane-concatenate the pooled rows. ----
    flat = jnp.concatenate(
        [jnp.concatenate([p3[b * L3 + l: b * L3 + l + 1, :] for l in range(L3)],
                         axis=1)
         for b in range(B)], axis=0)                              # (B, L3*CPAD)
    h = jnp.dot(flat.astype(jnp.bfloat16), w1_ref[...],
                preferred_element_type=jnp.float32)
    h = jnp.maximum(h * s1_ref[...] + t1_ref[...], 0.0)
    o = jnp.dot(h.astype(jnp.bfloat16), w2_ref[...],
                preferred_element_type=jnp.float32)
    o_ref[...] = o * s2_ref[...] + t2_ref[...]                    # (B, EPAD)


# ------------------------------ forward wrapper -------------------------------
def drug_conv_1d_forward(smiles_ncl, kp, embed_dim):
    """smiles_ncl: (B, Cin, L) -> (B, embed_dim) float32."""
    B, Cin, L0 = smiles_ncl.shape
    assert L0 % (POOL ** 3) == 0, "pooling assumes L divisible by 3 each stage"
    L1, L2 = L0 // POOL, L0 // POOL // POOL
    L3 = L2 // POOL
    H = kp["w1"].shape[-1]
    EPAD = kp["w2"].shape[-1]

    # Pre-pad (length halo + 128 lanes) and cast to bf16 in the wrapper:
    # removes the lane-masked in-kernel padding store and halves input DMA.
    x_nlc = jnp.transpose(smiles_ncl.astype(jnp.float32), (0, 2, 1))  # NCL->NLC
    Lp = L0 + 2 * PAD
    xpad = jnp.zeros((B, Lp, CPAD), jnp.bfloat16)
    xpad = xpad.at[:, PAD:PAD + L0, :Cin].set(x_nlc.astype(jnp.bfloat16))

    const2 = lambda g: (0, 0)
    const3 = lambda g: (0, 0, 0)
    kernel = functools.partial(_fused_kernel, B=B, L0=L0)

    weight_keys = ("wc1", "sc1", "sh1", "wc2", "sc2", "sh2", "wc3", "sc3", "sh3",
                   "w1", "s1", "t1", "w2", "s2", "t2")
    flops = 2 * B * (K * CPAD * CPAD * (L0 + L1 + L2) + (L3 * CPAD) * H + H * EPAD)
    bytes_accessed = (xpad.size * xpad.dtype.itemsize + B * EPAD * 4
                      + sum(kp[k].size * kp[k].dtype.itemsize for k in weight_keys))

    out = pl.pallas_call(
        kernel,
        out_shape=jax.ShapeDtypeStruct((B, EPAD), jnp.float32),
        grid_spec=pltpu.PrefetchScalarGridSpec(
            num_scalar_prefetch=0,
            grid=(1,),           # whole batch per step (see v7x TODO in header)
            in_specs=[
                pl.BlockSpec((B, Lp, CPAD), const3),
                pl.BlockSpec(kp["wc1"].shape, const2),
                pl.BlockSpec(kp["sc1"].shape, const2),
                pl.BlockSpec(kp["sh1"].shape, const2),
                pl.BlockSpec(kp["wc2"].shape, const2),
                pl.BlockSpec(kp["sc2"].shape, const2),
                pl.BlockSpec(kp["sh2"].shape, const2),
                pl.BlockSpec(kp["wc3"].shape, const2),
                pl.BlockSpec(kp["sc3"].shape, const2),
                pl.BlockSpec(kp["sh3"].shape, const2),
                pl.BlockSpec(kp["w1"].shape, const2),
                pl.BlockSpec(kp["s1"].shape, const2),
                pl.BlockSpec(kp["t1"].shape, const2),
                pl.BlockSpec(kp["w2"].shape, const2),
                pl.BlockSpec(kp["s2"].shape, const2),
                pl.BlockSpec(kp["t2"].shape, const2),
            ],
            out_specs=pl.BlockSpec((B, EPAD), const2),
            scratch_shapes=[
                pltpu.VMEM((B, ALIGN + L1 + ALIGN, CPAD), jnp.float32),  # blk2 in
                pltpu.VMEM((B, ALIGN + L2 + ALIGN, CPAD), jnp.float32),  # blk3 in
                pltpu.VMEM((B * L0, CPAD), jnp.float32),                 # pool buf
            ],
        ),
        compiler_params=pltpu.CompilerParams(
            dimension_semantics=("arbitrary",)),
        cost_estimate=pl.CostEstimate(flops=flops, transcendentals=0,
                                      bytes_accessed=bytes_accessed),
    )(xpad, kp["wc1"], kp["sc1"], kp["sh1"],
      kp["wc2"], kp["sc2"], kp["sh2"],
      kp["wc3"], kp["sc3"], kp["sh3"],
      kp["w1"], kp["s1"], kp["t1"], kp["w2"], kp["s2"], kp["t2"])
    return out[:, :embed_dim]


# ---------------------------- parameter preparation ---------------------------
def fold_bn(bias, gamma, beta, mean, var):
    """Fold a preceding bias + BatchNorm (inference) into 1-D scale/shift."""
    scale = gamma / jnp.sqrt(var + EPS)
    shift = beta + scale * (bias - mean)
    return scale, shift


def prepare_kernel_params(params):
    """Pad channels to 128 lanes (zero weight rows/cols & zero scale/shift in
    the padding — the kernel relies on this), reshape conv weights to im2col
    form, bake the NCL flatten into w1's row order, pad the final output dim to
    a 128-lane tile, and cast matmul weights to bf16."""
    kp = {}
    for i in range(3):
        blk = params[f"block{i + 1}"]
        w = blk["w"]                                   # (K, Cin, Cout) f32
        _, cin, cout = w.shape
        wp = jnp.zeros((K, CPAD, CPAD), jnp.float32).at[:, :cin, :cout].set(w)
        kp[f"wc{i + 1}"] = wp.reshape(K * CPAD, CPAD).astype(jnp.bfloat16)
        kp[f"sc{i + 1}"] = jnp.zeros((1, CPAD), jnp.float32).at[0, :cout].set(blk["scale"])
        kp[f"sh{i + 1}"] = jnp.zeros((1, CPAD), jnp.float32).at[0, :cout].set(blk["shift"])
    m = params["mlp"]
    c3 = params["block3"]["w"].shape[-1]
    din, H = m["w1"].shape
    L3 = din // c3
    # PyTorch flatten is NCL (row c*L3 + l); kernel flat index is l*CPAD + c.
    w1_lch = m["w1"].reshape(c3, L3, H).transpose(1, 0, 2)        # [l, c, :]
    w1p = jnp.zeros((L3, CPAD, H), jnp.float32).at[:, :c3, :].set(w1_lch)
    kp["w1"] = w1p.reshape(L3 * CPAD, H).astype(jnp.bfloat16)
    kp["s1"] = m["s1"].reshape(1, H).astype(jnp.float32)
    kp["t1"] = m["t1"].reshape(1, H).astype(jnp.float32)
    E = m["w2"].shape[-1]
    EPAD = ((E + CPAD - 1) // CPAD) * CPAD
    kp["w2"] = jnp.zeros((H, EPAD), jnp.float32).at[:, :E].set(m["w2"]).astype(jnp.bfloat16)
    kp["s2"] = jnp.zeros((1, EPAD), jnp.float32).at[0, :E].set(m["s2"])
    kp["t2"] = jnp.zeros((1, EPAD), jnp.float32).at[0, :E].set(m["t2"])
    return kp


# ------------------------------ pure-JAX reference ----------------------------
def reference_forward(smiles_ncl, params):
    """Independent f32 conv path for the correctness check."""
    x = smiles_ncl.astype(jnp.float32)
    for i in range(3):
        p = params[f"block{i + 1}"]
        w_oik = jnp.transpose(p["w"], (2, 1, 0))       # (K,Cin,Cout)->(O,I,K)
        y = jax.lax.conv_general_dilated(
            x, w_oik, window_strides=(1,), padding="SAME",
            dimension_numbers=("NCH", "OIH", "NCH"))
        y = y * p["scale"][None, :, None] + p["shift"][None, :, None]
        y = jnp.maximum(y, 0.0)
        B, C, L = y.shape
        y = jnp.max(y[:, :, : (L // POOL) * POOL].reshape(B, C, L // POOL, POOL),
                    axis=-1)
        x = y
    B = x.shape[0]
    flat = x.reshape(B, -1)                            # NCL flatten
    m = params["mlp"]
    h = jnp.maximum((flat @ m["w1"]) * m["s1"] + m["t1"], 0.0)
    return (h @ m["w2"]) * m["s2"] + m["t2"]


# ----------------------------------- main -------------------------------------
if __name__ == "__main__":
    embed_dim = 64
    in_channels = 30
    out_channels = [40, 80, 60]
    smiles_in_dim = 360
    B = 2
    L = 162  # 162 -> 54 -> 18 -> 6 after three MaxPool(3); 6 * 60 = 360

    key = jax.random.PRNGKey(0)
    keys = jax.random.split(key, 16)

    def nrm(k, shape, scale=0.05):
        return scale * jax.random.normal(k, shape, dtype=jnp.float32)

    params = {}
    cins = [in_channels] + out_channels[:2]
    for i, (cin, cout) in enumerate(zip(cins, out_channels)):
        w = nrm(keys[2 * i], (K, cin, cout))           # conv weight (K, Cin, Cout)
        b = nrm(keys[2 * i + 1], (cout,))              # conv bias
        scale, shift = fold_bn(b, jnp.ones(cout), jnp.zeros(cout),
                               jnp.zeros(cout), jnp.ones(cout))
        params[f"block{i + 1}"] = dict(w=w, scale=scale, shift=shift)

    w1 = nrm(keys[8], (smiles_in_dim, 512))
    b1 = nrm(keys[9], (512,))
    s1, t1 = fold_bn(b1, jnp.ones(512), jnp.zeros(512),
                     jnp.zeros(512), jnp.ones(512))
    w2 = nrm(keys[10], (512, embed_dim))
    b2 = nrm(keys[11], (embed_dim,))
    s2, t2 = fold_bn(b2, jnp.ones(embed_dim), jnp.zeros(embed_dim),
                     jnp.zeros(embed_dim), jnp.ones(embed_dim))
    params["mlp"] = dict(w1=w1, s1=s1, t1=t1, w2=w2, s2=s2, t2=t2)

    smiles = jax.random.normal(keys[12], (B, in_channels, L), dtype=jnp.float32)

    kp = prepare_kernel_params(params)
    forward = jax.jit(drug_conv_1d_forward, static_argnames=("embed_dim",))
    out = forward(smiles, kp, embed_dim=embed_dim)
    out = jax.block_until_ready(out)

    ref = reference_forward(smiles, params)
    # bf16 MXU operands (f32 accumulation) -> slightly looser tolerance.
    np.testing.assert_allclose(np.asarray(out), np.asarray(ref),
                               rtol=3e-2, atol=3e-2)
    assert out.shape == (B, embed_dim)
    print("KERNEL_OK")
</pallas_src>

<mosaic_0001>
module attributes {stable_mosaic.version = 11 : i64} {
  func.func @_fused_kernel(%arg0: i32, %arg1: memref<2x168x128xbf16, #tpu.memory_space<vmem>>, %arg2: memref<896x128xbf16, #tpu.memory_space<vmem>>, %arg3: memref<1x128xf32, #tpu.memory_space<vmem>>, %arg4: memref<1x128xf32, #tpu.memory_space<vmem>>, %arg5: memref<896x128xbf16, #tpu.memory_space<vmem>>, %arg6: memref<1x128xf32, #tpu.memory_space<vmem>>, %arg7: memref<1x128xf32, #tpu.memory_space<vmem>>, %arg8: memref<896x128xbf16, #tpu.memory_space<vmem>>, %arg9: memref<1x128xf32, #tpu.memory_space<vmem>>, %arg10: memref<1x128xf32, #tpu.memory_space<vmem>>, %arg11: memref<768x512xbf16, #tpu.memory_space<vmem>>, %arg12: memref<1x512xf32, #tpu.memory_space<vmem>>, %arg13: memref<1x512xf32, #tpu.memory_space<vmem>>, %arg14: memref<512x128xbf16, #tpu.memory_space<vmem>>, %arg15: memref<1x128xf32, #tpu.memory_space<vmem>>, %arg16: memref<1x128xf32, #tpu.memory_space<vmem>>, %arg17: memref<2x128xf32, #tpu.memory_space<vmem>>, %arg18: memref<2x70x128xf32, #tpu.memory_space<vmem>>, %arg19: memref<2x34x128xf32, #tpu.memory_space<vmem>>, %arg20: memref<324x128xf32, #tpu.memory_space<vmem>>) attributes {dimension_semantics = [#tpu.dimension_semantics<arbitrary>], iteration_bounds = array<i64: 1>, scalar_prefetch = 0 : i64, scratch_operands = 3 : i64, tpu.core_type = #tpu.core_type<tc>, window_params = [{pipeline_mode = #tpu.pipeline_mode<synchronous>, transform_indices = @transform_0, window_bounds = array<i64: 2, 168, 128>}, {pipeline_mode = #tpu.pipeline_mode<synchronous>, transform_indices = @transform_1, window_bounds = array<i64: 896, 128>}, {pipeline_mode = #tpu.pipeline_mode<synchronous>, transform_indices = @transform_2, window_bounds = array<i64: 1, 128>}, {pipeline_mode = #tpu.pipeline_mode<synchronous>, transform_indices = @transform_3, window_bounds = array<i64: 1, 128>}, {pipeline_mode = #tpu.pipeline_mode<synchronous>, transform_indices = @transform_4, window_bounds = array<i64: 896, 128>}, {pipeline_mode = #tpu.pipeline_mode<synchronous>, transform_indices = @transform_5, window_bounds = array<i64: 1, 128>}, {pipeline_mode = #tpu.pipeline_mode<synchronous>, transform_indices = @transform_6, window_bounds = array<i64: 1, 128>}, {pipeline_mode = #tpu.pipeline_mode<synchronous>, transform_indices = @transform_7, window_bounds = array<i64: 896, 128>}, {pipeline_mode = #tpu.pipeline_mode<synchronous>, transform_indices = @transform_8, window_bounds = array<i64: 1, 128>}, {pipeline_mode = #tpu.pipeline_mode<synchronous>, transform_indices = @transform_9, window_bounds = array<i64: 1, 128>}, {pipeline_mode = #tpu.pipeline_mode<synchronous>, transform_indices = @transform_10, window_bounds = array<i64: 768, 512>}, {pipeline_mode = #tpu.pipeline_mode<synchronous>, transform_indices = @transform_11, window_bounds = array<i64: 1, 512>}, {pipeline_mode = #tpu.pipeline_mode<synchronous>, transform_indices = @transform_12, window_bounds = array<i64: 1, 512>}, {pipeline_mode = #tpu.pipeline_mode<synchronous>, transform_indices = @transform_13, window_bounds = array<i64: 512, 128>}, {pipeline_mode = #tpu.pipeline_mode<synchronous>, transform_indices = @transform_14, window_bounds = array<i64: 1, 128>}, {pipeline_mode = #tpu.pipeline_mode<synchronous>, transform_indices = @transform_15, window_bounds = array<i64: 1, 128>}, {pipeline_mode = #tpu.pipeline_mode<synchronous>, transform_indices = @transform_16, window_bounds = array<i64: 2, 128>}]} {
    %c0 = arith.constant 0 : index
    %c0_0 = arith.constant 0 : index
    %c0_1 = arith.constant 0 : index
    %0 = vector.load %arg1[%c0, %c0_0, %c0_1] : memref<2x168x128xbf16, #tpu.memory_space<vmem>>, vector<1x168x128xbf16>
    %1 = vector.shape_cast %0 : vector<1x168x128xbf16> to vector<168x128xbf16>
    %c1 = arith.constant 1 : index
    %c0_2 = arith.constant 0 : index
    %c0_3 = arith.constant 0 : index
    %2 = vector.load %arg1[%c1, %c0_2, %c0_3] : memref<2x168x128xbf16, #tpu.memory_space<vmem>>, vector<1x168x128xbf16>
    %3 = vector.shape_cast %2 : vector<1x168x128xbf16> to vector<168x128xbf16>
    %4 = vector.extract_strided_slice %1 {offsets = [0, 0], sizes = [162, 128], strides = [1, 1]} : vector<168x128xbf16> to vector<162x128xbf16>
    %5 = vector.extract_strided_slice %1 {offsets = [1, 0], sizes = [162, 128], strides = [1, 1]} : vector<168x128xbf16> to vector<162x128xbf16>
    %6 = vector.extract_strided_slice %1 {offsets = [2, 0], sizes = [162, 128], strides = [1, 1]} : vector<168x128xbf16> to vector<162x128xbf16>
    %7 = vector.extract_strided_slice %1 {offsets = [3, 0], sizes = [162, 128], strides = [1, 1]} : vector<168x128xbf16> to vector<162x128xbf16>
    %8 = vector.extract_strided_slice %1 {offsets = [4, 0], sizes = [162, 128], strides = [1, 1]} : vector<168x128xbf16> to vector<162x128xbf16>
    %9 = vector.extract_strided_slice %1 {offsets = [5, 0], sizes = [162, 128], strides = [1, 1]} : vector<168x128xbf16> to vector<162x128xbf16>
    %10 = vector.extract_strided_slice %1 {offsets = [6, 0], sizes = [162, 128], strides = [1, 1]} : vector<168x128xbf16> to vector<162x128xbf16>
    %11 = tpu.concatenate %4, %5, %6, %7, %8, %9, %10 in 1 : vector<162x128xbf16>, vector<162x128xbf16>, vector<162x128xbf16>, vector<162x128xbf16>, vector<162x128xbf16>, vector<162x128xbf16>, vector<162x128xbf16> -> vector<162x896xbf16>
    %12 = vector.extract_strided_slice %3 {offsets = [0, 0], sizes = [162, 128], strides = [1, 1]} : vector<168x128xbf16> to vector<162x128xbf16>
    %13 = vector.extract_strided_slice %3 {offsets = [1, 0], sizes = [162, 128], strides = [1, 1]} : vector<168x128xbf16> to vector<162x128xbf16>
    %14 = vector.extract_strided_slice %3 {offsets = [2, 0], sizes = [162, 128], strides = [1, 1]} : vector<168x128xbf16> to vector<162x128xbf16>
    %15 = vector.extract_strided_slice %3 {offsets = [3, 0], sizes = [162, 128], strides = [1, 1]} : vector<168x128xbf16> to vector<162x128xbf16>
    %16 = vector.extract_strided_slice %3 {offsets = [4, 0], sizes = [162, 128], strides = [1, 1]} : vector<168x128xbf16> to vector<162x128xbf16>
    %17 = vector.extract_strided_slice %3 {offsets = [5, 0], sizes = [162, 128], strides = [1, 1]} : vector<168x128xbf16> to vector<162x128xbf16>
    %18 = vector.extract_strided_slice %3 {offsets = [6, 0], sizes = [162, 128], strides = [1, 1]} : vector<168x128xbf16> to vector<162x128xbf16>
    %19 = tpu.concatenate %12, %13, %14, %15, %16, %17, %18 in 1 : vector<162x128xbf16>, vector<162x128xbf16>, vector<162x128xbf16>, vector<162x128xbf16>, vector<162x128xbf16>, vector<162x128xbf16>, vector<162x128xbf16> -> vector<162x896xbf16>
    %20 = tpu.concatenate %11, %19 in 0 : vector<162x896xbf16>, vector<162x896xbf16> -> vector<324x896xbf16>
    %c0_4 = arith.constant 0 : index
    %c0_5 = arith.constant 0 : index
    %21 = vector.load %arg2[%c0_4, %c0_5] : memref<896x128xbf16, #tpu.memory_space<vmem>>, vector<896x128xbf16>
    %cst = arith.constant dense<0.000000e+00> : vector<324x128xf32>
    %22 = tpu.matmul %20, %21, %cst {dimension_numbers = #tpu.dot_dimension_numbers<[1], [0], [0], [1], [0, 0, 1, 1], [], []>} : vector<324x896xbf16>, vector<896x128xbf16>, vector<324x128xf32> -> vector<324x128xf32>
    %c0_6 = arith.constant 0 : index
    %c0_7 = arith.constant 0 : index
    %23 = vector.load %arg3[%c0_6, %c0_7] : memref<1x128xf32, #tpu.memory_space<vmem>>, vector<1x128xf32>
    %24 = vector.broadcast %23 : vector<1x128xf32> to vector<324x128xf32>
    %25 = arith.mulf %22, %24 : vector<324x128xf32>
    %c0_8 = arith.constant 0 : index
    %c0_9 = arith.constant 0 : index
    %26 = vector.load %arg4[%c0_8, %c0_9] : memref<1x128xf32, #tpu.memory_space<vmem>>, vector<1x128xf32>
    %27 = vector.broadcast %26 : vector<1x128xf32> to vector<324x128xf32>
    %28 = arith.addf %25, %27 : vector<324x128xf32>
    %cst_10 = arith.constant 0.000000e+00 : f32
    %29 = vector.broadcast %cst_10 : f32 to vector<324x128xf32>
    %30 = arith.maximumf %28, %29 : vector<324x128xf32>
    %31 = vector.extract_strided_slice %30 {offsets = [0, 0], sizes = [322, 128], strides = [1, 1]} : vector<324x128xf32> to vector<322x128xf32>
    %32 = vector.extract_strided_slice %30 {offsets = [1, 0], sizes = [322, 128], strides = [1, 1]} : vector<324x128xf32> to vector<322x128xf32>
    %33 = arith.maximumf %31, %32 : vector<322x128xf32>
    %34 = vector.extract_strided_slice %30 {offsets = [2, 0], sizes = [322, 128], strides = [1, 1]} : vector<324x128xf32> to vector<322x128xf32>
    %35 = arith.maximumf %33, %34 : vector<322x128xf32>
    %c0_11 = arith.constant 0 : index
    %c0_12 = arith.constant 0 : index
    %36 = vector.load %arg20[%c0_11, %c0_12] : memref<324x128xf32, #tpu.memory_space<vmem>>, vector<322x128xf32>
    tpu.vector_store %arg20[%c0_11, %c0_12], %35 {strides = array<i32>} : memref<324x128xf32, #tpu.memory_space<vmem>>, vector<322x128xf32>,
    %c0_13 = arith.constant 0 : index
    %c0_14 = arith.constant 0 : index
    %37 = tpu.strided_load %arg20[%c0_13, %c0_14] {strides = array<i32: 3, 1>} : memref<324x128xf32, #tpu.memory_space<vmem>>, vector<108x128xf32>
    %cst_15 = arith.constant 0.000000e+00 : f32
    %38 = vector.broadcast %cst_15 : f32 to vector<3x128xf32>
    %c0_16 = arith.constant 0 : index
    %c5 = arith.constant 5 : index
    %c0_17 = arith.constant 0 : index
    %39 = vector.load %arg18[%c0_16, %c5, %c0_17] : memref<2x70x128xf32, #tpu.memory_space<vmem>>, vector<1x3x128xf32>
    %40 = vector.shape_cast %39 : vector<1x3x128xf32> to vector<3x128xf32>
    %41 = vector.shape_cast %38 : vector<3x128xf32> to vector<1x3x128xf32>
    tpu.vector_store %arg18[%c0_16, %c5, %c0_17], %41 {strides = array<i32>} : memref<2x70x128xf32, #tpu.memory_space<vmem>>, vector<1x3x128xf32>,
    %c0_18 = arith.constant 0 : index
    %c62 = arith.constant 62 : index
    %c0_19 = arith.constant 0 : index
    %42 = vector.load %arg18[%c0_18, %c62, %c0_19] : memref<2x70x128xf32, #tpu.memory_space<vmem>>, vector<1x3x128xf32>
    %43 = vector.shape_cast %42 : vector<1x3x128xf32> to vector<3x128xf32>
    %44 = vector.shape_cast %38 : vector<3x128xf32> to vector<1x3x128xf32>
    tpu.vector_store %arg18[%c0_18, %c62, %c0_19], %44 {strides = array<i32>} : memref<2x70x128xf32, #tpu.memory_space<vmem>>, vector<1x3x128xf32>,
    %45 = vector.extract_strided_slice %37 {offsets = [0, 0], sizes = [54, 128], strides = [1, 1]} : vector<108x128xf32> to vector<54x128xf32>
    %c0_20 = arith.constant 0 : index
    %c8 = arith.constant 8 : index
    %c0_21 = arith.constant 0 : index
    %46 = vector.load %arg18[%c0_20, %c8, %c0_21] : memref<2x70x128xf32, #tpu.memory_space<vmem>>, vector<1x54x128xf32>
    %47 = vector.shape_cast %46 : vector<1x54x128xf32> to vector<54x128xf32>
    %48 = vector.shape_cast %45 : vector<54x128xf32> to vector<1x54x128xf32>
    tpu.vector_store %arg18[%c0_20, %c8, %c0_21], %48 {strides = array<i32>} : memref<2x70x128xf32, #tpu.memory_space<vmem>>, vector<1x54x128xf32>,
    %c1_22 = arith.constant 1 : index
    %c5_23 = arith.constant 5 : index
    %c0_24 = arith.constant 0 : index
    %49 = vector.load %arg18[%c1_22, %c5_23, %c0_24] : memref<2x70x128xf32, #tpu.memory_space<vmem>>, vector<1x3x128xf32>
    %50 = vector.shape_cast %49 : vector<1x3x128xf32> to vector<3x128xf32>
    %51 = vector.shape_cast %38 : vector<3x128xf32> to vector<1x3x128xf32>
    tpu.vector_store %arg18[%c1_22, %c5_23, %c0_24], %51 {strides = array<i32>} : memref<2x70x128xf32, #tpu.memory_space<vmem>>, vector<1x3x128xf32>,
    %c1_25 = arith.constant 1 : index
    %c62_26 = arith.constant 62 : index
    %c0_27 = arith.constant 0 : index
    %52 = vector.load %arg18[%c1_25, %c62_26, %c0_27] : memref<2x70x128xf32, #tpu.memory_space<vmem>>, vector<1x3x128xf32>
    %53 = vector.shape_cast %52 : vector<1x3x128xf32> to vector<3x128xf32>
    %54 = vector.shape_cast %38 : vector<3x128xf32> to vector<1x3x128xf32>
    tpu.vector_store %arg18[%c1_25, %c62_26, %c0_27], %54 {strides = array<i32>} : memref<2x70x128xf32, #tpu.memory_space<vmem>>, vector<1x3x128xf32>,
    %55 = vector.extract_strided_slice %37 {offsets = [54, 0], sizes = [54, 128], strides = [1, 1]} : vector<108x128xf32> to vector<54x128xf32>
    %c1_28 = arith.constant 1 : index
    %c8_29 = arith.constant 8 : index
    %c0_30 = arith.constant 0 : index
    %56 = vector.load %arg18[%c1_28, %c8_29, %c0_30] : memref<2x70x128xf32, #tpu.memory_space<vmem>>, vector<1x54x128xf32>
    %57 = vector.shape_cast %56 : vector<1x54x128xf32> to vector<54x128xf32>
    %58 = vector.shape_cast %55 : vector<54x128xf32> to vector<1x54x128xf32>
    tpu.vector_store %arg18[%c1_28, %c8_29, %c0_30], %58 {strides = array<i32>} : memref<2x70x128xf32, #tpu.memory_space<vmem>>, vector<1x54x128xf32>,
    %c0_31 = arith.constant 0 : index
    %c5_32 = arith.constant 5 : index
    %c0_33 = arith.constant 0 : index
    %59 = vector.load %arg18[%c0_31, %c5_32, %c0_33] : memref<2x70x128xf32, #tpu.memory_space<vmem>>, vector<1x60x128xf32>
    %60 = vector.shape_cast %59 : vector<1x60x128xf32> to vector<60x128xf32>
    %61 = arith.truncf %60 : vector<60x128xf32> to vector<60x128xbf16>
    %c1_34 = arith.constant 1 : index
    %c5_35 = arith.constant 5 : index
    %c0_36 = arith.constant 0 : index
    %62 = vector.load %arg18[%c1_34, %c5_35, %c0_36] : memref<2x70x128xf32, #tpu.memory_space<vmem>>, vector<1x60x128xf32>
    %63 = vector.shape_cast %62 : vector<1x60x128xf32> to vector<60x128xf32>
    %64 = arith.truncf %63 : vector<60x128xf32> to vector<60x128xbf16>
    %65 = vector.extract_strided_slice %61 {offsets = [0, 0], sizes = [54, 128], strides = [1, 1]} : vector<60x128xbf16> to vector<54x128xbf16>
    %66 = vector.extract_strided_slice %61 {offsets = [1, 0], sizes = [54, 128], strides = [1, 1]} : vector<60x128xbf16> to vector<54x128xbf16>
    %67 = vector.extract_strided_slice %61 {offsets = [2, 0], sizes = [54, 128], strides = [1, 1]} : vector<60x128xbf16> to vector<54x128xbf16>
    %68 = vector.extract_strided_slice %61 {offsets = [3, 0], sizes = [54, 128], strides = [1, 1]} : vector<60x128xbf16> to vector<54x128xbf16>
    %69 = vector.extract_strided_slice %61 {offsets = [4, 0], sizes = [54, 128], strides = [1, 1]} : vector<60x128xbf16> to vector<54x128xbf16>
    %70 = vector.extract_strided_slice %61 {offsets = [5, 0], sizes = [54, 128], strides = [1, 1]} : vector<60x128xbf16> to vector<54x128xbf16>
    %71 = vector.extract_strided_slice %61 {offsets = [6, 0], sizes = [54, 128], strides = [1, 1]} : vector<60x128xbf16> to vector<54x128xbf16>
    %72 = tpu.concatenate %65, %66, %67, %68, %69, %70, %71 in 1 : vector<54x128xbf16>, vector<54x128xbf16>, vector<54x128xbf16>, vector<54x128xbf16>, vector<54x128xbf16>, vector<54x128xbf16>, vector<54x128xbf16> -> vector<54x896xbf16>
    %73 = vector.extract_strided_slice %64 {offsets = [0, 0], sizes = [54, 128], strides = [1, 1]} : vector<60x128xbf16> to vector<54x128xbf16>
    %74 = vector.extract_strided_slice %64 {offsets = [1, 0], sizes = [54, 128], strides = [1, 1]} : vector<60x128xbf16> to vector<54x128xbf16>
    %75 = vector.extract_strided_slice %64 {offsets = [2, 0], sizes = [54, 128], strides = [1, 1]} : vector<60x128xbf16> to vector<54x128xbf16>
    %76 = vector.extract_strided_slice %64 {offsets = [3, 0], sizes = [54, 128], strides = [1, 1]} : vector<60x128xbf16> to vector<54x128xbf16>
    %77 = vector.extract_strided_slice %64 {offsets = [4, 0], sizes = [54, 128], strides = [1, 1]} : vector<60x128xbf16> to vector<54x128xbf16>
    %78 = vector.extract_strided_slice %64 {offsets = [5, 0], sizes = [54, 128], strides = [1, 1]} : vector<60x128xbf16> to vector<54x128xbf16>
    %79 = vector.extract_strided_slice %64 {offsets = [6, 0], sizes = [54, 128], strides = [1, 1]} : vector<60x128xbf16> to vector<54x128xbf16>
    %80 = tpu.concatenate %73, %74, %75, %76, %77, %78, %79 in 1 : vector<54x128xbf16>, vector<54x128xbf16>, vector<54x128xbf16>, vector<54x128xbf16>, vector<54x128xbf16>, vector<54x128xbf16>, vector<54x128xbf16> -> vector<54x896xbf16>
    %81 = tpu.concatenate %72, %80 in 0 : vector<54x896xbf16>, vector<54x896xbf16> -> vector<108x896xbf16>
    %c0_37 = arith.constant 0 : index
    %c0_38 = arith.constant 0 : index
    %82 = vector.load %arg5[%c0_37, %c0_38] : memref<896x128xbf16, #tpu.memory_space<vmem>>, vector<896x128xbf16>
    %cst_39 = arith.constant dense<0.000000e+00> : vector<108x128xf32>
    %83 = tpu.matmul %81, %82, %cst_39 {dimension_numbers = #tpu.dot_dimension_numbers<[1], [0], [0], [1], [0, 0, 1, 1], [], []>} : vector<108x896xbf16>, vector<896x128xbf16>, vector<108x128xf32> -> vector<108x128xf32>
    %c0_40 = arith.constant 0 : index
    %c0_41 = arith.constant 0 : index
    %84 = vector.load %arg6[%c0_40, %c0_41] : memref<1x128xf32, #tpu.memory_space<vmem>>, vector<1x128xf32>
    %85 = vector.broadcast %84 : vector<1x128xf32> to vector<108x128xf32>
    %86 = arith.mulf %83, %85 : vector<108x128xf32>
    %c0_42 = arith.constant 0 : index
    %c0_43 = arith.constant 0 : index
    %87 = vector.load %arg7[%c0_42, %c0_43] : memref<1x128xf32, #tpu.memory_space<vmem>>, vector<1x128xf32>
    %88 = vector.broadcast %87 : vector<1x128xf32> to vector<108x128xf32>
    %89 = arith.addf %86, %88 : vector<108x128xf32>
    %cst_44 = arith.constant 0.000000e+00 : f32
    %90 = vector.broadcast %cst_44 : f32 to vector<108x128xf32>
    %91 = arith.maximumf %89, %90 : vector<108x128xf32>
    %92 = vector.extract_strided_slice %91 {offsets = [0, 0], sizes = [106, 128], strides = [1, 1]} : vector<108x128xf32> to vector<106x128xf32>
    %93 = vector.extract_strided_slice %91 {offsets = [1, 0], sizes = [106, 128], strides = [1, 1]} : vector<108x128xf32> to vector<106x128xf32>
    %94 = arith.maximumf %92, %93 : vector<106x128xf32>
    %95 = vector.extract_strided_slice %91 {offsets = [2, 0], sizes = [106, 128], strides = [1, 1]} : vector<108x128xf32> to vector<106x128xf32>
    %96 = arith.maximumf %94, %95 : vector<106x128xf32>
    %c0_45 = arith.constant 0 : index
    %c0_46 = arith.constant 0 : index
    %97 = vector.load %arg20[%c0_45, %c0_46] : memref<324x128xf32, #tpu.memory_space<vmem>>, vector<106x128xf32>
    tpu.vector_store %arg20[%c0_45, %c0_46], %96 {strides = array<i32>} : memref<324x128xf32, #tpu.memory_space<vmem>>, vector<106x128xf32>,
    %c0_47 = arith.constant 0 : index
    %c0_48 = arith.constant 0 : index
    %98 = tpu.strided_load %arg20[%c0_47, %c0_48] {strides = array<i32: 3, 1>} : memref<324x128xf32, #tpu.memory_space<vmem>>, vector<36x128xf32>
    %c0_49 = arith.constant 0 : index
    %c5_50 = arith.constant 5 : index
    %c0_51 = arith.constant 0 : index
    %99 = vector.load %arg19[%c0_49, %c5_50, %c0_51] : memref<2x34x128xf32, #tpu.memory_space<vmem>>, vector<1x3x128xf32>
    %100 = vector.shape_cast %99 : vector<1x3x128xf32> to vector<3x128xf32>
    %101 = vector.shape_cast %38 : vector<3x128xf32> to vector<1x3x128xf32>
    tpu.vector_store %arg19[%c0_49, %c5_50, %c0_51], %101 {strides = array<i32>} : memref<2x34x128xf32, #tpu.memory_space<vmem>>, vector<1x3x128xf32>,
    %c0_52 = arith.constant 0 : index
    %c26 = arith.constant 26 : index
    %c0_53 = arith.constant 0 : index
    %102 = vector.load %arg19[%c0_52, %c26, %c0_53] : memref<2x34x128xf32, #tpu.memory_space<vmem>>, vector<1x3x128xf32>
    %103 = vector.shape_cast %102 : vector<1x3x128xf32> to vector<3x128xf32>
    %104 = vector.shape_cast %38 : vector<3x128xf32> to vector<1x3x128xf32>
    tpu.vector_store %arg19[%c0_52, %c26, %c0_53], %104 {strides = array<i32>} : memref<2x34x128xf32, #tpu.memory_space<vmem>>, vector<1x3x128xf32>,
    %105 = vector.extract_strided_slice %98 {offsets = [0, 0], sizes = [18, 128], strides = [1, 1]} : vector<36x128xf32> to vector<18x128xf32>
    %c0_54 = arith.constant 0 : index
    %c8_55 = arith.constant 8 : index
    %c0_56 = arith.constant 0 : index
    %106 = vector.load %arg19[%c0_54, %c8_55, %c0_56] : memref<2x34x128xf32, #tpu.memory_space<vmem>>, vector<1x18x128xf32>
    %107 = vector.shape_cast %106 : vector<1x18x128xf32> to vector<18x128xf32>
    %108 = vector.shape_cast %105 : vector<18x128xf32> to vector<1x18x128xf32>
    tpu.vector_store %arg19[%c0_54, %c8_55, %c0_56], %108 {strides = array<i32>} : memref<2x34x128xf32, #tpu.memory_space<vmem>>, vector<1x18x128xf32>,
    %c1_57 = arith.constant 1 : index
    %c5_58 = arith.constant 5 : index
    %c0_59 = arith.constant 0 : index
    %109 = vector.load %arg19[%c1_57, %c5_58, %c0_59] : memref<2x34x128xf32, #tpu.memory_space<vmem>>, vector<1x3x128xf32>
    %110 = vector.shape_cast %109 : vector<1x3x128xf32> to vector<3x128xf32>
    %111 = vector.shape_cast %38 : vector<3x128xf32> to vector<1x3x128xf32>
    tpu.vector_store %arg19[%c1_57, %c5_58, %c0_59], %111 {strides = array<i32>} : memref<2x34x128xf32, #tpu.memory_space<vmem>>, vector<1x3x128xf32>,
    %c1_60 = arith.constant 1 : index
    %c26_61 = arith.constant 26 : index
    %c0_62 = arith.constant 0 : index
    %112 = vector.load %arg19[%c1_60, %c26_61, %c0_62] : memref<2x34x128xf32, #tpu.memory_space<vmem>>, vector<1x3x128xf32>
    %113 = vector.shape_cast %112 : vector<1x3x128xf32> to vector<3x128xf32>
    %114 = vector.shape_cast %38 : vector<3x128xf32> to vector<1x3x128xf32>
    tpu.vector_store %arg19[%c1_60, %c26_61, %c0_62], %114 {strides = array<i32>} : memref<2x34x128xf32, #tpu.memory_space<vmem>>, vector<1x3x128xf32>,
    %115 = vector.extract_strided_slice %98 {offsets = [18, 0], sizes = [18, 128], strides = [1, 1]} : vector<36x128xf32> to vector<18x128xf32>
    %c1_63 = arith.constant 1 : index
    %c8_64 = arith.constant 8 : index
    %c0_65 = arith.constant 0 : index
    %116 = vector.load %arg19[%c1_63, %c8_64, %c0_65] : memref<2x34x128xf32, #tpu.memory_space<vmem>>, vector<1x18x128xf32>
    %117 = vector.shape_cast %116 : vector<1x18x128xf32> to vector<18x128xf32>
    %118 = vector.shape_cast %115 : vector<18x128xf32> to vector<1x18x128xf32>
    tpu.vector_store %arg19[%c1_63, %c8_64, %c0_65], %118 {strides = array<i32>} : memref<2x34x128xf32, #tpu.memory_space<vmem>>, vector<1x18x128xf32>,
    %c0_66 = arith.constant 0 : index
    %c5_67 = arith.constant 5 : index
    %c0_68 = arith.constant 0 : index
    %119 = vector.load %arg19[%c0_66, %c5_67, %c0_68] : memref<2x34x128xf32, #tpu.memory_space<vmem>>, vector<1x24x128xf32>
    %120 = vector.shape_cast %119 : vector<1x24x128xf32> to vector<24x128xf32>
    %121 = arith.truncf %120 : vector<24x128xf32> to vector<24x128xbf16>
    %c1_69 = arith.constant 1 : index
    %c5_70 = arith.constant 5 : index
    %c0_71 = arith.constant 0 : index
    %122 = vector.load %arg19[%c1_69, %c5_70, %c0_71] : memref<2x34x128xf32, #tpu.memory_space<vmem>>, vector<1x24x128xf32>
    %123 = vector.shape_cast %122 : vector<1x24x128xf32> to vector<24x128xf32>
    %124 = arith.truncf %123 : vector<24x128xf32> to vector<24x128xbf16>
    %125 = vector.extract_strided_slice %121 {offsets = [0, 0], sizes = [18, 128], strides = [1, 1]} : vector<24x128xbf16> to vector<18x128xbf16>
    %126 = vector.extract_strided_slice %121 {offsets = [1, 0], sizes = [18, 128], strides = [1, 1]} : vector<24x128xbf16> to vector<18x128xbf16>
    %127 = vector.extract_strided_slice %121 {offsets = [2, 0], sizes = [18, 128], strides = [1, 1]} : vector<24x128xbf16> to vector<18x128xbf16>
    %128 = vector.extract_strided_slice %121 {offsets = [3, 0], sizes = [18, 128], strides = [1, 1]} : vector<24x128xbf16> to vector<18x128xbf16>
    %129 = vector.extract_strided_slice %121 {offsets = [4, 0], sizes = [18, 128], strides = [1, 1]} : vector<24x128xbf16> to vector<18x128xbf16>
    %130 = vector.extract_strided_slice %121 {offsets = [5, 0], sizes = [18, 128], strides = [1, 1]} : vector<24x128xbf16> to vector<18x128xbf16>
    %131 = vector.extract_strided_slice %121 {offsets = [6, 0], sizes = [18, 128], strides = [1, 1]} : vector<24x128xbf16> to vector<18x128xbf16>
    %132 = tpu.concatenate %125, %126, %127, %128, %129, %130, %131 in 1 : vector<18x128xbf16>, vector<18x128xbf16>, vector<18x128xbf16>, vector<18x128xbf16>, vector<18x128xbf16>, vector<18x128xbf16>, vector<18x128xbf16> -> vector<18x896xbf16>
    %133 = vector.extract_strided_slice %124 {offsets = [0, 0], sizes = [18, 128], strides = [1, 1]} : vector<24x128xbf16> to vector<18x128xbf16>
    %134 = vector.extract_strided_slice %124 {offsets = [1, 0], sizes = [18, 128], strides = [1, 1]} : vector<24x128xbf16> to vector<18x128xbf16>
    %135 = vector.extract_strided_slice %124 {offsets = [2, 0], sizes = [18, 128], strides = [1, 1]} : vector<24x128xbf16> to vector<18x128xbf16>
    %136 = vector.extract_strided_slice %124 {offsets = [3, 0], sizes = [18, 128], strides = [1, 1]} : vector<24x128xbf16> to vector<18x128xbf16>
    %137 = vector.extract_strided_slice %124 {offsets = [4, 0], sizes = [18, 128], strides = [1, 1]} : vector<24x128xbf16> to vector<18x128xbf16>
    %138 = vector.extract_strided_slice %124 {offsets = [5, 0], sizes = [18, 128], strides = [1, 1]} : vector<24x128xbf16> to vector<18x128xbf16>
    %139 = vector.extract_strided_slice %124 {offsets = [6, 0], sizes = [18, 128], strides = [1, 1]} : vector<24x128xbf16> to vector<18x128xbf16>
    %140 = tpu.concatenate %133, %134, %135, %136, %137, %138, %139 in 1 : vector<18x128xbf16>, vector<18x128xbf16>, vector<18x128xbf16>, vector<18x128xbf16>, vector<18x128xbf16>, vector<18x128xbf16>, vector<18x128xbf16> -> vector<18x896xbf16>
    %141 = tpu.concatenate %132, %140 in 0 : vector<18x896xbf16>, vector<18x896xbf16> -> vector<36x896xbf16>
    %c0_72 = arith.constant 0 : index
    %c0_73 = arith.constant 0 : index
    %142 = vector.load %arg8[%c0_72, %c0_73] : memref<896x128xbf16, #tpu.memory_space<vmem>>, vector<896x128xbf16>
    %cst_74 = arith.constant dense<0.000000e+00> : vector<36x128xf32>
    %143 = tpu.matmul %141, %142, %cst_74 {dimension_numbers = #tpu.dot_dimension_numbers<[1], [0], [0], [1], [0, 0, 1, 1], [], []>} : vector<36x896xbf16>, vector<896x128xbf16>, vector<36x128xf32> -> vector<36x128xf32>
    %c0_75 = arith.constant 0 : index
    %c0_76 = arith.constant 0 : index
    %144 = vector.load %arg9[%c0_75, %c0_76] : memref<1x128xf32, #tpu.memory_space<vmem>>, vector<1x128xf32>
    %145 = vector.broadcast %144 : vector<1x128xf32> to vector<36x128xf32>
    %146 = arith.mulf %143, %145 : vector<36x128xf32>
    %c0_77 = arith.constant 0 : index
    %c0_78 = arith.constant 0 : index
    %147 = vector.load %arg10[%c0_77, %c0_78] : memref<1x128xf32, #tpu.memory_space<vmem>>, vector<1x128xf32>
    %148 = vector.broadcast %147 : vector<1x128xf32> to vector<36x128xf32>
    %149 = arith.addf %146, %148 : vector<36x128xf32>
    %cst_79 = arith.constant 0.000000e+00 : f32
    %150 = vector.broadcast %cst_79 : f32 to vector<36x128xf32>
    %151 = arith.maximumf %149, %150 : vector<36x128xf32>
    %152 = vector.extract_strided_slice %151 {offsets = [0, 0], sizes = [34, 128], strides = [1, 1]} : vector<36x128xf32> to vector<34x128xf32>
    %153 = vector.extract_strided_slice %151 {offsets = [1, 0], sizes = [34, 128], strides = [1, 1]} : vector<36x128xf32> to vector<34x128xf32>
    %154 = arith.maximumf %152, %153 : vector<34x128xf32>
    %155 = vector.extract_strided_slice %151 {offsets = [2, 0], sizes = [34, 128], strides = [1, 1]} : vector<36x128xf32> to vector<34x128xf32>
    %156 = arith.maximumf %154, %155 : vector<34x128xf32>
    %c0_80 = arith.constant 0 : index
    %c0_81 = arith.constant 0 : index
    %157 = vector.load %arg20[%c0_80, %c0_81] : memref<324x128xf32, #tpu.memory_space<vmem>>, vector<34x128xf32>
    tpu.vector_store %arg20[%c0_80, %c0_81], %156 {strides = array<i32>} : memref<324x128xf32, #tpu.memory_space<vmem>>, vector<34x128xf32>,
    %c0_82 = arith.constant 0 : index
    %c0_83 = arith.constant 0 : index
    %158 = tpu.strided_load %arg20[%c0_82, %c0_83] {strides = array<i32: 3, 1>} : memref<324x128xf32, #tpu.memory_space<vmem>>, vector<12x128xf32>
    %159 = vector.extract_strided_slice %158 {offsets = [0, 0], sizes = [1, 128], strides = [1, 1]} : vector<12x128xf32> to vector<1x128xf32>
    %160 = vector.extract_strided_slice %158 {offsets = [1, 0], sizes = [1, 128], strides = [1, 1]} : vector<12x128xf32> to vector<1x128xf32>
    %161 = vector.extract_strided_slice %158 {offsets = [2, 0], sizes = [1, 128], strides = [1, 1]} : vector<12x128xf32> to vector<1x128xf32>
    %162 = vector.extract_strided_slice %158 {offsets = [3, 0], sizes = [1, 128], strides = [1, 1]} : vector<12x128xf32> to vector<1x128xf32>
    %163 = vector.extract_strided_slice %158 {offsets = [4, 0], sizes = [1, 128], strides = [1, 1]} : vector<12x128xf32> to vector<1x128xf32>
    %164 = vector.extract_strided_slice %158 {offsets = [5, 0], sizes = [1, 128], strides = [1, 1]} : vector<12x128xf32> to vector<1x128xf32>
    %165 = tpu.concatenate %159, %160, %161, %162, %163, %164 in 1 : vector<1x128xf32>, vector<1x128xf32>, vector<1x128xf32>, vector<1x128xf32>, vector<1x128xf32>, vector<1x128xf32> -> vector<1x768xf32>
    %166 = vector.extract_strided_slice %158 {offsets = [6, 0], sizes = [1, 128], strides = [1, 1]} : vector<12x128xf32> to vector<1x128xf32>
    %167 = vector.extract_strided_slice %158 {offsets = [7, 0], sizes = [1, 128], strides = [1, 1]} : vector<12x128xf32> to vector<1x128xf32>
    %168 = vector.extract_strided_slice %158 {offsets = [8, 0], sizes = [1, 128], strides = [1, 1]} : vector<12x128xf32> to vector<1x128xf32>
    %169 = vector.extract_strided_slice %158 {offsets = [9, 0], sizes = [1, 128], strides = [1, 1]} : vector<12x128xf32> to vector<1x128xf32>
    %170 = vector.extract_strided_slice %158 {offsets = [10, 0], sizes = [1, 128], strides = [1, 1]} : vector<12x128xf32> to vector<1x128xf32>
    %171 = vector.extract_strided_slice %158 {offsets = [11, 0], sizes = [1, 128], strides = [1, 1]} : vector<12x128xf32> to vector<1x128xf32>
    %172 = tpu.concatenate %166, %167, %168, %169, %170, %171 in 1 : vector<1x128xf32>, vector<1x128xf32>, vector<1x128xf32>, vector<1x128xf32>, vector<1x128xf32>, vector<1x128xf32> -> vector<1x768xf32>
    %173 = tpu.concatenate %165, %172 in 0 : vector<1x768xf32>, vector<1x768xf32> -> vector<2x768xf32>
    %174 = arith.truncf %173 : vector<2x768xf32> to vector<2x768xbf16>
    %c0_84 = arith.constant 0 : index
    %c0_85 = arith.constant 0 : index
    %175 = vector.load %arg11[%c0_84, %c0_85] : memref<768x512xbf16, #tpu.memory_space<vmem>>, vector<768x512xbf16>
    %cst_86 = arith.constant dense<0.000000e+00> : vector<2x512xf32>
    %176 = tpu.matmul %174, %175, %cst_86 {dimension_numbers = #tpu.dot_dimension_numbers<[1], [0], [0], [1], [0, 0, 1, 1], [], []>} : vector<2x768xbf16>, vector<768x512xbf16>, vector<2x512xf32> -> vector<2x512xf32>
    %c0_87 = arith.constant 0 : index
    %c0_88 = arith.constant 0 : index
    %177 = vector.load %arg12[%c0_87, %c0_88] : memref<1x512xf32, #tpu.memory_space<vmem>>, vector<1x512xf32>
    %178 = vector.broadcast %177 : vector<1x512xf32> to vector<2x512xf32>
    %179 = arith.mulf %176, %178 : vector<2x512xf32>
    %c0_89 = arith.constant 0 : index
    %c0_90 = arith.constant 0 : index
    %180 = vector.load %arg13[%c0_89, %c0_90] : memref<1x512xf32, #tpu.memory_space<vmem>>, vector<1x512xf32>
    %181 = vector.broadcast %180 : vector<1x512xf32> to vector<2x512xf32>
    %182 = arith.addf %179, %181 : vector<2x512xf32>
    %cst_91 = arith.constant 0.000000e+00 : f32
    %183 = vector.broadcast %cst_91 : f32 to vector<2x512xf32>
    %184 = arith.maximumf %182, %183 : vector<2x512xf32>
    %185 = arith.truncf %184 : vector<2x512xf32> to vector<2x512xbf16>
    %c0_92 = arith.constant 0 : index
    %c0_93 = arith.constant 0 : index
    %186 = vector.load %arg14[%c0_92, %c0_93] : memref<512x128xbf16, #tpu.memory_space<vmem>>, vector<512x128xbf16>
    %cst_94 = arith.constant dense<0.000000e+00> : vector<2x128xf32>
    %187 = tpu.matmul %185, %186, %cst_94 {dimension_numbers = #tpu.dot_dimension_numbers<[1], [0], [0], [1], [0, 0, 1, 1], [], []>} : vector<2x512xbf16>, vector<512x128xbf16>, vector<2x128xf32> -> vector<2x128xf32>
    %c0_95 = arith.constant 0 : index
    %c0_96 = arith.constant 0 : index
    %188 = vector.load %arg15[%c0_95, %c0_96] : memref<1x128xf32, #tpu.memory_space<vmem>>, vector<1x128xf32>
    %189 = vector.broadcast %188 : vector<1x128xf32> to vector<2x128xf32>
    %190 = arith.mulf %187, %189 : vector<2x128xf32>
    %c0_97 = arith.constant 0 : index
    %c0_98 = arith.constant 0 : index
    %191 = vector.load %arg16[%c0_97, %c0_98] : memref<1x128xf32, #tpu.memory_space<vmem>>, vector<1x128xf32>
    %192 = vector.broadcast %191 : vector<1x128xf32> to vector<2x128xf32>
    %193 = arith.addf %190, %192 : vector<2x128xf32>
    %c0_99 = arith.constant 0 : index
    %c0_100 = arith.constant 0 : index
    %194 = vector.load %arg17[%c0_99, %c0_100] : memref<2x128xf32, #tpu.memory_space<vmem>>, vector<2x128xf32>
    tpu.vector_store %arg17[%c0_99, %c0_100], %193 {strides = array<i32>} : memref<2x128xf32, #tpu.memory_space<vmem>>, vector<2x128xf32>,
    return
  }
  func.func @transform_0(%arg0: i32) -> (i32, i32, i32) {
    %c0_i32 = arith.constant 0 : i32
    %c0_i32_0 = arith.constant 0 : i32
    %c0_i32_1 = arith.constant 0 : i32
    %c0_i32_2 = arith.constant 0 : i32
    return %c0_i32, %c0_i32_0, %c0_i32_1 : i32, i32, i32
  }
  func.func @transform_1(%arg0: i32) -> (i32, i32) {
    %c0_i32 = arith.constant 0 : i32
    %c0_i32_0 = arith.constant 0 : i32
    %c0_i32_1 = arith.constant 0 : i32
    return %c0_i32, %c0_i32_0 : i32, i32
  }
  func.func @transform_2(%arg0: i32) -> (i32, i32) {
    %c0_i32 = arith.constant 0 : i32
    %c0_i32_0 = arith.constant 0 : i32
    %c0_i32_1 = arith.constant 0 : i32
    return %c0_i32, %c0_i32_0 : i32, i32
  }
  func.func @transform_3(%arg0: i32) -> (i32, i32) {
    %c0_i32 = arith.constant 0 : i32
    %c0_i32_0 = arith.constant 0 : i32
    %c0_i32_1 = arith.constant 0 : i32
    return %c0_i32, %c0_i32_0 : i32, i32
  }
  func.func @transform_4(%arg0: i32) -> (i32, i32) {
    %c0_i32 = arith.constant 0 : i32
    %c0_i32_0 = arith.constant 0 : i32
    %c0_i32_1 = arith.constant 0 : i32
    return %c0_i32, %c0_i32_0 : i32, i32
  }
  func.func @transform_5(%arg0: i32) -> (i32, i32) {
    %c0_i32 = arith.constant 0 : i32
    %c0_i32_0 = arith.constant 0 : i32
    %c0_i32_1 = arith.constant 0 : i32
    return %c0_i32, %c0_i32_0 : i32, i32
  }
  func.func @transform_6(%arg0: i32) -> (i32, i32) {
    %c0_i32 = arith.constant 0 : i32
    %c0_i32_0 = arith.constant 0 : i32
    %c0_i32_1 = arith.constant 0 : i32
    return %c0_i32, %c0_i32_0 : i32, i32
  }
  func.func @transform_7(%arg0: i32) -> (i32, i32) {
    %c0_i32 = arith.constant 0 : i32
    %c0_i32_0 = arith.constant 0 : i32
    %c0_i32_1 = arith.constant 0 : i32
    return %c0_i32, %c0_i32_0 : i32, i32
  }
  func.func @transform_8(%arg0: i32) -> (i32, i32) {
    %c0_i32 = arith.constant 0 : i32
    %c0_i32_0 = arith.constant 0 : i32
    %c0_i32_1 = arith.constant 0 : i32
    return %c0_i32, %c0_i32_0 : i32, i32
  }
  func.func @transform_9(%arg0: i32) -> (i32, i32) {
    %c0_i32 = arith.constant 0 : i32
    %c0_i32_0 = arith.constant 0 : i32
    %c0_i32_1 = arith.constant 0 : i32
    return %c0_i32, %c0_i32_0 : i32, i32
  }
  func.func @transform_10(%arg0: i32) -> (i32, i32) {
    %c0_i32 = arith.constant 0 : i32
    %c0_i32_0 = arith.constant 0 : i32
    %c0_i32_1 = arith.constant 0 : i32
    return %c0_i32, %c0_i32_0 : i32, i32
  }
  func.func @transform_11(%arg0: i32) -> (i32, i32) {
    %c0_i32 = arith.constant 0 : i32
    %c0_i32_0 = arith.constant 0 : i32
    %c0_i32_1 = arith.constant 0 : i32
    return %c0_i32, %c0_i32_0 : i32, i32
  }
  func.func @transform_12(%arg0: i32) -> (i32, i32) {
    %c0_i32 = arith.constant 0 : i32
    %c0_i32_0 = arith.constant 0 : i32
    %c0_i32_1 = arith.constant 0 : i32
    return %c0_i32, %c0_i32_0 : i32, i32
  }
  func.func @transform_13(%arg0: i32) -> (i32, i32) {
    %c0_i32 = arith.constant 0 : i32
    %c0_i32_0 = arith.constant 0 : i32
    %c0_i32_1 = arith.constant 0 : i32
    return %c0_i32, %c0_i32_0 : i32, i32
  }
  func.func @transform_14(%arg0: i32) -> (i32, i32) {
    %c0_i32 = arith.constant 0 : i32
    %c0_i32_0 = arith.constant 0 : i32
    %c0_i32_1 = arith.constant 0 : i32
    return %c0_i32, %c0_i32_0 : i32, i32
  }
  func.func @transform_15(%arg0: i32) -> (i32, i32) {
    %c0_i32 = arith.constant 0 : i32
    %c0_i32_0 = arith.constant 0 : i32
    %c0_i32_1 = arith.constant 0 : i32
    return %c0_i32, %c0_i32_0 : i32, i32
  }
  func.func @transform_16(%arg0: i32) -> (i32, i32) {
    %c0_i32 = arith.constant 0 : i32
    %c0_i32_0 = arith.constant 0 : i32
    %c0_i32_1 = arith.constant 0 : i32
    return %c0_i32, %c0_i32_0 : i32, i32
  }
}

</mosaic_0001>

<llo_original>
// kernel: drug_conv_1d_forward.1
$region0: #{drug_conv_1d_forward.1}
  #allocation0 [shape = 'u32[]', space=smem, size = 0x4, offset = 0x4, fixed_abs, tag = 'smem constant byte address 0x4 - core index']
  #allocation1 [shape = 'u32[144,128]{1,0:T(1,128)}', space=vmem, size = 0x12000, scoped, tag = 'internal scratch']
  #allocation2 [shape = 'f32[2,70,128]{2,1,0:T(8,128)}', space=vmem, size = 0x12000, scoped, tag = 'scratch operand']
  #allocation3 [shape = 'f32[2,34,128]{2,1,0:T(8,128)}', space=vmem, size = 0xa000, scoped, tag = 'scratch operand']
  #allocation4 [shape = 'f32[324,128]{1,0:T(8,128)}', space=vmem, size = 0x29000, scoped, tag = 'scratch operand']
  %s0 = inlined_call_operand.vmem [shape: bf16[2,168,128], index: 0, kind: input, shape index: {}]
  %s1 = inlined_call_operand.vmem [shape: bf16[896,128], index: 1, kind: input, shape index: {}]
  %s2 = inlined_call_operand.vmem [shape: f32[1,128], index: 2, kind: input, shape index: {}]
  %s3 = inlined_call_operand.vmem [shape: f32[1,128], index: 3, kind: input, shape index: {}]
  %s4 = inlined_call_operand.hbm [shape: bf16[896,128], index: 4, kind: input, shape index: {}]
  %s5 = inlined_call_operand.vmem [shape: f32[1,128], index: 5, kind: input, shape index: {}]
  %s6 = inlined_call_operand.vmem [shape: f32[1,128], index: 6, kind: input, shape index: {}]
  %s7 = inlined_call_operand.hbm [shape: bf16[896,128], index: 7, kind: input, shape index: {}]
  %s8 = inlined_call_operand.vmem [shape: f32[1,128], index: 8, kind: input, shape index: {}]
  %s9 = inlined_call_operand.vmem [shape: f32[1,128], index: 9, kind: input, shape index: {}]
  %s10 = inlined_call_operand.hbm [shape: bf16[768,512], index: 10, kind: input, shape index: {}]
  %s11 = inlined_call_operand.vmem [shape: f32[1,512], index: 11, kind: input, shape index: {}]
  %s12 = inlined_call_operand.vmem [shape: f32[1,512], index: 12, kind: input, shape index: {}]
  %s13 = inlined_call_operand.vmem [shape: bf16[512,128], index: 13, kind: input, shape index: {}]
  %s14 = inlined_call_operand.vmem [shape: f32[1,128], index: 14, kind: input, shape index: {}]
  %s15 = inlined_call_operand.vmem [shape: f32[1,128], index: 15, kind: input, shape index: {}]
  %s16 = inlined_call_operand.hbm [shape: f32[2,128], index: 16, kind: output, shape index: {}]
  %s17 = sld [smem:[#allocation0]]
  $region86: #{drug_conv_1d_forward.1} parent=0
    _
  %s19 = ssub.s32 1, %s17
  %s20 = scalar_select 0, %s19, %s17
  $region1: #{drug_conv_1d_forward.1} parent=0
    #allocation5 [shape = 'u8[229376]{0}', space=vmem, size = 0x38000, scoped, tag = 'input window, operand 4, single buffered']
    #allocation6 [shape = 's32[1]{0}', space=sflag, size = 0x4, scoped, tag = 'scoped memory for drug_conv_1d_forward.1']
    #allocation7 [shape = 's32[1]{0}', space=sflag, size = 0x4, scoped, tag = 'scoped memory for drug_conv_1d_forward.1']
    #allocation8 [shape = 'u8[229376]{0}', space=vmem, size = 0x38000, scoped, tag = 'input window, operand 7, single buffered']
    #allocation9 [shape = 's32[1]{0}', space=sflag, size = 0x4, scoped, tag = 'scoped memory for drug_conv_1d_forward.1']
    #allocation10 [shape = 'u8[786432]{0}', space=vmem, size = 0xc0000, scoped, tag = 'input window, operand 10, single buffered']
    #allocation11 [shape = 'u8[1024]{0}', space=vmem, size = 0x400, scoped, tag = 'output window, operand 0, single buffered']
    %21 = vsyncpa [#allocation6], 0
    %22 = vsyncpa [#allocation9], 0
    %23 = vsyncpa [#allocation7], 0
    // Predicated region
    $region2: #{drug_conv_1d_forward.1} parent=1 // pred_check
      _
    $region3: #{drug_conv_1d_forward.1} parent=1 // pred_check_branch
      %25 = sbr.rel (0) target = $region5
    $region4: #{drug_conv_1d_forward.1} parent=1 // pred_region
      _
    $region5: #{drug_conv_1d_forward.1} parent=1 // pred_fallthru
      _
    // Predicated region
    $region6: #{drug_conv_1d_forward.1} parent=1 // pred_check
      _
    $region7: #{drug_conv_1d_forward.1} parent=1 // pred_check_branch
      %27 = sbr.rel (0) target = $region9
    $region8: #{drug_conv_1d_forward.1} parent=1 // pred_region
      _
    $region9: #{drug_conv_1d_forward.1} parent=1 // pred_fallthru
      _
    // Predicated region
    $region10: #{drug_conv_1d_forward.1} parent=1 // pred_check
      _
    $region11: #{drug_conv_1d_forward.1} parent=1 // pred_check_branch
      %29 = sbr.rel (0) target = $region13
    $region12: #{drug_conv_1d_forward.1} parent=1 // pred_region
      _
    $region13: #{drug_conv_1d_forward.1} parent=1 // pred_fallthru
      _
    // Predicated region
    $region14: #{drug_conv_1d_forward.1} parent=1 // pred_check
      _
    $region15: #{drug_conv_1d_forward.1} parent=1 // pred_check_branch
      %31 = sbr.rel (0) target = $region17
    $region16: #{drug_conv_1d_forward.1} parent=1 // pred_region
      _
    $region17: #{drug_conv_1d_forward.1} parent=1 // pred_fallthru
      _
    // Predicated region
    $region18: #{drug_conv_1d_forward.1} parent=1 // pred_check
      _
    $region19: #{drug_conv_1d_forward.1} parent=1 // pred_check_branch
      %33 = sbr.rel (0) target = $region21
    $region20: #{drug_conv_1d_forward.1} parent=1 // pred_region
      %s35 = ssub.s32 7168, 7168
      %36 = vsyncadd [#allocation6], %s35
      %s37 = sshll.u32 [#allocation5], 4
      %s38 = int_to_ptr.vmem [resolvable:$true] %s37
      %43 = dma.hbm_to_vmem [thread:$0]  %s4, 7168, %s38, [#allocation6], 64, 64, 4
    $region21: #{drug_conv_1d_forward.1} parent=1 // pred_fallthru
      _
    // Predicated region
    $region22: #{drug_conv_1d_forward.1} parent=1 // pred_check
      _
    $region23: #{drug_conv_1d_forward.1} parent=1 // pred_check_branch
      %45 = sbr.rel (0) target = $region25
    $region24: #{drug_conv_1d_forward.1} parent=1 // pred_region
      _
    $region25: #{drug_conv_1d_forward.1} parent=1 // pred_fallthru
      _
    // Predicated region
    $region26: #{drug_conv_1d_forward.1} parent=1 // pred_check
      _
    $region27: #{drug_conv_1d_forward.1} parent=1 // pred_check_branch
      %47 = sbr.rel (0) target = $region29
    $region28: #{drug_conv_1d_forward.1} parent=1 // pred_region
      _
    $region29: #{drug_conv_1d_forward.1} parent=1 // pred_fallthru
      _
    // Predicated region
    $region30: #{drug_conv_1d_forward.1} parent=1 // pred_check
      _
    $region31: #{drug_conv_1d_forward.1} parent=1 // pred_check_branch
      %49 = sbr.rel (0) target = $region33
    $region32: #{drug_conv_1d_forward.1} parent=1 // pred_region
      %s51 = ssub.s32 7168, 7168
      %52 = vsyncadd [#allocation9], %s51
      %s53 = sshll.u32 [#allocation8], 4
      %s54 = int_to_ptr.vmem [resolvable:$true] %s53
      %59 = dma.hbm_to_vmem [thread:$0]  %s7, 7168, %s54, [#allocation9], 64, 64, 4
    $region33: #{drug_conv_1d_forward.1} parent=1 // pred_fallthru
      _
    // Predicated region
    $region34: #{drug_conv_1d_forward.1} parent=1 // pred_check
      _
    $region35: #{drug_conv_1d_forward.1} parent=1 // pred_check_branch
      %61 = sbr.rel (0) target = $region37
    $region36: #{drug_conv_1d_forward.1} parent=1 // pred_region
      _
    $region37: #{drug_conv_1d_forward.1} parent=1 // pred_fallthru
      _
    // Predicated region
    $region38: #{drug_conv_1d_forward.1} parent=1 // pred_check
      _
    $region39: #{drug_conv_1d_forward.1} parent=1 // pred_check_branch
      %63 = sbr.rel (0) target = $region41
    $region40: #{drug_conv_1d_forward.1} parent=1 // pred_region
      _
    $region41: #{drug_conv_1d_forward.1} parent=1 // pred_fallthru
      _
    // Predicated region
    $region42: #{drug_conv_1d_forward.1} parent=1 // pred_check
      _
    $region43: #{drug_conv_1d_forward.1} parent=1 // pred_check_branch
      %65 = sbr.rel (0) target = $region45
    $region44: #{drug_conv_1d_forward.1} parent=1 // pred_region
      %s67 = ssub.s32 24576, 24576
      %68 = vsyncadd [#allocation9], %s67
      %s69 = sshll.u32 [#allocation10], 4
      %s70 = int_to_ptr.vmem [resolvable:$true] %s69
      %75 = dma.hbm_to_vmem [thread:$0]  %s10, 24576, %s70, [#allocation9], 256, 256, 16
    $region45: #{drug_conv_1d_forward.1} parent=1 // pred_fallthru
      _
    // Predicated region
    $region46: #{drug_conv_1d_forward.1} parent=1 // pred_check
      _
    $region47: #{drug_conv_1d_forward.1} parent=1 // pred_check_branch
      %77 = sbr.rel (0) target = $region49
    $region48: #{drug_conv_1d_forward.1} parent=1 // pred_region
      _
    $region49: #{drug_conv_1d_forward.1} parent=1 // pred_fallthru
      _
    // Predicated region
    $region50: #{drug_conv_1d_forward.1} parent=1 // pred_check
      _
    $region51: #{drug_conv_1d_forward.1} parent=1 // pred_check_branch
      %79 = sbr.rel (0) target = $region53
    $region52: #{drug_conv_1d_forward.1} parent=1 // pred_region
      _
    $region53: #{drug_conv_1d_forward.1} parent=1 // pred_fallthru
      _
    // Predicated region
    $region54: #{drug_conv_1d_forward.1} parent=1 // pred_check
      _
    $region55: #{drug_conv_1d_forward.1} parent=1 // pred_check_branch
      %81 = sbr.rel (0) target = $region57
    $region56: #{drug_conv_1d_forward.1} parent=1 // pred_region
      _
    $region57: #{drug_conv_1d_forward.1} parent=1 // pred_fallthru
      _
    // Predicated region
    $region58: #{drug_conv_1d_forward.1} parent=1 // pred_check
      _
    $region59: #{drug_conv_1d_forward.1} parent=1 // pred_check_branch
      %83 = sbr.rel (0) target = $region61
    $region60: #{drug_conv_1d_forward.1} parent=1 // pred_region
      _
    $region61: #{drug_conv_1d_forward.1} parent=1 // pred_fallthru
      _
    // Predicated region
    $region62: #{drug_conv_1d_forward.1} parent=1 // pred_check
      _
    $region63: #{drug_conv_1d_forward.1} parent=1 // pred_check_branch
      %85 = sbr.rel (0) target = $region65
    $region64: #{drug_conv_1d_forward.1} parent=1 // pred_region
      _
    $region65: #{drug_conv_1d_forward.1} parent=1 // pred_fallthru
      _
    // Predicated region
    $region66: #{drug_conv_1d_forward.1} parent=1 // pred_check
      _
    $region67: #{drug_conv_1d_forward.1} parent=1 // pred_check_branch
      %87 = sbr.rel (0) target = $region69
    $region68: #{drug_conv_1d_forward.1} parent=1 // pred_region
      %88 = dma.done [#allocation6], 7168
    $region69: #{drug_conv_1d_forward.1} parent=1 // pred_fallthru
      _
    // Predicated region
    $region70: #{drug_conv_1d_forward.1} parent=1 // pred_check
      _
    $region71: #{drug_conv_1d_forward.1} parent=1 // pred_check_branch
      %90 = sbr.rel (0) target = $region73
    $region72: #{drug_conv_1d_forward.1} parent=1 // pred_region
      %91 = dma.done [#allocation9], 7168
    $region73: #{drug_conv_1d_forward.1} parent=1 // pred_fallthru
      _
    // Predicated region
    $region74: #{drug_conv_1d_forward.1} parent=1 // pred_check
      _
    $region75: #{drug_conv_1d_forward.1} parent=1 // pred_check_branch
      %93 = sbr.rel (0) target = $region77
    $region76: #{drug_conv_1d_forward.1} parent=1 // pred_region
      %94 = dma.done [#allocation9], 24576
    $region77: #{drug_conv_1d_forward.1} parent=1 // pred_fallthru
      _
    %v96 = vld [vmem:[%s0] sm:$0xf]
    %v97 = vld [vmem:[%s0 + $0x4] sm:$0xf]
    %v98 = vld [vmem:[%s0 + $0x8] sm:$0xf]
    %v99 = vld [vmem:[%s0 + $0xc] sm:$0xf]
    %v100 = vld [vmem:[%s0 + $0x10] sm:$0xf]
    %v101 = vld [vmem:[%s0 + $0x14] sm:$0xf]
    %v102 = vld [vmem:[%s0 + $0x18] sm:$0xf]
    %v103 = vld [vmem:[%s0 + $0x1c] sm:$0xf]
    %v104 = vld [vmem:[%s0 + $0x20] sm:$0xf]
    %v105 = vld [vmem:[%s0 + $0x24] sm:$0xf]
    %v106 = vld [vmem:[%s0 + $0x28] sm:$0xf]
    %v107 = vld [vmem:[%s0 + $0x2c] sm:$0xf]
    %v108 = vld [vmem:[%s0 + $0x30] sm:$0xf]
    %v109 = vld [vmem:[%s0 + $0x34] sm:$0xf]
    %v110 = vld [vmem:[%s0 + $0x38] sm:$0xf]
    %v111 = vld [vmem:[%s0 + $0x3c] sm:$0xf]
    %v112 = vld [vmem:[%s0 + $0x40] sm:$0xf]
    %v113 = vld [vmem:[%s0 + $0x44] sm:$0xf]
    %v114 = vld [vmem:[%s0 + $0x48] sm:$0xf]
    %v115 = vld [vmem:[%s0 + $0x4c] sm:$0xf]
    %v116 = vld [vmem:[%s0 + $0x50] sm:$0xf]
    %s117 = scalar_lea.vmem %s0, 84
    %v118 = vld [vmem:[%s117] sm:$0xf]
    %v119 = vld [vmem:[%s117 + $0x4] sm:$0xf]
    %v120 = vld [vmem:[%s117 + $0x8] sm:$0xf]
    %v121 = vld [vmem:[%s117 + $0xc] sm:$0xf]
    %v122 = vld [vmem:[%s117 + $0x10] sm:$0xf]
    %v123 = vld [vmem:[%s117 + $0x14] sm:$0xf]
    %v124 = vld [vmem:[%s117 + $0x18] sm:$0xf]
    %v125 = vld [vmem:[%s117 + $0x1c] sm:$0xf]
    %v126 = vld [vmem:[%s117 + $0x20] sm:$0xf]
    %v127 = vld [vmem:[%s117 + $0x24] sm:$0xf]
    %v128 = vld [vmem:[%s117 + $0x28] sm:$0xf]
    %v129 = vld [vmem:[%s117 + $0x2c] sm:$0xf]
    %v130 = vld [vmem:[%s117 + $0x30] sm:$0xf]
    %v131 = vld [vmem:[%s117 + $0x34] sm:$0xf]
    %v132 = vld [vmem:[%s117 + $0x38] sm:$0xf]
    %v133 = vld [vmem:[%s117 + $0x3c] sm:$0xf]
    %v134 = vld [vmem:[%s117 + $0x40] sm:$0xf]
    %v135 = vld [vmem:[%s117 + $0x44] sm:$0xf]
    %v136 = vld [vmem:[%s117 + $0x48] sm:$0xf]
    %v137 = vld [vmem:[%s117 + $0x4c] sm:$0xf]
    %v138 = vld [vmem:[%s117 + $0x50] sm:$0xf]
    %v160 = vunpack.c.l.b16 %v96
    %v161 = vunpack.c.l.b16 %v97
    %v162 = vunpack.c.l.b16 %v98
    %v163 = vunpack.c.l.b16 %v99
    %v164 = vunpack.c.l.b16 %v100
    %v165 = vunpack.c.l.b16 %v101
    %v166 = vunpack.c.l.b16 %v102
    %v167 = vunpack.c.l.b16 %v103
    %v168 = vunpack.c.l.b16 %v104
    %v169 = vunpack.c.l.b16 %v105
    %v170 = vunpack.c.l.b16 %v106
    %v171 = vunpack.c.l.b16 %v107
    %v172 = vunpack.c.l.b16 %v108
    %v173 = vunpack.c.l.b16 %v109
    %v174 = vunpack.c.l.b16 %v110
    %v175 = vunpack.c.l.b16 %v111
    %v176 = vunpack.c.l.b16 %v112
    %v177 = vunpack.c.l.b16 %v113
    %v178 = vunpack.c.l.b16 %v114
    %v179 = vunpack.c.l.b16 %v115
    %v180 = vunpack.c.l.b16 %v116
    %v181 = vpack.c.b16 %v161, %v160
    %v182 = vpack.c.b16 %v163, %v162
    %v183 = vpack.c.b16 %v165, %v164
    %v184 = vpack.c.b16 %v167, %v166
    %v185 = vpack.c.b16 %v169, %v168
    %v186 = vpack.c.b16 %v171, %v170
    %v187 = vpack.c.b16 %v173, %v172
    %v188 = vpack.c.b16 %v175, %v174
    %v189 = vpack.c.b16 %v177, %v176
    %v190 = vpack.c.b16 %v179, %v178
    %v191 = vpack.c.b16 %v180, %v180
    %vm202 = vsmask.f32 7424
    %v204 = vshrl.u32 %v181, 16
    %v206 = vshll.u32 %v181, 16
    %v208 = vrot.slane %v206, 1
    %v209 = vor.u32 %v204, %v208
    %v211 = vshll.u32 %v182, 16
    %v213 = vrot.slane %v211, 1
    %v214 = vsel %vm202, %v209, %v213
    %v215 = vshrl.u32 %v182, 16
    %v217 = vor.u32 %v215, %v213
    %v219 = vshll.u32 %v183, 16
    %v221 = vrot.slane %v219, 1
    %v222 = vsel %vm202, %v217, %v221
    %v223 = vshrl.u32 %v183, 16
    %v225 = vor.u32 %v223, %v221
    %v227 = vshll.u32 %v184, 16
    %v229 = vrot.slane %v227, 1
    %v230 = vsel %vm202, %v225, %v229
    %v231 = vshrl.u32 %v184, 16
    %v233 = vor.u32 %v231, %v229
    %v235 = vshll.u32 %v185, 16
    %v237 = vrot.slane %v235, 1
    %v238 = vsel %vm202, %v233, %v237
    %v239 = vshrl.u32 %v185, 16
    %v241 = vor.u32 %v239, %v237
    %v243 = vshll.u32 %v186, 16
    %v245 = vrot.slane %v243, 1
    %v246 = vsel %vm202, %v241, %v245
    %v247 = vshrl.u32 %v186, 16
    %v249 = vor.u32 %v247, %v245
    %v251 = vshll.u32 %v187, 16
    %v253 = vrot.slane %v251, 1
    %v254 = vsel %vm202, %v249, %v253
    %v255 = vshrl.u32 %v187, 16
    %v257 = vor.u32 %v255, %v253
    %v259 = vshll.u32 %v188, 16
    %v261 = vrot.slane %v259, 1
    %v262 = vsel %vm202, %v257, %v261
    %v263 = vshrl.u32 %v188, 16
    %v265 = vor.u32 %v263, %v261
    %v267 = vshll.u32 %v189, 16
    %v269 = vrot.slane %v267, 1
    %v270 = vsel %vm202, %v265, %v269
    %v271 = vshrl.u32 %v189, 16
    %v273 = vor.u32 %v271, %v269
    %v275 = vshll.u32 %v190, 16
    %v277 = vrot.slane %v275, 1
    %v278 = vsel %vm202, %v273, %v277
    %v279 = vshrl.u32 %v190, 16
    %v281 = vor.u32 %v279, %v277
    %v283 = vshll.u32 %v191, 16
    %v285 = vrot.slane %v283, 1
    %v286 = vsel %vm202, %v281, %v285
    %v287 = vshrl.u32 %v191, 16
    %v289 = vor.u32 %v287, %v285
    %vm300 = vcmask 1046528
    %v301 = vrot.slane %v181, 1
    %v302 = vrot.slane %v182, 1
    %v303 = vsel %vm300, %v301, %v302
    %v304 = vrot.slane %v183, 1
    %v305 = vsel %vm300, %v302, %v304
    %v306 = vrot.slane %v184, 1
    %v307 = vsel %vm300, %v304, %v306
    %v308 = vrot.slane %v185, 1
    %v309 = vsel %vm300, %v306, %v308
    %v310 = vrot.slane %v186, 1
    %v311 = vsel %vm300, %v308, %v310
    %v312 = vrot.slane %v187, 1
    %v313 = vsel %vm300, %v310, %v312
    %v314 = vrot.slane %v188, 1
    %v315 = vsel %vm300, %v312, %v314
    %v316 = vrot.slane %v189, 1
    %v317 = vsel %vm300, %v314, %v316
    %v318 = vrot.slane %v190, 1
    %v319 = vsel %vm300, %v316, %v318
    %v320 = vrot.slane %v191, 1
    %v321 = vsel %vm300, %v318, %v320
    %vm332 = vsmask.f32 6400
    %v333 = vrot.slane %v204, 1
    %v334 = vrot.slane %v206, 2
    %v335 = vor.u32 %v333, %v334
    %v336 = vrot.slane %v215, 1
    %v337 = vrot.slane %v211, 2
    %v338 = vor.u32 %v336, %v337
    %v339 = vsel %vm332, %v335, %v338
    %v340 = vrot.slane %v223, 1
    %v341 = vrot.slane %v219, 2
    %v342 = vor.u32 %v340, %v341
    %v343 = vsel %vm332, %v338, %v342
    %v344 = vrot.slane %v231, 1
    %v345 = vrot.slane %v227, 2
    %v346 = vor.u32 %v344, %v345
    %v347 = vsel %vm332, %v342, %v346
    %v348 = vrot.slane %v239, 1
    %v349 = vrot.slane %v235, 2
    %v350 = vor.u32 %v348, %v349
    %v351 = vsel %vm332, %v346, %v350
    %v352 = vrot.slane %v247, 1
    %v353 = vrot.slane %v243, 2
    %v354 = vor.u32 %v352, %v353
    %v355 = vsel %vm332, %v350, %v354
    %v356 = vrot.slane %v255, 1
    %v357 = vrot.slane %v251, 2
    %v358 = vor.u32 %v356, %v357
    %v359 = vsel %vm332, %v354, %v358
    %v360 = vrot.slane %v263, 1
    %v361 = vrot.slane %v259, 2
    %v362 = vor.u32 %v360, %v361
    %v363 = vsel %vm332, %v358, %v362
    %v364 = vrot.slane %v271, 1
    %v365 = vrot.slane %v267, 2
    %v366 = vor.u32 %v364, %v365
    %v367 = vsel %vm332, %v362, %v366
    %v368 = vrot.slane %v279, 1
    %v369 = vrot.slane %v275, 2
    %v370 = vor.u32 %v368, %v369
    %v371 = vsel %vm332, %v366, %v370
    %v372 = vrot.slane %v287, 1
    %v373 = vrot.slane %v283, 2
    %v374 = vor.u32 %v372, %v373
    %v375 = vsel %vm332, %v370, %v374
    %vm386 = vcmask 1045504
    %v387 = vrot.slane %v181, 2
    %v388 = vrot.slane %v182, 2
    %v389 = vsel %vm386, %v387, %v388
    %v390 = vrot.slane %v183, 2
    %v391 = vsel %vm386, %v388, %v390
    %v392 = vrot.slane %v184, 2
    %v393 = vsel %vm386, %v390, %v392
    %v394 = vrot.slane %v185, 2
    %v395 = vsel %vm386, %v392, %v394
    %v396 = vrot.slane %v186, 2
    %v397 = vsel %vm386, %v394, %v396
    %v398 = vrot.slane %v187, 2
    %v399 = vsel %vm386, %v396, %v398
    %v400 = vrot.slane %v188, 2
    %v401 = vsel %vm386, %v398, %v400
    %v402 = vrot.slane %v189, 2
    %v403 = vsel %vm386, %v400, %v402
    %v404 = vrot.slane %v190, 2
    %v405 = vsel %vm386, %v402, %v404
    %v406 = vrot.slane %v191, 2
    %v407 = vsel %vm386, %v404, %v406
    %vm418 = vsmask.f32 5376
    %v419 = vrot.slane %v204, 2
    %v420 = vrot.slane %v206, 3
    %v421 = vor.u32 %v419, %v420
    %v422 = vrot.slane %v215, 2
    %v423 = vrot.slane %v211, 3
    %v424 = vor.u32 %v422, %v423
    %v425 = vsel %vm418, %v421, %v424
    %v426 = vrot.slane %v223, 2
    %v427 = vrot.slane %v219, 3
    %v428 = vor.u32 %v426, %v427
    %v429 = vsel %vm418, %v424, %v428
    %v430 = vrot.slane %v231, 2
    %v431 = vrot.slane %v227, 3
    %v432 = vor.u32 %v430, %v431
    %v433 = vsel %vm418, %v428, %v432
    %v434 = vrot.slane %v239, 2
    %v435 = vrot.slane %v235, 3
    %v436 = vor.u32 %v434, %v435
    %v437 = vsel %vm418, %v432, %v436
    %v438 = vrot.slane %v247, 2
    %v439 = vrot.slane %v243, 3
    %v440 = vor.u32 %v438, %v439
    %v441 = vsel %vm418, %v436, %v440
    %v442 = vrot.slane %v255, 2
    %v443 = vrot.slane %v251, 3
    %v444 = vor.u32 %v442, %v443
    %v445 = vsel %vm418, %v440, %v444
    %v446 = vrot.slane %v263, 2
    %v447 = vrot.slane %v259, 3
    %v448 = vor.u32 %v446, %v447
    %v449 = vsel %vm418, %v444, %v448
    %v450 = vrot.slane %v271, 2
    %v451 = vrot.slane %v267, 3
    %v452 = vor.u32 %v450, %v451
    %v453 = vsel %vm418, %v448, %v452
    %v454 = vrot.slane %v279, 2
    %v455 = vrot.slane %v275, 3
    %v456 = vor.u32 %v454, %v455
    %v457 = vsel %vm418, %v452, %v456
    %v458 = vrot.slane %v287, 2
    %v459 = vrot.slane %v283, 3
    %v460 = vor.u32 %v458, %v459
    %v461 = vsel %vm418, %v456, %v460
    %vm472 = vcmask 1044480
    %v473 = vrot.slane %v181, 3
    %v474 = vrot.slane %v182, 3
    %v475 = vsel %vm472, %v473, %v474
    %v476 = vrot.slane %v183, 3
    %v477 = vsel %vm472, %v474, %v476
    %v478 = vrot.slane %v184, 3
    %v479 = vsel %vm472, %v476, %v478
    %v480 = vrot.slane %v185, 3
    %v481 = vsel %vm472, %v478, %v480
    %v482 = vrot.slane %v186, 3
    %v483 = vsel %vm472, %v480, %v482
    %v484 = vrot.slane %v187, 3
    %v485 = vsel %vm472, %v482, %v484
    %v486 = vrot.slane %v188, 3
    %v487 = vsel %vm472, %v484, %v486
    %v488 = vrot.slane %v189, 3
    %v489 = vsel %vm472, %v486, %v488
    %v490 = vrot.slane %v190, 3
    %v491 = vsel %vm472, %v488, %v490
    %v492 = vrot.slane %v191, 3
    %v493 = vsel %vm472, %v490, %v492
    %v525 = vunpack.c.l.b16 %v118
    %v526 = vunpack.c.l.b16 %v119
    %v527 = vunpack.c.l.b16 %v120
    %v528 = vunpack.c.l.b16 %v121
    %v529 = vunpack.c.l.b16 %v122
    %v530 = vunpack.c.l.b16 %v123
    %v531 = vunpack.c.l.b16 %v124
    %v532 = vunpack.c.l.b16 %v125
    %v533 = vunpack.c.l.b16 %v126
    %v534 = vunpack.c.l.b16 %v127
    %v535 = vunpack.c.l.b16 %v128
    %v536 = vunpack.c.l.b16 %v129
    %v537 = vunpack.c.l.b16 %v130
    %v538 = vunpack.c.l.b16 %v131
    %v539 = vunpack.c.l.b16 %v132
    %v540 = vunpack.c.l.b16 %v133
    %v541 = vunpack.c.l.b16 %v134
    %v542 = vunpack.c.l.b16 %v135
    %v543 = vunpack.c.l.b16 %v136
    %v544 = vunpack.c.l.b16 %v137
    %v545 = vunpack.c.l.b16 %v138
    %v546 = vpack.c.b16 %v526, %v525
    %v547 = vpack.c.b16 %v528, %v527
    %v548 = vpack.c.b16 %v530, %v529
    %v549 = vpack.c.b16 %v532, %v531
    %v550 = vpack.c.b16 %v534, %v533
    %v551 = vpack.c.b16 %v536, %v535
    %v552 = vpack.c.b16 %v538, %v537
    %v553 = vpack.c.b16 %v540, %v539
    %v554 = vpack.c.b16 %v542, %v541
    %v555 = vpack.c.b16 %v544, %v543
    %v556 = vpack.c.b16 %v545, %v545
    %v558 = vshrl.u32 %v546, 16
    %v560 = vshll.u32 %v546, 16
    %v562 = vrot.slane %v560, 1
    %v563 = vor.u32 %v558, %v562
    %v565 = vshll.u32 %v547, 16
    %v567 = vrot.slane %v565, 1
    %v568 = vsel %vm202, %v563, %v567
    %v569 = vshrl.u32 %v547, 16
    %v571 = vor.u32 %v569, %v567
    %v573 = vshll.u32 %v548, 16
    %v575 = vrot.slane %v573, 1
    %v576 = vsel %vm202, %v571, %v575
    %v577 = vshrl.u32 %v548, 16
    %v579 = vor.u32 %v577, %v575
    %v581 = vshll.u32 %v549, 16
    %v583 = vrot.slane %v581, 1
    %v584 = vsel %vm202, %v579, %v583
    %v585 = vshrl.u32 %v549, 16
    %v587 = vor.u32 %v585, %v583
    %v589 = vshll.u32 %v550, 16
    %v591 = vrot.slane %v589, 1
    %v592 = vsel %vm202, %v587, %v591
    %v593 = vshrl.u32 %v550, 16
    %v595 = vor.u32 %v593, %v591
    %v597 = vshll.u32 %v551, 16
    %v599 = vrot.slane %v597, 1
    %v600 = vsel %vm202, %v595, %v599
    %v601 = vshrl.u32 %v551, 16
    %v603 = vor.u32 %v601, %v599
    %v605 = vshll.u32 %v552, 16
    %v607 = vrot.slane %v605, 1
    %v608 = vsel %vm202, %v603, %v607
    %v609 = vshrl.u32 %v552, 16
    %v611 = vor.u32 %v609, %v607
    %v613 = vshll.u32 %v553, 16
    %v615 = vrot.slane %v613, 1
    %v616 = vsel %vm202, %v611, %v615
    %v617 = vshrl.u32 %v553, 16
    %v619 = vor.u32 %v617, %v615
    %v621 = vshll.u32 %v554, 16
    %v623 = vrot.slane %v621, 1
    %v624 = vsel %vm202, %v619, %v623
    %v625 = vshrl.u32 %v554, 16
    %v627 = vor.u32 %v625, %v623
    %v629 = vshll.u32 %v555, 16
    %v631 = vrot.slane %v629, 1
    %v632 = vsel %vm202, %v627, %v631
    %v633 = vshrl.u32 %v555, 16
    %v635 = vor.u32 %v633, %v631
    %v637 = vshll.u32 %v556, 16
    %v639 = vrot.slane %v637, 1
    %v640 = vsel %vm202, %v635, %v639
    %v641 = vshrl.u32 %v556, 16
    %v643 = vor.u32 %v641, %v639
    %v644 = vrot.slane %v546, 1
    %v645 = vrot.slane %v547, 1
    %v646 = vsel %vm300, %v644, %v645
    %v647 = vrot.slane %v548, 1
    %v648 = vsel %vm300, %v645, %v647
    %v649 = vrot.slane %v549, 1
    %v650 = vsel %vm300, %v647, %v649
    %v651 = vrot.slane %v550, 1
    %v652 = vsel %vm300, %v649, %v651
    %v653 = vrot.slane %v551, 1
    %v654 = vsel %vm300, %v651, %v653
    %v655 = vrot.slane %v552, 1
    %v656 = vsel %vm300, %v653, %v655
    %v657 = vrot.slane %v553, 1
    %v658 = vsel %vm300, %v655, %v657
    %v659 = vrot.slane %v554, 1
    %v660 = vsel %vm300, %v657, %v659
    %v661 = vrot.slane %v555, 1
    %v662 = vsel %vm300, %v659, %v661
    %v663 = vrot.slane %v556, 1
    %v664 = vsel %vm300, %v661, %v663
    %v665 = vrot.slane %v558, 1
    %v666 = vrot.slane %v560, 2
    %v667 = vor.u32 %v665, %v666
    %v668 = vrot.slane %v569, 1
    %v669 = vrot.slane %v565, 2
    %v670 = vor.u32 %v668, %v669
    %v671 = vsel %vm332, %v667, %v670
    %v672 = vrot.slane %v577, 1
    %v673 = vrot.slane %v573, 2
    %v674 = vor.u32 %v672, %v673
    %v675 = vsel %vm332, %v670, %v674
    %v676 = vrot.slane %v585, 1
    %v677 = vrot.slane %v581, 2
    %v678 = vor.u32 %v676, %v677
    %v679 = vsel %vm332, %v674, %v678
    %v680 = vrot.slane %v593, 1
    %v681 = vrot.slane %v589, 2
    %v682 = vor.u32 %v680, %v681
    %v683 = vsel %vm332, %v678, %v682
    %v684 = vrot.slane %v601, 1
    %v685 = vrot.slane %v597, 2
    %v686 = vor.u32 %v684, %v685
    %v687 = vsel %vm332, %v682, %v686
    %v688 = vrot.slane %v609, 1
    %v689 = vrot.slane %v605, 2
    %v690 = vor.u32 %v688, %v689
    %v691 = vsel %vm332, %v686, %v690
    %v692 = vrot.slane %v617, 1
    %v693 = vrot.slane %v613, 2
    %v694 = vor.u32 %v692, %v693
    %v695 = vsel %vm332, %v690, %v694
    %v696 = vrot.slane %v625, 1
    %v697 = vrot.slane %v621, 2
    %v698 = vor.u32 %v696, %v697
    %v699 = vsel %vm332, %v694, %v698
    %v700 = vrot.slane %v633, 1
    %v701 = vrot.slane %v629, 2
    %v702 = vor.u32 %v700, %v701
    %v703 = vsel %vm332, %v698, %v702
    %v704 = vrot.slane %v641, 1
    %v705 = vrot.slane %v637, 2
    %v706 = vor.u32 %v704, %v705
    %v707 = vsel %vm332, %v702, %v706
    %v708 = vrot.slane %v546, 2
    %v709 = vrot.slane %v547, 2
    %v710 = vsel %vm386, %v708, %v709
    %v711 = vrot.slane %v548, 2
    %v712 = vsel %vm386, %v709, %v711
    %v713 = vrot.slane %v549, 2
    %v714 = vsel %vm386, %v711, %v713
    %v715 = vrot.slane %v550, 2
    %v716 = vsel %vm386, %v713, %v715
    %v717 = vrot.slane %v551, 2
    %v718 = vsel %vm386, %v715, %v717
    %v719 = vrot.slane %v552, 2
    %v720 = vsel %vm386, %v717, %v719
    %v721 = vrot.slane %v553, 2
    %v722 = vsel %vm386, %v719, %v721
    %v723 = vrot.slane %v554, 2
    %v724 = vsel %vm386, %v721, %v723
    %v725 = vrot.slane %v555, 2
    %v726 = vsel %vm386, %v723, %v725
    %v727 = vrot.slane %v556, 2
    %v728 = vsel %vm386, %v725, %v727
    %v729 = vrot.slane %v558, 2
    %v730 = vrot.slane %v560, 3
    %v731 = vor.u32 %v729, %v730
    %v732 = vrot.slane %v569, 2
    %v733 = vrot.slane %v565, 3
    %v734 = vor.u32 %v732, %v733
    %v735 = vsel %vm418, %v731, %v734
    %v736 = vrot.slane %v577, 2
    %v737 = vrot.slane %v573, 3
    %v738 = vor.u32 %v736, %v737
    %v739 = vsel %vm418, %v734, %v738
    %v740 = vrot.slane %v585, 2
    %v741 = vrot.slane %v581, 3
    %v742 = vor.u32 %v740, %v741
    %v743 = vsel %vm418, %v738, %v742
    %v744 = vrot.slane %v593, 2
    %v745 = vrot.slane %v589, 3
    %v746 = vor.u32 %v744, %v745
    %v747 = vsel %vm418, %v742, %v746
    %v748 = vrot.slane %v601, 2
    %v749 = vrot.slane %v597, 3
    %v750 = vor.u32 %v748, %v749
    %v751 = vsel %vm418, %v746, %v750
    %v752 = vrot.slane %v609, 2
    %v753 = vrot.slane %v605, 3
    %v754 = vor.u32 %v752, %v753
    %v755 = vsel %vm418, %v750, %v754
    %v756 = vrot.slane %v617, 2
    %v757 = vrot.slane %v613, 3
    %v758 = vor.u32 %v756, %v757
    %v759 = vsel %vm418, %v754, %v758
    %v760 = vrot.slane %v625, 2
    %v761 = vrot.slane %v621, 3
    %v762 = vor.u32 %v760, %v761
    %v763 = vsel %vm418, %v758, %v762
    %v764 = vrot.slane %v633, 2
    %v765 = vrot.slane %v629, 3
    %v766 = vor.u32 %v764, %v765
    %v767 = vsel %vm418, %v762, %v766
    %v768 = vrot.slane %v641, 2
    %v769 = vrot.slane %v637, 3
    %v770 = vor.u32 %v768, %v769
    %v771 = vsel %vm418, %v766, %v770
    %v772 = vrot.slane %v546, 3
    %v773 = vrot.slane %v547, 3
    %v774 = vsel %vm472, %v772, %v773
    %v775 = vrot.slane %v548, 3
    %v776 = vsel %vm472, %v773, %v775
    %v777 = vrot.slane %v549, 3
    %v778 = vsel %vm472, %v775, %v777
    %v779 = vrot.slane %v550, 3
    %v780 = vsel %vm472, %v777, %v779
    %v781 = vrot.slane %v551, 3
    %v782 = vsel %vm472, %v779, %v781
    %v783 = vrot.slane %v552, 3
    %v784 = vsel %vm472, %v781, %v783
    %v785 = vrot.slane %v553, 3
    %v786 = vsel %vm472, %v783, %v785
    %v787 = vrot.slane %v554, 3
    %v788 = vsel %vm472, %v785, %v787
    %v789 = vrot.slane %v555, 3
    %v790 = vsel %vm472, %v787, %v789
    %v791 = vrot.slane %v556, 3
    %v792 = vsel %vm472, %v789, %v791
    %vm793 = vcmask 1040384
    %v794 = vrot.slane %v546, 7
    %v795 = vrot.slane %v568, 7
    %v796 = vrot.slane %v646, 7
    %v797 = vrot.slane %v671, 7
    %v798 = vrot.slane %v710, 7
    %v799 = vrot.slane %v735, 7
    %v800 = vrot.slane %v774, 7
    %v801 = vrot.slane %v547, 7
    %v802 = vsel %vm793, %v794, %v801
    %v803 = vrot.slane %v576, 7
    %v804 = vsel %vm793, %v795, %v803
    %v805 = vrot.slane %v648, 7
    %v806 = vsel %vm793, %v796, %v805
    %v807 = vrot.slane %v675, 7
    %v808 = vsel %vm793, %v797, %v807
    %v809 = vrot.slane %v712, 7
    %v810 = vsel %vm793, %v798, %v809
    %v811 = vrot.slane %v739, 7
    %v812 = vsel %vm793, %v799, %v811
    %v813 = vrot.slane %v776, 7
    %v814 = vsel %vm793, %v800, %v813
    %v815 = vrot.slane %v548, 7
    %v816 = vsel %vm793, %v801, %v815
    %v817 = vrot.slane %v584, 7
    %v818 = vsel %vm793, %v803, %v817
    %v819 = vrot.slane %v650, 7
    %v820 = vsel %vm793, %v805, %v819
    %v821 = vrot.slane %v679, 7
    %v822 = vsel %vm793, %v807, %v821
    %v823 = vrot.slane %v714, 7
    %v824 = vsel %vm793, %v809, %v823
    %v825 = vrot.slane %v743, 7
    %v826 = vsel %vm793, %v811, %v825
    %v827 = vrot.slane %v778, 7
    %v828 = vsel %vm793, %v813, %v827
    %v829 = vrot.slane %v549, 7
    %v830 = vsel %vm793, %v815, %v829
    %v831 = vrot.slane %v592, 7
    %v832 = vsel %vm793, %v817, %v831
    %v833 = vrot.slane %v652, 7
    %v834 = vsel %vm793, %v819, %v833
    %v835 = vrot.slane %v683, 7
    %v836 = vsel %vm793, %v821, %v835
    %v837 = vrot.slane %v716, 7
    %v838 = vsel %vm793, %v823, %v837
    %v839 = vrot.slane %v747, 7
    %v840 = vsel %vm793, %v825, %v839
    %v841 = vrot.slane %v780, 7
    %v842 = vsel %vm793, %v827, %v841
    %v843 = vrot.slane %v550, 7
    %v844 = vsel %vm793, %v829, %v843
    %v845 = vrot.slane %v600, 7
    %v846 = vsel %vm793, %v831, %v845
    %v847 = vrot.slane %v654, 7
    %v848 = vsel %vm793, %v833, %v847
    %v849 = vrot.slane %v687, 7
    %v850 = vsel %vm793, %v835, %v849
    %v851 = vrot.slane %v718, 7
    %v852 = vsel %vm793, %v837, %v851
    %v853 = vrot.slane %v751, 7
    %v854 = vsel %vm793, %v839, %v853
    %v855 = vrot.slane %v782, 7
    %v856 = vsel %vm793, %v841, %v855
    %v857 = vrot.slane %v551, 7
    %v858 = vsel %vm793, %v843, %v857
    %v859 = vrot.slane %v608, 7
    %v860 = vsel %vm793, %v845, %v859
    %v861 = vrot.slane %v656, 7
    %v862 = vsel %vm793, %v847, %v861
    %v863 = vrot.slane %v691, 7
    %v864 = vsel %vm793, %v849, %v863
    %v865 = vrot.slane %v720, 7
    %v866 = vsel %vm793, %v851, %v865
    %v867 = vrot.slane %v755, 7
    %v868 = vsel %vm793, %v853, %v867
    %v869 = vrot.slane %v784, 7
    %v870 = vsel %vm793, %v855, %v869
    %v871 = vrot.slane %v552, 7
    %v872 = vsel %vm793, %v857, %v871
    %v873 = vrot.slane %v616, 7
    %v874 = vsel %vm793, %v859, %v873
    %v875 = vrot.slane %v658, 7
    %v876 = vsel %vm793, %v861, %v875
    %v877 = vrot.slane %v695, 7
    %v878 = vsel %vm793, %v863, %v877
    %v879 = vrot.slane %v722, 7
    %v880 = vsel %vm793, %v865, %v879
    %v881 = vrot.slane %v759, 7
    %v882 = vsel %vm793, %v867, %v881
    %v883 = vrot.slane %v786, 7
    %v884 = vsel %vm793, %v869, %v883
    %v885 = vrot.slane %v553, 7
    %v886 = vsel %vm793, %v871, %v885
    %v887 = vrot.slane %v624, 7
    %v888 = vsel %vm793, %v873, %v887
    %v889 = vrot.slane %v660, 7
    %v890 = vsel %vm793, %v875, %v889
    %v891 = vrot.slane %v699, 7
    %v892 = vsel %vm793, %v877, %v891
    %v893 = vrot.slane %v724, 7
    %v894 = vsel %vm793, %v879, %v893
    %v895 = vrot.slane %v763, 7
    %v896 = vsel %vm793, %v881, %v895
    %v897 = vrot.slane %v788, 7
    %v898 = vsel %vm793, %v883, %v897
    %v899 = vrot.slane %v554, 7
    %v900 = vsel %vm793, %v885, %v899
    %v901 = vrot.slane %v632, 7
    %v902 = vsel %vm793, %v887, %v901
    %v903 = vrot.slane %v662, 7
    %v904 = vsel %vm793, %v889, %v903
    %v905 = vrot.slane %v703, 7
    %v906 = vsel %vm793, %v891, %v905
    %v907 = vrot.slane %v726, 7
    %v908 = vsel %vm793, %v893, %v907
    %v909 = vrot.slane %v767, 7
    %v910 = vsel %vm793, %v895, %v909
    %v911 = vrot.slane %v790, 7
    %v912 = vsel %vm793, %v897, %v911
    %v913 = vrot.slane %v555, 7
    %v914 = vsel %vm793, %v899, %v913
    %v915 = vrot.slane %v640, 7
    %v916 = vsel %vm793, %v901, %v915
    %v917 = vrot.slane %v664, 7
    %v918 = vsel %vm793, %v903, %v917
    %v919 = vrot.slane %v707, 7
    %v920 = vsel %vm793, %v905, %v919
    %v921 = vrot.slane %v728, 7
    %v922 = vsel %vm793, %v907, %v921
    %v923 = vrot.slane %v771, 7
    %v924 = vsel %vm793, %v909, %v923
    %v925 = vrot.slane %v792, 7
    %v926 = vsel %vm793, %v911, %v925
    %v927 = vrot.slane %v556, 7
    %v928 = vsel %vm793, %v913, %v927
    %v929 = vrot.slane %v643, 7
    %v930 = vsel %vm793, %v915, %v929
    %v931 = vrot.slane %v663, 7
    %v932 = vsel %vm793, %v917, %v931
    %v933 = vrot.slane %v706, 7
    %v934 = vsel %vm793, %v919, %v933
    %v935 = vrot.slane %v727, 7
    %v936 = vsel %vm793, %v921, %v935
    %v937 = vrot.slane %v770, 7
    %v938 = vsel %vm793, %v923, %v937
    %v939 = vrot.slane %v791, 7
    %v940 = vsel %vm793, %v925, %v939
    %vm1011 = vcmask 1040384
    %v1013 = vsel %vm1011, %v191, %v794
    %v1017 = vsel %vm1011, %v289, %v795
    %v1021 = vsel %vm1011, %v320, %v796
    %v1025 = vsel %vm1011, %v374, %v797
    %v1029 = vsel %vm1011, %v406, %v798
    %v1033 = vsel %vm1011, %v460, %v799
    %v1037 = vsel %vm1011, %v492, %v800
    %v1039 = vld [vmem:[%s1] sm:$0xf]
    %v1040 = vld [vmem:[%s1 + $0x4] sm:$0xf]
    %v1041 = vld [vmem:[%s1 + $0x8] sm:$0xf]
    %v1042 = vld [vmem:[%s1 + $0xc] sm:$0xf]
    %v1043 = vld [vmem:[%s1 + $0x10] sm:$0xf]
    %v1044 = vld [vmem:[%s1 + $0x14] sm:$0xf]
    %v1045 = vld [vmem:[%s1 + $0x18] sm:$0xf]
    %v1046 = vld [vmem:[%s1 + $0x1c] sm:$0xf]
    %v1047 = vld [vmem:[%s1 + $0x20] sm:$0xf]
    %v1048 = vld [vmem:[%s1 + $0x24] sm:$0xf]
    %v1049 = vld [vmem:[%s1 + $0x28] sm:$0xf]
    %v1050 = vld [vmem:[%s1 + $0x2c] sm:$0xf]
    %v1051 = vld [vmem:[%s1 + $0x30] sm:$0xf]
    %v1052 = vld [vmem:[%s1 + $0x34] sm:$0xf]
    %v1053 = vld [vmem:[%s1 + $0x38] sm:$0xf]
    %v1054 = vld [vmem:[%s1 + $0x3c] sm:$0xf]
    %v1055 = vld [vmem:[%s1 + $0x40] sm:$0xf]
    %v1056 = vld [vmem:[%s1 + $0x44] sm:$0xf]
    %v1057 = vld [vmem:[%s1 + $0x48] sm:$0xf]
    %v1058 = vld [vmem:[%s1 + $0x4c] sm:$0xf]
    %v1059 = vld [vmem:[%s1 + $0x50] sm:$0xf]
    %v1060 = vld [vmem:[%s1 + $0x54] sm:$0xf]
    %v1061 = vld [vmem:[%s1 + $0x58] sm:$0xf]
    %v1062 = vld [vmem:[%s1 + $0x5c] sm:$0xf]
    %v1063 = vld [vmem:[%s1 + $0x60] sm:$0xf]
    %v1064 = vld [vmem:[%s1 + $0x64] sm:$0xf]
    %v1065 = vld [vmem:[%s1 + $0x68] sm:$0xf]
    %v1066 = vld [vmem:[%s1 + $0x6c] sm:$0xf]
    %v1067 = vld [vmem:[%s1 + $0x70] sm:$0xf]
    %v1068 = vld [vmem:[%s1 + $0x74] sm:$0xf]
    %v1069 = vld [vmem:[%s1 + $0x78] sm:$0xf]
    %v1070 = vld [vmem:[%s1 + $0x7c] sm:$0xf]
    %v1071 = vld [vmem:[%s1 + $0x80] sm:$0xf]
    %v1072 = vld [vmem:[%s1 + $0x84] sm:$0xf]
    %v1073 = vld [vmem:[%s1 + $0x88] sm:$0xf]
    %v1074 = vld [vmem:[%s1 + $0x8c] sm:$0xf]
    %v1075 = vld [vmem:[%s1 + $0x90] sm:$0xf]
    %v1076 = vld [vmem:[%s1 + $0x94] sm:$0xf]
    %v1077 = vld [vmem:[%s1 + $0x98] sm:$0xf]
    %v1078 = vld [vmem:[%s1 + $0x9c] sm:$0xf]
    %v1079 = vld [vmem:[%s1 + $0xa0] sm:$0xf]
    %v1080 = vld [vmem:[%s1 + $0xa4] sm:$0xf]
    %v1081 = vld [vmem:[%s1 + $0xa8] sm:$0xf]
    %v1082 = vld [vmem:[%s1 + $0xac] sm:$0xf]
    %v1083 = vld [vmem:[%s1 + $0xb0] sm:$0xf]
    %v1084 = vld [vmem:[%s1 + $0xb4] sm:$0xf]
    %v1085 = vld [vmem:[%s1 + $0xb8] sm:$0xf]
    %v1086 = vld [vmem:[%s1 + $0xbc] sm:$0xf]
    %v1087 = vld [vmem:[%s1 + $0xc0] sm:$0xf]
    %v1088 = vld [vmem:[%s1 + $0xc4] sm:$0xf]
    %v1089 = vld [vmem:[%s1 + $0xc8] sm:$0xf]
    %v1090 = vld [vmem:[%s1 + $0xcc] sm:$0xf]
    %v1091 = vld [vmem:[%s1 + $0xd0] sm:$0xf]
    %v1092 = vld [vmem:[%s1 + $0xd4] sm:$0xf]
    %v1093 = vld [vmem:[%s1 + $0xd8] sm:$0xf]
    %v1094 = vld [vmem:[%s1 + $0xdc] sm:$0xf]
    %v1095 = vld [vmem:[%s1 + $0xe0] sm:$0xf]
    %v1096 = vld [vmem:[%s1 + $0xe4] sm:$0xf]
    %v1097 = vld [vmem:[%s1 + $0xe8] sm:$0xf]
    %v1098 = vld [vmem:[%s1 + $0xec] sm:$0xf]
    %v1099 = vld [vmem:[%s1 + $0xf0] sm:$0xf]
    %v1100 = vld [vmem:[%s1 + $0xf4] sm:$0xf]
    %v1101 = vld [vmem:[%s1 + $0xf8] sm:$0xf]
    %v1102 = vld [vmem:[%s1 + $0xfc] sm:$0xf]
    %v1103 = vld [vmem:[%s1 + $0x100] sm:$0xf]
    %v1104 = vld [vmem:[%s1 + $0x104] sm:$0xf]
    %v1105 = vld [vmem:[%s1 + $0x108] sm:$0xf]
    %v1106 = vld [vmem:[%s1 + $0x10c] sm:$0xf]
    %v1107 = vld [vmem:[%s1 + $0x110] sm:$0xf]
    %v1108 = vld [vmem:[%s1 + $0x114] sm:$0xf]
    %v1109 = vld [vmem:[%s1 + $0x118] sm:$0xf]
    %v1110 = vld [vmem:[%s1 + $0x11c] sm:$0xf]
    %v1111 = vld [vmem:[%s1 + $0x120] sm:$0xf]
    %v1112 = vld [vmem:[%s1 + $0x124] sm:$0xf]
    %v1113 = vld [vmem:[%s1 + $0x128] sm:$0xf]
    %v1114 = vld [vmem:[%s1 + $0x12c] sm:$0xf]
    %v1115 = vld [vmem:[%s1 + $0x130] sm:$0xf]
    %v1116 = vld [vmem:[%s1 + $0x134] sm:$0xf]
    %v1117 = vld [vmem:[%s1 + $0x138] sm:$0xf]
    %v1118 = vld [vmem:[%s1 + $0x13c] sm:$0xf]
    %v1119 = vld [vmem:[%s1 + $0x140] sm:$0xf]
    %v1120 = vld [vmem:[%s1 + $0x144] sm:$0xf]
    %v1121 = vld [vmem:[%s1 + $0x148] sm:$0xf]
    %v1122 = vld [vmem:[%s1 + $0x14c] sm:$0xf]
    %v1123 = vld [vmem:[%s1 + $0x150] sm:$0xf]
    %v1124 = vld [vmem:[%s1 + $0x154] sm:$0xf]
    %v1125 = vld [vmem:[%s1 + $0x158] sm:$0xf]
    %v1126 = vld [vmem:[%s1 + $0x15c] sm:$0xf]
    %v1127 = vld [vmem:[%s1 + $0x160] sm:$0xf]
    %v1128 = vld [vmem:[%s1 + $0x164] sm:$0xf]
    %v1129 = vld [vmem:[%s1 + $0x168] sm:$0xf]
    %v1130 = vld [vmem:[%s1 + $0x16c] sm:$0xf]
    %v1131 = vld [vmem:[%s1 + $0x170] sm:$0xf]
    %v1132 = vld [vmem:[%s1 + $0x174] sm:$0xf]
    %v1133 = vld [vmem:[%s1 + $0x178] sm:$0xf]
    %v1134 = vld [vmem:[%s1 + $0x17c] sm:$0xf]
    %v1135 = vld [vmem:[%s1 + $0x180] sm:$0xf]
    %v1136 = vld [vmem:[%s1 + $0x184] sm:$0xf]
    %v1137 = vld [vmem:[%s1 + $0x188] sm:$0xf]
    %v1138 = vld [vmem:[%s1 + $0x18c] sm:$0xf]
    %v1139 = vld [vmem:[%s1 + $0x190] sm:$0xf]
    %v1140 = vld [vmem:[%s1 + $0x194] sm:$0xf]
    %v1141 = vld [vmem:[%s1 + $0x198] sm:$0xf]
    %v1142 = vld [vmem:[%s1 + $0x19c] sm:$0xf]
    %v1143 = vld [vmem:[%s1 + $0x1a0] sm:$0xf]
    %v1144 = vld [vmem:[%s1 + $0x1a4] sm:$0xf]
    %v1145 = vld [vmem:[%s1 + $0x1a8] sm:$0xf]
    %v1146 = vld [vmem:[%s1 + $0x1ac] sm:$0xf]
    %v1147 = vld [vmem:[%s1 + $0x1b0] sm:$0xf]
    %v1148 = vld [vmem:[%s1 + $0x1b4] sm:$0xf]
    %v1149 = vld [vmem:[%s1 + $0x1b8] sm:$0xf]
    %v1150 = vld [vmem:[%s1 + $0x1bc] sm:$0xf]
    %v1263 = vunpack.c.l.b16 %v1039
    %v1264 = vunpack.c.l.b16 %v1040
    %v1265 = vunpack.c.l.b16 %v1041
    %v1266 = vunpack.c.l.b16 %v1042
    %v1267 = vunpack.c.l.b16 %v1043
    %v1268 = vunpack.c.l.b16 %v1044
    %v1269 = vunpack.c.l.b16 %v1045
    %v1270 = vunpack.c.l.b16 %v1046
    %v1271 = vunpack.c.l.b16 %v1047
    %v1272 = vunpack.c.l.b16 %v1048
    %v1273 = vunpack.c.l.b16 %v1049
    %v1274 = vunpack.c.l.b16 %v1050
    %v1275 = vunpack.c.l.b16 %v1051
    %v1276 = vunpack.c.l.b16 %v1052
    %v1277 = vunpack.c.l.b16 %v1053
    %v1278 = vunpack.c.l.b16 %v1054
    %v1279 = vunpack.c.l.b16 %v1055
    %v1280 = vunpack.c.l.b16 %v1056
    %v1281 = vunpack.c.l.b16 %v1057
    %v1282 = vunpack.c.l.b16 %v1058
    %v1283 = vunpack.c.l.b16 %v1059
    %v1284 = vunpack.c.l.b16 %v1060
    %v1285 = vunpack.c.l.b16 %v1061
    %v1286 = vunpack.c.l.b16 %v1062
    %v1287 = vunpack.c.l.b16 %v1063
    %v1288 = vunpack.c.l.b16 %v1064
    %v1289 = vunpack.c.l.b16 %v1065
    %v1290 = vunpack.c.l.b16 %v1066
    %v1291 = vunpack.c.l.b16 %v1067
    %v1292 = vunpack.c.l.b16 %v1068
    %v1293 = vunpack.c.l.b16 %v1069
    %v1294 = vunpack.c.l.b16 %v1070
    %v1295 = vunpack.c.l.b16 %v1071
    %v1296 = vunpack.c.l.b16 %v1072
    %v1297 = vunpack.c.l.b16 %v1073
    %v1298 = vunpack.c.l.b16 %v1074
    %v1299 = vunpack.c.l.b16 %v1075
    %v1300 = vunpack.c.l.b16 %v1076
    %v1301 = vunpack.c.l.b16 %v1077
    %v1302 = vunpack.c.l.b16 %v1078
    %v1303 = vunpack.c.l.b16 %v1079
    %v1304 = vunpack.c.l.b16 %v1080
    %v1305 = vunpack.c.l.b16 %v1081
    %v1306 = vunpack.c.l.b16 %v1082
    %v1307 = vunpack.c.l.b16 %v1083
    %v1308 = vunpack.c.l.b16 %v1084
    %v1309 = vunpack.c.l.b16 %v1085
    %v1310 = vunpack.c.l.b16 %v1086
    %v1311 = vunpack.c.l.b16 %v1087
    %v1312 = vunpack.c.l.b16 %v1088
    %v1313 = vunpack.c.l.b16 %v1089
    %v1314 = vunpack.c.l.b16 %v1090
    %v1315 = vunpack.c.l.b16 %v1091
    %v1316 = vunpack.c.l.b16 %v1092
    %v1317 = vunpack.c.l.b16 %v1093
    %v1318 = vunpack.c.l.b16 %v1094
    %v1319 = vunpack.c.l.b16 %v1095
    %v1320 = vunpack.c.l.b16 %v1096
    %v1321 = vunpack.c.l.b16 %v1097
    %v1322 = vunpack.c.l.b16 %v1098
    %v1323 = vunpack.c.l.b16 %v1099
    %v1324 = vunpack.c.l.b16 %v1100
    %v1325 = vunpack.c.l.b16 %v1101
    %v1326 = vunpack.c.l.b16 %v1102
    %v1327 = vunpack.c.l.b16 %v1103
    %v1328 = vunpack.c.l.b16 %v1104
    %v1329 = vunpack.c.l.b16 %v1105
    %v1330 = vunpack.c.l.b16 %v1106
    %v1331 = vunpack.c.l.b16 %v1107
    %v1332 = vunpack.c.l.b16 %v1108
    %v1333 = vunpack.c.l.b16 %v1109
    %v1334 = vunpack.c.l.b16 %v1110
    %v1335 = vunpack.c.l.b16 %v1111
    %v1336 = vunpack.c.l.b16 %v1112
    %v1337 = vunpack.c.l.b16 %v1113
    %v1338 = vunpack.c.l.b16 %v1114
    %v1339 = vunpack.c.l.b16 %v1115
    %v1340 = vunpack.c.l.b16 %v1116
    %v1341 = vunpack.c.l.b16 %v1117
    %v1342 = vunpack.c.l.b16 %v1118
    %v1343 = vunpack.c.l.b16 %v1119
    %v1344 = vunpack.c.l.b16 %v1120
    %v1345 = vunpack.c.l.b16 %v1121
    %v1346 = vunpack.c.l.b16 %v1122
    %v1347 = vunpack.c.l.b16 %v1123
    %v1348 = vunpack.c.l.b16 %v1124
    %v1349 = vunpack.c.l.b16 %v1125
    %v1350 = vunpack.c.l.b16 %v1126
    %v1351 = vunpack.c.l.b16 %v1127
    %v1352 = vunpack.c.l.b16 %v1128
    %v1353 = vunpack.c.l.b16 %v1129
    %v1354 = vunpack.c.l.b16 %v1130
    %v1355 = vunpack.c.l.b16 %v1131
    %v1356 = vunpack.c.l.b16 %v1132
    %v1357 = vunpack.c.l.b16 %v1133
    %v1358 = vunpack.c.l.b16 %v1134
    %v1359 = vunpack.c.l.b16 %v1135
    %v1360 = vunpack.c.l.b16 %v1136
    %v1361 = vunpack.c.l.b16 %v1137
    %v1362 = vunpack.c.l.b16 %v1138
    %v1363 = vunpack.c.l.b16 %v1139
    %v1364 = vunpack.c.l.b16 %v1140
    %v1365 = vunpack.c.l.b16 %v1141
    %v1366 = vunpack.c.l.b16 %v1142
    %v1367 = vunpack.c.l.b16 %v1143
    %v1368 = vunpack.c.l.b16 %v1144
    %v1369 = vunpack.c.l.b16 %v1145
    %v1370 = vunpack.c.l.b16 %v1146
    %v1371 = vunpack.c.l.b16 %v1147
    %v1372 = vunpack.c.l.b16 %v1148
    %v1373 = vunpack.c.l.b16 %v1149
    %v1374 = vunpack.c.l.b16 %v1150
    %v1375 = vpack.c.b16 %v1264, %v1263
    %v1376 = vpack.c.b16 %v1266, %v1265
    %v1377 = vpack.c.b16 %v1268, %v1267
    %v1378 = vpack.c.b16 %v1270, %v1269
    %v1379 = vpack.c.b16 %v1272, %v1271
    %v1380 = vpack.c.b16 %v1274, %v1273
    %v1381 = vpack.c.b16 %v1276, %v1275
    %v1382 = vpack.c.b16 %v1278, %v1277
    %v1383 = vpack.c.b16 %v1280, %v1279
    %v1384 = vpack.c.b16 %v1282, %v1281
    %v1385 = vpack.c.b16 %v1284, %v1283
    %v1386 = vpack.c.b16 %v1286, %v1285
    %v1387 = vpack.c.b16 %v1288, %v1287
    %v1388 = vpack.c.b16 %v1290, %v1289
    %v1389 = vpack.c.b16 %v1292, %v1291
    %v1390 = vpack.c.b16 %v1294, %v1293
    %v1391 = vpack.c.b16 %v1296, %v1295
    %v1392 = vpack.c.b16 %v1298, %v1297
    %v1393 = vpack.c.b16 %v1300, %v1299
    %v1394 = vpack.c.b16 %v1302, %v1301
    %v1395 = vpack.c.b16 %v1304, %v1303
    %v1396 = vpack.c.b16 %v1306, %v1305
    %v1397 = vpack.c.b16 %v1308, %v1307
    %v1398 = vpack.c.b16 %v1310, %v1309
    %v1399 = vpack.c.b16 %v1312, %v1311
    %v1400 = vpack.c.b16 %v1314, %v1313
    %v1401 = vpack.c.b16 %v1316, %v1315
    %v1402 = vpack.c.b16 %v1318, %v1317
    %v1403 = vpack.c.b16 %v1320, %v1319
    %v1404 = vpack.c.b16 %v1322, %v1321
    %v1405 = vpack.c.b16 %v1324, %v1323
    %v1406 = vpack.c.b16 %v1326, %v1325
    %v1407 = vpack.c.b16 %v1328, %v1327
    %v1408 = vpack.c.b16 %v1330, %v1329
    %v1409 = vpack.c.b16 %v1332, %v1331
    %v1410 = vpack.c.b16 %v1334, %v1333
    %v1411 = vpack.c.b16 %v1336, %v1335
    %v1412 = vpack.c.b16 %v1338, %v1337
    %v1413 = vpack.c.b16 %v1340, %v1339
    %v1414 = vpack.c.b16 %v1342, %v1341
    %v1415 = vpack.c.b16 %v1344, %v1343
    %v1416 = vpack.c.b16 %v1346, %v1345
    %v1417 = vpack.c.b16 %v1348, %v1347
    %v1418 = vpack.c.b16 %v1350, %v1349
    %v1419 = vpack.c.b16 %v1352, %v1351
    %v1420 = vpack.c.b16 %v1354, %v1353
    %v1421 = vpack.c.b16 %v1356, %v1355
    %v1422 = vpack.c.b16 %v1358, %v1357
    %v1423 = vpack.c.b16 %v1360, %v1359
    %v1424 = vpack.c.b16 %v1362, %v1361
    %v1425 = vpack.c.b16 %v1364, %v1363
    %v1426 = vpack.c.b16 %v1366, %v1365
    %v1427 = vpack.c.b16 %v1368, %v1367
    %v1428 = vpack.c.b16 %v1370, %v1369
    %v1429 = vpack.c.b16 %v1372, %v1371
    %v1430 = vpack.c.b16 %v1374, %v1373
    %1487 = vmatprep.subr.bf16.mxu0 0
    %1488 = vmatpush1.bf16.msra.mxu0 %v1375
    %1489 = vmatprep.subr.bf16.mxu0 0
    %1490 = vmatpush1.bf16.msra.mxu0 %v1376
    %1491 = vmatprep.subr.bf16.mxu0 0
    %1492 = vmatpush1.bf16.msra.mxu0 %v1377
    %1493 = vmatprep.subr.bf16.mxu0 0
    %1494 = vmatpush1.bf16.msra.mxu0 %v1378
    %1495 = vmatprep.subr.bf16.mxu0 0
    %1496 = vmatpush1.bf16.msra.mxu0 %v1379
    %1497 = vmatprep.subr.bf16.mxu0 0
    %1498 = vmatpush1.bf16.msra.mxu0 %v1380
    %1499 = vmatprep.subr.bf16.mxu0 0
    %1500 = vmatpush1.bf16.msra.mxu0 %v1381
    %1501 = vmatprep.subr.bf16.mxu0 0
    %1502 = vmatpush1.bf16.msra.mxu0 %v1382
    %1503 = vmatprep.subr.bf16.mxu0 0
    %1504 = vmatpush1.bf16.msra.mxu0 %v1383
    %1505 = vmatprep.subr.bf16.mxu0 0
    %1506 = vmatpush1.bf16.msra.mxu0 %v1384
    %1507 = vmatprep.subr.bf16.mxu0 0
    %1508 = vmatpush1.bf16.msra.mxu0 %v1385
    %1509 = vmatprep.subr.bf16.mxu0 0
    %1510 = vmatpush1.bf16.msra.mxu0 %v1386
    %1511 = vmatprep.subr.bf16.mxu0 0
    %1512 = vmatpush1.bf16.msra.mxu0 %v1387
    %1513 = vmatprep.subr.bf16.mxu0 0
    %1514 = vmatpush1.bf16.msra.mxu0 %v1388
    %1515 = vmatprep.subr.bf16.mxu0 0
    %1516 = vmatpush1.bf16.msra.mxu0 %v1389
    %1517 = vmatprep.subr.bf16.mxu0 0
    %1518 = vmatpush1.bf16.msra.mxu0 %v1390
    %1519 = vmatprep.mubr.bf16.mxu0 %v214
    %1520 = vmatmul.mubr.bf16.gmra.mrb[0].mxu0 %v181
    %v1521 = vpop.f32.mrb[0].mxu0
    %v1522 = vadd.f32 0.0, %v1521
    %v1523 = vpop.f32.mrb[0].mxu0
    %v1524 = vpop.f32.mrb[0].mxu0
    %v1525 = vadd.f32 0.0, %v1524
    %v1526 = vpop.f32.mrb[0].mxu0
    %1527 = vmatprep.mubr.bf16.mxu0 %v222
    %1528 = vmatmul.mubr.bf16.gmra.mrb[0].mxu0 %v182
    %v1529 = vpop.f32.mrb[0].mxu0
    %v1530 = vadd.f32 0.0, %v1529
    %v1531 = vpop.f32.mrb[0].mxu0
    %v1532 = vpop.f32.mrb[0].mxu0
    %v1533 = vadd.f32 0.0, %v1532
    %v1534 = vpop.f32.mrb[0].mxu0
    %1535 = vmatprep.mubr.bf16.mxu0 %v230
    %1536 = vmatmul.mubr.bf16.gmra.mrb[0].mxu0 %v183
    %v1537 = vpop.f32.mrb[0].mxu0
    %v1538 = vadd.f32 0.0, %v1537
    %v1539 = vpop.f32.mrb[0].mxu0
    %v1540 = vpop.f32.mrb[0].mxu0
    %v1541 = vadd.f32 0.0, %v1540
    %v1542 = vpop.f32.mrb[0].mxu0
    %1543 = vmatprep.mubr.bf16.mxu0 %v238
    %1544 = vmatmul.mubr.bf16.gmra.mrb[0].mxu0 %v184
    %v1545 = vpop.f32.mrb[0].mxu0
    %v1546 = vadd.f32 0.0, %v1545
    %v1547 = vpop.f32.mrb[0].mxu0
    %v1548 = vpop.f32.mrb[0].mxu0
    %v1549 = vadd.f32 0.0, %v1548
    %v1550 = vpop.f32.mrb[0].mxu0
    %1551 = vmatprep.mubr.bf16.mxu0 %v246
    %1552 = vmatmul.mubr.bf16.gmra.mrb[0].mxu0 %v185
    %v1553 = vpop.f32.mrb[0].mxu0
    %v1554 = vadd.f32 0.0, %v1553
    %v1555 = vpop.f32.mrb[0].mxu0
    %v1556 = vpop.f32.mrb[0].mxu0
    %v1557 = vadd.f32 0.0, %v1556
    %v1558 = vpop.f32.mrb[0].mxu0
    %1559 = vmatprep.mubr.bf16.mxu0 %v254
    %1560 = vmatmul.mubr.bf16.gmra.mrb[0].mxu0 %v186
    %v1561 = vpop.f32.mrb[0].mxu0
    %v1562 = vadd.f32 0.0, %v1561
    %v1563 = vpop.f32.mrb[0].mxu0
    %v1564 = vpop.f32.mrb[0].mxu0
    %v1565 = vadd.f32 0.0, %v1564
    %v1566 = vpop.f32.mrb[0].mxu0
    %1567 = vmatprep.mubr.bf16.mxu0 %v262
    %1568 = vmatmul.mubr.bf16.gmra.mrb[0].mxu0 %v187
    %v1569 = vpop.f32.mrb[0].mxu0
    %v1570 = vadd.f32 0.0, %v1569
    %v1571 = vpop.f32.mrb[0].mxu0
    %v1572 = vpop.f32.mrb[0].mxu0
    %v1573 = vadd.f32 0.0, %v1572
    %v1574 = vpop.f32.mrb[0].mxu0
    %1575 = vmatprep.mubr.bf16.mxu0 %v270
    %1576 = vmatmul.mubr.bf16.gmra.mrb[0].mxu0 %v188
    %v1577 = vpop.f32.mrb[0].mxu0
    %v1578 = vadd.f32 0.0, %v1577
    %v1579 = vpop.f32.mrb[0].mxu0
    %v1580 = vpop.f32.mrb[0].mxu0
    %v1581 = vadd.f32 0.0, %v1580
    %v1582 = vpop.f32.mrb[0].mxu0
    %1583 = vmatprep.mubr.bf16.mxu0 %v278
    %1584 = vmatmul.mubr.bf16.gmra.mrb[0].mxu0 %v189
    %v1585 = vpop.f32.mrb[0].mxu0
    %v1586 = vadd.f32 0.0, %v1585
    %v1587 = vpop.f32.mrb[0].mxu0
    %v1588 = vpop.f32.mrb[0].mxu0
    %v1589 = vadd.f32 0.0, %v1588
    %v1590 = vpop.f32.mrb[0].mxu0
    %1591 = vmatprep.mubr.bf16.mxu0 %v286
    %1592 = vmatmul.mubr.bf16.gmra.mrb[0].mxu0 %v190
    %v1593 = vpop.f32.mrb[0].mxu0
    %v1594 = vadd.f32 0.0, %v1593
    %v1595 = vpop.f32.mrb[0].mxu0
    %v1596 = vpop.f32.mrb[0].mxu0
    %v1597 = vadd.f32 0.0, %v1596
    %v1598 = vpop.f32.mrb[0].mxu0
    %1599 = vmatprep.mubr.bf16.mxu0 %v1017
    %1600 = vmatmul.mubr.bf16.gmra.mrb[0].mxu0 %v1013
    %v1601 = vpop.f32.mrb[0].mxu0
    %v1602 = vadd.f32 0.0, %v1601
    %v1603 = vpop.f32.mrb[0].mxu0
    %v1604 = vpop.f32.mrb[0].mxu0
    %v1605 = vadd.f32 0.0, %v1604
    %v1606 = vpop.f32.mrb[0].mxu0
    %1607 = vmatprep.mubr.bf16.mxu0 %v804
    %1608 = vmatmul.mubr.bf16.gmra.mrb[0].mxu0 %v802
    %v1609 = vpop.f32.mrb[0].mxu0
    %v1610 = vadd.f32 0.0, %v1609
    %v1611 = vpop.f32.mrb[0].mxu0
    %v1612 = vpop.f32.mrb[0].mxu0
    %v1613 = vadd.f32 0.0, %v1612
    %v1614 = vpop.f32.mrb[0].mxu0
    %1615 = vmatprep.mubr.bf16.mxu0 %v818
    %1616 = vmatmul.mubr.bf16.gmra.mrb[0].mxu0 %v816
    %v1617 = vpop.f32.mrb[0].mxu0
    %v1618 = vadd.f32 0.0, %v1617
    %v1619 = vpop.f32.mrb[0].mxu0
    %v1620 = vpop.f32.mrb[0].mxu0
    %v1621 = vadd.f32 0.0, %v1620
    %v1622 = vpop.f32.mrb[0].mxu0
    %1623 = vmatprep.mubr.bf16.mxu0 %v832
    %1624 = vmatmul.mubr.bf16.gmra.mrb[0].mxu0 %v830
    %v1625 = vpop.f32.mrb[0].mxu0
    %v1626 = vadd.f32 0.0, %v1625
    %v1627 = vpop.f32.mrb[0].mxu0
    %v1628 = vpop.f32.mrb[0].mxu0
    %v1629 = vadd.f32 0.0, %v1628
    %v1630 = vpop.f32.mrb[0].mxu0
    %1631 = vmatprep.mubr.bf16.mxu0 %v846
    %1632 = vmatmul.mubr.bf16.gmra.mrb[0].mxu0 %v844
    %v1633 = vpop.f32.mrb[0].mxu0
    %v1634 = vadd.f32 0.0, %v1633
    %v1635 = vpop.f32.mrb[0].mxu0
    %v1636 = vpop.f32.mrb[0].mxu0
    %v1637 = vadd.f32 0.0, %v1636
    %v1638 = vpop.f32.mrb[0].mxu0
    %1639 = vmatprep.mubr.bf16.mxu0 %v860
    %1640 = vmatmul.mubr.bf16.gmra.mrb[0].mxu0 %v858
    %v1641 = vpop.f32.mrb[0].mxu0
    %v1642 = vadd.f32 0.0, %v1641
    %v1643 = vpop.f32.mrb[0].mxu0
    %v1644 = vpop.f32.mrb[0].mxu0
    %v1645 = vadd.f32 0.0, %v1644
    %v1646 = vpop.f32.mrb[0].mxu0
    %1647 = vmatprep.mubr.bf16.mxu0 %v874
    %1648 = vmatmul.mubr.bf16.gmra.mrb[0].mxu0 %v872
    %v1649 = vpop.f32.mrb[0].mxu0
    %v1650 = vadd.f32 0.0, %v1649
    %v1651 = vpop.f32.mrb[0].mxu0
    %v1652 = vpop.f32.mrb[0].mxu0
    %v1653 = vadd.f32 0.0, %v1652
    %v1654 = vpop.f32.mrb[0].mxu0
    %1655 = vmatprep.mubr.bf16.mxu0 %v888
    %1656 = vmatmul.mubr.bf16.gmra.mrb[0].mxu0 %v886
    %v1657 = vpop.f32.mrb[0].mxu0
    %v1658 = vadd.f32 0.0, %v1657
    %v1659 = vpop.f32.mrb[0].mxu0
    %v1660 = vpop.f32.mrb[0].mxu0
    %v1661 = vadd.f32 0.0, %v1660
    %v1662 = vpop.f32.mrb[0].mxu0
    %1663 = vmatprep.mubr.bf16.mxu0 %v902
    %1664 = vmatmul.mubr.bf16.gmra.mrb[0].mxu0 %v900
    %v1665 = vpop.f32.mrb[0].mxu0
    %v1666 = vadd.f32 0.0, %v1665
    %v1667 = vpop.f32.mrb[0].mxu0
    %v1668 = vpop.f32.mrb[0].mxu0
    %v1669 = vadd.f32 0.0, %v1668
    %v1670 = vpop.f32.mrb[0].mxu0
    %1671 = vmatprep.mubr.bf16.mxu0 %v916
    %1672 = vmatmul.mubr.bf16.gmra.mrb[0].mxu0 %v914
    %v1673 = vpop.f32.mrb[0].mxu0
    %v1674 = vadd.f32 0.0, %v1673
    %v1675 = vpop.f32.mrb[0].mxu0
    %v1676 = vpop.f32.mrb[0].mxu0
    %v1677 = vadd.f32 0.0, %v1676
    %v1678 = vpop.f32.mrb[0].mxu0
    %1679 = vmatprep.mubr.bf16.mxu0 %v930
    %1680 = vmatmul.mubr.bf16.gmra.mrb[0].mxu0 %v928
    %v1681 = vpop.f32.mrb[0].mxu0
    %v1682 = vadd.f32 0.0, %v1681
    %v1683 = vpop.f32.mrb[0].mxu0
    %v1684 = vpop.f32.mrb[0].mxu0
    %v1685 = vpop.f32.mrb[0].mxu0
    %1686 = vdwg.mxu0
    %1687 = vmatprep.subr.bf16.mxu0 0
    %1688 = vmatpush1.bf16.msra.mxu0 %v1391
    %1689 = vmatprep.subr.bf16.mxu0 0
    %1690 = vmatpush1.bf16.msra.mxu0 %v1392
    %1691 = vmatprep.subr.bf16.mxu0 0
    %1692 = vmatpush1.bf16.msra.mxu0 %v1393
    %1693 = vmatprep.subr.bf16.mxu0 0
    %1694 = vmatpush1.bf16.msra.mxu0 %v1394
    %1695 = vmatprep.subr.bf16.mxu0 0
    %1696 = vmatpush1.bf16.msra.mxu0 %v1395
    %1697 = vmatprep.subr.bf16.mxu0 0
    %1698 = vmatpush1.bf16.msra.mxu0 %v1396
    %1699 = vmatprep.subr.bf16.mxu0 0
    %1700 = vmatpush1.bf16.msra.mxu0 %v1397
    %1701 = vmatprep.subr.bf16.mxu0 0
    %1702 = vmatpush1.bf16.msra.mxu0 %v1398
    %1703 = vmatprep.subr.bf16.mxu0 0
    %1704 = vmatpush1.bf16.msra.mxu0 %v1399
    %1705 = vmatprep.subr.bf16.mxu0 0
    %1706 = vmatpush1.bf16.msra.mxu0 %v1400
    %1707 = vmatprep.subr.bf16.mxu0 0
    %1708 = vmatpush1.bf16.msra.mxu0 %v1401
    %1709 = vmatprep.subr.bf16.mxu0 0
    %1710 = vmatpush1.bf16.msra.mxu0 %v1402
    %1711 = vmatprep.subr.bf16.mxu0 0
    %1712 = vmatpush1.bf16.msra.mxu0 %v1403
    %1713 = vmatprep.subr.bf16.mxu0 0
    %1714 = vmatpush1.bf16.msra.mxu0 %v1404
    %1715 = vmatprep.subr.bf16.mxu0 0
    %1716 = vmatpush1.bf16.msra.mxu0 %v1405
    %1717 = vmatprep.subr.bf16.mxu0 0
    %1718 = vmatpush1.bf16.msra.mxu0 %v1406
    %1719 = vmatprep.mubr.bf16.mxu0 %v339
    %1720 = vmatmul.mubr.bf16.gmra.mrb[0].mxu0 %v303
    %v1721 = vpop.f32.mrb[0].mxu0
    %v1722 = vadd.f32 %v1522, %v1721
    %v1723 = vpop.f32.mrb[0].mxu0
    %v1724 = vpop.f32.mrb[0].mxu0
    %v1725 = vadd.f32 %v1525, %v1724
    %v1726 = vpop.f32.mrb[0].mxu0
    %1727 = vmatprep.mubr.bf16.mxu0 %v343
    %1728 = vmatmul.mubr.bf16.gmra.mrb[0].mxu0 %v305
    %v1729 = vpop.f32.mrb[0].mxu0
    %v1730 = vadd.f32 %v1530, %v1729
    %v1731 = vpop.f32.mrb[0].mxu0
    %v1732 = vpop.f32.mrb[0].mxu0
    %v1733 = vadd.f32 %v1533, %v1732
    %v1734 = vpop.f32.mrb[0].mxu0
    %1735 = vmatprep.mubr.bf16.mxu0 %v347
    %1736 = vmatmul.mubr.bf16.gmra.mrb[0].mxu0 %v307
    %v1737 = vpop.f32.mrb[0].mxu0
    %v1738 = vadd.f32 %v1538, %v1737
    %v1739 = vpop.f32.mrb[0].mxu0
    %v1740 = vpop.f32.mrb[0].mxu0
    %v1741 = vadd.f32 %v1541, %v1740
    %v1742 = vpop.f32.mrb[0].mxu0
    %1743 = vmatprep.mubr.bf16.mxu0 %v351
    %1744 = vmatmul.mubr.bf16.gmra.mrb[0].mxu0 %v309
    %v1745 = vpop.f32.mrb[0].mxu0
    %v1746 = vadd.f32 %v1546, %v1745
    %v1747 = vpop.f32.mrb[0].mxu0
    %v1748 = vpop.f32.mrb[0].mxu0
    %v1749 = vadd.f32 %v1549, %v1748
    %v1750 = vpop.f32.mrb[0].mxu0
    %1751 = vmatprep.mubr.bf16.mxu0 %v355
    %1752 = vmatmul.mubr.bf16.gmra.mrb[0].mxu0 %v311
    %v1753 = vpop.f32.mrb[0].mxu0
    %v1754 = vadd.f32 %v1554, %v1753
    %v1755 = vpop.f32.mrb[0].mxu0
    %v1756 = vpop.f32.mrb[0].mxu0
    %v1757 = vadd.f32 %v1557, %v1756
    %v1758 = vpop.f32.mrb[0].mxu0
    %1759 = vmatprep.mubr.bf16.mxu0 %v359
    %1760 = vmatmul.mubr.bf16.gmra.mrb[0].mxu0 %v313
    %v1761 = vpop.f32.mrb[0].mxu0
    %v1762 = vadd.f32 %v1562, %v1761
    %v1763 = vpop.f32.mrb[0].mxu0
    %v1764 = vpop.f32.mrb[0].mxu0
    %v1765 = vadd.f32 %v1565, %v1764
    %v1766 = vpop.f32.mrb[0].mxu0
    %1767 = vmatprep.mubr.bf16.mxu0 %v363
    %1768 = vmatmul.mubr.bf16.gmra.mrb[0].mxu0 %v315
    %v1769 = vpop.f32.mrb[0].mxu0
    %v1770 = vadd.f32 %v1570, %v1769
    %v1771 = vpop.f32.mrb[0].mxu0
    %v1772 = vpop.f32.mrb[0].mxu0
    %v1773 = vadd.f32 %v1573, %v1772
    %v1774 = vpop.f32.mrb[0].mxu0
    %1775 = vmatprep.mubr.bf16.mxu0 %v367
    %1776 = vmatmul.mubr.bf16.gmra.mrb[0].mxu0 %v317
    %v1777 = vpop.f32.mrb[0].mxu0
    %v1778 = vadd.f32 %v1578, %v1777
    %v1779 = vpop.f32.mrb[0].mxu0
    %v1780 = vpop.f32.mrb[0].mxu0
    %v1781 = vadd.f32 %v1581, %v1780
    %v1782 = vpop.f32.mrb[0].mxu0
    %1783 = vmatprep.mubr.bf16.mxu0 %v371
    %1784 = vmatmul.mubr.bf16.gmra.mrb[0].mxu0 %v319
    %v1785 = vpop.f32.mrb[0].mxu0
    %v1786 = vadd.f32 %v1586, %v1785
    %v1787 = vpop.f32.mrb[0].mxu0
    %v1788 = vpop.f32.mrb[0].mxu0
    %v1789 = vadd.f32 %v1589, %v1788
    %v1790 = vpop.f32.mrb[0].mxu0
    %1791 = vmatprep.mubr.bf16.mxu0 %v375
    %1792 = vmatmul.mubr.bf16.gmra.mrb[0].mxu0 %v321
    %v1793 = vpop.f32.mrb[0].mxu0
    %v1794 = vadd.f32 %v1594, %v1793
    %v1795 = vpop.f32.mrb[0].mxu0
    %v1796 = vpop.f32.mrb[0].mxu0
    %v1797 = vadd.f32 %v1597, %v1796
    %v1798 = vpop.f32.mrb[0].mxu0
    %1799 = vmatprep.mubr.bf16.mxu0 %v1025
    %1800 = vmatmul.mubr.bf16.gmra.mrb[0].mxu0 %v1021
    %v1801 = vpop.f32.mrb[0].mxu0
    %v1802 = vadd.f32 %v1602, %v1801
    %v1803 = vpop.f32.mrb[0].mxu0
    %v1804 = vpop.f32.mrb[0].mxu0
    %v1805 = vadd.f32 %v1605, %v1804
    %v1806 = vpop.f32.mrb[0].mxu0
    %1807 = vmatprep.mubr.bf16.mxu0 %v808
    %1808 = vmatmul.mubr.bf16.gmra.mrb[0].mxu0 %v806
    %v1809 = vpop.f32.mrb[0].mxu0
    %v1810 = vadd.f32 %v1610, %v1809
    %v1811 = vpop.f32.mrb[0].mxu0
    %v1812 = vpop.f32.mrb[0].mxu0
    %v1813 = vadd.f32 %v1613, %v1812
    %v1814 = vpop.f32.mrb[0].mxu0
    %1815 = vmatprep.mubr.bf16.mxu0 %v822
    %1816 = vmatmul.mubr.bf16.gmra.mrb[0].mxu0 %v820
    %v1817 = vpop.f32.mrb[0].mxu0
    %v1818 = vadd.f32 %v1618, %v1817
    %v1819 = vpop.f32.mrb[0].mxu0
    %v1820 = vpop.f32.mrb[0].mxu0
    %v1821 = vadd.f32 %v1621, %v1820
    %v1822 = vpop.f32.mrb[0].mxu0
    %1823 = vmatprep.mubr.bf16.mxu0 %v836
    %1824 = vmatmul.mubr.bf16.gmra.mrb[0].mxu0 %v834
    %v1825 = vpop.f32.mrb[0].mxu0
    %v1826 = vadd.f32 %v1626, %v1825
    %v1827 = vpop.f32.mrb[0].mxu0
    %v1828 = vpop.f32.mrb[0].mxu0
    %v1829 = vadd.f32 %v1629, %v1828
    %v1830 = vpop.f32.mrb[0].mxu0
    %1831 = vmatprep.mubr.bf16.mxu0 %v850
    %1832 = vmatmul.mubr.bf16.gmra.mrb[0].mxu0 %v848
    %v1833 = vpop.f32.mrb[0].mxu0
    %v1834 = vadd.f32 %v1634, %v1833
    %v1835 = vpop.f32.mrb[0].mxu0
    %v1836 = vpop.f32.mrb[0].mxu0
    %v1837 = vadd.f32 %v1637, %v1836
    %v1838 = vpop.f32.mrb[0].mxu0
    %1839 = vmatprep.mubr.bf16.mxu0 %v864
    %1840 = vmatmul.mubr.bf16.gmra.mrb[0].mxu0 %v862
    %v1841 = vpop.f32.mrb[0].mxu0
    %v1842 = vadd.f32 %v1642, %v1841
    %v1843 = vpop.f32.mrb[0].mxu0
    %v1844 = vpop.f32.mrb[0].mxu0
    %v1845 = vadd.f32 %v1645, %v1844
    %v1846 = vpop.f32.mrb[0].mxu0
    %1847 = vmatprep.mubr.bf16.mxu0 %v878
    %1848 = vmatmul.mubr.bf16.gmra.mrb[0].mxu0 %v876
    %v1849 = vpop.f32.mrb[0].mxu0
    %v1850 = vadd.f32 %v1650, %v1849
    %v1851 = vpop.f32.mrb[0].mxu0
    %v1852 = vpop.f32.mrb[0].mxu0
    %v1853 = vadd.f32 %v1653, %v1852
    %v1854 = vpop.f32.mrb[0].mxu0
    %1855 = vmatprep.mubr.bf16.mxu0 %v892
    %1856 = vmatmul.mubr.bf16.gmra.mrb[0].mxu0 %v890
    %v1857 = vpop.f32.mrb[0].mxu0
    %v1858 = vadd.f32 %v1658, %v1857
    %v1859 = vpop.f32.mrb[0].mxu0
    %v1860 = vpop.f32.mrb[0].mxu0
    %v1861 = vadd.f32 %v1661, %v1860
    %v1862 = vpop.f32.mrb[0].mxu0
    %1863 = vmatprep.mubr.bf16.mxu0 %v906
    %1864 = vmatmul.mubr.bf16.gmra.mrb[0].mxu0 %v904
    %v1865 = vpop.f32.mrb[0].mxu0
    %v1866 = vadd.f32 %v1666, %v1865
    %v1867 = vpop.f32.mrb[0].mxu0
    %v1868 = vpop.f32.mrb[0].mxu0
    %v1869 = vadd.f32 %v1669, %v1868
    %v1870 = vpop.f32.mrb[0].mxu0
    %1871 = vmatprep.mubr.bf16.mxu0 %v920
    %1872 = vmatmul.mubr.bf16.gmra.mrb[0].mxu0 %v918
    %v1873 = vpop.f32.mrb[0].mxu0
    %v1874 = vadd.f32 %v1674, %v1873
    %v1875 = vpop.f32.mrb[0].mxu0
    %v1876 = vpop.f32.mrb[0].mxu0
    %v1877 = vadd.f32 %v1677, %v1876
    %v1878 = vpop.f32.mrb[0].mxu0
    %1879 = vmatprep.mubr.bf16.mxu0 %v934
    %1880 = vmatmul.mubr.bf16.gmra.mrb[0].mxu0 %v932
    %v1881 = vpop.f32.mrb[0].mxu0
    %v1882 = vadd.f32 %v1682, %v1881
    %v1883 = vpop.f32.mrb[0].mxu0
    %v1884 = vpop.f32.mrb[0].mxu0
    %v1885 = vpop.f32.mrb[0].mxu0
    %1886 = vdwg.mxu0
    %1887 = vmatprep.subr.bf16.mxu0 0
    %1888 = vmatpush1.bf16.msra.mxu0 %v1407
    %1889 = vmatprep.subr.bf16.mxu0 0
    %1890 = vmatpush1.bf16.msra.mxu0 %v1408
    %1891 = vmatprep.subr.bf16.mxu0 0
    %1892 = vmatpush1.bf16.msra.mxu0 %v1409
    %1893 = vmatprep.subr.bf16.mxu0 0
    %1894 = vmatpush1.bf16.msra.mxu0 %v1410
    %1895 = vmatprep.subr.bf16.mxu0 0
    %1896 = vmatpush1.bf16.msra.mxu0 %v1411
    %1897 = vmatprep.subr.bf16.mxu0 0
    %1898 = vmatpush1.bf16.msra.mxu0 %v1412
    %1899 = vmatprep.subr.bf16.mxu0 0
    %1900 = vmatpush1.bf16.msra.mxu0 %v1413
    %1901 = vmatprep.subr.bf16.mxu0 0
    %1902 = vmatpush1.bf16.msra.mxu0 %v1414
    %1903 = vmatprep.subr.bf16.mxu0 0
    %1904 = vmatpush1.bf16.msra.mxu0 %v1415
    %1905 = vmatprep.subr.bf16.mxu0 0
    %1906 = vmatpush1.bf16.msra.mxu0 %v1416
    %1907 = vmatprep.subr.bf16.mxu0 0
    %1908 = vmatpush1.bf16.msra.mxu0 %v1417
    %1909 = vmatprep.subr.bf16.mxu0 0
    %1910 = vmatpush1.bf16.msra.mxu0 %v1418
    %1911 = vmatprep.subr.bf16.mxu0 0
    %1912 = vmatpush1.bf16.msra.mxu0 %v1419
    %1913 = vmatprep.subr.bf16.mxu0 0
    %1914 = vmatpush1.bf16.msra.mxu0 %v1420
    %1915 = vmatprep.subr.bf16.mxu0 0
    %1916 = vmatpush1.bf16.msra.mxu0 %v1421
    %1917 = vmatprep.subr.bf16.mxu0 0
    %1918 = vmatpush1.bf16.msra.mxu0 %v1422
    %1919 = vmatprep.mubr.bf16.mxu0 %v425
    %1920 = vmatmul.mubr.bf16.gmra.mrb[0].mxu0 %v389
    %v1921 = vpop.f32.mrb[0].mxu0
    %v1922 = vadd.f32 %v1722, %v1921
    %v1923 = vpop.f32.mrb[0].mxu0
    %v1924 = vpop.f32.mrb[0].mxu0
    %v1925 = vadd.f32 %v1725, %v1924
    %v1926 = vpop.f32.mrb[0].mxu0
    %1927 = vmatprep.mubr.bf16.mxu0 %v429
    %1928 = vmatmul.mubr.bf16.gmra.mrb[0].mxu0 %v391
    %v1929 = vpop.f32.mrb[0].mxu0
    %v1930 = vadd.f32 %v1730, %v1929
    %v1931 = vpop.f32.mrb[0].mxu0
    %v1932 = vpop.f32.mrb[0].mxu0
    %v1933 = vadd.f32 %v1733, %v1932
    %v1934 = vpop.f32.mrb[0].mxu0
    %1935 = vmatprep.mubr.bf16.mxu0 %v433
    %1936 = vmatmul.mubr.bf16.gmra.mrb[0].mxu0 %v393
    %v1937 = vpop.f32.mrb[0].mxu0
    %v1938 = vadd.f32 %v1738, %v1937
    %v1939 = vpop.f32.mrb[0].mxu0
    %v1940 = vpop.f32.mrb[0].mxu0
    %v1941 = vadd.f32 %v1741, %v1940
    %v1942 = vpop.f32.mrb[0].mxu0
    %1943 = vmatprep.mubr.bf16.mxu0 %v437
    %1944 = vmatmul.mubr.bf16.gmra.mrb[0].mxu0 %v395
    %v1945 = vpop.f32.mrb[0].mxu0
    %v1946 = vadd.f32 %v1746, %v1945
    %v1947 = vpop.f32.mrb[0].mxu0
    %v1948 = vpop.f32.mrb[0].mxu0
    %v1949 = vadd.f32 %v1749, %v1948
    %v1950 = vpop.f32.mrb[0].mxu0
    %1951 = vmatprep.mubr.bf16.mxu0 %v441
    %1952 = vmatmul.mubr.bf16.gmra.mrb[0].mxu0 %v397
    %v1953 = vpop.f32.mrb[0].mxu0
    %v1954 = vadd.f32 %v1754, %v1953
    %v1955 = vpop.f32.mrb[0].mxu0
    %v1956 = vpop.f32.mrb[0].mxu0
    %v1957 = vadd.f32 %v1757, %v1956
    %v1958 = vpop.f32.mrb[0].mxu0
    %1959 = vmatprep.mubr.bf16.mxu0 %v445
    %1960 = vmatmul.mubr.bf16.gmra.mrb[0].mxu0 %v399
    %v1961 = vpop.f32.mrb[0].mxu0
    %v1962 = vadd.f32 %v1762, %v1961
    %v1963 = vpop.f32.mrb[0].mxu0
    %v1964 = vpop.f32.mrb[0].mxu0
    %v1965 = vadd.f32 %v1765, %v1964
    %v1966 = vpop.f32.mrb[0].mxu0
    %1967 = vmatprep.mubr.bf16.mxu0 %v449
    %1968 = vmatmul.mubr.bf16.gmra.mrb[0].mxu0 %v401
    %v1969 = vpop.f32.mrb[0].mxu0
    %v1970 = vadd.f32 %v1770, %v1969
    %v1971 = vpop.f32.mrb[0].mxu0
    %v1972 = vpop.f32.mrb[0].mxu0
    %v1973 = vadd.f32 %v1773, %v1972
    %v1974 = vpop.f32.mrb[0].mxu0
    %1975 = vmatprep.mubr.bf16.mxu0 %v453
    %1976 = vmatmul.mubr.bf16.gmra.mrb[0].mxu0 %v403
    %v1977 = vpop.f32.mrb[0].mxu0
    %v1978 = vadd.f32 %v1778, %v1977
    %v1979 = vpop.f32.mrb[0].mxu0
    %v1980 = vpop.f32.mrb[0].mxu0
    %v1981 = vadd.f32 %v1781, %v1980
    %v1982 = vpop.f32.mrb[0].mxu0
    %1983 = vmatprep.mubr.bf16.mxu0 %v457
    %1984 = vmatmul.mubr.bf16.gmra.mrb[0].mxu0 %v405
    %v1985 = vpop.f32.mrb[0].mxu0
    %v1986 = vadd.f32 %v1786, %v1985
    %v1987 = vpop.f32.mrb[0].mxu0
    %v1988 = vpop.f32.mrb[0].mxu0
    %v1989 = vadd.f32 %v1789, %v1988
    %v1990 = vpop.f32.mrb[0].mxu0
    %1991 = vmatprep.mubr.bf16.mxu0 %v461
    %1992 = vmatmul.mubr.bf16.gmra.mrb[0].mxu0 %v407
    %v1993 = vpop.f32.mrb[0].mxu0
    %v1994 = vadd.f32 %v1794, %v1993
    %v1995 = vpop.f32.mrb[0].mxu0
    %v1996 = vpop.f32.mrb[0].mxu0
    %v1997 = vadd.f32 %v1797, %v1996
    %v1998 = vpop.f32.mrb[0].mxu0
    %1999 = vmatprep.mubr.bf16.mxu0 %v1033
    %2000 = vmatmul.mubr.bf16.gmra.mrb[0].mxu0 %v1029
    %v2001 = vpop.f32.mrb[0].mxu0
    %v2002 = vadd.f32 %v1802, %v2001
    %v2003 = vpop.f32.mrb[0].mxu0
    %v2004 = vpop.f32.mrb[0].mxu0
    %v2005 = vadd.f32 %v1805, %v2004
    %v2006 = vpop.f32.mrb[0].mxu0
    %2007 = vmatprep.mubr.bf16.mxu0 %v812
    %2008 = vmatmul.mubr.bf16.gmra.mrb[0].mxu0 %v810
    %v2009 = vpop.f32.mrb[0].mxu0
    %v2010 = vadd.f32 %v1810, %v2009
    %v2011 = vpop.f32.mrb[0].mxu0
    %v2012 = vpop.f32.mrb[0].mxu0
    %v2013 = vadd.f32 %v1813, %v2012
    %v2014 = vpop.f32.mrb[0].mxu0
    %2015 = vmatprep.mubr.bf16.mxu0 %v826
    %2016 = vmatmul.mubr.bf16.gmra.mrb[0].mxu0 %v824
    %v2017 = vpop.f32.mrb[0].mxu0
    %v2018 = vadd.f32 %v1818, %v2017
    %v2019 = vpop.f32.mrb[0].mxu0
    %v2020 = vpop.f32.mrb[0].mxu0
    %v2021 = vadd.f32 %v1821, %v2020
    %v2022 = vpop.f32.mrb[0].mxu0
    %2023 = vmatprep.mubr.bf16.mxu0 %v840
    %2024 = vmatmul.mubr.bf16.gmra.mrb[0].mxu0 %v838
    %v2025 = vpop.f32.mrb[0].mxu0
    %v2026 = vadd.f32 %v1826, %v2025
    %v2027 = vpop.f32.mrb[0].mxu0
    %v2028 = vpop.f32.mrb[0].mxu0
    %v2029 = vadd.f32 %v1829, %v2028
    %v2030 = vpop.f32.mrb[0].mxu0
    %2031 = vmatprep.mubr.bf16.mxu0 %v854
    %2032 = vmatmul.mubr.bf16.gmra.mrb[0].mxu0 %v852
    %v2033 = vpop.f32.mrb[0].mxu0
    %v2034 = vadd.f32 %v1834, %v2033
    %v2035 = vpop.f32.mrb[0].mxu0
    %v2036 = vpop.f32.mrb[0].mxu0
    %v2037 = vadd.f32 %v1837, %v2036
    %v2038 = vpop.f32.mrb[0].mxu0
    %2039 = vmatprep.mubr.bf16.mxu0 %v868
    %2040 = vmatmul.mubr.bf16.gmra.mrb[0].mxu0 %v866
    %v2041 = vpop.f32.mrb[0].mxu0
    %v2042 = vadd.f32 %v1842, %v2041
    %v2043 = vpop.f32.mrb[0].mxu0
    %v2044 = vpop.f32.mrb[0].mxu0
    %v2045 = vadd.f32 %v1845, %v2044
    %v2046 = vpop.f32.mrb[0].mxu0
    %2047 = vmatprep.mubr.bf16.mxu0 %v882
    %2048 = vmatmul.mubr.bf16.gmra.mrb[0].mxu0 %v880
    %v2049 = vpop.f32.mrb[0].mxu0
    %v2050 = vadd.f32 %v1850, %v2049
    %v2051 = vpop.f32.mrb[0].mxu0
    %v2052 = vpop.f32.mrb[0].mxu0
    %v2053 = vadd.f32 %v1853, %v2052
    %v2054 = vpop.f32.mrb[0].mxu0
    %2055 = vmatprep.mubr.bf16.mxu0 %v896
    %2056 = vmatmul.mubr.bf16.gmra.mrb[0].mxu0 %v894
    %v2057 = vpop.f32.mrb[0].mxu0
    %v2058 = vadd.f32 %v1858, %v2057
    %v2059 = vpop.f32.mrb[0].mxu0
    %v2060 = vpop.f32.mrb[0].mxu0
    %v2061 = vadd.f32 %v1861, %v2060
    %v2062 = vpop.f32.mrb[0].mxu0
    %2063 = vmatprep.mubr.bf16.mxu0 %v910
    %2064 = vmatmul.mubr.bf16.gmra.mrb[0].mxu0 %v908
    %v2065 = vpop.f32.mrb[0].mxu0
    %v2066 = vadd.f32 %v1866, %v2065
    %v2067 = vpop.f32.mrb[0].mxu0
    %v2068 = vpop.f32.mrb[0].mxu0
    %v2069 = vadd.f32 %v1869, %v2068
    %v2070 = vpop.f32.mrb[0].mxu0
    %2071 = vmatprep.mubr.bf16.mxu0 %v924
    %2072 = vmatmul.mubr.bf16.gmra.mrb[0].mxu0 %v922
    %v2073 = vpop.f32.mrb[0].mxu0
    %v2074 = vadd.f32 %v1874, %v2073
    %v2075 = vpop.f32.mrb[0].mxu0
    %v2076 = vpop.f32.mrb[0].mxu0
    %v2077 = vadd.f32 %v1877, %v2076
    %v2078 = vpop.f32.mrb[0].mxu0
    %2079 = vmatprep.mubr.bf16.mxu0 %v938
    %2080 = vmatmul.mubr.bf16.gmra.mrb[0].mxu0 %v936
    %v2081 = vpop.f32.mrb[0].mxu0
    %v2082 = vadd.f32 %v1882, %v2081
    %v2083 = vpop.f32.mrb[0].mxu0
    %v2084 = vpop.f32.mrb[0].mxu0
    %v2085 = vpop.f32.mrb[0].mxu0
    %2086 = vdwg.mxu0
    %2087 = vmatprep.subr.bf16.mxu0 0
    %2088 = vmatpush1.bf16.msra.mxu0 %v1423
    %2089 = vmatprep.subr.bf16.mxu0 0
    %2090 = vmatpush1.bf16.msra.mxu0 %v1424
    %2091 = vmatprep.subr.bf16.mxu0 0
    %2092 = vmatpush1.bf16.msra.mxu0 %v1425
    %2093 = vmatprep.subr.bf16.mxu0 0
    %2094 = vmatpush1.bf16.msra.mxu0 %v1426
    %2095 = vmatprep.subr.bf16.mxu0 0
    %2096 = vmatpush1.bf16.msra.mxu0 %v1427
    %2097 = vmatprep.subr.bf16.mxu0 0
    %2098 = vmatpush1.bf16.msra.mxu0 %v1428
    %2099 = vmatprep.subr.bf16.mxu0 0
    %2100 = vmatpush1.bf16.msra.mxu0 %v1429
    %2101 = vmatprep.subr.bf16.mxu0 0
    %2102 = vmatpush1.bf16.msra.mxu0 %v1430
    %2103 = vmatprep.subr.bf16.mxu0 0
    %2104 = vmatpush1.bf16.msra.mxu0 0
    %2105 = vmatprep.subr.bf16.mxu0 0
    %2106 = vmatpush1.bf16.msra.mxu0 0
    %2107 = vmatprep.subr.bf16.mxu0 0
    %2108 = vmatpush1.bf16.msra.mxu0 0
    %2109 = vmatprep.subr.bf16.mxu0 0
    %2110 = vmatpush1.bf16.msra.mxu0 0
    %2111 = vmatprep.subr.bf16.mxu0 0
    %2112 = vmatpush1.bf16.msra.mxu0 0
    %2113 = vmatprep.subr.bf16.mxu0 0
    %2114 = vmatpush1.bf16.msra.mxu0 0
    %2115 = vmatprep.subr.bf16.mxu0 0
    %2116 = vmatpush1.bf16.msra.mxu0 0
    %2117 = vmatprep.subr.bf16.mxu0 0
    %2118 = vmatpush1.bf16.msra.mxu0 0
    %2119 = vmatprep.mubr.bf16.mxu0 0
    %2120 = vmatmul.mubr.bf16.gmra.mrb[0].mxu0 %v475
    %v2121 = vpop.f32.mrb[0].mxu0
    %v2122 = vadd.f32 %v1922, %v2121
    %v2123 = vpop.f32.mrb[0].mxu0
    %v2124 = vpop.f32.mrb[0].mxu0
    %v2125 = vadd.f32 %v1925, %v2124
    %v2126 = vpop.f32.mrb[0].mxu0
    %2127 = vmatprep.mubr.bf16.mxu0 0
    %2128 = vmatmul.mubr.bf16.gmra.mrb[0].mxu0 %v477
    %v2129 = vpop.f32.mrb[0].mxu0
    %v2130 = vadd.f32 %v1930, %v2129
    %v2131 = vpop.f32.mrb[0].mxu0
    %v2132 = vpop.f32.mrb[0].mxu0
    %v2133 = vadd.f32 %v1933, %v2132
    %v2134 = vpop.f32.mrb[0].mxu0
    %2135 = vmatprep.mubr.bf16.mxu0 0
    %2136 = vmatmul.mubr.bf16.gmra.mrb[0].mxu0 %v479
    %v2137 = vpop.f32.mrb[0].mxu0
    %v2138 = vadd.f32 %v1938, %v2137
    %v2139 = vpop.f32.mrb[0].mxu0
    %v2140 = vpop.f32.mrb[0].mxu0
    %v2141 = vadd.f32 %v1941, %v2140
    %v2142 = vpop.f32.mrb[0].mxu0
    %2143 = vmatprep.mubr.bf16.mxu0 0
    %2144 = vmatmul.mubr.bf16.gmra.mrb[0].mxu0 %v481
    %v2145 = vpop.f32.mrb[0].mxu0
    %v2146 = vadd.f32 %v1946, %v2145
    %v2147 = vpop.f32.mrb[0].mxu0
    %v2148 = vpop.f32.mrb[0].mxu0
    %v2149 = vadd.f32 %v1949, %v2148
    %v2150 = vpop.f32.mrb[0].mxu0
    %2151 = vmatprep.mubr.bf16.mxu0 0
    %2152 = vmatmul.mubr.bf16.gmra.mrb[0].mxu0 %v483
    %v2153 = vpop.f32.mrb[0].mxu0
    %v2154 = vadd.f32 %v1954, %v2153
    %v2155 = vpop.f32.mrb[0].mxu0
    %v2156 = vpop.f32.mrb[0].mxu0
    %v2157 = vadd.f32 %v1957, %v2156
    %v2158 = vpop.f32.mrb[0].mxu0
    %2159 = vmatprep.mubr.bf16.mxu0 0
    %2160 = vmatmul.mubr.bf16.gmra.mrb[0].mxu0 %v485
    %v2161 = vpop.f32.mrb[0].mxu0
    %v2162 = vadd.f32 %v1962, %v2161
    %v2163 = vpop.f32.mrb[0].mxu0
    %v2164 = vpop.f32.mrb[0].mxu0
    %v2165 = vadd.f32 %v1965, %v2164
    %v2166 = vpop.f32.mrb[0].mxu0
    %2167 = vmatprep.mubr.bf16.mxu0 0
    %2168 = vmatmul.mubr.bf16.gmra.mrb[0].mxu0 %v487
    %v2169 = vpop.f32.mrb[0].mxu0
    %v2170 = vadd.f32 %v1970, %v2169
    %v2171 = vpop.f32.mrb[0].mxu0
    %v2172 = vpop.f32.mrb[0].mxu0
    %v2173 = vadd.f32 %v1973, %v2172
    %v2174 = vpop.f32.mrb[0].mxu0
    %2175 = vmatprep.mubr.bf16.mxu0 0
    %2176 = vmatmul.mubr.bf16.gmra.mrb[0].mxu0 %v489
    %v2177 = vpop.f32.mrb[0].mxu0
    %v2178 = vadd.f32 %v1978, %v2177
    %v2179 = vpop.f32.mrb[0].mxu0
    %v2180 = vpop.f32.mrb[0].mxu0
    %v2181 = vadd.f32 %v1981, %v2180
    %v2182 = vpop.f32.mrb[0].mxu0
    %2183 = vmatprep.mubr.bf16.mxu0 0
    %2184 = vmatmul.mubr.bf16.gmra.mrb[0].mxu0 %v491
    %v2185 = vpop.f32.mrb[0].mxu0
    %v2186 = vadd.f32 %v1986, %v2185
    %v2187 = vpop.f32.mrb[0].mxu0
    %v2188 = vpop.f32.mrb[0].mxu0
    %v2189 = vadd.f32 %v1989, %v2188
    %v2190 = vpop.f32.mrb[0].mxu0
    %2191 = vmatprep.mubr.bf16.mxu0 0
    %2192 = vmatmul.mubr.bf16.gmra.mrb[0].mxu0 %v493
    %v2193 = vpop.f32.mrb[0].mxu0
    %v2194 = vadd.f32 %v1994, %v2193
    %v2195 = vpop.f32.mrb[0].mxu0
    %v2196 = vpop.f32.mrb[0].mxu0
    %v2197 = vadd.f32 %v1997, %v2196
    %v2198 = vpop.f32.mrb[0].mxu0
    %2199 = vmatprep.mubr.bf16.mxu0 0
    %2200 = vmatmul.mubr.bf16.gmra.mrb[0].mxu0 %v1037
    %v2201 = vpop.f32.mrb[0].mxu0
    %v2202 = vadd.f32 %v2002, %v2201
    %v2203 = vpop.f32.mrb[0].mxu0
    %v2204 = vpop.f32.mrb[0].mxu0
    %v2205 = vadd.f32 %v2005, %v2204
    %v2206 = vpop.f32.mrb[0].mxu0
    %2207 = vmatprep.mubr.bf16.mxu0 0
    %2208 = vmatmul.mubr.bf16.gmra.mrb[0].mxu0 %v814
    %v2209 = vpop.f32.mrb[0].mxu0
    %v2210 = vadd.f32 %v2010, %v2209
    %v2211 = vpop.f32.mrb[0].mxu0
    %v2212 = vpop.f32.mrb[0].mxu0
    %v2213 = vadd.f32 %v2013, %v2212
    %v2214 = vpop.f32.mrb[0].mxu0
    %2215 = vmatprep.mubr.bf16.mxu0 0
    %2216 = vmatmul.mubr.bf16.gmra.mrb[0].mxu0 %v828
    %v2217 = vpop.f32.mrb[0].mxu0
    %v2218 = vadd.f32 %v2018, %v2217
    %v2219 = vpop.f32.mrb[0].mxu0
    %v2220 = vpop.f32.mrb[0].mxu0
    %v2221 = vadd.f32 %v2021, %v2220
    %v2222 = vpop.f32.mrb[0].mxu0
    %2223 = vmatprep.mubr.bf16.mxu0 0
    %2224 = vmatmul.mubr.bf16.gmra.mrb[0].mxu0 %v842
    %v2225 = vpop.f32.mrb[0].mxu0
    %v2226 = vadd.f32 %v2026, %v2225
    %v2227 = vpop.f32.mrb[0].mxu0
    %v2228 = vpop.f32.mrb[0].mxu0
    %v2229 = vadd.f32 %v2029, %v2228
    %v2230 = vpop.f32.mrb[0].mxu0
    %2231 = vmatprep.mubr.bf16.mxu0 0
    %2232 = vmatmul.mubr.bf16.gmra.mrb[0].mxu0 %v856
    %v2233 = vpop.f32.mrb[0].mxu0
    %v2234 = vadd.f32 %v2034, %v2233
    %v2235 = vpop.f32.mrb[0].mxu0
    %v2236 = vpop.f32.mrb[0].mxu0
    %v2237 = vadd.f32 %v2037, %v2236
    %v2238 = vpop.f32.mrb[0].mxu0
    %2239 = vmatprep.mubr.bf16.mxu0 0
    %2240 = vmatmul.mubr.bf16.gmra.mrb[0].mxu0 %v870
    %v2241 = vpop.f32.mrb[0].mxu0
    %v2242 = vadd.f32 %v2042, %v2241
    %v2243 = vpop.f32.mrb[0].mxu0
    %v2244 = vpop.f32.mrb[0].mxu0
    %v2245 = vadd.f32 %v2045, %v2244
    %v2246 = vpop.f32.mrb[0].mxu0
    %2247 = vmatprep.mubr.bf16.mxu0 0
    %2248 = vmatmul.mubr.bf16.gmra.mrb[0].mxu0 %v884
    %v2249 = vpop.f32.mrb[0].mxu0
    %v2250 = vadd.f32 %v2050, %v2249
    %v2251 = vpop.f32.mrb[0].mxu0
    %v2252 = vpop.f32.mrb[0].mxu0
    %v2253 = vadd.f32 %v2053, %v2252
    %v2254 = vpop.f32.mrb[0].mxu0
    %2255 = vmatprep.mubr.bf16.mxu0 0
    %2256 = vmatmul.mubr.bf16.gmra.mrb[0].mxu0 %v898
    %v2257 = vpop.f32.mrb[0].mxu0
    %v2258 = vadd.f32 %v2058, %v2257
    %v2259 = vpop.f32.mrb[0].mxu0
    %v2260 = vpop.f32.mrb[0].mxu0
    %v2261 = vadd.f32 %v2061, %v2260
    %v2262 = vpop.f32.mrb[0].mxu0
    %2263 = vmatprep.mubr.bf16.mxu0 0
    %2264 = vmatmul.mubr.bf16.gmra.mrb[0].mxu0 %v912
    %v2265 = vpop.f32.mrb[0].mxu0
    %v2266 = vadd.f32 %v2066, %v2265
    %v2267 = vpop.f32.mrb[0].mxu0
    %v2268 = vpop.f32.mrb[0].mxu0
    %v2269 = vadd.f32 %v2069, %v2268
    %v2270 = vpop.f32.mrb[0].mxu0
    %2271 = vmatprep.mubr.bf16.mxu0 0
    %2272 = vmatmul.mubr.bf16.gmra.mrb[0].mxu0 %v926
    %v2273 = vpop.f32.mrb[0].mxu0
    %v2274 = vadd.f32 %v2074, %v2273
    %v2275 = vpop.f32.mrb[0].mxu0
    %v2276 = vpop.f32.mrb[0].mxu0
    %v2277 = vadd.f32 %v2077, %v2276
    %v2278 = vpop.f32.mrb[0].mxu0
    %2279 = vmatprep.mubr.bf16.mxu0 0
    %2280 = vmatmul.mubr.bf16.gmra.mrb[0].mxu0 %v940
    %v2281 = vpop.f32.mrb[0].mxu0
    %v2282 = vadd.f32 %v2082, %v2281
    %v2283 = vpop.f32.mrb[0].mxu0
    %v2284 = vpop.f32.mrb[0].mxu0
    %v2285 = vpop.f32.mrb[0].mxu0
    %2286 = vdwg.mxu0
    %v2287 = vld [vmem:[%s2] sm:$0x1]
    %v2289 = vlaneseq
    %v2290 = vshrl.u32 %v2289, 7
    %v2291 = vsub.s32 0, %v2290
    %v2292 = vrot.slane %v2287, %v2291
    %v2294 = vmul.f32 %v2122, %v2292
    %v2295 = vmul.f32 %v2125, %v2292
    %v2296 = vmul.f32 %v2130, %v2292
    %v2297 = vmul.f32 %v2133, %v2292
    %v2298 = vmul.f32 %v2138, %v2292
    %v2299 = vmul.f32 %v2141, %v2292
    %v2300 = vmul.f32 %v2146, %v2292
    %v2301 = vmul.f32 %v2149, %v2292
    %v2302 = vmul.f32 %v2154, %v2292
    %v2303 = vmul.f32 %v2157, %v2292
    %v2304 = vmul.f32 %v2162, %v2292
    %v2305 = vmul.f32 %v2165, %v2292
    %v2306 = vmul.f32 %v2170, %v2292
    %v2307 = vmul.f32 %v2173, %v2292
    %v2308 = vmul.f32 %v2178, %v2292
    %v2309 = vmul.f32 %v2181, %v2292
    %v2310 = vmul.f32 %v2186, %v2292
    %v2311 = vmul.f32 %v2189, %v2292
    %v2312 = vmul.f32 %v2194, %v2292
    %v2313 = vmul.f32 %v2197, %v2292
    %v2314 = vmul.f32 %v2202, %v2292
    %v2315 = vmul.f32 %v2205, %v2292
    %v2316 = vmul.f32 %v2210, %v2292
    %v2317 = vmul.f32 %v2213, %v2292
    %v2318 = vmul.f32 %v2218, %v2292
    %v2319 = vmul.f32 %v2221, %v2292
    %v2320 = vmul.f32 %v2226, %v2292
    %v2321 = vmul.f32 %v2229, %v2292
    %v2322 = vmul.f32 %v2234, %v2292
    %v2323 = vmul.f32 %v2237, %v2292
    %v2324 = vmul.f32 %v2242, %v2292
    %v2325 = vmul.f32 %v2245, %v2292
    %v2326 = vmul.f32 %v2250, %v2292
    %v2327 = vmul.f32 %v2253, %v2292
    %v2328 = vmul.f32 %v2258, %v2292
    %v2329 = vmul.f32 %v2261, %v2292
    %v2330 = vmul.f32 %v2266, %v2292
    %v2331 = vmul.f32 %v2269, %v2292
    %v2332 = vmul.f32 %v2274, %v2292
    %v2333 = vmul.f32 %v2277, %v2292
    %v2334 = vmul.f32 %v2282, %v2292
    %v2335 = vld [vmem:[%s3] sm:$0x1]
    %v2337 = vlaneseq
    %v2338 = vshrl.u32 %v2337, 7
    %v2339 = vsub.s32 0, %v2338
    %v2340 = vrot.slane %v2335, %v2339
    %v2342 = vadd.f32 %v2294, %v2340
    %v2343 = vadd.f32 %v2295, %v2340
    %v2344 = vadd.f32 %v2296, %v2340
    %v2345 = vadd.f32 %v2297, %v2340
    %v2346 = vadd.f32 %v2298, %v2340
    %v2347 = vadd.f32 %v2299, %v2340
    %v2348 = vadd.f32 %v2300, %v2340
    %v2349 = vadd.f32 %v2301, %v2340
    %v2350 = vadd.f32 %v2302, %v2340
    %v2351 = vadd.f32 %v2303, %v2340
    %v2352 = vadd.f32 %v2304, %v2340
    %v2353 = vadd.f32 %v2305, %v2340
    %v2354 = vadd.f32 %v2306, %v2340
    %v2355 = vadd.f32 %v2307, %v2340
    %v2356 = vadd.f32 %v2308, %v2340
    %v2357 = vadd.f32 %v2309, %v2340
    %v2358 = vadd.f32 %v2310, %v2340
    %v2359 = vadd.f32 %v2311, %v2340
    %v2360 = vadd.f32 %v2312, %v2340
    %v2361 = vadd.f32 %v2313, %v2340
    %v2362 = vadd.f32 %v2314, %v2340
    %v2363 = vadd.f32 %v2315, %v2340
    %v2364 = vadd.f32 %v2316, %v2340
    %v2365 = vadd.f32 %v2317, %v2340
    %v2366 = vadd.f32 %v2318, %v2340
    %v2367 = vadd.f32 %v2319, %v2340
    %v2368 = vadd.f32 %v2320, %v2340
    %v2369 = vadd.f32 %v2321, %v2340
    %v2370 = vadd.f32 %v2322, %v2340
    %v2371 = vadd.f32 %v2323, %v2340
    %v2372 = vadd.f32 %v2324, %v2340
    %v2373 = vadd.f32 %v2325, %v2340
    %v2374 = vadd.f32 %v2326, %v2340
    %v2375 = vadd.f32 %v2327, %v2340
    %v2376 = vadd.f32 %v2328, %v2340
    %v2377 = vadd.f32 %v2329, %v2340
    %v2378 = vadd.f32 %v2330, %v2340
    %v2379 = vadd.f32 %v2331, %v2340
    %v2380 = vadd.f32 %v2332, %v2340
    %v2381 = vadd.f32 %v2333, %v2340
    %v2382 = vadd.f32 %v2334, %v2340
    %v2383 = vmax.f32 %v2342, 0.0
    %v2384 = vmax.f32 %v2343, 0.0
    %v2385 = vmax.f32 %v2344, 0.0
    %v2386 = vmax.f32 %v2345, 0.0
    %v2387 = vmax.f32 %v2346, 0.0
    %v2388 = vmax.f32 %v2347, 0.0
    %v2389 = vmax.f32 %v2348, 0.0
    %v2390 = vmax.f32 %v2349, 0.0
    %v2391 = vmax.f32 %v2350, 0.0
    %v2392 = vmax.f32 %v2351, 0.0
    %v2393 = vmax.f32 %v2352, 0.0
    %v2394 = vmax.f32 %v2353, 0.0
    %v2395 = vmax.f32 %v2354, 0.0
    %v2396 = vmax.f32 %v2355, 0.0
    %v2397 = vmax.f32 %v2356, 0.0
    %v2398 = vmax.f32 %v2357, 0.0
    %v2399 = vmax.f32 %v2358, 0.0
    %v2400 = vmax.f32 %v2359, 0.0
    %v2401 = vmax.f32 %v2360, 0.0
    %v2402 = vmax.f32 %v2361, 0.0
    %v2403 = vmax.f32 %v2362, 0.0
    %v2404 = vmax.f32 %v2363, 0.0
    %v2405 = vmax.f32 %v2364, 0.0
    %v2406 = vmax.f32 %v2365, 0.0
    %v2407 = vmax.f32 %v2366, 0.0
    %v2408 = vmax.f32 %v2367, 0.0
    %v2409 = vmax.f32 %v2368, 0.0
    %v2410 = vmax.f32 %v2369, 0.0
    %v2411 = vmax.f32 %v2370, 0.0
    %v2412 = vmax.f32 %v2371, 0.0
    %v2413 = vmax.f32 %v2372, 0.0
    %v2414 = vmax.f32 %v2373, 0.0
    %v2415 = vmax.f32 %v2374, 0.0
    %v2416 = vmax.f32 %v2375, 0.0
    %v2417 = vmax.f32 %v2376, 0.0
    %v2418 = vmax.f32 %v2377, 0.0
    %v2419 = vmax.f32 %v2378, 0.0
    %v2420 = vmax.f32 %v2379, 0.0
    %v2421 = vmax.f32 %v2380, 0.0
    %v2422 = vmax.f32 %v2381, 0.0
    %v2423 = vmax.f32 %v2382, 0.0
    %vm2465 = vcmask 1046528
    %v2466 = vrot.slane %v2383, 1
    %v2467 = vrot.slane %v2384, 1
    %v2468 = vsel %vm2465, %v2466, %v2467
    %v2469 = vrot.slane %v2385, 1
    %v2470 = vsel %vm2465, %v2467, %v2469
    %v2471 = vrot.slane %v2386, 1
    %v2472 = vsel %vm2465, %v2469, %v2471
    %v2473 = vrot.slane %v2387, 1
    %v2474 = vsel %vm2465, %v2471, %v2473
    %v2475 = vrot.slane %v2388, 1
    %v2476 = vsel %vm2465, %v2473, %v2475
    %v2477 = vrot.slane %v2389, 1
    %v2478 = vsel %vm2465, %v2475, %v2477
    %v2479 = vrot.slane %v2390, 1
    %v2480 = vsel %vm2465, %v2477, %v2479
    %v2481 = vrot.slane %v2391, 1
    %v2482 = vsel %vm2465, %v2479, %v2481
    %v2483 = vrot.slane %v2392, 1
    %v2484 = vsel %vm2465, %v2481, %v2483
    %v2485 = vrot.slane %v2393, 1
    %v2486 = vsel %vm2465, %v2483, %v2485
    %v2487 = vrot.slane %v2394, 1
    %v2488 = vsel %vm2465, %v2485, %v2487
    %v2489 = vrot.slane %v2395, 1
    %v2490 = vsel %vm2465, %v2487, %v2489
    %v2491 = vrot.slane %v2396, 1
    %v2492 = vsel %vm2465, %v2489, %v2491
    %v2493 = vrot.slane %v2397, 1
    %v2494 = vsel %vm2465, %v2491, %v2493
    %v2495 = vrot.slane %v2398, 1
    %v2496 = vsel %vm2465, %v2493, %v2495
    %v2497 = vrot.slane %v2399, 1
    %v2498 = vsel %vm2465, %v2495, %v2497
    %v2499 = vrot.slane %v2400, 1
    %v2500 = vsel %vm2465, %v2497, %v2499
    %v2501 = vrot.slane %v2401, 1
    %v2502 = vsel %vm2465, %v2499, %v2501
    %v2503 = vrot.slane %v2402, 1
    %v2504 = vsel %vm2465, %v2501, %v2503
    %v2505 = vrot.slane %v2403, 1
    %v2506 = vsel %vm2465, %v2503, %v2505
    %v2507 = vrot.slane %v2404, 1
    %v2508 = vsel %vm2465, %v2505, %v2507
    %v2509 = vrot.slane %v2405, 1
    %v2510 = vsel %vm2465, %v2507, %v2509
    %v2511 = vrot.slane %v2406, 1
    %v2512 = vsel %vm2465, %v2509, %v2511
    %v2513 = vrot.slane %v2407, 1
    %v2514 = vsel %vm2465, %v2511, %v2513
    %v2515 = vrot.slane %v2408, 1
    %v2516 = vsel %vm2465, %v2513, %v2515
    %v2517 = vrot.slane %v2409, 1
    %v2518 = vsel %vm2465, %v2515, %v2517
    %v2519 = vrot.slane %v2410, 1
    %v2520 = vsel %vm2465, %v2517, %v2519
    %v2521 = vrot.slane %v2411, 1
    %v2522 = vsel %vm2465, %v2519, %v2521
    %v2523 = vrot.slane %v2412, 1
    %v2524 = vsel %vm2465, %v2521, %v2523
    %v2525 = vrot.slane %v2413, 1
    %v2526 = vsel %vm2465, %v2523, %v2525
    %v2527 = vrot.slane %v2414, 1
    %v2528 = vsel %vm2465, %v2525, %v2527
    %v2529 = vrot.slane %v2415, 1
    %v2530 = vsel %vm2465, %v2527, %v2529
    %v2531 = vrot.slane %v2416, 1
    %v2532 = vsel %vm2465, %v2529, %v2531
    %v2533 = vrot.slane %v2417, 1
    %v2534 = vsel %vm2465, %v2531, %v2533
    %v2535 = vrot.slane %v2418, 1
    %v2536 = vsel %vm2465, %v2533, %v2535
    %v2537 = vrot.slane %v2419, 1
    %v2538 = vsel %vm2465, %v2535, %v2537
    %v2539 = vrot.slane %v2420, 1
    %v2540 = vsel %vm2465, %v2537, %v2539
    %v2541 = vrot.slane %v2421, 1
    %v2542 = vsel %vm2465, %v2539, %v2541
    %v2543 = vrot.slane %v2422, 1
    %v2544 = vsel %vm2465, %v2541, %v2543
    %v2545 = vrot.slane %v2423, 1
    %v2546 = vsel %vm2465, %v2543, %v2545
    %v2588 = vmax.f32 %v2383, %v2468
    %v2589 = vmax.f32 %v2384, %v2470
    %v2590 = vmax.f32 %v2385, %v2472
    %v2591 = vmax.f32 %v2386, %v2474
    %v2592 = vmax.f32 %v2387, %v2476
    %v2593 = vmax.f32 %v2388, %v2478
    %v2594 = vmax.f32 %v2389, %v2480
    %v2595 = vmax.f32 %v2390, %v2482
    %v2596 = vmax.f32 %v2391, %v2484
    %v2597 = vmax.f32 %v2392, %v2486
    %v2598 = vmax.f32 %v2393, %v2488
    %v2599 = vmax.f32 %v2394, %v2490
    %v2600 = vmax.f32 %v2395, %v2492
    %v2601 = vmax.f32 %v2396, %v2494
    %v2602 = vmax.f32 %v2397, %v2496
    %v2603 = vmax.f32 %v2398, %v2498
    %v2604 = vmax.f32 %v2399, %v2500
    %v2605 = vmax.f32 %v2400, %v2502
    %v2606 = vmax.f32 %v2401, %v2504
    %v2607 = vmax.f32 %v2402, %v2506
    %v2608 = vmax.f32 %v2403, %v2508
    %v2609 = vmax.f32 %v2404, %v2510
    %v2610 = vmax.f32 %v2405, %v2512
    %v2611 = vmax.f32 %v2406, %v2514
    %v2612 = vmax.f32 %v2407, %v2516
    %v2613 = vmax.f32 %v2408, %v2518
    %v2614 = vmax.f32 %v2409, %v2520
    %v2615 = vmax.f32 %v2410, %v2522
    %v2616 = vmax.f32 %v2411, %v2524
    %v2617 = vmax.f32 %v2412, %v2526
    %v2618 = vmax.f32 %v2413, %v2528
    %v2619 = vmax.f32 %v2414, %v2530
    %v2620 = vmax.f32 %v2415, %v2532
    %v2621 = vmax.f32 %v2416, %v2534
    %v2622 = vmax.f32 %v2417, %v2536
    %v2623 = vmax.f32 %v2418, %v2538
    %v2624 = vmax.f32 %v2419, %v2540
    %v2625 = vmax.f32 %v2420, %v2542
    %v2626 = vmax.f32 %v2421, %v2544
    %v2627 = vmax.f32 %v2422, %v2546
    %v2628 = vmax.f32 %v2423, %v2545
    %vm2629 = vcmask 1045504
    %v2630 = vrot.slane %v2383, 2
    %v2631 = vrot.slane %v2384, 2
    %v2632 = vsel %vm2629, %v2630, %v2631
    %v2633 = vrot.slane %v2385, 2
    %v2634 = vsel %vm2629, %v2631, %v2633
    %v2635 = vrot.slane %v2386, 2
    %v2636 = vsel %vm2629, %v2633, %v2635
    %v2637 = vrot.slane %v2387, 2
    %v2638 = vsel %vm2629, %v2635, %v2637
    %v2639 = vrot.slane %v2388, 2
    %v2640 = vsel %vm2629, %v2637, %v2639
    %v2641 = vrot.slane %v2389, 2
    %v2642 = vsel %vm2629, %v2639, %v2641
    %v2643 = vrot.slane %v2390, 2
    %v2644 = vsel %vm2629, %v2641, %v2643
    %v2645 = vrot.slane %v2391, 2
    %v2646 = vsel %vm2629, %v2643, %v2645
    %v2647 = vrot.slane %v2392, 2
    %v2648 = vsel %vm2629, %v2645, %v2647
    %v2649 = vrot.slane %v2393, 2
    %v2650 = vsel %vm2629, %v2647, %v2649
    %v2651 = vrot.slane %v2394, 2
    %v2652 = vsel %vm2629, %v2649, %v2651
    %v2653 = vrot.slane %v2395, 2
    %v2654 = vsel %vm2629, %v2651, %v2653
    %v2655 = vrot.slane %v2396, 2
    %v2656 = vsel %vm2629, %v2653, %v2655
    %v2657 = vrot.slane %v2397, 2
    %v2658 = vsel %vm2629, %v2655, %v2657
    %v2659 = vrot.slane %v2398, 2
    %v2660 = vsel %vm2629, %v2657, %v2659
    %v2661 = vrot.slane %v2399, 2
    %v2662 = vsel %vm2629, %v2659, %v2661
    %v2663 = vrot.slane %v2400, 2
    %v2664 = vsel %vm2629, %v2661, %v2663
    %v2665 = vrot.slane %v2401, 2
    %v2666 = vsel %vm2629, %v2663, %v2665
    %v2667 = vrot.slane %v2402, 2
    %v2668 = vsel %vm2629, %v2665, %v2667
    %v2669 = vrot.slane %v2403, 2
    %v2670 = vsel %vm2629, %v2667, %v2669
    %v2671 = vrot.slane %v2404, 2
    %v2672 = vsel %vm2629, %v2669, %v2671
    %v2673 = vrot.slane %v2405, 2
    %v2674 = vsel %vm2629, %v2671, %v2673
    %v2675 = vrot.slane %v2406, 2
    %v2676 = vsel %vm2629, %v2673, %v2675
    %v2677 = vrot.slane %v2407, 2
    %v2678 = vsel %vm2629, %v2675, %v2677
    %v2679 = vrot.slane %v2408, 2
    %v2680 = vsel %vm2629, %v2677, %v2679
    %v2681 = vrot.slane %v2409, 2
    %v2682 = vsel %vm2629, %v2679, %v2681
    %v2683 = vrot.slane %v2410, 2
    %v2684 = vsel %vm2629, %v2681, %v2683
    %v2685 = vrot.slane %v2411, 2
    %v2686 = vsel %vm2629, %v2683, %v2685
    %v2687 = vrot.slane %v2412, 2
    %v2688 = vsel %vm2629, %v2685, %v2687
    %v2689 = vrot.slane %v2413, 2
    %v2690 = vsel %vm2629, %v2687, %v2689
    %v2691 = vrot.slane %v2414, 2
    %v2692 = vsel %vm2629, %v2689, %v2691
    %v2693 = vrot.slane %v2415, 2
    %v2694 = vsel %vm2629, %v2691, %v2693
    %v2695 = vrot.slane %v2416, 2
    %v2696 = vsel %vm2629, %v2693, %v2695
    %v2697 = vrot.slane %v2417, 2
    %v2698 = vsel %vm2629, %v2695, %v2697
    %v2699 = vrot.slane %v2418, 2
    %v2700 = vsel %vm2629, %v2697, %v2699
    %v2701 = vrot.slane %v2419, 2
    %v2702 = vsel %vm2629, %v2699, %v2701
    %v2703 = vrot.slane %v2420, 2
    %v2704 = vsel %vm2629, %v2701, %v2703
    %v2705 = vrot.slane %v2421, 2
    %v2706 = vsel %vm2629, %v2703, %v2705
    %v2707 = vrot.slane %v2422, 2
    %v2708 = vsel %vm2629, %v2705, %v2707
    %v2709 = vrot.slane %v2423, 2
    %v2710 = vsel %vm2629, %v2707, %v2709
    %v2752 = vmax.f32 %v2588, %v2632
    %v2753 = vmax.f32 %v2589, %v2634
    %v2754 = vmax.f32 %v2590, %v2636
    %v2755 = vmax.f32 %v2591, %v2638
    %v2756 = vmax.f32 %v2592, %v2640
    %v2757 = vmax.f32 %v2593, %v2642
    %v2758 = vmax.f32 %v2594, %v2644
    %v2759 = vmax.f32 %v2595, %v2646
    %v2760 = vmax.f32 %v2596, %v2648
    %v2761 = vmax.f32 %v2597, %v2650
    %v2762 = vmax.f32 %v2598, %v2652
    %v2763 = vmax.f32 %v2599, %v2654
    %v2764 = vmax.f32 %v2600, %v2656
    %v2765 = vmax.f32 %v2601, %v2658
    %v2766 = vmax.f32 %v2602, %v2660
    %v2767 = vmax.f32 %v2603, %v2662
    %v2768 = vmax.f32 %v2604, %v2664
    %v2769 = vmax.f32 %v2605, %v2666
    %v2770 = vmax.f32 %v2606, %v2668
    %v2771 = vmax.f32 %v2607, %v2670
    %v2772 = vmax.f32 %v2608, %v2672
    %v2773 = vmax.f32 %v2609, %v2674
    %v2774 = vmax.f32 %v2610, %v2676
    %v2775 = vmax.f32 %v2611, %v2678
    %v2776 = vmax.f32 %v2612, %v2680
    %v2777 = vmax.f32 %v2613, %v2682
    %v2778 = vmax.f32 %v2614, %v2684
    %v2779 = vmax.f32 %v2615, %v2686
    %v2780 = vmax.f32 %v2616, %v2688
    %v2781 = vmax.f32 %v2617, %v2690
    %v2782 = vmax.f32 %v2618, %v2692
    %v2783 = vmax.f32 %v2619, %v2694
    %v2784 = vmax.f32 %v2620, %v2696
    %v2785 = vmax.f32 %v2621, %v2698
    %v2786 = vmax.f32 %v2622, %v2700
    %v2787 = vmax.f32 %v2623, %v2702
    %v2788 = vmax.f32 %v2624, %v2704
    %v2789 = vmax.f32 %v2625, %v2706
    %v2790 = vmax.f32 %v2626, %v2708
    %v2791 = vmax.f32 %v2627, %v2710
    %v2792 = vmax.f32 %v2628, %v2709
    %2793 = vst [vmem:[#allocation4] sm:$0xff] %v2752
    %2794 = vst [vmem:[#allocation4 + $0x8] sm:$0xff] %v2753
    %2795 = vst [vmem:[#allocation4 + $0x10] sm:$0xff] %v2754
    %2796 = vst [vmem:[#allocation4 + $0x18] sm:$0xff] %v2755
    %2797 = vst [vmem:[#allocation4 + $0x20] sm:$0xff] %v2756
    %2798 = vst [vmem:[#allocation4 + $0x28] sm:$0xff] %v2757
    %2799 = vst [vmem:[#allocation4 + $0x30] sm:$0xff] %v2758
    %2800 = vst [vmem:[#allocation4 + $0x38] sm:$0xff] %v2759
    %2801 = vst [vmem:[#allocation4 + $0x40] sm:$0xff] %v2760
    %2802 = vst [vmem:[#allocation4 + $0x48] sm:$0xff] %v2761
    %2803 = vst [vmem:[#allocation4 + $0x50] sm:$0xff] %v2762
    %2804 = vst [vmem:[#allocation4 + $0x58] sm:$0xff] %v2763
    %2805 = vst [vmem:[#allocation4 + $0x60] sm:$0xff] %v2764
    %2806 = vst [vmem:[#allocation4 + $0x68] sm:$0xff] %v2765
    %2807 = vst [vmem:[#allocation4 + $0x70] sm:$0xff] %v2766
    %2808 = vst [vmem:[#allocation4 + $0x78] sm:$0xff] %v2767
    %2809 = vst [vmem:[#allocation4 + $0x80] sm:$0xff] %v2768
    %2810 = vst [vmem:[#allocation4 + $0x88] sm:$0xff] %v2769
    %2811 = vst [vmem:[#allocation4 + $0x90] sm:$0xff] %v2770
    %2812 = vst [vmem:[#allocation4 + $0x98] sm:$0xff] %v2771
    %2813 = vst [vmem:[#allocation4 + $0xa0] sm:$0xff] %v2772
    %2814 = vst [vmem:[#allocation4 + $0xa8] sm:$0xff] %v2773
    %2815 = vst [vmem:[#allocation4 + $0xb0] sm:$0xff] %v2774
    %2816 = vst [vmem:[#allocation4 + $0xb8] sm:$0xff] %v2775
    %2817 = vst [vmem:[#allocation4 + $0xc0] sm:$0xff] %v2776
    %2818 = vst [vmem:[#allocation4 + $0xc8] sm:$0xff] %v2777
    %2819 = vst [vmem:[#allocation4 + $0xd0] sm:$0xff] %v2778
    %2820 = vst [vmem:[#allocation4 + $0xd8] sm:$0xff] %v2779
    %2821 = vst [vmem:[#allocation4 + $0xe0] sm:$0xff] %v2780
    %2822 = vst [vmem:[#allocation4 + $0xe8] sm:$0xff] %v2781
    %2823 = vst [vmem:[#allocation4 + $0xf0] sm:$0xff] %v2782
    %2824 = vst [vmem:[#allocation4 + $0xf8] sm:$0xff] %v2783
    %2825 = vst [vmem:[#allocation4 + $0x100] sm:$0xff] %v2784
    %2826 = vst [vmem:[#allocation4 + $0x108] sm:$0xff] %v2785
    %2827 = vst [vmem:[#allocation4 + $0x110] sm:$0xff] %v2786
    %2828 = vst [vmem:[#allocation4 + $0x118] sm:$0xff] %v2787
    %2829 = vst [vmem:[#allocation4 + $0x120] sm:$0xff] %v2788
    %2830 = vst [vmem:[#allocation4 + $0x128] sm:$0xff] %v2789
    %2831 = vst [vmem:[#allocation4 + $0x130] sm:$0xff] %v2790
    %2832 = vst [vmem:[#allocation4 + $0x138] sm:$0xff] %v2791
    %2833 = vst [vmem:[#allocation4 + $0x140] sm:$0x3] %v2792
    %v2834 = vld [vmem:[#allocation4] ss:$3 sm:$0xff]
    %s2835 = scalar_lea.vmem [#allocation4], 24
    %v2836 = vld [vmem:[%s2835] ss:$3 sm:$0xff]
    %s2837 = scalar_lea.vmem [#allocation4], 48
    %v2838 = vld [vmem:[%s2837] ss:$3 sm:$0xff]
    %s2839 = scalar_lea.vmem [#allocation4], 72
    %v2840 = vld [vmem:[%s2839] ss:$3 sm:$0xff]
    %s2841 = scalar_lea.vmem [#allocation4], 96
    %v2842 = vld [vmem:[%s2841] ss:$3 sm:$0xff]
    %s2843 = scalar_lea.vmem [#allocation4], 120
    %v2844 = vld [vmem:[%s2843] ss:$3 sm:$0xff]
    %s2845 = scalar_lea.vmem [#allocation4], 144
    %v2846 = vld [vmem:[%s2845] ss:$3 sm:$0xff]
    %s2847 = scalar_lea.vmem [#allocation4], 168
    %v2848 = vld [vmem:[%s2847] ss:$3 sm:$0xff]
    %s2849 = scalar_lea.vmem [#allocation4], 192
    %v2850 = vld [vmem:[%s2849] ss:$3 sm:$0xff]
    %s2851 = scalar_lea.vmem [#allocation4], 216
    %v2852 = vld [vmem:[%s2851] ss:$3 sm:$0xff]
    %s2853 = scalar_lea.vmem [#allocation4], 240
    %v2854 = vld [vmem:[%s2853] ss:$3 sm:$0xff]
    %s2855 = scalar_lea.vmem [#allocation4], 264
    %v2856 = vld [vmem:[%s2855] ss:$3 sm:$0xff]
    %s2857 = scalar_lea.vmem [#allocation4], 288
    %v2858 = vld [vmem:[%s2857] ss:$3 sm:$0xff]
    %s2859 = scalar_lea.vmem [#allocation4], 312
    %v2860 = vld [vmem:[%s2859] ss:$3 sm:$0xf]
    %2861 = vst [vmem:[#allocation2 + $0x5] sm:$0x7] 0.0
    %2862 = vst [vmem:[#allocation2 + $0x3e] sm:$0x7] 0.0
    %2863 = vst [vmem:[#allocation2 + $0x8] sm:$0xff] %v2834
    %2864 = vst [vmem:[#allocation2 + $0x10] sm:$0xff] %v2836
    %2865 = vst [vmem:[#allocation2 + $0x18] sm:$0xff] %v2838
    %2866 = vst [vmem:[#allocation2 + $0x20] sm:$0xff] %v2840
    %2867 = vst [vmem:[#allocation2 + $0x28] sm:$0xff] %v2842
    %2868 = vst [vmem:[#allocation2 + $0x30] sm:$0xff] %v2844
    %2869 = vst [vmem:[#allocation2 + $0x38] sm:$0x3f] %v2846
    %s2870 = scalar_lea.vmem [#allocation2], 72
    %2871 = vst [vmem:[%s2870 + $0x5] sm:$0x7] 0.0
    %2872 = vst [vmem:[%s2870 + $0x3e] sm:$0x7] 0.0
    %2873 = vst [vmem:[%s2870 + $0x2] sm:$0xc0] %v2846
    %2874 = vst [vmem:[%s2870 + $0xa] sm:$0xff] %v2848
    %2875 = vst [vmem:[%s2870 + $0x12] sm:$0xff] %v2850
    %2876 = vst [vmem:[%s2870 + $0x1a] sm:$0xff] %v2852
    %2877 = vst [vmem:[%s2870 + $0x22] sm:$0xff] %v2854
    %2878 = vst [vmem:[%s2870 + $0x2a] sm:$0xff] %v2856
    %2879 = vst [vmem:[%s2870 + $0x32] sm:$0xff] %v2858
    %2880 = vst [vmem:[%s2870 + $0x3a] sm:$0xf] %v2860
    %v2881 = vld [vmem:[#allocation2 + $0x5] sm:$0xff]
    %v2882 = vld [vmem:[#allocation2 + $0xd] sm:$0xff]
    %v2883 = vld [vmem:[#allocation2 + $0x15] sm:$0xff]
    %v2884 = vld [vmem:[#allocation2 + $0x1d] sm:$0xff]
    %v2885 = vld [vmem:[#allocation2 + $0x25] sm:$0xff]
    %v2886 = vld [vmem:[#allocation2 + $0x2d] sm:$0xff]
    %v2887 = vld [vmem:[#allocation2 + $0x35] sm:$0xff]
    %v2888 = vld [vmem:[#allocation2 + $0x3d] sm:$0xf]
    %v2889 = vpack.c.bf16 %v2882, %v2881
    %v2890 = vpack.c.bf16 %v2884, %v2883
    %v2891 = vpack.c.bf16 %v2886, %v2885
    %v2892 = vpack.c.bf16 %v2888, %v2887
    %v2893 = vld [vmem:[%s2870 + $0x5] sm:$0xff]
    %v2894 = vld [vmem:[%s2870 + $0xd] sm:$0xff]
    %v2895 = vld [vmem:[%s2870 + $0x15] sm:$0xff]
    %v2896 = vld [vmem:[%s2870 + $0x1d] sm:$0xff]
    %v2897 = vld [vmem:[%s2870 + $0x25] sm:$0xff]
    %v2898 = vld [vmem:[%s2870 + $0x2d] sm:$0xff]
    %v2899 = vld [vmem:[%s2870 + $0x35] sm:$0xff]
    %v2900 = vld [vmem:[%s2870 + $0x3d] sm:$0xf]
    %v2901 = vpack.c.bf16 %v2894, %v2893
    %v2902 = vpack.c.bf16 %v2896, %v2895
    %v2903 = vpack.c.bf16 %v2898, %v2897
    %v2904 = vpack.c.bf16 %v2900, %v2899
    %v2906 = vshrl.u32 %v2889, 16
    %v2908 = vshll.u32 %v2889, 16
    %v2910 = vrot.slane %v2908, 1
    %v2911 = vor.u32 %v2906, %v2910
    %v2913 = vshll.u32 %v2890, 16
    %v2915 = vrot.slane %v2913, 1
    %v2916 = vsel %vm202, %v2911, %v2915
    %v2917 = vshrl.u32 %v2890, 16
    %v2919 = vor.u32 %v2917, %v2915
    %v2921 = vshll.u32 %v2891, 16
    %v2923 = vrot.slane %v2921, 1
    %v2924 = vsel %vm202, %v2919, %v2923
    %v2925 = vshrl.u32 %v2891, 16
    %v2927 = vor.u32 %v2925, %v2923
    %v2929 = vshll.u32 %v2892, 16
    %v2931 = vrot.slane %v2929, 1
    %v2932 = vsel %vm202, %v2927, %v2931
    %v2933 = vshrl.u32 %v2892, 16
    %v2935 = vor.u32 %v2933, %v2931
    %v2943 = vrot.slane %v2889, 1
    %v2944 = vrot.slane %v2890, 1
    %v2945 = vsel %vm300, %v2943, %v2944
    %v2946 = vrot.slane %v2891, 1
    %v2947 = vsel %vm300, %v2944, %v2946
    %v2948 = vrot.slane %v2892, 1
    %v2949 = vsel %vm300, %v2946, %v2948
    %v2953 = vrot.slane %v2906, 1
    %v2954 = vrot.slane %v2908, 2
    %v2955 = vor.u32 %v2953, %v2954
    %v2956 = vrot.slane %v2917, 1
    %v2957 = vrot.slane %v2913, 2
    %v2958 = vor.u32 %v2956, %v2957
    %v2959 = vsel %vm332, %v2955, %v2958
    %v2960 = vrot.slane %v2925, 1
    %v2961 = vrot.slane %v2921, 2
    %v2962 = vor.u32 %v2960, %v2961
    %v2963 = vsel %vm332, %v2958, %v2962
    %v2964 = vrot.slane %v2933, 1
    %v2965 = vrot.slane %v2929, 2
    %v2966 = vor.u32 %v2964, %v2965
    %v2967 = vsel %vm332, %v2962, %v2966
    %v2971 = vrot.slane %v2889, 2
    %v2972 = vrot.slane %v2890, 2
    %v2973 = vsel %vm386, %v2971, %v2972
    %v2974 = vrot.slane %v2891, 2
    %v2975 = vsel %vm386, %v2972, %v2974
    %v2976 = vrot.slane %v2892, 2
    %v2977 = vsel %vm386, %v2974, %v2976
    %v2981 = vrot.slane %v2906, 2
    %v2982 = vrot.slane %v2908, 3
    %v2983 = vor.u32 %v2981, %v2982
    %v2984 = vrot.slane %v2917, 2
    %v2985 = vrot.slane %v2913, 3
    %v2986 = vor.u32 %v2984, %v2985
    %v2987 = vsel %vm418, %v2983, %v2986
    %v2988 = vrot.slane %v2925, 2
    %v2989 = vrot.slane %v2921, 3
    %v2990 = vor.u32 %v2988, %v2989
    %v2991 = vsel %vm418, %v2986, %v2990
    %v2992 = vrot.slane %v2933, 2
    %v2993 = vrot.slane %v2929, 3
    %v2994 = vor.u32 %v2992, %v2993
    %v2995 = vsel %vm418, %v2990, %v2994
    %v2999 = vrot.slane %v2889, 3
    %v3000 = vrot.slane %v2890, 3
    %v3001 = vsel %vm472, %v2999, %v3000
    %v3002 = vrot.slane %v2891, 3
    %v3003 = vsel %vm472, %v3000, %v3002
    %v3004 = vrot.slane %v2892, 3
    %v3005 = vsel %vm472, %v3002, %v3004
    %v3010 = vshrl.u32 %v2901, 16
    %v3012 = vshll.u32 %v2901, 16
    %v3014 = vrot.slane %v3012, 1
    %v3015 = vor.u32 %v3010, %v3014
    %v3017 = vshll.u32 %v2902, 16
    %v3019 = vrot.slane %v3017, 1
    %v3020 = vsel %vm202, %v3015, %v3019
    %v3021 = vshrl.u32 %v2902, 16
    %v3023 = vor.u32 %v3021, %v3019
    %v3025 = vshll.u32 %v2903, 16
    %v3027 = vrot.slane %v3025, 1
    %v3028 = vsel %vm202, %v3023, %v3027
    %v3029 = vshrl.u32 %v2903, 16
    %v3031 = vor.u32 %v3029, %v3027
    %v3033 = vshll.u32 %v2904, 16
    %v3035 = vrot.slane %v3033, 1
    %v3036 = vsel %vm202, %v3031, %v3035
    %v3037 = vshrl.u32 %v2904, 16
    %v3039 = vor.u32 %v3037, %v3035
    %v3044 = vrot.slane %v2901, 1
    %v3045 = vrot.slane %v2902, 1
    %v3046 = vsel %vm300, %v3044, %v3045
    %v3047 = vrot.slane %v2903, 1
    %v3048 = vsel %vm300, %v3045, %v3047
    %v3049 = vrot.slane %v2904, 1
    %v3050 = vsel %vm300, %v3047, %v3049
    %v3051 = vrot.slane %v3010, 1
    %v3052 = vrot.slane %v3012, 2
    %v3053 = vor.u32 %v3051, %v3052
    %v3054 = vrot.slane %v3021, 1
    %v3055 = vrot.slane %v3017, 2
    %v3056 = vor.u32 %v3054, %v3055
    %v3057 = vsel %vm332, %v3053, %v3056
    %v3058 = vrot.slane %v3029, 1
    %v3059 = vrot.slane %v3025, 2
    %v3060 = vor.u32 %v3058, %v3059
    %v3061 = vsel %vm332, %v3056, %v3060
    %v3062 = vrot.slane %v3037, 1
    %v3063 = vrot.slane %v3033, 2
    %v3064 = vor.u32 %v3062, %v3063
    %v3065 = vsel %vm332, %v3060, %v3064
    %v3066 = vrot.slane %v2901, 2
    %v3067 = vrot.slane %v2902, 2
    %v3068 = vsel %vm386, %v3066, %v3067
    %v3069 = vrot.slane %v2903, 2
    %v3070 = vsel %vm386, %v3067, %v3069
    %v3071 = vrot.slane %v2904, 2
    %v3072 = vsel %vm386, %v3069, %v3071
    %v3073 = vrot.slane %v3010, 2
    %v3074 = vrot.slane %v3012, 3
    %v3075 = vor.u32 %v3073, %v3074
    %v3076 = vrot.slane %v3021, 2
    %v3077 = vrot.slane %v3017, 3
    %v3078 = vor.u32 %v3076, %v3077
    %v3079 = vsel %vm418, %v3075, %v3078
    %v3080 = vrot.slane %v3029, 2
    %v3081 = vrot.slane %v3025, 3
    %v3082 = vor.u32 %v3080, %v3081
    %v3083 = vsel %vm418, %v3078, %v3082
    %v3084 = vrot.slane %v3037, 2
    %v3085 = vrot.slane %v3033, 3
    %v3086 = vor.u32 %v3084, %v3085
    %v3087 = vsel %vm418, %v3082, %v3086
    %v3088 = vrot.slane %v2901, 3
    %v3089 = vrot.slane %v2902, 3
    %v3090 = vsel %vm472, %v3088, %v3089
    %v3091 = vrot.slane %v2903, 3
    %v3092 = vsel %vm472, %v3089, %v3091
    %v3093 = vrot.slane %v2904, 3
    %v3094 = vsel %vm472, %v3091, %v3093
    %vm3095 = vcmask 1042432
    %v3096 = vrot.slane %v2901, 5
    %v3097 = vrot.slane %v3020, 5
    %v3098 = vrot.slane %v3046, 5
    %v3099 = vrot.slane %v3057, 5
    %v3100 = vrot.slane %v3068, 5
    %v3101 = vrot.slane %v3079, 5
    %v3102 = vrot.slane %v3090, 5
    %v3103 = vrot.slane %v2902, 5
    %v3104 = vsel %vm3095, %v3096, %v3103
    %v3105 = vrot.slane %v3028, 5
    %v3106 = vsel %vm3095, %v3097, %v3105
    %v3107 = vrot.slane %v3048, 5
    %v3108 = vsel %vm3095, %v3098, %v3107
    %v3109 = vrot.slane %v3061, 5
    %v3110 = vsel %vm3095, %v3099, %v3109
    %v3111 = vrot.slane %v3070, 5
    %v3112 = vsel %vm3095, %v3100, %v3111
    %v3113 = vrot.slane %v3083, 5
    %v3114 = vsel %vm3095, %v3101, %v3113
    %v3115 = vrot.slane %v3092, 5
    %v3116 = vsel %vm3095, %v3102, %v3115
    %v3117 = vrot.slane %v2903, 5
    %v3118 = vsel %vm3095, %v3103, %v3117
    %v3119 = vrot.slane %v3036, 5
    %v3120 = vsel %vm3095, %v3105, %v3119
    %v3121 = vrot.slane %v3050, 5
    %v3122 = vsel %vm3095, %v3107, %v3121
    %v3123 = vrot.slane %v3065, 5
    %v3124 = vsel %vm3095, %v3109, %v3123
    %v3125 = vrot.slane %v3072, 5
    %v3126 = vsel %vm3095, %v3111, %v3125
    %v3127 = vrot.slane %v3087, 5
    %v3128 = vsel %vm3095, %v3113, %v3127
    %v3129 = vrot.slane %v3094, 5
    %v3130 = vsel %vm3095, %v3115, %v3129
    %v3131 = vrot.slane %v2904, 5
    %v3132 = vsel %vm3095, %v3117, %v3131
    %v3133 = vrot.slane %v3039, 5
    %v3134 = vsel %vm3095, %v3119, %v3133
    %v3135 = vrot.slane %v3049, 5
    %v3136 = vsel %vm3095, %v3121, %v3135
    %v3137 = vrot.slane %v3064, 5
    %v3138 = vsel %vm3095, %v3123, %v3137
    %v3139 = vrot.slane %v3071, 5
    %v3140 = vsel %vm3095, %v3125, %v3139
    %v3141 = vrot.slane %v3086, 5
    %v3142 = vsel %vm3095, %v3127, %v3141
    %v3143 = vrot.slane %v3093, 5
    %v3144 = vsel %vm3095, %v3129, %v3143
    %vm3166 = vcmask 1042432
    %v3168 = vsel %vm3166, %v2892, %v3096
    %v3172 = vsel %vm3166, %v2935, %v3097
    %v3176 = vsel %vm3166, %v2948, %v3098
    %v3180 = vsel %vm3166, %v2966, %v3099
    %v3184 = vsel %vm3166, %v2976, %v3100
    %v3188 = vsel %vm3166, %v2994, %v3101
    %v3192 = vsel %vm3166, %v3004, %v3102
    %v3194 = vld [vmem:[#allocation5] sm:$0xf]
    %v3195 = vld [vmem:[#allocation5 + $0x4] sm:$0xf]
    %v3196 = vld [vmem:[#allocation5 + $0x8] sm:$0xf]
    %v3197 = vld [vmem:[#allocation5 + $0xc] sm:$0xf]
    %v3198 = vld [vmem:[#allocation5 + $0x10] sm:$0xf]
    %v3199 = vld [vmem:[#allocation5 + $0x14] sm:$0xf]
    %v3200 = vld [vmem:[#allocation5 + $0x18] sm:$0xf]
    %v3201 = vld [vmem:[#allocation5 + $0x1c] sm:$0xf]
    %v3202 = vld [vmem:[#allocation5 + $0x20] sm:$0xf]
    %v3203 = vld [vmem:[#allocation5 + $0x24] sm:$0xf]
    %v3204 = vld [vmem:[#allocation5 + $0x28] sm:$0xf]
    %v3205 = vld [vmem:[#allocation5 + $0x2c] sm:$0xf]
    %v3206 = vld [vmem:[#allocation5 + $0x30] sm:$0xf]
    %v3207 = vld [vmem:[#allocation5 + $0x34] sm:$0xf]
    %v3208 = vld [vmem:[#allocation5 + $0x38] sm:$0xf]
    %v3209 = vld [vmem:[#allocation5 + $0x3c] sm:$0xf]
    %v3210 = vld [vmem:[#allocation5 + $0x40] sm:$0xf]
    %v3211 = vld [vmem:[#allocation5 + $0x44] sm:$0xf]
    %v3212 = vld [vmem:[#allocation5 + $0x48] sm:$0xf]
    %v3213 = vld [vmem:[#allocation5 + $0x4c] sm:$0xf]
    %v3214 = vld [vmem:[#allocation5 + $0x50] sm:$0xf]
    %v3215 = vld [vmem:[#allocation5 + $0x54] sm:$0xf]
    %v3216 = vld [vmem:[#allocation5 + $0x58] sm:$0xf]
    %v3217 = vld [vmem:[#allocation5 + $0x5c] sm:$0xf]
    %v3218 = vld [vmem:[#allocation5 + $0x60] sm:$0xf]
    %v3219 = vld [vmem:[#allocation5 + $0x64] sm:$0xf]
    %v3220 = vld [vmem:[#allocation5 + $0x68] sm:$0xf]
    %v3221 = vld [vmem:[#allocation5 + $0x6c] sm:$0xf]
    %v3222 = vld [vmem:[#allocation5 + $0x70] sm:$0xf]
    %v3223 = vld [vmem:[#allocation5 + $0x74] sm:$0xf]
    %v3224 = vld [vmem:[#allocation5 + $0x78] sm:$0xf]
    %v3225 = vld [vmem:[#allocation5 + $0x7c] sm:$0xf]
    %v3226 = vld [vmem:[#allocation5 + $0x80] sm:$0xf]
    %v3227 = vld [vmem:[#allocation5 + $0x84] sm:$0xf]
    %v3228 = vld [vmem:[#allocation5 + $0x88] sm:$0xf]
    %v3229 = vld [vmem:[#allocation5 + $0x8c] sm:$0xf]
    %v3230 = vld [vmem:[#allocation5 + $0x90] sm:$0xf]
    %v3231 = vld [vmem:[#allocation5 + $0x94] sm:$0xf]
    %v3232 = vld [vmem:[#allocation5 + $0x98] sm:$0xf]
    %v3233 = vld [vmem:[#allocation5 + $0x9c] sm:$0xf]
    %v3234 = vld [vmem:[#allocation5 + $0xa0] sm:$0xf]
    %v3235 = vld [vmem:[#allocation5 + $0xa4] sm:$0xf]
    %v3236 = vld [vmem:[#allocation5 + $0xa8] sm:$0xf]
    %v3237 = vld [vmem:[#allocation5 + $0xac] sm:$0xf]
    %v3238 = vld [vmem:[#allocation5 + $0xb0] sm:$0xf]
    %v3239 = vld [vmem:[#allocation5 + $0xb4] sm:$0xf]
    %v3240 = vld [vmem:[#allocation5 + $0xb8] sm:$0xf]
    %v3241 = vld [vmem:[#allocation5 + $0xbc] sm:$0xf]
    %v3242 = vld [vmem:[#allocation5 + $0xc0] sm:$0xf]
    %v3243 = vld [vmem:[#allocation5 + $0xc4] sm:$0xf]
    %v3244 = vld [vmem:[#allocation5 + $0xc8] sm:$0xf]
    %v3245 = vld [vmem:[#allocation5 + $0xcc] sm:$0xf]
    %v3246 = vld [vmem:[#allocation5 + $0xd0] sm:$0xf]
    %v3247 = vld [vmem:[#allocation5 + $0xd4] sm:$0xf]
    %v3248 = vld [vmem:[#allocation5 + $0xd8] sm:$0xf]
    %v3249 = vld [vmem:[#allocation5 + $0xdc] sm:$0xf]
    %v3250 = vld [vmem:[#allocation5 + $0xe0] sm:$0xf]
    %v3251 = vld [vmem:[#allocation5 + $0xe4] sm:$0xf]
    %v3252 = vld [vmem:[#allocation5 + $0xe8] sm:$0xf]
    %v3253 = vld [vmem:[#allocation5 + $0xec] sm:$0xf]
    %v3254 = vld [vmem:[#allocation5 + $0xf0] sm:$0xf]
    %v3255 = vld [vmem:[#allocation5 + $0xf4] sm:$0xf]
    %v3256 = vld [vmem:[#allocation5 + $0xf8] sm:$0xf]
    %v3257 = vld [vmem:[#allocation5 + $0xfc] sm:$0xf]
    %v3258 = vld [vmem:[#allocation5 + $0x100] sm:$0xf]
    %v3259 = vld [vmem:[#allocation5 + $0x104] sm:$0xf]
    %v3260 = vld [vmem:[#allocation5 + $0x108] sm:$0xf]
    %v3261 = vld [vmem:[#allocation5 + $0x10c] sm:$0xf]
    %v3262 = vld [vmem:[#allocation5 + $0x110] sm:$0xf]
    %v3263 = vld [vmem:[#allocation5 + $0x114] sm:$0xf]
    %v3264 = vld [vmem:[#allocation5 + $0x118] sm:$0xf]
    %v3265 = vld [vmem:[#allocation5 + $0x11c] sm:$0xf]
    %v3266 = vld [vmem:[#allocation5 + $0x120] sm:$0xf]
    %v3267 = vld [vmem:[#allocation5 + $0x124] sm:$0xf]
    %v3268 = vld [vmem:[#allocation5 + $0x128] sm:$0xf]
    %v3269 = vld [vmem:[#allocation5 + $0x12c] sm:$0xf]
    %v3270 = vld [vmem:[#allocation5 + $0x130] sm:$0xf]
    %v3271 = vld [vmem:[#allocation5 + $0x134] sm:$0xf]
    %v3272 = vld [vmem:[#allocation5 + $0x138] sm:$0xf]
    %v3273 = vld [vmem:[#allocation5 + $0x13c] sm:$0xf]
    %v3274 = vld [vmem:[#allocation5 + $0x140] sm:$0xf]
    %v3275 = vld [vmem:[#allocation5 + $0x144] sm:$0xf]
    %v3276 = vld [vmem:[#allocation5 + $0x148] sm:$0xf]
    %v3277 = vld [vmem:[#allocation5 + $0x14c] sm:$0xf]
    %v3278 = vld [vmem:[#allocation5 + $0x150] sm:$0xf]
    %v3279 = vld [vmem:[#allocation5 + $0x154] sm:$0xf]
    %v3280 = vld [vmem:[#allocation5 + $0x158] sm:$0xf]
    %v3281 = vld [vmem:[#allocation5 + $0x15c] sm:$0xf]
    %v3282 = vld [vmem:[#allocation5 + $0x160] sm:$0xf]
    %v3283 = vld [vmem:[#allocation5 + $0x164] sm:$0xf]
    %v3284 = vld [vmem:[#allocation5 + $0x168] sm:$0xf]
    %v3285 = vld [vmem:[#allocation5 + $0x16c] sm:$0xf]
    %v3286 = vld [vmem:[#allocation5 + $0x170] sm:$0xf]
    %v3287 = vld [vmem:[#allocation5 + $0x174] sm:$0xf]
    %v3288 = vld [vmem:[#allocation5 + $0x178] sm:$0xf]
    %v3289 = vld [vmem:[#allocation5 + $0x17c] sm:$0xf]
    %v3290 = vld [vmem:[#allocation5 + $0x180] sm:$0xf]
    %v3291 = vld [vmem:[#allocation5 + $0x184] sm:$0xf]
    %v3292 = vld [vmem:[#allocation5 + $0x188] sm:$0xf]
    %v3293 = vld [vmem:[#allocation5 + $0x18c] sm:$0xf]
    %v3294 = vld [vmem:[#allocation5 + $0x190] sm:$0xf]
    %v3295 = vld [vmem:[#allocation5 + $0x194] sm:$0xf]
    %v3296 = vld [vmem:[#allocation5 + $0x198] sm:$0xf]
    %v3297 = vld [vmem:[#allocation5 + $0x19c] sm:$0xf]
    %v3298 = vld [vmem:[#allocation5 + $0x1a0] sm:$0xf]
    %v3299 = vld [vmem:[#allocation5 + $0x1a4] sm:$0xf]
    %v3300 = vld [vmem:[#allocation5 + $0x1a8] sm:$0xf]
    %v3301 = vld [vmem:[#allocation5 + $0x1ac] sm:$0xf]
    %v3302 = vld [vmem:[#allocation5 + $0x1b0] sm:$0xf]
    %v3303 = vld [vmem:[#allocation5 + $0x1b4] sm:$0xf]
    %v3304 = vld [vmem:[#allocation5 + $0x1b8] sm:$0xf]
    %v3305 = vld [vmem:[#allocation5 + $0x1bc] sm:$0xf]
    %v3418 = vunpack.c.l.b16 %v3194
    %v3419 = vunpack.c.l.b16 %v3195
    %v3420 = vunpack.c.l.b16 %v3196
    %v3421 = vunpack.c.l.b16 %v3197
    %v3422 = vunpack.c.l.b16 %v3198
    %v3423 = vunpack.c.l.b16 %v3199
    %v3424 = vunpack.c.l.b16 %v3200
    %v3425 = vunpack.c.l.b16 %v3201
    %v3426 = vunpack.c.l.b16 %v3202
    %v3427 = vunpack.c.l.b16 %v3203
    %v3428 = vunpack.c.l.b16 %v3204
    %v3429 = vunpack.c.l.b16 %v3205
    %v3430 = vunpack.c.l.b16 %v3206
    %v3431 = vunpack.c.l.b16 %v3207
    %v3432 = vunpack.c.l.b16 %v3208
    %v3433 = vunpack.c.l.b16 %v3209
    %v3434 = vunpack.c.l.b16 %v3210
    %v3435 = vunpack.c.l.b16 %v3211
    %v3436 = vunpack.c.l.b16 %v3212
    %v3437 = vunpack.c.l.b16 %v3213
    %v3438 = vunpack.c.l.b16 %v3214
    %v3439 = vunpack.c.l.b16 %v3215
    %v3440 = vunpack.c.l.b16 %v3216
    %v3441 = vunpack.c.l.b16 %v3217
    %v3442 = vunpack.c.l.b16 %v3218
    %v3443 = vunpack.c.l.b16 %v3219
    %v3444 = vunpack.c.l.b16 %v3220
    %v3445 = vunpack.c.l.b16 %v3221
    %v3446 = vunpack.c.l.b16 %v3222
    %v3447 = vunpack.c.l.b16 %v3223
    %v3448 = vunpack.c.l.b16 %v3224
    %v3449 = vunpack.c.l.b16 %v3225
    %v3450 = vunpack.c.l.b16 %v3226
    %v3451 = vunpack.c.l.b16 %v3227
    %v3452 = vunpack.c.l.b16 %v3228
    %v3453 = vunpack.c.l.b16 %v3229
    %v3454 = vunpack.c.l.b16 %v3230
    %v3455 = vunpack.c.l.b16 %v3231
    %v3456 = vunpack.c.l.b16 %v3232
    %v3457 = vunpack.c.l.b16 %v3233
    %v3458 = vunpack.c.l.b16 %v3234
    %v3459 = vunpack.c.l.b16 %v3235
    %v3460 = vunpack.c.l.b16 %v3236
    %v3461 = vunpack.c.l.b16 %v3237
    %v3462 = vunpack.c.l.b16 %v3238
    %v3463 = vunpack.c.l.b16 %v3239
    %v3464 = vunpack.c.l.b16 %v3240
    %v3465 = vunpack.c.l.b16 %v3241
    %v3466 = vunpack.c.l.b16 %v3242
    %v3467 = vunpack.c.l.b16 %v3243
    %v3468 = vunpack.c.l.b16 %v3244
    %v3469 = vunpack.c.l.b16 %v3245
    %v3470 = vunpack.c.l.b16 %v3246
    %v3471 = vunpack.c.l.b16 %v3247
    %v3472 = vunpack.c.l.b16 %v3248
    %v3473 = vunpack.c.l.b16 %v3249
    %v3474 = vunpack.c.l.b16 %v3250
    %v3475 = vunpack.c.l.b16 %v3251
    %v3476 = vunpack.c.l.b16 %v3252
    %v3477 = vunpack.c.l.b16 %v3253
    %v3478 = vunpack.c.l.b16 %v3254
    %v3479 = vunpack.c.l.b16 %v3255
    %v3480 = vunpack.c.l.b16 %v3256
    %v3481 = vunpack.c.l.b16 %v3257
    %v3482 = vunpack.c.l.b16 %v3258
    %v3483 = vunpack.c.l.b16 %v3259
    %v3484 = vunpack.c.l.b16 %v3260
    %v3485 = vunpack.c.l.b16 %v3261
    %v3486 = vunpack.c.l.b16 %v3262
    %v3487 = vunpack.c.l.b16 %v3263
    %v3488 = vunpack.c.l.b16 %v3264
    %v3489 = vunpack.c.l.b16 %v3265
    %v3490 = vunpack.c.l.b16 %v3266
    %v3491 = vunpack.c.l.b16 %v3267
    %v3492 = vunpack.c.l.b16 %v3268
    %v3493 = vunpack.c.l.b16 %v3269
    %v3494 = vunpack.c.l.b16 %v3270
    %v3495 = vunpack.c.l.b16 %v3271
    %v3496 = vunpack.c.l.b16 %v3272
    %v3497 = vunpack.c.l.b16 %v3273
    %v3498 = vunpack.c.l.b16 %v3274
    %v3499 = vunpack.c.l.b16 %v3275
    %v3500 = vunpack.c.l.b16 %v3276
    %v3501 = vunpack.c.l.b16 %v3277
    %v3502 = vunpack.c.l.b16 %v3278
    %v3503 = vunpack.c.l.b16 %v3279
    %v3504 = vunpack.c.l.b16 %v3280
    %v3505 = vunpack.c.l.b16 %v3281
    %v3506 = vunpack.c.l.b16 %v3282
    %v3507 = vunpack.c.l.b16 %v3283
    %v3508 = vunpack.c.l.b16 %v3284
    %v3509 = vunpack.c.l.b16 %v3285
    %v3510 = vunpack.c.l.b16 %v3286
    %v3511 = vunpack.c.l.b16 %v3287
    %v3512 = vunpack.c.l.b16 %v3288
    %v3513 = vunpack.c.l.b16 %v3289
    %v3514 = vunpack.c.l.b16 %v3290
    %v3515 = vunpack.c.l.b16 %v3291
    %v3516 = vunpack.c.l.b16 %v3292
    %v3517 = vunpack.c.l.b16 %v3293
    %v3518 = vunpack.c.l.b16 %v3294
    %v3519 = vunpack.c.l.b16 %v3295
    %v3520 = vunpack.c.l.b16 %v3296
    %v3521 = vunpack.c.l.b16 %v3297
    %v3522 = vunpack.c.l.b16 %v3298
    %v3523 = vunpack.c.l.b16 %v3299
    %v3524 = vunpack.c.l.b16 %v3300
    %v3525 = vunpack.c.l.b16 %v3301
    %v3526 = vunpack.c.l.b16 %v3302
    %v3527 = vunpack.c.l.b16 %v3303
    %v3528 = vunpack.c.l.b16 %v3304
    %v3529 = vunpack.c.l.b16 %v3305
    %v3530 = vpack.c.b16 %v3419, %v3418
    %v3531 = vpack.c.b16 %v3421, %v3420
    %v3532 = vpack.c.b16 %v3423, %v3422
    %v3533 = vpack.c.b16 %v3425, %v3424
    %v3534 = vpack.c.b16 %v3427, %v3426
    %v3535 = vpack.c.b16 %v3429, %v3428
    %v3536 = vpack.c.b16 %v3431, %v3430
    %v3537 = vpack.c.b16 %v3433, %v3432
    %v3538 = vpack.c.b16 %v3435, %v3434
    %v3539 = vpack.c.b16 %v3437, %v3436
    %v3540 = vpack.c.b16 %v3439, %v3438
    %v3541 = vpack.c.b16 %v3441, %v3440
    %v3542 = vpack.c.b16 %v3443, %v3442
    %v3543 = vpack.c.b16 %v3445, %v3444
    %v3544 = vpack.c.b16 %v3447, %v3446
    %v3545 = vpack.c.b16 %v3449, %v3448
    %v3546 = vpack.c.b16 %v3451, %v3450
    %v3547 = vpack.c.b16 %v3453, %v3452
    %v3548 = vpack.c.b16 %v3455, %v3454
    %v3549 = vpack.c.b16 %v3457, %v3456
    %v3550 = vpack.c.b16 %v3459, %v3458
    %v3551 = vpack.c.b16 %v3461, %v3460
    %v3552 = vpack.c.b16 %v3463, %v3462
    %v3553 = vpack.c.b16 %v3465, %v3464
    %v3554 = vpack.c.b16 %v3467, %v3466
    %v3555 = vpack.c.b16 %v3469, %v3468
    %v3556 = vpack.c.b16 %v3471, %v3470
    %v3557 = vpack.c.b16 %v3473, %v3472
    %v3558 = vpack.c.b16 %v3475, %v3474
    %v3559 = vpack.c.b16 %v3477, %v3476
    %v3560 = vpack.c.b16 %v3479, %v3478
    %v3561 = vpack.c.b16 %v3481, %v3480
    %v3562 = vpack.c.b16 %v3483, %v3482
    %v3563 = vpack.c.b16 %v3485, %v3484
    %v3564 = vpack.c.b16 %v3487, %v3486
    %v3565 = vpack.c.b16 %v3489, %v3488
    %v3566 = vpack.c.b16 %v3491, %v3490
    %v3567 = vpack.c.b16 %v3493, %v3492
    %v3568 = vpack.c.b16 %v3495, %v3494
    %v3569 = vpack.c.b16 %v3497, %v3496
    %v3570 = vpack.c.b16 %v3499, %v3498
    %v3571 = vpack.c.b16 %v3501, %v3500
    %v3572 = vpack.c.b16 %v3503, %v3502
    %v3573 = vpack.c.b16 %v3505, %v3504
    %v3574 = vpack.c.b16 %v3507, %v3506
    %v3575 = vpack.c.b16 %v3509, %v3508
    %v3576 = vpack.c.b16 %v3511, %v3510
    %v3577 = vpack.c.b16 %v3513, %v3512
    %v3578 = vpack.c.b16 %v3515, %v3514
    %v3579 = vpack.c.b16 %v3517, %v3516
    %v3580 = vpack.c.b16 %v3519, %v3518
    %v3581 = vpack.c.b16 %v3521, %v3520
    %v3582 = vpack.c.b16 %v3523, %v3522
    %v3583 = vpack.c.b16 %v3525, %v3524
    %v3584 = vpack.c.b16 %v3527, %v3526
    %v3585 = vpack.c.b16 %v3529, %v3528
    %3642 = vmatprep.subr.bf16.mxu0 0
    %3643 = vmatpush1.bf16.msra.mxu0 %v3530
    %3644 = vmatprep.subr.bf16.mxu0 0
    %3645 = vmatpush1.bf16.msra.mxu0 %v3531
    %3646 = vmatprep.subr.bf16.mxu0 0
    %3647 = vmatpush1.bf16.msra.mxu0 %v3532
    %3648 = vmatprep.subr.bf16.mxu0 0
    %3649 = vmatpush1.bf16.msra.mxu0 %v3533
    %3650 = vmatprep.subr.bf16.mxu0 0
    %3651 = vmatpush1.bf16.msra.mxu0 %v3534
    %3652 = vmatprep.subr.bf16.mxu0 0
    %3653 = vmatpush1.bf16.msra.mxu0 %v3535
    %3654 = vmatprep.subr.bf16.mxu0 0
    %3655 = vmatpush1.bf16.msra.mxu0 %v3536
    %3656 = vmatprep.subr.bf16.mxu0 0
    %3657 = vmatpush1.bf16.msra.mxu0 %v3537
    %3658 = vmatprep.subr.bf16.mxu0 0
    %3659 = vmatpush1.bf16.msra.mxu0 %v3538
    %3660 = vmatprep.subr.bf16.mxu0 0
    %3661 = vmatpush1.bf16.msra.mxu0 %v3539
    %3662 = vmatprep.subr.bf16.mxu0 0
    %3663 = vmatpush1.bf16.msra.mxu0 %v3540
    %3664 = vmatprep.subr.bf16.mxu0 0
    %3665 = vmatpush1.bf16.msra.mxu0 %v3541
    %3666 = vmatprep.subr.bf16.mxu0 0
    %3667 = vmatpush1.bf16.msra.mxu0 %v3542
    %3668 = vmatprep.subr.bf16.mxu0 0
    %3669 = vmatpush1.bf16.msra.mxu0 %v3543
    %3670 = vmatprep.subr.bf16.mxu0 0
    %3671 = vmatpush1.bf16.msra.mxu0 %v3544
    %3672 = vmatprep.subr.bf16.mxu0 0
    %3673 = vmatpush1.bf16.msra.mxu0 %v3545
    %3674 = vmatprep.mubr.bf16.mxu0 %v2916
    %3675 = vmatmul.mubr.bf16.gmra.mrb[0].mxu0 %v2889
    %v3676 = vpop.f32.mrb[0].mxu0
    %v3677 = vadd.f32 0.0, %v3676
    %v3678 = vpop.f32.mrb[0].mxu0
    %v3679 = vpop.f32.mrb[0].mxu0
    %v3680 = vadd.f32 0.0, %v3679
    %v3681 = vpop.f32.mrb[0].mxu0
    %3682 = vmatprep.mubr.bf16.mxu0 %v2924
    %3683 = vmatmul.mubr.bf16.gmra.mrb[0].mxu0 %v2890
    %v3684 = vpop.f32.mrb[0].mxu0
    %v3685 = vadd.f32 0.0, %v3684
    %v3686 = vpop.f32.mrb[0].mxu0
    %v3687 = vpop.f32.mrb[0].mxu0
    %v3688 = vadd.f32 0.0, %v3687
    %v3689 = vpop.f32.mrb[0].mxu0
    %3690 = vmatprep.mubr.bf16.mxu0 %v2932
    %3691 = vmatmul.mubr.bf16.gmra.mrb[0].mxu0 %v2891
    %v3692 = vpop.f32.mrb[0].mxu0
    %v3693 = vadd.f32 0.0, %v3692
    %v3694 = vpop.f32.mrb[0].mxu0
    %v3695 = vpop.f32.mrb[0].mxu0
    %v3696 = vadd.f32 0.0, %v3695
    %v3697 = vpop.f32.mrb[0].mxu0
    %3698 = vmatprep.mubr.bf16.mxu0 %v3172
    %3699 = vmatmul.mubr.bf16.gmra.mrb[0].mxu0 %v3168
    %v3700 = vpop.f32.mrb[0].mxu0
    %v3701 = vadd.f32 0.0, %v3700
    %v3702 = vpop.f32.mrb[0].mxu0
    %v3703 = vpop.f32.mrb[0].mxu0
    %v3704 = vadd.f32 0.0, %v3703
    %v3705 = vpop.f32.mrb[0].mxu0
    %3706 = vmatprep.mubr.bf16.mxu0 %v3106
    %3707 = vmatmul.mubr.bf16.gmra.mrb[0].mxu0 %v3104
    %v3708 = vpop.f32.mrb[0].mxu0
    %v3709 = vadd.f32 0.0, %v3708
    %v3710 = vpop.f32.mrb[0].mxu0
    %v3711 = vpop.f32.mrb[0].mxu0
    %v3712 = vadd.f32 0.0, %v3711
    %v3713 = vpop.f32.mrb[0].mxu0
    %3714 = vmatprep.mubr.bf16.mxu0 %v3120
    %3715 = vmatmul.mubr.bf16.gmra.mrb[0].mxu0 %v3118
    %v3716 = vpop.f32.mrb[0].mxu0
    %v3717 = vadd.f32 0.0, %v3716
    %v3718 = vpop.f32.mrb[0].mxu0
    %v3719 = vpop.f32.mrb[0].mxu0
    %v3720 = vadd.f32 0.0, %v3719
    %v3721 = vpop.f32.mrb[0].mxu0
    %3722 = vmatprep.mubr.bf16.mxu0 %v3134
    %3723 = vmatmul.mubr.bf16.gmra.mrb[0].mxu0 %v3132
    %v3724 = vpop.f32.mrb[0].mxu0
    %v3725 = vadd.f32 0.0, %v3724
    %v3726 = vpop.f32.mrb[0].mxu0
    %v3727 = vpop.f32.mrb[0].mxu0
    %v3728 = vadd.f32 0.0, %v3727
    %v3729 = vpop.f32.mrb[0].mxu0
    %3730 = vdwg.mxu0
    %3731 = vmatprep.subr.bf16.mxu0 0
    %3732 = vmatpush1.bf16.msra.mxu0 %v3546
    %3733 = vmatprep.subr.bf16.mxu0 0
    %3734 = vmatpush1.bf16.msra.mxu0 %v3547
    %3735 = vmatprep.subr.bf16.mxu0 0
    %3736 = vmatpush1.bf16.msra.mxu0 %v3548
    %3737 = vmatprep.subr.bf16.mxu0 0
    %3738 = vmatpush1.bf16.msra.mxu0 %v3549
    %3739 = vmatprep.subr.bf16.mxu0 0
    %3740 = vmatpush1.bf16.msra.mxu0 %v3550
    %3741 = vmatprep.subr.bf16.mxu0 0
    %3742 = vmatpush1.bf16.msra.mxu0 %v3551
    %3743 = vmatprep.subr.bf16.mxu0 0
    %3744 = vmatpush1.bf16.msra.mxu0 %v3552
    %3745 = vmatprep.subr.bf16.mxu0 0
    %3746 = vmatpush1.bf16.msra.mxu0 %v3553
    %3747 = vmatprep.subr.bf16.mxu0 0
    %3748 = vmatpush1.bf16.msra.mxu0 %v3554
    %3749 = vmatprep.subr.bf16.mxu0 0
    %3750 = vmatpush1.bf16.msra.mxu0 %v3555
    %3751 = vmatprep.subr.bf16.mxu0 0
    %3752 = vmatpush1.bf16.msra.mxu0 %v3556
    %3753 = vmatprep.subr.bf16.mxu0 0
    %3754 = vmatpush1.bf16.msra.mxu0 %v3557
    %3755 = vmatprep.subr.bf16.mxu0 0
    %3756 = vmatpush1.bf16.msra.mxu0 %v3558
    %3757 = vmatprep.subr.bf16.mxu0 0
    %3758 = vmatpush1.bf16.msra.mxu0 %v3559
    %3759 = vmatprep.subr.bf16.mxu0 0
    %3760 = vmatpush1.bf16.msra.mxu0 %v3560
    %3761 = vmatprep.subr.bf16.mxu0 0
    %3762 = vmatpush1.bf16.msra.mxu0 %v3561
    %3763 = vmatprep.mubr.bf16.mxu0 %v2959
    %3764 = vmatmul.mubr.bf16.gmra.mrb[0].mxu0 %v2945
    %v3765 = vpop.f32.mrb[0].mxu0
    %v3766 = vadd.f32 %v3677, %v3765
    %v3767 = vpop.f32.mrb[0].mxu0
    %v3768 = vpop.f32.mrb[0].mxu0
    %v3769 = vadd.f32 %v3680, %v3768
    %v3770 = vpop.f32.mrb[0].mxu0
    %3771 = vmatprep.mubr.bf16.mxu0 %v2963
    %3772 = vmatmul.mubr.bf16.gmra.mrb[0].mxu0 %v2947
    %v3773 = vpop.f32.mrb[0].mxu0
    %v3774 = vadd.f32 %v3685, %v3773
    %v3775 = vpop.f32.mrb[0].mxu0
    %v3776 = vpop.f32.mrb[0].mxu0
    %v3777 = vadd.f32 %v3688, %v3776
    %v3778 = vpop.f32.mrb[0].mxu0
    %3779 = vmatprep.mubr.bf16.mxu0 %v2967
    %3780 = vmatmul.mubr.bf16.gmra.mrb[0].mxu0 %v2949
    %v3781 = vpop.f32.mrb[0].mxu0
    %v3782 = vadd.f32 %v3693, %v3781
    %v3783 = vpop.f32.mrb[0].mxu0
    %v3784 = vpop.f32.mrb[0].mxu0
    %v3785 = vadd.f32 %v3696, %v3784
    %v3786 = vpop.f32.mrb[0].mxu0
    %3787 = vmatprep.mubr.bf16.mxu0 %v3180
    %3788 = vmatmul.mubr.bf16.gmra.mrb[0].mxu0 %v3176
    %v3789 = vpop.f32.mrb[0].mxu0
    %v3790 = vadd.f32 %v3701, %v3789
    %v3791 = vpop.f32.mrb[0].mxu0
    %v3792 = vpop.f32.mrb[0].mxu0
    %v3793 = vadd.f32 %v3704, %v3792
    %v3794 = vpop.f32.mrb[0].mxu0
    %3795 = vmatprep.mubr.bf16.mxu0 %v3110
    %3796 = vmatmul.mubr.bf16.gmra.mrb[0].mxu0 %v3108
    %v3797 = vpop.f32.mrb[0].mxu0
    %v3798 = vadd.f32 %v3709, %v3797
    %v3799 = vpop.f32.mrb[0].mxu0
    %v3800 = vpop.f32.mrb[0].mxu0
    %v3801 = vadd.f32 %v3712, %v3800
    %v3802 = vpop.f32.mrb[0].mxu0
    %3803 = vmatprep.mubr.bf16.mxu0 %v3124
    %3804 = vmatmul.mubr.bf16.gmra.mrb[0].mxu0 %v3122
    %v3805 = vpop.f32.mrb[0].mxu0
    %v3806 = vadd.f32 %v3717, %v3805
    %v3807 = vpop.f32.mrb[0].mxu0
    %v3808 = vpop.f32.mrb[0].mxu0
    %v3809 = vadd.f32 %v3720, %v3808
    %v3810 = vpop.f32.mrb[0].mxu0
    %3811 = vmatprep.mubr.bf16.mxu0 %v3138
    %3812 = vmatmul.mubr.bf16.gmra.mrb[0].mxu0 %v3136
    %v3813 = vpop.f32.mrb[0].mxu0
    %v3814 = vadd.f32 %v3725, %v3813
    %v3815 = vpop.f32.mrb[0].mxu0
    %v3816 = vpop.f32.mrb[0].mxu0
    %v3817 = vadd.f32 %v3728, %v3816
    %v3818 = vpop.f32.mrb[0].mxu0
    %3819 = vdwg.mxu0
    %3820 = vmatprep.subr.bf16.mxu0 0
    %3821 = vmatpush1.bf16.msra.mxu0 %v3562
    %3822 = vmatprep.subr.bf16.mxu0 0
    %3823 = vmatpush1.bf16.msra.mxu0 %v3563
    %3824 = vmatprep.subr.bf16.mxu0 0
    %3825 = vmatpush1.bf16.msra.mxu0 %v3564
    %3826 = vmatprep.subr.bf16.mxu0 0
    %3827 = vmatpush1.bf16.msra.mxu0 %v3565
    %3828 = vmatprep.subr.bf16.mxu0 0
    %3829 = vmatpush1.bf16.msra.mxu0 %v3566
    %3830 = vmatprep.subr.bf16.mxu0 0
    %3831 = vmatpush1.bf16.msra.mxu0 %v3567
    %3832 = vmatprep.subr.bf16.mxu0 0
    %3833 = vmatpush1.bf16.msra.mxu0 %v3568
    %3834 = vmatprep.subr.bf16.mxu0 0
    %3835 = vmatpush1.bf16.msra.mxu0 %v3569
    %3836 = vmatprep.subr.bf16.mxu0 0
    %3837 = vmatpush1.bf16.msra.mxu0 %v3570
    %3838 = vmatprep.subr.bf16.mxu0 0
    %3839 = vmatpush1.bf16.msra.mxu0 %v3571
    %3840 = vmatprep.subr.bf16.mxu0 0
    %3841 = vmatpush1.bf16.msra.mxu0 %v3572
    %3842 = vmatprep.subr.bf16.mxu0 0
    %3843 = vmatpush1.bf16.msra.mxu0 %v3573
    %3844 = vmatprep.subr.bf16.mxu0 0
    %3845 = vmatpush1.bf16.msra.mxu0 %v3574
    %3846 = vmatprep.subr.bf16.mxu0 0
    %3847 = vmatpush1.bf16.msra.mxu0 %v3575
    %3848 = vmatprep.subr.bf16.mxu0 0
    %3849 = vmatpush1.bf16.msra.mxu0 %v3576
    %3850 = vmatprep.subr.bf16.mxu0 0
    %3851 = vmatpush1.bf16.msra.mxu0 %v3577
    %3852 = vmatprep.mubr.bf16.mxu0 %v2987
    %3853 = vmatmul.mubr.bf16.gmra.mrb[0].mxu0 %v2973
    %v3854 = vpop.f32.mrb[0].mxu0
    %v3855 = vadd.f32 %v3766, %v3854
    %v3856 = vpop.f32.mrb[0].mxu0
    %v3857 = vpop.f32.mrb[0].mxu0
    %v3858 = vadd.f32 %v3769, %v3857
    %v3859 = vpop.f32.mrb[0].mxu0
    %3860 = vmatprep.mubr.bf16.mxu0 %v2991
    %3861 = vmatmul.mubr.bf16.gmra.mrb[0].mxu0 %v2975
    %v3862 = vpop.f32.mrb[0].mxu0
    %v3863 = vadd.f32 %v3774, %v3862
    %v3864 = vpop.f32.mrb[0].mxu0
    %v3865 = vpop.f32.mrb[0].mxu0
    %v3866 = vadd.f32 %v3777, %v3865
    %v3867 = vpop.f32.mrb[0].mxu0
    %3868 = vmatprep.mubr.bf16.mxu0 %v2995
    %3869 = vmatmul.mubr.bf16.gmra.mrb[0].mxu0 %v2977
    %v3870 = vpop.f32.mrb[0].mxu0
    %v3871 = vadd.f32 %v3782, %v3870
    %v3872 = vpop.f32.mrb[0].mxu0
    %v3873 = vpop.f32.mrb[0].mxu0
    %v3874 = vadd.f32 %v3785, %v3873
    %v3875 = vpop.f32.mrb[0].mxu0
    %3876 = vmatprep.mubr.bf16.mxu0 %v3188
    %3877 = vmatmul.mubr.bf16.gmra.mrb[0].mxu0 %v3184
    %v3878 = vpop.f32.mrb[0].mxu0
    %v3879 = vadd.f32 %v3790, %v3878
    %v3880 = vpop.f32.mrb[0].mxu0
    %v3881 = vpop.f32.mrb[0].mxu0
    %v3882 = vadd.f32 %v3793, %v3881
    %v3883 = vpop.f32.mrb[0].mxu0
    %3884 = vmatprep.mubr.bf16.mxu0 %v3114
    %3885 = vmatmul.mubr.bf16.gmra.mrb[0].mxu0 %v3112
    %v3886 = vpop.f32.mrb[0].mxu0
    %v3887 = vadd.f32 %v3798, %v3886
    %v3888 = vpop.f32.mrb[0].mxu0
    %v3889 = vpop.f32.mrb[0].mxu0
    %v3890 = vadd.f32 %v3801, %v3889
    %v3891 = vpop.f32.mrb[0].mxu0
    %3892 = vmatprep.mubr.bf16.mxu0 %v3128
    %3893 = vmatmul.mubr.bf16.gmra.mrb[0].mxu0 %v3126
    %v3894 = vpop.f32.mrb[0].mxu0
    %v3895 = vadd.f32 %v3806, %v3894
    %v3896 = vpop.f32.mrb[0].mxu0
    %v3897 = vpop.f32.mrb[0].mxu0
    %v3898 = vadd.f32 %v3809, %v3897
    %v3899 = vpop.f32.mrb[0].mxu0
    %3900 = vmatprep.mubr.bf16.mxu0 %v3142
    %3901 = vmatmul.mubr.bf16.gmra.mrb[0].mxu0 %v3140
    %v3902 = vpop.f32.mrb[0].mxu0
    %v3903 = vadd.f32 %v3814, %v3902
    %v3904 = vpop.f32.mrb[0].mxu0
    %v3905 = vpop.f32.mrb[0].mxu0
    %v3906 = vadd.f32 %v3817, %v3905
    %v3907 = vpop.f32.mrb[0].mxu0
    %3908 = vdwg.mxu0
    %3909 = vmatprep.subr.bf16.mxu0 0
    %3910 = vmatpush1.bf16.msra.mxu0 %v3578
    %3911 = vmatprep.subr.bf16.mxu0 0
    %3912 = vmatpush1.bf16.msra.mxu0 %v3579
    %3913 = vmatprep.subr.bf16.mxu0 0
    %3914 = vmatpush1.bf16.msra.mxu0 %v3580
    %3915 = vmatprep.subr.bf16.mxu0 0
    %3916 = vmatpush1.bf16.msra.mxu0 %v3581
    %3917 = vmatprep.subr.bf16.mxu0 0
    %3918 = vmatpush1.bf16.msra.mxu0 %v3582
    %3919 = vmatprep.subr.bf16.mxu0 0
    %3920 = vmatpush1.bf16.msra.mxu0 %v3583
    %3921 = vmatprep.subr.bf16.mxu0 0
    %3922 = vmatpush1.bf16.msra.mxu0 %v3584
    %3923 = vmatprep.subr.bf16.mxu0 0
    %3924 = vmatpush1.bf16.msra.mxu0 %v3585
    %3925 = vmatprep.subr.bf16.mxu0 0
    %3926 = vmatpush1.bf16.msra.mxu0 0
    %3927 = vmatprep.subr.bf16.mxu0 0
    %3928 = vmatpush1.bf16.msra.mxu0 0
    %3929 = vmatprep.subr.bf16.mxu0 0
    %3930 = vmatpush1.bf16.msra.mxu0 0
    %3931 = vmatprep.subr.bf16.mxu0 0
    %3932 = vmatpush1.bf16.msra.mxu0 0
    %3933 = vmatprep.subr.bf16.mxu0 0
    %3934 = vmatpush1.bf16.msra.mxu0 0
    %3935 = vmatprep.subr.bf16.mxu0 0
    %3936 = vmatpush1.bf16.msra.mxu0 0
    %3937 = vmatprep.subr.bf16.mxu0 0
    %3938 = vmatpush1.bf16.msra.mxu0 0
    %3939 = vmatprep.subr.bf16.mxu0 0
    %3940 = vmatpush1.bf16.msra.mxu0 0
    %3941 = vmatprep.mubr.bf16.mxu0 0
    %3942 = vmatmul.mubr.bf16.gmra.mrb[0].mxu0 %v3001
    %v3943 = vpop.f32.mrb[0].mxu0
    %v3944 = vadd.f32 %v3855, %v3943
    %v3945 = vpop.f32.mrb[0].mxu0
    %v3946 = vpop.f32.mrb[0].mxu0
    %v3947 = vadd.f32 %v3858, %v3946
    %v3948 = vpop.f32.mrb[0].mxu0
    %3949 = vmatprep.mubr.bf16.mxu0 0
    %3950 = vmatmul.mubr.bf16.gmra.mrb[0].mxu0 %v3003
    %v3951 = vpop.f32.mrb[0].mxu0
    %v3952 = vadd.f32 %v3863, %v3951
    %v3953 = vpop.f32.mrb[0].mxu0
    %v3954 = vpop.f32.mrb[0].mxu0
    %v3955 = vadd.f32 %v3866, %v3954
    %v3956 = vpop.f32.mrb[0].mxu0
    %3957 = vmatprep.mubr.bf16.mxu0 0
    %3958 = vmatmul.mubr.bf16.gmra.mrb[0].mxu0 %v3005
    %v3959 = vpop.f32.mrb[0].mxu0
    %v3960 = vadd.f32 %v3871, %v3959
    %v3961 = vpop.f32.mrb[0].mxu0
    %v3962 = vpop.f32.mrb[0].mxu0
    %v3963 = vadd.f32 %v3874, %v3962
    %v3964 = vpop.f32.mrb[0].mxu0
    %3965 = vmatprep.mubr.bf16.mxu0 0
    %3966 = vmatmul.mubr.bf16.gmra.mrb[0].mxu0 %v3192
    %v3967 = vpop.f32.mrb[0].mxu0
    %v3968 = vadd.f32 %v3879, %v3967
    %v3969 = vpop.f32.mrb[0].mxu0
    %v3970 = vpop.f32.mrb[0].mxu0
    %v3971 = vadd.f32 %v3882, %v3970
    %v3972 = vpop.f32.mrb[0].mxu0
    %3973 = vmatprep.mubr.bf16.mxu0 0
    %3974 = vmatmul.mubr.bf16.gmra.mrb[0].mxu0 %v3116
    %v3975 = vpop.f32.mrb[0].mxu0
    %v3976 = vadd.f32 %v3887, %v3975
    %v3977 = vpop.f32.mrb[0].mxu0
    %v3978 = vpop.f32.mrb[0].mxu0
    %v3979 = vadd.f32 %v3890, %v3978
    %v3980 = vpop.f32.mrb[0].mxu0
    %3981 = vmatprep.mubr.bf16.mxu0 0
    %3982 = vmatmul.mubr.bf16.gmra.mrb[0].mxu0 %v3130
    %v3983 = vpop.f32.mrb[0].mxu0
    %v3984 = vadd.f32 %v3895, %v3983
    %v3985 = vpop.f32.mrb[0].mxu0
    %v3986 = vpop.f32.mrb[0].mxu0
    %v3987 = vadd.f32 %v3898, %v3986
    %v3988 = vpop.f32.mrb[0].mxu0
    %3989 = vmatprep.mubr.bf16.mxu0 0
    %3990 = vmatmul.mubr.bf16.gmra.mrb[0].mxu0 %v3144
    %v3991 = vpop.f32.mrb[0].mxu0
    %v3992 = vadd.f32 %v3903, %v3991
    %v3993 = vpop.f32.mrb[0].mxu0
    %v3994 = vpop.f32.mrb[0].mxu0
    %v3995 = vadd.f32 %v3906, %v3994
    %v3996 = vpop.f32.mrb[0].mxu0
    %3997 = vdwg.mxu0
    %v3998 = vld [vmem:[%s5] sm:$0x1]
    %v4000 = vlaneseq
    %v4001 = vshrl.u32 %v4000, 7
    %v4002 = vsub.s32 0, %v4001
    %v4003 = vrot.slane %v3998, %v4002
    %v4005 = vmul.f32 %v3944, %v4003
    %v4006 = vmul.f32 %v3947, %v4003
    %v4007 = vmul.f32 %v3952, %v4003
    %v4008 = vmul.f32 %v3955, %v4003
    %v4009 = vmul.f32 %v3960, %v4003
    %v4010 = vmul.f32 %v3963, %v4003
    %v4011 = vmul.f32 %v3968, %v4003
    %v4012 = vmul.f32 %v3971, %v4003
    %v4013 = vmul.f32 %v3976, %v4003
    %v4014 = vmul.f32 %v3979, %v4003
    %v4015 = vmul.f32 %v3984, %v4003
    %v4016 = vmul.f32 %v3987, %v4003
    %v4017 = vmul.f32 %v3992, %v4003
    %v4018 = vmul.f32 %v3995, %v4003
    %v4019 = vld [vmem:[%s6] sm:$0x1]
    %v4021 = vlaneseq
    %v4022 = vshrl.u32 %v4021, 7
    %v4023 = vsub.s32 0, %v4022
    %v4024 = vrot.slane %v4019, %v4023
    %v4026 = vadd.f32 %v4005, %v4024
    %v4027 = vadd.f32 %v4006, %v4024
    %v4028 = vadd.f32 %v4007, %v4024
    %v4029 = vadd.f32 %v4008, %v4024
    %v4030 = vadd.f32 %v4009, %v4024
    %v4031 = vadd.f32 %v4010, %v4024
    %v4032 = vadd.f32 %v4011, %v4024
    %v4033 = vadd.f32 %v4012, %v4024
    %v4034 = vadd.f32 %v4013, %v4024
    %v4035 = vadd.f32 %v4014, %v4024
    %v4036 = vadd.f32 %v4015, %v4024
    %v4037 = vadd.f32 %v4016, %v4024
    %v4038 = vadd.f32 %v4017, %v4024
    %v4039 = vadd.f32 %v4018, %v4024
    %v4040 = vmax.f32 %v4026, 0.0
    %v4041 = vmax.f32 %v4027, 0.0
    %v4042 = vmax.f32 %v4028, 0.0
    %v4043 = vmax.f32 %v4029, 0.0
    %v4044 = vmax.f32 %v4030, 0.0
    %v4045 = vmax.f32 %v4031, 0.0
    %v4046 = vmax.f32 %v4032, 0.0
    %v4047 = vmax.f32 %v4033, 0.0
    %v4048 = vmax.f32 %v4034, 0.0
    %v4049 = vmax.f32 %v4035, 0.0
    %v4050 = vmax.f32 %v4036, 0.0
    %v4051 = vmax.f32 %v4037, 0.0
    %v4052 = vmax.f32 %v4038, 0.0
    %v4053 = vmax.f32 %v4039, 0.0
    %v4068 = vrot.slane %v4040, 1
    %v4069 = vrot.slane %v4041, 1
    %v4070 = vsel %vm2465, %v4068, %v4069
    %v4071 = vrot.slane %v4042, 1
    %v4072 = vsel %vm2465, %v4069, %v4071
    %v4073 = vrot.slane %v4043, 1
    %v4074 = vsel %vm2465, %v4071, %v4073
    %v4075 = vrot.slane %v4044, 1
    %v4076 = vsel %vm2465, %v4073, %v4075
    %v4077 = vrot.slane %v4045, 1
    %v4078 = vsel %vm2465, %v4075, %v4077
    %v4079 = vrot.slane %v4046, 1
    %v4080 = vsel %vm2465, %v4077, %v4079
    %v4081 = vrot.slane %v4047, 1
    %v4082 = vsel %vm2465, %v4079, %v4081
    %v4083 = vrot.slane %v4048, 1
    %v4084 = vsel %vm2465, %v4081, %v4083
    %v4085 = vrot.slane %v4049, 1
    %v4086 = vsel %vm2465, %v4083, %v4085
    %v4087 = vrot.slane %v4050, 1
    %v4088 = vsel %vm2465, %v4085, %v4087
    %v4089 = vrot.slane %v4051, 1
    %v4090 = vsel %vm2465, %v4087, %v4089
    %v4091 = vrot.slane %v4052, 1
    %v4092 = vsel %vm2465, %v4089, %v4091
    %v4093 = vrot.slane %v4053, 1
    %v4094 = vsel %vm2465, %v4091, %v4093
    %v4109 = vmax.f32 %v4040, %v4070
    %v4110 = vmax.f32 %v4041, %v4072
    %v4111 = vmax.f32 %v4042, %v4074
    %v4112 = vmax.f32 %v4043, %v4076
    %v4113 = vmax.f32 %v4044, %v4078
    %v4114 = vmax.f32 %v4045, %v4080
    %v4115 = vmax.f32 %v4046, %v4082
    %v4116 = vmax.f32 %v4047, %v4084
    %v4117 = vmax.f32 %v4048, %v4086
    %v4118 = vmax.f32 %v4049, %v4088
    %v4119 = vmax.f32 %v4050, %v4090
    %v4120 = vmax.f32 %v4051, %v4092
    %v4121 = vmax.f32 %v4052, %v4094
    %v4122 = vmax.f32 %v4053, %v4093
    %v4123 = vrot.slane %v4040, 2
    %v4124 = vrot.slane %v4041, 2
    %v4125 = vsel %vm2629, %v4123, %v4124
    %v4126 = vrot.slane %v4042, 2
    %v4127 = vsel %vm2629, %v4124, %v4126
    %v4128 = vrot.slane %v4043, 2
    %v4129 = vsel %vm2629, %v4126, %v4128
    %v4130 = vrot.slane %v4044, 2
    %v4131 = vsel %vm2629, %v4128, %v4130
    %v4132 = vrot.slane %v4045, 2
    %v4133 = vsel %vm2629, %v4130, %v4132
    %v4134 = vrot.slane %v4046, 2
    %v4135 = vsel %vm2629, %v4132, %v4134
    %v4136 = vrot.slane %v4047, 2
    %v4137 = vsel %vm2629, %v4134, %v4136
    %v4138 = vrot.slane %v4048, 2
    %v4139 = vsel %vm2629, %v4136, %v4138
    %v4140 = vrot.slane %v4049, 2
    %v4141 = vsel %vm2629, %v4138, %v4140
    %v4142 = vrot.slane %v4050, 2
    %v4143 = vsel %vm2629, %v4140, %v4142
    %v4144 = vrot.slane %v4051, 2
    %v4145 = vsel %vm2629, %v4142, %v4144
    %v4146 = vrot.slane %v4052, 2
    %v4147 = vsel %vm2629, %v4144, %v4146
    %v4148 = vrot.slane %v4053, 2
    %v4149 = vsel %vm2629, %v4146, %v4148
    %v4164 = vmax.f32 %v4109, %v4125
    %v4165 = vmax.f32 %v4110, %v4127
    %v4166 = vmax.f32 %v4111, %v4129
    %v4167 = vmax.f32 %v4112, %v4131
    %v4168 = vmax.f32 %v4113, %v4133
    %v4169 = vmax.f32 %v4114, %v4135
    %v4170 = vmax.f32 %v4115, %v4137
    %v4171 = vmax.f32 %v4116, %v4139
    %v4172 = vmax.f32 %v4117, %v4141
    %v4173 = vmax.f32 %v4118, %v4143
    %v4174 = vmax.f32 %v4119, %v4145
    %v4175 = vmax.f32 %v4120, %v4147
    %v4176 = vmax.f32 %v4121, %v4149
    %v4177 = vmax.f32 %v4122, %v4148
    %4178 = vst [vmem:[#allocation4] sm:$0xff] %v4164
    %4179 = vst [vmem:[#allocation4 + $0x8] sm:$0xff] %v4165
    %4180 = vst [vmem:[#allocation4 + $0x10] sm:$0xff] %v4166
    %4181 = vst [vmem:[#allocation4 + $0x18] sm:$0xff] %v4167
    %4182 = vst [vmem:[#allocation4 + $0x20] sm:$0xff] %v4168
    %4183 = vst [vmem:[#allocation4 + $0x28] sm:$0xff] %v4169
    %4184 = vst [vmem:[#allocation4 + $0x30] sm:$0xff] %v4170
    %4185 = vst [vmem:[#allocation4 + $0x38] sm:$0xff] %v4171
    %4186 = vst [vmem:[#allocation4 + $0x40] sm:$0xff] %v4172
    %4187 = vst [vmem:[#allocation4 + $0x48] sm:$0xff] %v4173
    %4188 = vst [vmem:[#allocation4 + $0x50] sm:$0xff] %v4174
    %4189 = vst [vmem:[#allocation4 + $0x58] sm:$0xff] %v4175
    %4190 = vst [vmem:[#allocation4 + $0x60] sm:$0xff] %v4176
    %4191 = vst [vmem:[#allocation4 + $0x68] sm:$0x3] %v4177
    %v4192 = vld [vmem:[#allocation4] ss:$3 sm:$0xff]
    %s4193 = scalar_lea.vmem [#allocation4], 24
    %v4194 = vld [vmem:[%s4193] ss:$3 sm:$0xff]
    %s4195 = scalar_lea.vmem [#allocation4], 48
    %v4196 = vld [vmem:[%s4195] ss:$3 sm:$0xff]
    %s4197 = scalar_lea.vmem [#allocation4], 72
    %v4198 = vld [vmem:[%s4197] ss:$3 sm:$0xff]
    %s4199 = scalar_lea.vmem [#allocation4], 96
    %v4200 = vld [vmem:[%s4199] ss:$3 sm:$0xf]
    %4201 = vst [vmem:[#allocation3 + $0x5] sm:$0x7] 0.0
    %4202 = vst [vmem:[#allocation3 + $0x1a] sm:$0x7] 0.0
    %4203 = vst [vmem:[#allocation3 + $0x8] sm:$0xff] %v4192
    %4204 = vst [vmem:[#allocation3 + $0x10] sm:$0xff] %v4194
    %4205 = vst [vmem:[#allocation3 + $0x18] sm:$0x3] %v4196
    %s4206 = scalar_lea.vmem [#allocation3], 40
    %4207 = vst [vmem:[%s4206 + $0x5] sm:$0x7] 0.0
    %4208 = vst [vmem:[%s4206 + $0x1a] sm:$0x7] 0.0
    %4209 = vst [vmem:[%s4206 + $0x6] sm:$0xfc] %v4196
    %4210 = vst [vmem:[%s4206 + $0xe] sm:$0xff] %v4198
    %4211 = vst [vmem:[%s4206 + $0x16] sm:$0xf] %v4200
    %v4212 = vld [vmem:[#allocation3 + $0x5] sm:$0xff]
    %v4213 = vld [vmem:[#allocation3 + $0xd] sm:$0xff]
    %v4214 = vld [vmem:[#allocation3 + $0x15] sm:$0xff]
    %v4215 = vpack.c.bf16 %v4213, %v4212
    %v4216 = vpack.c.bf16 %v4214, %v4214
    %v4217 = vld [vmem:[%s4206 + $0x5] sm:$0xff]
    %v4218 = vld [vmem:[%s4206 + $0xd] sm:$0xff]
    %v4219 = vld [vmem:[%s4206 + $0x15] sm:$0xff]
    %v4220 = vpack.c.bf16 %v4218, %v4217
    %v4221 = vpack.c.bf16 %v4219, %v4219
    %v4223 = vshrl.u32 %v4215, 16
    %v4225 = vshll.u32 %v4215, 16
    %v4227 = vrot.slane %v4225, 1
    %v4228 = vor.u32 %v4223, %v4227
    %v4230 = vshll.u32 %v4216, 16
    %v4232 = vrot.slane %v4230, 1
    %v4233 = vsel %vm202, %v4228, %v4232
    %v4234 = vshrl.u32 %v4216, 16
    %v4236 = vor.u32 %v4234, %v4232
    %v4240 = vrot.slane %v4215, 1
    %v4241 = vrot.slane %v4216, 1
    %v4242 = vsel %vm300, %v4240, %v4241
    %v4244 = vrot.slane %v4223, 1
    %v4245 = vrot.slane %v4225, 2
    %v4246 = vor.u32 %v4244, %v4245
    %v4247 = vrot.slane %v4234, 1
    %v4248 = vrot.slane %v4230, 2
    %v4249 = vor.u32 %v4247, %v4248
    %v4250 = vsel %vm332, %v4246, %v4249
    %v4252 = vrot.slane %v4215, 2
    %v4253 = vrot.slane %v4216, 2
    %v4254 = vsel %vm386, %v4252, %v4253
    %v4256 = vrot.slane %v4223, 2
    %v4257 = vrot.slane %v4225, 3
    %v4258 = vor.u32 %v4256, %v4257
    %v4259 = vrot.slane %v4234, 2
    %v4260 = vrot.slane %v4230, 3
    %v4261 = vor.u32 %v4259, %v4260
    %v4262 = vsel %vm418, %v4258, %v4261
    %v4264 = vrot.slane %v4215, 3
    %v4265 = vrot.slane %v4216, 3
    %v4266 = vsel %vm472, %v4264, %v4265
    %v4269 = vshrl.u32 %v4220, 16
    %v4271 = vshll.u32 %v4220, 16
    %v4273 = vrot.slane %v4271, 1
    %v4274 = vor.u32 %v4269, %v4273
    %v4276 = vshll.u32 %v4221, 16
    %v4278 = vrot.slane %v4276, 1
    %v4279 = vsel %vm202, %v4274, %v4278
    %v4280 = vshrl.u32 %v4221, 16
    %v4282 = vor.u32 %v4280, %v4278
    %v4285 = vrot.slane %v4220, 1
    %v4286 = vrot.slane %v4221, 1
    %v4287 = vsel %vm300, %v4285, %v4286
    %v4288 = vrot.slane %v4269, 1
    %v4289 = vrot.slane %v4271, 2
    %v4290 = vor.u32 %v4288, %v4289
    %v4291 = vrot.slane %v4280, 1
    %v4292 = vrot.slane %v4276, 2
    %v4293 = vor.u32 %v4291, %v4292
    %v4294 = vsel %vm332, %v4290, %v4293
    %v4295 = vrot.slane %v4220, 2
    %v4296 = vrot.slane %v4221, 2
    %v4297 = vsel %vm386, %v4295, %v4296
    %v4298 = vrot.slane %v4269, 2
    %v4299 = vrot.slane %v4271, 3
    %v4300 = vor.u32 %v4298, %v4299
    %v4301 = vrot.slane %v4280, 2
    %v4302 = vrot.slane %v4276, 3
    %v4303 = vor.u32 %v4301, %v4302
    %v4304 = vsel %vm418, %v4300, %v4303
    %v4305 = vrot.slane %v4220, 3
    %v4306 = vrot.slane %v4221, 3
    %v4307 = vsel %vm472, %v4305, %v4306
    %v4308 = vrot.slane %v4220, 7
    %v4309 = vrot.slane %v4279, 7
    %v4310 = vrot.slane %v4287, 7
    %v4311 = vrot.slane %v4294, 7
    %v4312 = vrot.slane %v4297, 7
    %v4313 = vrot.slane %v4304, 7
    %v4314 = vrot.slane %v4307, 7
    %v4315 = vrot.slane %v4221, 7
    %v4316 = vsel %vm793, %v4308, %v4315
    %v4317 = vrot.slane %v4282, 7
    %v4318 = vsel %vm793, %v4309, %v4317
    %v4319 = vrot.slane %v4286, 7
    %v4320 = vsel %vm793, %v4310, %v4319
    %v4321 = vrot.slane %v4293, 7
    %v4322 = vsel %vm793, %v4311, %v4321
    %v4323 = vrot.slane %v4296, 7
    %v4324 = vsel %vm793, %v4312, %v4323
    %v4325 = vrot.slane %v4303, 7
    %v4326 = vsel %vm793, %v4313, %v4325
    %v4327 = vrot.slane %v4306, 7
    %v4328 = vsel %vm793, %v4314, %v4327
    %v4337 = vsel %vm1011, %v4216, %v4308
    %v4341 = vsel %vm1011, %v4236, %v4309
    %v4345 = vsel %vm1011, %v4241, %v4310
    %v4349 = vsel %vm1011, %v4249, %v4311
    %v4353 = vsel %vm1011, %v4253, %v4312
    %v4357 = vsel %vm1011, %v4261, %v4313
    %v4361 = vsel %vm1011, %v4265, %v4314
    %v4363 = vld [vmem:[#allocation8] sm:$0xf]
    %v4364 = vld [vmem:[#allocation8 + $0x4] sm:$0xf]
    %v4365 = vld [vmem:[#allocation8 + $0x8] sm:$0xf]
    %v4366 = vld [vmem:[#allocation8 + $0xc] sm:$0xf]
    %v4367 = vld [vmem:[#allocation8 + $0x10] sm:$0xf]
    %v4368 = vld [vmem:[#allocation8 + $0x14] sm:$0xf]
    %v4369 = vld [vmem:[#allocation8 + $0x18] sm:$0xf]
    %v4370 = vld [vmem:[#allocation8 + $0x1c] sm:$0xf]
    %v4371 = vld [vmem:[#allocation8 + $0x20] sm:$0xf]
    %v4372 = vld [vmem:[#allocation8 + $0x24] sm:$0xf]
    %v4373 = vld [vmem:[#allocation8 + $0x28] sm:$0xf]
    %v4374 = vld [vmem:[#allocation8 + $0x2c] sm:$0xf]
    %v4375 = vld [vmem:[#allocation8 + $0x30] sm:$0xf]
    %v4376 = vld [vmem:[#allocation8 + $0x34] sm:$0xf]
    %v4377 = vld [vmem:[#allocation8 + $0x38] sm:$0xf]
    %v4378 = vld [vmem:[#allocation8 + $0x3c] sm:$0xf]
    %v4379 = vld [vmem:[#allocation8 + $0x40] sm:$0xf]
    %v4380 = vld [vmem:[#allocation8 + $0x44] sm:$0xf]
    %v4381 = vld [vmem:[#allocation8 + $0x48] sm:$0xf]
    %v4382 = vld [vmem:[#allocation8 + $0x4c] sm:$0xf]
    %v4383 = vld [vmem:[#allocation8 + $0x50] sm:$0xf]
    %v4384 = vld [vmem:[#allocation8 + $0x54] sm:$0xf]
    %v4385 = vld [vmem:[#allocation8 + $0x58] sm:$0xf]
    %v4386 = vld [vmem:[#allocation8 + $0x5c] sm:$0xf]
    %v4387 = vld [vmem:[#allocation8 + $0x60] sm:$0xf]
    %v4388 = vld [vmem:[#allocation8 + $0x64] sm:$0xf]
    %v4389 = vld [vmem:[#allocation8 + $0x68] sm:$0xf]
    %v4390 = vld [vmem:[#allocation8 + $0x6c] sm:$0xf]
    %v4391 = vld [vmem:[#allocation8 + $0x70] sm:$0xf]
    %v4392 = vld [vmem:[#allocation8 + $0x74] sm:$0xf]
    %v4393 = vld [vmem:[#allocation8 + $0x78] sm:$0xf]
    %v4394 = vld [vmem:[#allocation8 + $0x7c] sm:$0xf]
    %v4395 = vld [vmem:[#allocation8 + $0x80] sm:$0xf]
    %v4396 = vld [vmem:[#allocation8 + $0x84] sm:$0xf]
    %v4397 = vld [vmem:[#allocation8 + $0x88] sm:$0xf]
    %v4398 = vld [vmem:[#allocation8 + $0x8c] sm:$0xf]
    %v4399 = vld [vmem:[#allocation8 + $0x90] sm:$0xf]
    %v4400 = vld [vmem:[#allocation8 + $0x94] sm:$0xf]
    %v4401 = vld [vmem:[#allocation8 + $0x98] sm:$0xf]
    %v4402 = vld [vmem:[#allocation8 + $0x9c] sm:$0xf]
    %v4403 = vld [vmem:[#allocation8 + $0xa0] sm:$0xf]
    %v4404 = vld [vmem:[#allocation8 + $0xa4] sm:$0xf]
    %v4405 = vld [vmem:[#allocation8 + $0xa8] sm:$0xf]
    %v4406 = vld [vmem:[#allocation8 + $0xac] sm:$0xf]
    %v4407 = vld [vmem:[#allocation8 + $0xb0] sm:$0xf]
    %v4408 = vld [vmem:[#allocation8 + $0xb4] sm:$0xf]
    %v4409 = vld [vmem:[#allocation8 + $0xb8] sm:$0xf]
    %v4410 = vld [vmem:[#allocation8 + $0xbc] sm:$0xf]
    %v4411 = vld [vmem:[#allocation8 + $0xc0] sm:$0xf]
    %v4412 = vld [vmem:[#allocation8 + $0xc4] sm:$0xf]
    %v4413 = vld [vmem:[#allocation8 + $0xc8] sm:$0xf]
    %v4414 = vld [vmem:[#allocation8 + $0xcc] sm:$0xf]
    %v4415 = vld [vmem:[#allocation8 + $0xd0] sm:$0xf]
    %v4416 = vld [vmem:[#allocation8 + $0xd4] sm:$0xf]
    %v4417 = vld [vmem:[#allocation8 + $0xd8] sm:$0xf]
    %v4418 = vld [vmem:[#allocation8 + $0xdc] sm:$0xf]
    %v4419 = vld [vmem:[#allocation8 + $0xe0] sm:$0xf]
    %v4420 = vld [vmem:[#allocation8 + $0xe4] sm:$0xf]
    %v4421 = vld [vmem:[#allocation8 + $0xe8] sm:$0xf]
    %v4422 = vld [vmem:[#allocation8 + $0xec] sm:$0xf]
    %v4423 = vld [vmem:[#allocation8 + $0xf0] sm:$0xf]
    %v4424 = vld [vmem:[#allocation8 + $0xf4] sm:$0xf]
    %v4425 = vld [vmem:[#allocation8 + $0xf8] sm:$0xf]
    %v4426 = vld [vmem:[#allocation8 + $0xfc] sm:$0xf]
    %v4427 = vld [vmem:[#allocation8 + $0x100] sm:$0xf]
    %v4428 = vld [vmem:[#allocation8 + $0x104] sm:$0xf]
    %v4429 = vld [vmem:[#allocation8 + $0x108] sm:$0xf]
    %v4430 = vld [vmem:[#allocation8 + $0x10c] sm:$0xf]
    %v4431 = vld [vmem:[#allocation8 + $0x110] sm:$0xf]
    %v4432 = vld [vmem:[#allocation8 + $0x114] sm:$0xf]
    %v4433 = vld [vmem:[#allocation8 + $0x118] sm:$0xf]
    %v4434 = vld [vmem:[#allocation8 + $0x11c] sm:$0xf]
    %v4435 = vld [vmem:[#allocation8 + $0x120] sm:$0xf]
    %v4436 = vld [vmem:[#allocation8 + $0x124] sm:$0xf]
    %v4437 = vld [vmem:[#allocation8 + $0x128] sm:$0xf]
    %v4438 = vld [vmem:[#allocation8 + $0x12c] sm:$0xf]
    %v4439 = vld [vmem:[#allocation8 + $0x130] sm:$0xf]
    %v4440 = vld [vmem:[#allocation8 + $0x134] sm:$0xf]
    %v4441 = vld [vmem:[#allocation8 + $0x138] sm:$0xf]
    %v4442 = vld [vmem:[#allocation8 + $0x13c] sm:$0xf]
    %v4443 = vld [vmem:[#allocation8 + $0x140] sm:$0xf]
    %v4444 = vld [vmem:[#allocation8 + $0x144] sm:$0xf]
    %v4445 = vld [vmem:[#allocation8 + $0x148] sm:$0xf]
    %v4446 = vld [vmem:[#allocation8 + $0x14c] sm:$0xf]
    %v4447 = vld [vmem:[#allocation8 + $0x150] sm:$0xf]
    %v4448 = vld [vmem:[#allocation8 + $0x154] sm:$0xf]
    %v4449 = vld [vmem:[#allocation8 + $0x158] sm:$0xf]
    %v4450 = vld [vmem:[#allocation8 + $0x15c] sm:$0xf]
    %v4451 = vld [vmem:[#allocation8 + $0x160] sm:$0xf]
    %v4452 = vld [vmem:[#allocation8 + $0x164] sm:$0xf]
    %v4453 = vld [vmem:[#allocation8 + $0x168] sm:$0xf]
    %v4454 = vld [vmem:[#allocation8 + $0x16c] sm:$0xf]
    %v4455 = vld [vmem:[#allocation8 + $0x170] sm:$0xf]
    %v4456 = vld [vmem:[#allocation8 + $0x174] sm:$0xf]
    %v4457 = vld [vmem:[#allocation8 + $0x178] sm:$0xf]
    %v4458 = vld [vmem:[#allocation8 + $0x17c] sm:$0xf]
    %v4459 = vld [vmem:[#allocation8 + $0x180] sm:$0xf]
    %v4460 = vld [vmem:[#allocation8 + $0x184] sm:$0xf]
    %v4461 = vld [vmem:[#allocation8 + $0x188] sm:$0xf]
    %v4462 = vld [vmem:[#allocation8 + $0x18c] sm:$0xf]
    %v4463 = vld [vmem:[#allocation8 + $0x190] sm:$0xf]
    %v4464 = vld [vmem:[#allocation8 + $0x194] sm:$0xf]
    %v4465 = vld [vmem:[#allocation8 + $0x198] sm:$0xf]
    %v4466 = vld [vmem:[#allocation8 + $0x19c] sm:$0xf]
    %v4467 = vld [vmem:[#allocation8 + $0x1a0] sm:$0xf]
    %v4468 = vld [vmem:[#allocation8 + $0x1a4] sm:$0xf]
    %v4469 = vld [vmem:[#allocation8 + $0x1a8] sm:$0xf]
    %v4470 = vld [vmem:[#allocation8 + $0x1ac] sm:$0xf]
    %v4471 = vld [vmem:[#allocation8 + $0x1b0] sm:$0xf]
    %v4472 = vld [vmem:[#allocation8 + $0x1b4] sm:$0xf]
    %v4473 = vld [vmem:[#allocation8 + $0x1b8] sm:$0xf]
    %v4474 = vld [vmem:[#allocation8 + $0x1bc] sm:$0xf]
    %v4587 = vunpack.c.l.b16 %v4363
    %v4588 = vunpack.c.l.b16 %v4364
    %v4589 = vunpack.c.l.b16 %v4365
    %v4590 = vunpack.c.l.b16 %v4366
    %v4591 = vunpack.c.l.b16 %v4367
    %v4592 = vunpack.c.l.b16 %v4368
    %v4593 = vunpack.c.l.b16 %v4369
    %v4594 = vunpack.c.l.b16 %v4370
    %v4595 = vunpack.c.l.b16 %v4371
    %v4596 = vunpack.c.l.b16 %v4372
    %v4597 = vunpack.c.l.b16 %v4373
    %v4598 = vunpack.c.l.b16 %v4374
    %v4599 = vunpack.c.l.b16 %v4375
    %v4600 = vunpack.c.l.b16 %v4376
    %v4601 = vunpack.c.l.b16 %v4377
    %v4602 = vunpack.c.l.b16 %v4378
    %v4603 = vunpack.c.l.b16 %v4379
    %v4604 = vunpack.c.l.b16 %v4380
    %v4605 = vunpack.c.l.b16 %v4381
    %v4606 = vunpack.c.l.b16 %v4382
    %v4607 = vunpack.c.l.b16 %v4383
    %v4608 = vunpack.c.l.b16 %v4384
    %v4609 = vunpack.c.l.b16 %v4385
    %v4610 = vunpack.c.l.b16 %v4386
    %v4611 = vunpack.c.l.b16 %v4387
    %v4612 = vunpack.c.l.b16 %v4388
    %v4613 = vunpack.c.l.b16 %v4389
    %v4614 = vunpack.c.l.b16 %v4390
    %v4615 = vunpack.c.l.b16 %v4391
    %v4616 = vunpack.c.l.b16 %v4392
    %v4617 = vunpack.c.l.b16 %v4393
    %v4618 = vunpack.c.l.b16 %v4394
    %v4619 = vunpack.c.l.b16 %v4395
    %v4620 = vunpack.c.l.b16 %v4396
    %v4621 = vunpack.c.l.b16 %v4397
    %v4622 = vunpack.c.l.b16 %v4398
    %v4623 = vunpack.c.l.b16 %v4399
    %v4624 = vunpack.c.l.b16 %v4400
    %v4625 = vunpack.c.l.b16 %v4401
    %v4626 = vunpack.c.l.b16 %v4402
    %v4627 = vunpack.c.l.b16 %v4403
    %v4628 = vunpack.c.l.b16 %v4404
    %v4629 = vunpack.c.l.b16 %v4405
    %v4630 = vunpack.c.l.b16 %v4406
    %v4631 = vunpack.c.l.b16 %v4407
    %v4632 = vunpack.c.l.b16 %v4408
    %v4633 = vunpack.c.l.b16 %v4409
    %v4634 = vunpack.c.l.b16 %v4410
    %v4635 = vunpack.c.l.b16 %v4411
    %v4636 = vunpack.c.l.b16 %v4412
    %v4637 = vunpack.c.l.b16 %v4413
    %v4638 = vunpack.c.l.b16 %v4414
    %v4639 = vunpack.c.l.b16 %v4415
    %v4640 = vunpack.c.l.b16 %v4416
    %v4641 = vunpack.c.l.b16 %v4417
    %v4642 = vunpack.c.l.b16 %v4418
    %v4643 = vunpack.c.l.b16 %v4419
    %v4644 = vunpack.c.l.b16 %v4420
    %v4645 = vunpack.c.l.b16 %v4421
    %v4646 = vunpack.c.l.b16 %v4422
    %v4647 = vunpack.c.l.b16 %v4423
    %v4648 = vunpack.c.l.b16 %v4424
    %v4649 = vunpack.c.l.b16 %v4425
    %v4650 = vunpack.c.l.b16 %v4426
    %v4651 = vunpack.c.l.b16 %v4427
    %v4652 = vunpack.c.l.b16 %v4428
    %v4653 = vunpack.c.l.b16 %v4429
    %v4654 = vunpack.c.l.b16 %v4430
    %v4655 = vunpack.c.l.b16 %v4431
    %v4656 = vunpack.c.l.b16 %v4432
    %v4657 = vunpack.c.l.b16 %v4433
    %v4658 = vunpack.c.l.b16 %v4434
    %v4659 = vunpack.c.l.b16 %v4435
    %v4660 = vunpack.c.l.b16 %v4436
    %v4661 = vunpack.c.l.b16 %v4437
    %v4662 = vunpack.c.l.b16 %v4438
    %v4663 = vunpack.c.l.b16 %v4439
    %v4664 = vunpack.c.l.b16 %v4440
    %v4665 = vunpack.c.l.b16 %v4441
    %v4666 = vunpack.c.l.b16 %v4442
    %v4667 = vunpack.c.l.b16 %v4443
    %v4668 = vunpack.c.l.b16 %v4444
    %v4669 = vunpack.c.l.b16 %v4445
    %v4670 = vunpack.c.l.b16 %v4446
    %v4671 = vunpack.c.l.b16 %v4447
    %v4672 = vunpack.c.l.b16 %v4448
    %v4673 = vunpack.c.l.b16 %v4449
    %v4674 = vunpack.c.l.b16 %v4450
    %v4675 = vunpack.c.l.b16 %v4451
    %v4676 = vunpack.c.l.b16 %v4452
    %v4677 = vunpack.c.l.b16 %v4453
    %v4678 = vunpack.c.l.b16 %v4454
    %v4679 = vunpack.c.l.b16 %v4455
    %v4680 = vunpack.c.l.b16 %v4456
    %v4681 = vunpack.c.l.b16 %v4457
    %v4682 = vunpack.c.l.b16 %v4458
    %v4683 = vunpack.c.l.b16 %v4459
    %v4684 = vunpack.c.l.b16 %v4460
    %v4685 = vunpack.c.l.b16 %v4461
    %v4686 = vunpack.c.l.b16 %v4462
    %v4687 = vunpack.c.l.b16 %v4463
    %v4688 = vunpack.c.l.b16 %v4464
    %v4689 = vunpack.c.l.b16 %v4465
    %v4690 = vunpack.c.l.b16 %v4466
    %v4691 = vunpack.c.l.b16 %v4467
    %v4692 = vunpack.c.l.b16 %v4468
    %v4693 = vunpack.c.l.b16 %v4469
    %v4694 = vunpack.c.l.b16 %v4470
    %v4695 = vunpack.c.l.b16 %v4471
    %v4696 = vunpack.c.l.b16 %v4472
    %v4697 = vunpack.c.l.b16 %v4473
    %v4698 = vunpack.c.l.b16 %v4474
    %v4699 = vpack.c.b16 %v4588, %v4587
    %v4700 = vpack.c.b16 %v4590, %v4589
    %v4701 = vpack.c.b16 %v4592, %v4591
    %v4702 = vpack.c.b16 %v4594, %v4593
    %v4703 = vpack.c.b16 %v4596, %v4595
    %v4704 = vpack.c.b16 %v4598, %v4597
    %v4705 = vpack.c.b16 %v4600, %v4599
    %v4706 = vpack.c.b16 %v4602, %v4601
    %v4707 = vpack.c.b16 %v4604, %v4603
    %v4708 = vpack.c.b16 %v4606, %v4605
    %v4709 = vpack.c.b16 %v4608, %v4607
    %v4710 = vpack.c.b16 %v4610, %v4609
    %v4711 = vpack.c.b16 %v4612, %v4611
    %v4712 = vpack.c.b16 %v4614, %v4613
    %v4713 = vpack.c.b16 %v4616, %v4615
    %v4714 = vpack.c.b16 %v4618, %v4617
    %v4715 = vpack.c.b16 %v4620, %v4619
    %v4716 = vpack.c.b16 %v4622, %v4621
    %v4717 = vpack.c.b16 %v4624, %v4623
    %v4718 = vpack.c.b16 %v4626, %v4625
    %v4719 = vpack.c.b16 %v4628, %v4627
    %v4720 = vpack.c.b16 %v4630, %v4629
    %v4721 = vpack.c.b16 %v4632, %v4631
    %v4722 = vpack.c.b16 %v4634, %v4633
    %v4723 = vpack.c.b16 %v4636, %v4635
    %v4724 = vpack.c.b16 %v4638, %v4637
    %v4725 = vpack.c.b16 %v4640, %v4639
    %v4726 = vpack.c.b16 %v4642, %v4641
    %v4727 = vpack.c.b16 %v4644, %v4643
    %v4728 = vpack.c.b16 %v4646, %v4645
    %v4729 = vpack.c.b16 %v4648, %v4647
    %v4730 = vpack.c.b16 %v4650, %v4649
    %v4731 = vpack.c.b16 %v4652, %v4651
    %v4732 = vpack.c.b16 %v4654, %v4653
    %v4733 = vpack.c.b16 %v4656, %v4655
    %v4734 = vpack.c.b16 %v4658, %v4657
    %v4735 = vpack.c.b16 %v4660, %v4659
    %v4736 = vpack.c.b16 %v4662, %v4661
    %v4737 = vpack.c.b16 %v4664, %v4663
    %v4738 = vpack.c.b16 %v4666, %v4665
    %v4739 = vpack.c.b16 %v4668, %v4667
    %v4740 = vpack.c.b16 %v4670, %v4669
    %v4741 = vpack.c.b16 %v4672, %v4671
    %v4742 = vpack.c.b16 %v4674, %v4673
    %v4743 = vpack.c.b16 %v4676, %v4675
    %v4744 = vpack.c.b16 %v4678, %v4677
    %v4745 = vpack.c.b16 %v4680, %v4679
    %v4746 = vpack.c.b16 %v4682, %v4681
    %v4747 = vpack.c.b16 %v4684, %v4683
    %v4748 = vpack.c.b16 %v4686, %v4685
    %v4749 = vpack.c.b16 %v4688, %v4687
    %v4750 = vpack.c.b16 %v4690, %v4689
    %v4751 = vpack.c.b16 %v4692, %v4691
    %v4752 = vpack.c.b16 %v4694, %v4693
    %v4753 = vpack.c.b16 %v4696, %v4695
    %v4754 = vpack.c.b16 %v4698, %v4697
    %4811 = vmatprep.subr.bf16.mxu0 0
    %4812 = vmatpush1.bf16.msra.mxu0 %v4699
    %4813 = vmatprep.subr.bf16.mxu0 0
    %4814 = vmatpush1.bf16.msra.mxu0 %v4700
    %4815 = vmatprep.subr.bf16.mxu0 0
    %4816 = vmatpush1.bf16.msra.mxu0 %v4701
    %4817 = vmatprep.subr.bf16.mxu0 0
    %4818 = vmatpush1.bf16.msra.mxu0 %v4702
    %4819 = vmatprep.subr.bf16.mxu0 0
    %4820 = vmatpush1.bf16.msra.mxu0 %v4703
    %4821 = vmatprep.subr.bf16.mxu0 0
    %4822 = vmatpush1.bf16.msra.mxu0 %v4704
    %4823 = vmatprep.subr.bf16.mxu0 0
    %4824 = vmatpush1.bf16.msra.mxu0 %v4705
    %4825 = vmatprep.subr.bf16.mxu0 0
    %4826 = vmatpush1.bf16.msra.mxu0 %v4706
    %4827 = vmatprep.subr.bf16.mxu0 0
    %4828 = vmatpush1.bf16.msra.mxu0 %v4707
    %4829 = vmatprep.subr.bf16.mxu0 0
    %4830 = vmatpush1.bf16.msra.mxu0 %v4708
    %4831 = vmatprep.subr.bf16.mxu0 0
    %4832 = vmatpush1.bf16.msra.mxu0 %v4709
    %4833 = vmatprep.subr.bf16.mxu0 0
    %4834 = vmatpush1.bf16.msra.mxu0 %v4710
    %4835 = vmatprep.subr.bf16.mxu0 0
    %4836 = vmatpush1.bf16.msra.mxu0 %v4711
    %4837 = vmatprep.subr.bf16.mxu0 0
    %4838 = vmatpush1.bf16.msra.mxu0 %v4712
    %4839 = vmatprep.subr.bf16.mxu0 0
    %4840 = vmatpush1.bf16.msra.mxu0 %v4713
    %4841 = vmatprep.subr.bf16.mxu0 0
    %4842 = vmatpush1.bf16.msra.mxu0 %v4714
    %4843 = vmatprep.mubr.bf16.mxu0 %v4233
    %4844 = vmatmul.mubr.bf16.gmra.mrb[0].mxu0 %v4215
    %v4845 = vpop.f32.mrb[0].mxu0
    %v4846 = vadd.f32 0.0, %v4845
    %v4847 = vpop.f32.mrb[0].mxu0
    %v4848 = vpop.f32.mrb[0].mxu0
    %v4849 = vadd.f32 0.0, %v4848
    %v4850 = vpop.f32.mrb[0].mxu0
    %4851 = vmatprep.mubr.bf16.mxu0 %v4341
    %4852 = vmatmul.mubr.bf16.gmra.mrb[0].mxu0 %v4337
    %v4853 = vpop.f32.mrb[0].mxu0
    %v4854 = vadd.f32 0.0, %v4853
    %v4855 = vpop.f32.mrb[0].mxu0
    %v4856 = vpop.f32.mrb[0].mxu0
    %v4857 = vadd.f32 0.0, %v4856
    %v4858 = vpop.f32.mrb[0].mxu0
    %4859 = vmatprep.mubr.bf16.mxu0 %v4318
    %4860 = vmatmul.mubr.bf16.gmra.mrb[0].mxu0 %v4316
    %v4861 = vpop.f32.mrb[0].mxu0
    %v4862 = vadd.f32 0.0, %v4861
    %v4863 = vpop.f32.mrb[0].mxu0
    %v4864 = vpop.f32.mrb[0].mxu0
    %v4865 = vpop.f32.mrb[0].mxu0
    %4866 = vdwg.mxu0
    %4867 = vmatprep.subr.bf16.mxu0 0
    %4868 = vmatpush1.bf16.msra.mxu0 %v4715
    %4869 = vmatprep.subr.bf16.mxu0 0
    %4870 = vmatpush1.bf16.msra.mxu0 %v4716
    %4871 = vmatprep.subr.bf16.mxu0 0
    %4872 = vmatpush1.bf16.msra.mxu0 %v4717
    %4873 = vmatprep.subr.bf16.mxu0 0
    %4874 = vmatpush1.bf16.msra.mxu0 %v4718
    %4875 = vmatprep.subr.bf16.mxu0 0
    %4876 = vmatpush1.bf16.msra.mxu0 %v4719
    %4877 = vmatprep.subr.bf16.mxu0 0
    %4878 = vmatpush1.bf16.msra.mxu0 %v4720
    %4879 = vmatprep.subr.bf16.mxu0 0
    %4880 = vmatpush1.bf16.msra.mxu0 %v4721
    %4881 = vmatprep.subr.bf16.mxu0 0
    %4882 = vmatpush1.bf16.msra.mxu0 %v4722
    %4883 = vmatprep.subr.bf16.mxu0 0
    %4884 = vmatpush1.bf16.msra.mxu0 %v4723
    %4885 = vmatprep.subr.bf16.mxu0 0
    %4886 = vmatpush1.bf16.msra.mxu0 %v4724
    %4887 = vmatprep.subr.bf16.mxu0 0
    %4888 = vmatpush1.bf16.msra.mxu0 %v4725
    %4889 = vmatprep.subr.bf16.mxu0 0
    %4890 = vmatpush1.bf16.msra.mxu0 %v4726
    %4891 = vmatprep.subr.bf16.mxu0 0
    %4892 = vmatpush1.bf16.msra.mxu0 %v4727
    %4893 = vmatprep.subr.bf16.mxu0 0
    %4894 = vmatpush1.bf16.msra.mxu0 %v4728
    %4895 = vmatprep.subr.bf16.mxu0 0
    %4896 = vmatpush1.bf16.msra.mxu0 %v4729
    %4897 = vmatprep.subr.bf16.mxu0 0
    %4898 = vmatpush1.bf16.msra.mxu0 %v4730
    %4899 = vmatprep.mubr.bf16.mxu0 %v4250
    %4900 = vmatmul.mubr.bf16.gmra.mrb[0].mxu0 %v4242
    %v4901 = vpop.f32.mrb[0].mxu0
    %v4902 = vadd.f32 %v4846, %v4901
    %v4903 = vpop.f32.mrb[0].mxu0
    %v4904 = vpop.f32.mrb[0].mxu0
    %v4905 = vadd.f32 %v4849, %v4904
    %v4906 = vpop.f32.mrb[0].mxu0
    %4907 = vmatprep.mubr.bf16.mxu0 %v4349
    %4908 = vmatmul.mubr.bf16.gmra.mrb[0].mxu0 %v4345
    %v4909 = vpop.f32.mrb[0].mxu0
    %v4910 = vadd.f32 %v4854, %v4909
    %v4911 = vpop.f32.mrb[0].mxu0
    %v4912 = vpop.f32.mrb[0].mxu0
    %v4913 = vadd.f32 %v4857, %v4912
    %v4914 = vpop.f32.mrb[0].mxu0
    %4915 = vmatprep.mubr.bf16.mxu0 %v4322
    %4916 = vmatmul.mubr.bf16.gmra.mrb[0].mxu0 %v4320
    %v4917 = vpop.f32.mrb[0].mxu0
    %v4918 = vadd.f32 %v4862, %v4917
    %v4919 = vpop.f32.mrb[0].mxu0
    %v4920 = vpop.f32.mrb[0].mxu0
    %v4921 = vpop.f32.mrb[0].mxu0
    %4922 = vdwg.mxu0
    %4923 = vmatprep.subr.bf16.mxu0 0
    %4924 = vmatpush1.bf16.msra.mxu0 %v4731
    %4925 = vmatprep.subr.bf16.mxu0 0
    %4926 = vmatpush1.bf16.msra.mxu0 %v4732
    %4927 = vmatprep.subr.bf16.mxu0 0
    %4928 = vmatpush1.bf16.msra.mxu0 %v4733
    %4929 = vmatprep.subr.bf16.mxu0 0
    %4930 = vmatpush1.bf16.msra.mxu0 %v4734
    %4931 = vmatprep.subr.bf16.mxu0 0
    %4932 = vmatpush1.bf16.msra.mxu0 %v4735
    %4933 = vmatprep.subr.bf16.mxu0 0
    %4934 = vmatpush1.bf16.msra.mxu0 %v4736
    %4935 = vmatprep.subr.bf16.mxu0 0
    %4936 = vmatpush1.bf16.msra.mxu0 %v4737
    %4937 = vmatprep.subr.bf16.mxu0 0
    %4938 = vmatpush1.bf16.msra.mxu0 %v4738
    %4939 = vmatprep.subr.bf16.mxu0 0
    %4940 = vmatpush1.bf16.msra.mxu0 %v4739
    %4941 = vmatprep.subr.bf16.mxu0 0
    %4942 = vmatpush1.bf16.msra.mxu0 %v4740
    %4943 = vmatprep.subr.bf16.mxu0 0
    %4944 = vmatpush1.bf16.msra.mxu0 %v4741
    %4945 = vmatprep.subr.bf16.mxu0 0
    %4946 = vmatpush1.bf16.msra.mxu0 %v4742
    %4947 = vmatprep.subr.bf16.mxu0 0
    %4948 = vmatpush1.bf16.msra.mxu0 %v4743
    %4949 = vmatprep.subr.bf16.mxu0 0
    %4950 = vmatpush1.bf16.msra.mxu0 %v4744
    %4951 = vmatprep.subr.bf16.mxu0 0
    %4952 = vmatpush1.bf16.msra.mxu0 %v4745
    %4953 = vmatprep.subr.bf16.mxu0 0
    %4954 = vmatpush1.bf16.msra.mxu0 %v4746
    %4955 = vmatprep.mubr.bf16.mxu0 %v4262
    %4956 = vmatmul.mubr.bf16.gmra.mrb[0].mxu0 %v4254
    %v4957 = vpop.f32.mrb[0].mxu0
    %v4958 = vadd.f32 %v4902, %v4957
    %v4959 = vpop.f32.mrb[0].mxu0
    %v4960 = vpop.f32.mrb[0].mxu0
    %v4961 = vadd.f32 %v4905, %v4960
    %v4962 = vpop.f32.mrb[0].mxu0
    %4963 = vmatprep.mubr.bf16.mxu0 %v4357
    %4964 = vmatmul.mubr.bf16.gmra.mrb[0].mxu0 %v4353
    %v4965 = vpop.f32.mrb[0].mxu0
    %v4966 = vadd.f32 %v4910, %v4965
    %v4967 = vpop.f32.mrb[0].mxu0
    %v4968 = vpop.f32.mrb[0].mxu0
    %v4969 = vadd.f32 %v4913, %v4968
    %v4970 = vpop.f32.mrb[0].mxu0
    %4971 = vmatprep.mubr.bf16.mxu0 %v4326
    %4972 = vmatmul.mubr.bf16.gmra.mrb[0].mxu0 %v4324
    %v4973 = vpop.f32.mrb[0].mxu0
    %v4974 = vadd.f32 %v4918, %v4973
    %v4975 = vpop.f32.mrb[0].mxu0
    %v4976 = vpop.f32.mrb[0].mxu0
    %v4977 = vpop.f32.mrb[0].mxu0
    %4978 = vdwg.mxu0
    %4979 = vmatprep.subr.bf16.mxu0 0
    %4980 = vmatpush1.bf16.msra.mxu0 %v4747
    %4981 = vmatprep.subr.bf16.mxu0 0
    %4982 = vmatpush1.bf16.msra.mxu0 %v4748
    %4983 = vmatprep.subr.bf16.mxu0 0
    %4984 = vmatpush1.bf16.msra.mxu0 %v4749
    %4985 = vmatprep.subr.bf16.mxu0 0
    %4986 = vmatpush1.bf16.msra.mxu0 %v4750
    %4987 = vmatprep.subr.bf16.mxu0 0
    %4988 = vmatpush1.bf16.msra.mxu0 %v4751
    %4989 = vmatprep.subr.bf16.mxu0 0
    %4990 = vmatpush1.bf16.msra.mxu0 %v4752
    %4991 = vmatprep.subr.bf16.mxu0 0
    %4992 = vmatpush1.bf16.msra.mxu0 %v4753
    %4993 = vmatprep.subr.bf16.mxu0 0
    %4994 = vmatpush1.bf16.msra.mxu0 %v4754
    %4995 = vmatprep.subr.bf16.mxu0 0
    %4996 = vmatpush1.bf16.msra.mxu0 0
    %4997 = vmatprep.subr.bf16.mxu0 0
    %4998 = vmatpush1.bf16.msra.mxu0 0
    %4999 = vmatprep.subr.bf16.mxu0 0
    %5000 = vmatpush1.bf16.msra.mxu0 0
    %5001 = vmatprep.subr.bf16.mxu0 0
    %5002 = vmatpush1.bf16.msra.mxu0 0
    %5003 = vmatprep.subr.bf16.mxu0 0
    %5004 = vmatpush1.bf16.msra.mxu0 0
    %5005 = vmatprep.subr.bf16.mxu0 0
    %5006 = vmatpush1.bf16.msra.mxu0 0
    %5007 = vmatprep.subr.bf16.mxu0 0
    %5008 = vmatpush1.bf16.msra.mxu0 0
    %5009 = vmatprep.subr.bf16.mxu0 0
    %5010 = vmatpush1.bf16.msra.mxu0 0
    %5011 = vmatprep.mubr.bf16.mxu0 0
    %5012 = vmatmul.mubr.bf16.gmra.mrb[0].mxu0 %v4266
    %v5013 = vpop.f32.mrb[0].mxu0
    %v5014 = vadd.f32 %v4958, %v5013
    %v5015 = vpop.f32.mrb[0].mxu0
    %v5016 = vpop.f32.mrb[0].mxu0
    %v5017 = vadd.f32 %v4961, %v5016
    %v5018 = vpop.f32.mrb[0].mxu0
    %5019 = vmatprep.mubr.bf16.mxu0 0
    %5020 = vmatmul.mubr.bf16.gmra.mrb[0].mxu0 %v4361
    %v5021 = vpop.f32.mrb[0].mxu0
    %v5022 = vadd.f32 %v4966, %v5021
    %v5023 = vpop.f32.mrb[0].mxu0
    %v5024 = vpop.f32.mrb[0].mxu0
    %v5025 = vadd.f32 %v4969, %v5024
    %v5026 = vpop.f32.mrb[0].mxu0
    %5027 = vmatprep.mubr.bf16.mxu0 0
    %5028 = vmatmul.mubr.bf16.gmra.mrb[0].mxu0 %v4328
    %v5029 = vpop.f32.mrb[0].mxu0
    %v5030 = vadd.f32 %v4974, %v5029
    %v5031 = vpop.f32.mrb[0].mxu0
    %v5032 = vpop.f32.mrb[0].mxu0
    %v5033 = vpop.f32.mrb[0].mxu0
    %5034 = vdwg.mxu0
    %v5035 = vld [vmem:[%s8] sm:$0x1]
    %v5037 = vlaneseq
    %v5038 = vshrl.u32 %v5037, 7
    %v5039 = vsub.s32 0, %v5038
    %v5040 = vrot.slane %v5035, %v5039
    %v5042 = vmul.f32 %v5014, %v5040
    %v5043 = vmul.f32 %v5017, %v5040
    %v5044 = vmul.f32 %v5022, %v5040
    %v5045 = vmul.f32 %v5025, %v5040
    %v5046 = vmul.f32 %v5030, %v5040
    %v5047 = vld [vmem:[%s9] sm:$0x1]
    %v5049 = vlaneseq
    %v5050 = vshrl.u32 %v5049, 7
    %v5051 = vsub.s32 0, %v5050
    %v5052 = vrot.slane %v5047, %v5051
    %v5054 = vadd.f32 %v5042, %v5052
    %v5055 = vadd.f32 %v5043, %v5052
    %v5056 = vadd.f32 %v5044, %v5052
    %v5057 = vadd.f32 %v5045, %v5052
    %v5058 = vadd.f32 %v5046, %v5052
    %v5059 = vmax.f32 %v5054, 0.0
    %v5060 = vmax.f32 %v5055, 0.0
    %v5061 = vmax.f32 %v5056, 0.0
    %v5062 = vmax.f32 %v5057, 0.0
    %v5063 = vmax.f32 %v5058, 0.0
    %v5069 = vrot.slane %v5059, 1
    %v5070 = vrot.slane %v5060, 1
    %v5071 = vsel %vm2465, %v5069, %v5070
    %v5072 = vrot.slane %v5061, 1
    %v5073 = vsel %vm2465, %v5070, %v5072
    %v5074 = vrot.slane %v5062, 1
    %v5075 = vsel %vm2465, %v5072, %v5074
    %v5076 = vrot.slane %v5063, 1
    %v5077 = vsel %vm2465, %v5074, %v5076
    %v5083 = vmax.f32 %v5059, %v5071
    %v5084 = vmax.f32 %v5060, %v5073
    %v5085 = vmax.f32 %v5061, %v5075
    %v5086 = vmax.f32 %v5062, %v5077
    %v5087 = vmax.f32 %v5063, %v5076
    %v5088 = vrot.slane %v5059, 2
    %v5089 = vrot.slane %v5060, 2
    %v5090 = vsel %vm2629, %v5088, %v5089
    %v5091 = vrot.slane %v5061, 2
    %v5092 = vsel %vm2629, %v5089, %v5091
    %v5093 = vrot.slane %v5062, 2
    %v5094 = vsel %vm2629, %v5091, %v5093
    %v5095 = vrot.slane %v5063, 2
    %v5096 = vsel %vm2629, %v5093, %v5095
    %v5102 = vmax.f32 %v5083, %v5090
    %v5103 = vmax.f32 %v5084, %v5092
    %v5104 = vmax.f32 %v5085, %v5094
    %v5105 = vmax.f32 %v5086, %v5096
    %v5106 = vmax.f32 %v5087, %v5095
    %5107 = vst [vmem:[#allocation4] sm:$0xff] %v5102
    %5108 = vst [vmem:[#allocation4 + $0x8] sm:$0xff] %v5103
    %5109 = vst [vmem:[#allocation4 + $0x10] sm:$0xff] %v5104
    %5110 = vst [vmem:[#allocation4 + $0x18] sm:$0xff] %v5105
    %5111 = vst [vmem:[#allocation4 + $0x20] sm:$0x3] %v5106
    %v5112 = vld [vmem:[#allocation4] ss:$3 sm:$0xff]
    %v5113 = vld [vmem:[%s4193] ss:$3 sm:$0xf]
    %v5115 = vrot.slane %v5112, 1
    %v5117 = vrot.slane %v5112, 2
    %v5119 = vrot.slane %v5112, 3
    %v5121 = vrot.slane %v5112, 4
    %v5123 = vrot.slane %v5112, 5
    %v5126 = vrot.slane %v5113, 2
    %v5127 = vrot.slane %v5113, 3
    %v5128 = vrot.slane %v5113, 4
    %v5129 = vrot.slane %v5113, 5
    %v5130 = vrot.slane %v5115, 5
    %v5131 = vrot.slane %v5126, 5
    %v5132 = vrot.slane %v5127, 5
    %v5133 = vrot.slane %v5128, 5
    %v5134 = vrot.slane %v5129, 5
    %v5140 = vsel %vm1011, %v5112, %v5123
    %v5141 = vsel %vm1011, %v5115, %v5130
    %v5142 = vsel %vm1011, %v5117, %v5131
    %v5143 = vsel %vm1011, %v5119, %v5132
    %v5144 = vsel %vm1011, %v5121, %v5133
    %v5145 = vsel %vm1011, %v5123, %v5134
    %v5146 = vpack.c.bf16 %v5140, %v5140
    %v5147 = vpack.c.bf16 %v5141, %v5141
    %v5148 = vpack.c.bf16 %v5142, %v5142
    %v5149 = vpack.c.bf16 %v5143, %v5143
    %v5150 = vpack.c.bf16 %v5144, %v5144
    %v5151 = vpack.c.bf16 %v5145, %v5145
    %v5152 = vld [vmem:[#allocation10] sm:$0xff]
    %v5153 = vld [vmem:[#allocation10 + $0x8] sm:$0xff]
    %v5154 = vld [vmem:[#allocation10 + $0x10] sm:$0xff]
    %v5155 = vld [vmem:[#allocation10 + $0x18] sm:$0xff]
    %v5156 = vld [vmem:[#allocation10 + $0x20] sm:$0xff]
    %v5157 = vld [vmem:[#allocation10 + $0x28] sm:$0xff]
    %v5158 = vld [vmem:[#allocation10 + $0x30] sm:$0xff]
    %v5159 = vld [vmem:[#allocation10 + $0x38] sm:$0xff]
    %v5160 = vld [vmem:[#allocation10 + $0x40] sm:$0xff]
    %v5161 = vld [vmem:[#allocation10 + $0x48] sm:$0xff]
    %v5162 = vld [vmem:[#allocation10 + $0x50] sm:$0xff]
    %v5163 = vld [vmem:[#allocation10 + $0x58] sm:$0xff]
    %v5164 = vld [vmem:[#allocation10 + $0x60] sm:$0xff]
    %v5165 = vld [vmem:[#allocation10 + $0x68] sm:$0xff]
    %v5166 = vld [vmem:[#allocation10 + $0x70] sm:$0xff]
    %v5167 = vld [vmem:[#allocation10 + $0x78] sm:$0xff]
    %v5168 = vld [vmem:[#allocation10 + $0x80] sm:$0xff]
    %v5169 = vld [vmem:[#allocation10 + $0x88] sm:$0xff]
    %v5170 = vld [vmem:[#allocation10 + $0x90] sm:$0xff]
    %v5171 = vld [vmem:[#allocation10 + $0x98] sm:$0xff]
    %v5172 = vld [vmem:[#allocation10 + $0xa0] sm:$0xff]
    %v5173 = vld [vmem:[#allocation10 + $0xa8] sm:$0xff]
    %v5174 = vld [vmem:[#allocation10 + $0xb0] sm:$0xff]
    %v5175 = vld [vmem:[#allocation10 + $0xb8] sm:$0xff]
    %v5176 = vld [vmem:[#allocation10 + $0xc0] sm:$0xff]
    %v5177 = vld [vmem:[#allocation10 + $0xc8] sm:$0xff]
    %v5178 = vld [vmem:[#allocation10 + $0xd0] sm:$0xff]
    %v5179 = vld [vmem:[#allocation10 + $0xd8] sm:$0xff]
    %v5180 = vld [vmem:[#allocation10 + $0xe0] sm:$0xff]
    %v5181 = vld [vmem:[#allocation10 + $0xe8] sm:$0xff]
    %v5182 = vld [vmem:[#allocation10 + $0xf0] sm:$0xff]
    %v5183 = vld [vmem:[#allocation10 + $0xf8] sm:$0xff]
    %v5184 = vld [vmem:[#allocation10 + $0x100] sm:$0xff]
    %v5185 = vld [vmem:[#allocation10 + $0x108] sm:$0xff]
    %v5186 = vld [vmem:[#allocation10 + $0x110] sm:$0xff]
    %v5187 = vld [vmem:[#allocation10 + $0x118] sm:$0xff]
    %v5188 = vld [vmem:[#allocation10 + $0x120] sm:$0xff]
    %v5189 = vld [vmem:[#allocation10 + $0x128] sm:$0xff]
    %v5190 = vld [vmem:[#allocation10 + $0x130] sm:$0xff]
    %v5191 = vld [vmem:[#allocation10 + $0x138] sm:$0xff]
    %v5192 = vld [vmem:[#allocation10 + $0x140] sm:$0xff]
    %v5193 = vld [vmem:[#allocation10 + $0x148] sm:$0xff]
    %v5194 = vld [vmem:[#allocation10 + $0x150] sm:$0xff]
    %v5195 = vld [vmem:[#allocation10 + $0x158] sm:$0xff]
    %v5196 = vld [vmem:[#allocation10 + $0x160] sm:$0xff]
    %v5197 = vld [vmem:[#allocation10 + $0x168] sm:$0xff]
    %v5198 = vld [vmem:[#allocation10 + $0x170] sm:$0xff]
    %v5199 = vld [vmem:[#allocation10 + $0x178] sm:$0xff]
    %v5200 = vld [vmem:[#allocation10 + $0x180] sm:$0xff]
    %v5201 = vld [vmem:[#allocation10 + $0x188] sm:$0xff]
    %v5202 = vld [vmem:[#allocation10 + $0x190] sm:$0xff]
    %v5203 = vld [vmem:[#allocation10 + $0x198] sm:$0xff]
    %v5204 = vld [vmem:[#allocation10 + $0x1a0] sm:$0xff]
    %v5205 = vld [vmem:[#allocation10 + $0x1a8] sm:$0xff]
    %v5206 = vld [vmem:[#allocation10 + $0x1b0] sm:$0xff]
    %v5207 = vld [vmem:[#allocation10 + $0x1b8] sm:$0xff]
    %v5208 = vld [vmem:[#allocation10 + $0x1c0] sm:$0xff]
    %v5209 = vld [vmem:[#allocation10 + $0x1c8] sm:$0xff]
    %v5210 = vld [vmem:[#allocation10 + $0x1d0] sm:$0xff]
    %v5211 = vld [vmem:[#allocation10 + $0x1d8] sm:$0xff]
    %v5212 = vld [vmem:[#allocation10 + $0x1e0] sm:$0xff]
    %v5213 = vld [vmem:[#allocation10 + $0x1e8] sm:$0xff]
    %v5214 = vld [vmem:[#allocation10 + $0x1f0] sm:$0xff]
    %v5215 = vld [vmem:[#allocation10 + $0x1f8] sm:$0xff]
    %v5216 = vld [vmem:[#allocation10 + $0x200] sm:$0xff]
    %v5217 = vld [vmem:[#allocation10 + $0x208] sm:$0xff]
    %v5218 = vld [vmem:[#allocation10 + $0x210] sm:$0xff]
    %v5219 = vld [vmem:[#allocation10 + $0x218] sm:$0xff]
    %v5220 = vld [vmem:[#allocation10 + $0x220] sm:$0xff]
    %v5221 = vld [vmem:[#allocation10 + $0x228] sm:$0xff]
    %v5222 = vld [vmem:[#allocation10 + $0x230] sm:$0xff]
    %v5223 = vld [vmem:[#allocation10 + $0x238] sm:$0xff]
    %v5224 = vld [vmem:[#allocation10 + $0x240] sm:$0xff]
    %v5225 = vld [vmem:[#allocation10 + $0x248] sm:$0xff]
    %v5226 = vld [vmem:[#allocation10 + $0x250] sm:$0xff]
    %v5227 = vld [vmem:[#allocation10 + $0x258] sm:$0xff]
    %v5228 = vld [vmem:[#allocation10 + $0x260] sm:$0xff]
    %v5229 = vld [vmem:[#allocation10 + $0x268] sm:$0xff]
    %v5230 = vld [vmem:[#allocation10 + $0x270] sm:$0xff]
    %v5231 = vld [vmem:[#allocation10 + $0x278] sm:$0xff]
    %v5232 = vld [vmem:[#allocation10 + $0x280] sm:$0xff]
    %v5233 = vld [vmem:[#allocation10 + $0x288] sm:$0xff]
    %v5234 = vld [vmem:[#allocation10 + $0x290] sm:$0xff]
    %v5235 = vld [vmem:[#allocation10 + $0x298] sm:$0xff]
    %v5236 = vld [vmem:[#allocation10 + $0x2a0] sm:$0xff]
    %v5237 = vld [vmem:[#allocation10 + $0x2a8] sm:$0xff]
    %v5238 = vld [vmem:[#allocation10 + $0x2b0] sm:$0xff]
    %v5239 = vld [vmem:[#allocation10 + $0x2b8] sm:$0xff]
    %v5240 = vld [vmem:[#allocation10 + $0x2c0] sm:$0xff]
    %v5241 = vld [vmem:[#allocation10 + $0x2c8] sm:$0xff]
    %v5242 = vld [vmem:[#allocation10 + $0x2d0] sm:$0xff]
    %v5243 = vld [vmem:[#allocation10 + $0x2d8] sm:$0xff]
    %v5244 = vld [vmem:[#allocation10 + $0x2e0] sm:$0xff]
    %v5245 = vld [vmem:[#allocation10 + $0x2e8] sm:$0xff]
    %v5246 = vld [vmem:[#allocation10 + $0x2f0] sm:$0xff]
    %v5247 = vld [vmem:[#allocation10 + $0x2f8] sm:$0xff]
    %v5248 = vld [vmem:[#allocation10 + $0x300] sm:$0xff]
    %v5249 = vld [vmem:[#allocation10 + $0x308] sm:$0xff]
    %v5250 = vld [vmem:[#allocation10 + $0x310] sm:$0xff]
    %v5251 = vld [vmem:[#allocation10 + $0x318] sm:$0xff]
    %v5252 = vld [vmem:[#allocation10 + $0x320] sm:$0xff]
    %v5253 = vld [vmem:[#allocation10 + $0x328] sm:$0xff]
    %v5254 = vld [vmem:[#allocation10 + $0x330] sm:$0xff]
    %v5255 = vld [vmem:[#allocation10 + $0x338] sm:$0xff]
    %v5256 = vld [vmem:[#allocation10 + $0x340] sm:$0xff]
    %v5257 = vld [vmem:[#allocation10 + $0x348] sm:$0xff]
    %v5258 = vld [vmem:[#allocation10 + $0x350] sm:$0xff]
    %v5259 = vld [vmem:[#allocation10 + $0x358] sm:$0xff]
    %v5260 = vld [vmem:[#allocation10 + $0x360] sm:$0xff]
    %v5261 = vld [vmem:[#allocation10 + $0x368] sm:$0xff]
    %v5262 = vld [vmem:[#allocation10 + $0x370] sm:$0xff]
    %v5263 = vld [vmem:[#allocation10 + $0x378] sm:$0xff]
    %v5264 = vld [vmem:[#allocation10 + $0x380] sm:$0xff]
    %v5265 = vld [vmem:[#allocation10 + $0x388] sm:$0xff]
    %v5266 = vld [vmem:[#allocation10 + $0x390] sm:$0xff]
    %v5267 = vld [vmem:[#allocation10 + $0x398] sm:$0xff]
    %v5268 = vld [vmem:[#allocation10 + $0x3a0] sm:$0xff]
    %v5269 = vld [vmem:[#allocation10 + $0x3a8] sm:$0xff]
    %v5270 = vld [vmem:[#allocation10 + $0x3b0] sm:$0xff]
    %v5271 = vld [vmem:[#allocation10 + $0x3b8] sm:$0xff]
    %v5272 = vld [vmem:[#allocation10 + $0x3c0] sm:$0xff]
    %v5273 = vld [vmem:[#allocation10 + $0x3c8] sm:$0xff]
    %v5274 = vld [vmem:[#allocation10 + $0x3d0] sm:$0xff]
    %v5275 = vld [vmem:[#allocation10 + $0x3d8] sm:$0xff]
    %v5276 = vld [vmem:[#allocation10 + $0x3e0] sm:$0xff]
    %v5277 = vld [vmem:[#allocation10 + $0x3e8] sm:$0xff]
    %v5278 = vld [vmem:[#allocation10 + $0x3f0] sm:$0xff]
    %v5279 = vld [vmem:[#allocation10 + $0x3f8] sm:$0xff]
    %v5280 = vld [vmem:[#allocation10 + $0x400] sm:$0xff]
    %v5281 = vld [vmem:[#allocation10 + $0x408] sm:$0xff]
    %v5282 = vld [vmem:[#allocation10 + $0x410] sm:$0xff]
    %v5283 = vld [vmem:[#allocation10 + $0x418] sm:$0xff]
    %v5284 = vld [vmem:[#allocation10 + $0x420] sm:$0xff]
    %v5285 = vld [vmem:[#allocation10 + $0x428] sm:$0xff]
    %v5286 = vld [vmem:[#allocation10 + $0x430] sm:$0xff]
    %v5287 = vld [vmem:[#allocation10 + $0x438] sm:$0xff]
    %v5288 = vld [vmem:[#allocation10 + $0x440] sm:$0xff]
    %v5289 = vld [vmem:[#allocation10 + $0x448] sm:$0xff]
    %v5290 = vld [vmem:[#allocation10 + $0x450] sm:$0xff]
    %v5291 = vld [vmem:[#allocation10 + $0x458] sm:$0xff]
    %v5292 = vld [vmem:[#allocation10 + $0x460] sm:$0xff]
    %v5293 = vld [vmem:[#allocation10 + $0x468] sm:$0xff]
    %v5294 = vld [vmem:[#allocation10 + $0x470] sm:$0xff]
    %v5295 = vld [vmem:[#allocation10 + $0x478] sm:$0xff]
    %v5296 = vld [vmem:[#allocation10 + $0x480] sm:$0xff]
    %v5297 = vld [vmem:[#allocation10 + $0x488] sm:$0xff]
    %v5298 = vld [vmem:[#allocation10 + $0x490] sm:$0xff]
    %v5299 = vld [vmem:[#allocation10 + $0x498] sm:$0xff]
    %v5300 = vld [vmem:[#allocation10 + $0x4a0] sm:$0xff]
    %v5301 = vld [vmem:[#allocation10 + $0x4a8] sm:$0xff]
    %v5302 = vld [vmem:[#allocation10 + $0x4b0] sm:$0xff]
    %v5303 = vld [vmem:[#allocation10 + $0x4b8] sm:$0xff]
    %v5304 = vld [vmem:[#allocation10 + $0x4c0] sm:$0xff]
    %v5305 = vld [vmem:[#allocation10 + $0x4c8] sm:$0xff]
    %v5306 = vld [vmem:[#allocation10 + $0x4d0] sm:$0xff]
    %v5307 = vld [vmem:[#allocation10 + $0x4d8] sm:$0xff]
    %v5308 = vld [vmem:[#allocation10 + $0x4e0] sm:$0xff]
    %v5309 = vld [vmem:[#allocation10 + $0x4e8] sm:$0xff]
    %v5310 = vld [vmem:[#allocation10 + $0x4f0] sm:$0xff]
    %v5311 = vld [vmem:[#allocation10 + $0x4f8] sm:$0xff]
    %v5312 = vld [vmem:[#allocation10 + $0x500] sm:$0xff]
    %v5313 = vld [vmem:[#allocation10 + $0x508] sm:$0xff]
    %v5314 = vld [vmem:[#allocation10 + $0x510] sm:$0xff]
    %v5315 = vld [vmem:[#allocation10 + $0x518] sm:$0xff]
    %v5316 = vld [vmem:[#allocation10 + $0x520] sm:$0xff]
    %v5317 = vld [vmem:[#allocation10 + $0x528] sm:$0xff]
    %v5318 = vld [vmem:[#allocation10 + $0x530] sm:$0xff]
    %v5319 = vld [vmem:[#allocation10 + $0x538] sm:$0xff]
    %v5320 = vld [vmem:[#allocation10 + $0x540] sm:$0xff]
    %v5321 = vld [vmem:[#allocation10 + $0x548] sm:$0xff]
    %v5322 = vld [vmem:[#allocation10 + $0x550] sm:$0xff]
    %v5323 = vld [vmem:[#allocation10 + $0x558] sm:$0xff]
    %v5324 = vld [vmem:[#allocation10 + $0x560] sm:$0xff]
    %v5325 = vld [vmem:[#allocation10 + $0x568] sm:$0xff]
    %v5326 = vld [vmem:[#allocation10 + $0x570] sm:$0xff]
    %v5327 = vld [vmem:[#allocation10 + $0x578] sm:$0xff]
    %v5328 = vld [vmem:[#allocation10 + $0x580] sm:$0xff]
    %v5329 = vld [vmem:[#allocation10 + $0x588] sm:$0xff]
    %v5330 = vld [vmem:[#allocation10 + $0x590] sm:$0xff]
    %v5331 = vld [vmem:[#allocation10 + $0x598] sm:$0xff]
    %v5332 = vld [vmem:[#allocation10 + $0x5a0] sm:$0xff]
    %v5333 = vld [vmem:[#allocation10 + $0x5a8] sm:$0xff]
    %v5334 = vld [vmem:[#allocation10 + $0x5b0] sm:$0xff]
    %v5335 = vld [vmem:[#allocation10 + $0x5b8] sm:$0xff]
    %v5336 = vld [vmem:[#allocation10 + $0x5c0] sm:$0xff]
    %v5337 = vld [vmem:[#allocation10 + $0x5c8] sm:$0xff]
    %v5338 = vld [vmem:[#allocation10 + $0x5d0] sm:$0xff]
    %v5339 = vld [vmem:[#allocation10 + $0x5d8] sm:$0xff]
    %v5340 = vld [vmem:[#allocation10 + $0x5e0] sm:$0xff]
    %v5341 = vld [vmem:[#allocation10 + $0x5e8] sm:$0xff]
    %v5342 = vld [vmem:[#allocation10 + $0x5f0] sm:$0xff]
    %v5343 = vld [vmem:[#allocation10 + $0x5f8] sm:$0xff]
    %v5536 = vunpack.c.l.b16 %v5152
    %v5537 = vunpack.c.h.b16 %v5152
    %v5538 = vunpack.c.l.b16 %v5153
    %v5539 = vunpack.c.h.b16 %v5153
    %v5540 = vunpack.c.l.b16 %v5154
    %v5541 = vunpack.c.h.b16 %v5154
    %v5542 = vunpack.c.l.b16 %v5155
    %v5543 = vunpack.c.h.b16 %v5155
    %v5544 = vunpack.c.l.b16 %v5156
    %v5545 = vunpack.c.h.b16 %v5156
    %v5546 = vunpack.c.l.b16 %v5157
    %v5547 = vunpack.c.h.b16 %v5157
    %v5548 = vunpack.c.l.b16 %v5158
    %v5549 = vunpack.c.h.b16 %v5158
    %v5550 = vunpack.c.l.b16 %v5159
    %v5551 = vunpack.c.h.b16 %v5159
    %v5552 = vunpack.c.l.b16 %v5160
    %v5553 = vunpack.c.h.b16 %v5160
    %v5554 = vunpack.c.l.b16 %v5161
    %v5555 = vunpack.c.h.b16 %v5161
    %v5556 = vunpack.c.l.b16 %v5162
    %v5557 = vunpack.c.h.b16 %v5162
    %v5558 = vunpack.c.l.b16 %v5163
    %v5559 = vunpack.c.h.b16 %v5163
    %v5560 = vunpack.c.l.b16 %v5164
    %v5561 = vunpack.c.h.b16 %v5164
    %v5562 = vunpack.c.l.b16 %v5165
    %v5563 = vunpack.c.h.b16 %v5165
    %v5564 = vunpack.c.l.b16 %v5166
    %v5565 = vunpack.c.h.b16 %v5166
    %v5566 = vunpack.c.l.b16 %v5167
    %v5567 = vunpack.c.h.b16 %v5167
    %v5568 = vunpack.c.l.b16 %v5168
    %v5569 = vunpack.c.h.b16 %v5168
    %v5570 = vunpack.c.l.b16 %v5169
    %v5571 = vunpack.c.h.b16 %v5169
    %v5572 = vunpack.c.l.b16 %v5170
    %v5573 = vunpack.c.h.b16 %v5170
    %v5574 = vunpack.c.l.b16 %v5171
    %v5575 = vunpack.c.h.b16 %v5171
    %v5576 = vunpack.c.l.b16 %v5172
    %v5577 = vunpack.c.h.b16 %v5172
    %v5578 = vunpack.c.l.b16 %v5173
    %v5579 = vunpack.c.h.b16 %v5173
    %v5580 = vunpack.c.l.b16 %v5174
    %v5581 = vunpack.c.h.b16 %v5174
    %v5582 = vunpack.c.l.b16 %v5175
    %v5583 = vunpack.c.h.b16 %v5175
    %v5584 = vunpack.c.l.b16 %v5176
    %v5585 = vunpack.c.h.b16 %v5176
    %v5586 = vunpack.c.l.b16 %v5177
    %v5587 = vunpack.c.h.b16 %v5177
    %v5588 = vunpack.c.l.b16 %v5178
    %v5589 = vunpack.c.h.b16 %v5178
    %v5590 = vunpack.c.l.b16 %v5179
    %v5591 = vunpack.c.h.b16 %v5179
    %v5592 = vunpack.c.l.b16 %v5180
    %v5593 = vunpack.c.h.b16 %v5180
    %v5594 = vunpack.c.l.b16 %v5181
    %v5595 = vunpack.c.h.b16 %v5181
    %v5596 = vunpack.c.l.b16 %v5182
    %v5597 = vunpack.c.h.b16 %v5182
    %v5598 = vunpack.c.l.b16 %v5183
    %v5599 = vunpack.c.h.b16 %v5183
    %v5600 = vunpack.c.l.b16 %v5184
    %v5601 = vunpack.c.h.b16 %v5184
    %v5602 = vunpack.c.l.b16 %v5185
    %v5603 = vunpack.c.h.b16 %v5185
    %v5604 = vunpack.c.l.b16 %v5186
    %v5605 = vunpack.c.h.b16 %v5186
    %v5606 = vunpack.c.l.b16 %v5187
    %v5607 = vunpack.c.h.b16 %v5187
    %v5608 = vunpack.c.l.b16 %v5188
    %v5609 = vunpack.c.h.b16 %v5188
    %v5610 = vunpack.c.l.b16 %v5189
    %v5611 = vunpack.c.h.b16 %v5189
    %v5612 = vunpack.c.l.b16 %v5190
    %v5613 = vunpack.c.h.b16 %v5190
    %v5614 = vunpack.c.l.b16 %v5191
    %v5615 = vunpack.c.h.b16 %v5191
    %v5616 = vunpack.c.l.b16 %v5192
    %v5617 = vunpack.c.h.b16 %v5192
    %v5618 = vunpack.c.l.b16 %v5193
    %v5619 = vunpack.c.h.b16 %v5193
    %v5620 = vunpack.c.l.b16 %v5194
    %v5621 = vunpack.c.h.b16 %v5194
    %v5622 = vunpack.c.l.b16 %v5195
    %v5623 = vunpack.c.h.b16 %v5195
    %v5624 = vunpack.c.l.b16 %v5196
    %v5625 = vunpack.c.h.b16 %v5196
    %v5626 = vunpack.c.l.b16 %v5197
    %v5627 = vunpack.c.h.b16 %v5197
    %v5628 = vunpack.c.l.b16 %v5198
    %v5629 = vunpack.c.h.b16 %v5198
    %v5630 = vunpack.c.l.b16 %v5199
    %v5631 = vunpack.c.h.b16 %v5199
    %v5632 = vunpack.c.l.b16 %v5200
    %v5633 = vunpack.c.h.b16 %v5200
    %v5634 = vunpack.c.l.b16 %v5201
    %v5635 = vunpack.c.h.b16 %v5201
    %v5636 = vunpack.c.l.b16 %v5202
    %v5637 = vunpack.c.h.b16 %v5202
    %v5638 = vunpack.c.l.b16 %v5203
    %v5639 = vunpack.c.h.b16 %v5203
    %v5640 = vunpack.c.l.b16 %v5204
    %v5641 = vunpack.c.h.b16 %v5204
    %v5642 = vunpack.c.l.b16 %v5205
    %v5643 = vunpack.c.h.b16 %v5205
    %v5644 = vunpack.c.l.b16 %v5206
    %v5645 = vunpack.c.h.b16 %v5206
    %v5646 = vunpack.c.l.b16 %v5207
    %v5647 = vunpack.c.h.b16 %v5207
    %v5648 = vunpack.c.l.b16 %v5208
    %v5649 = vunpack.c.h.b16 %v5208
    %v5650 = vunpack.c.l.b16 %v5209
    %v5651 = vunpack.c.h.b16 %v5209
    %v5652 = vunpack.c.l.b16 %v5210
    %v5653 = vunpack.c.h.b16 %v5210
    %v5654 = vunpack.c.l.b16 %v5211
    %v5655 = vunpack.c.h.b16 %v5211
    %v5656 = vunpack.c.l.b16 %v5212
    %v5657 = vunpack.c.h.b16 %v5212
    %v5658 = vunpack.c.l.b16 %v5213
    %v5659 = vunpack.c.h.b16 %v5213
    %v5660 = vunpack.c.l.b16 %v5214
    %v5661 = vunpack.c.h.b16 %v5214
    %v5662 = vunpack.c.l.b16 %v5215
    %v5663 = vunpack.c.h.b16 %v5215
    %v5664 = vunpack.c.l.b16 %v5216
    %v5665 = vunpack.c.h.b16 %v5216
    %v5666 = vunpack.c.l.b16 %v5217
    %v5667 = vunpack.c.h.b16 %v5217
    %v5668 = vunpack.c.l.b16 %v5218
    %v5669 = vunpack.c.h.b16 %v5218
    %v5670 = vunpack.c.l.b16 %v5219
    %v5671 = vunpack.c.h.b16 %v5219
    %v5672 = vunpack.c.l.b16 %v5220
    %v5673 = vunpack.c.h.b16 %v5220
    %v5674 = vunpack.c.l.b16 %v5221
    %v5675 = vunpack.c.h.b16 %v5221
    %v5676 = vunpack.c.l.b16 %v5222
    %v5677 = vunpack.c.h.b16 %v5222
    %v5678 = vunpack.c.l.b16 %v5223
    %v5679 = vunpack.c.h.b16 %v5223
    %v5680 = vunpack.c.l.b16 %v5224
    %v5681 = vunpack.c.h.b16 %v5224
    %v5682 = vunpack.c.l.b16 %v5225
    %v5683 = vunpack.c.h.b16 %v5225
    %v5684 = vunpack.c.l.b16 %v5226
    %v5685 = vunpack.c.h.b16 %v5226
    %v5686 = vunpack.c.l.b16 %v5227
    %v5687 = vunpack.c.h.b16 %v5227
    %v5688 = vunpack.c.l.b16 %v5228
    %v5689 = vunpack.c.h.b16 %v5228
    %v5690 = vunpack.c.l.b16 %v5229
    %v5691 = vunpack.c.h.b16 %v5229
    %v5692 = vunpack.c.l.b16 %v5230
    %v5693 = vunpack.c.h.b16 %v5230
    %v5694 = vunpack.c.l.b16 %v5231
    %v5695 = vunpack.c.h.b16 %v5231
    %v5696 = vunpack.c.l.b16 %v5232
    %v5697 = vunpack.c.h.b16 %v5232
    %v5698 = vunpack.c.l.b16 %v5233
    %v5699 = vunpack.c.h.b16 %v5233
    %v5700 = vunpack.c.l.b16 %v5234
    %v5701 = vunpack.c.h.b16 %v5234
    %v5702 = vunpack.c.l.b16 %v5235
    %v5703 = vunpack.c.h.b16 %v5235
    %v5704 = vunpack.c.l.b16 %v5236
    %v5705 = vunpack.c.h.b16 %v5236
    %v5706 = vunpack.c.l.b16 %v5237
    %v5707 = vunpack.c.h.b16 %v5237
    %v5708 = vunpack.c.l.b16 %v5238
    %v5709 = vunpack.c.h.b16 %v5238
    %v5710 = vunpack.c.l.b16 %v5239
    %v5711 = vunpack.c.h.b16 %v5239
    %v5712 = vunpack.c.l.b16 %v5240
    %v5713 = vunpack.c.h.b16 %v5240
    %v5714 = vunpack.c.l.b16 %v5241
    %v5715 = vunpack.c.h.b16 %v5241
    %v5716 = vunpack.c.l.b16 %v5242
    %v5717 = vunpack.c.h.b16 %v5242
    %v5718 = vunpack.c.l.b16 %v5243
    %v5719 = vunpack.c.h.b16 %v5243
    %v5720 = vunpack.c.l.b16 %v5244
    %v5721 = vunpack.c.h.b16 %v5244
    %v5722 = vunpack.c.l.b16 %v5245
    %v5723 = vunpack.c.h.b16 %v5245
    %v5724 = vunpack.c.l.b16 %v5246
    %v5725 = vunpack.c.h.b16 %v5246
    %v5726 = vunpack.c.l.b16 %v5247
    %v5727 = vunpack.c.h.b16 %v5247
    %v5728 = vunpack.c.l.b16 %v5248
    %v5729 = vunpack.c.h.b16 %v5248
    %v5730 = vunpack.c.l.b16 %v5249
    %v5731 = vunpack.c.h.b16 %v5249
    %v5732 = vunpack.c.l.b16 %v5250
    %v5733 = vunpack.c.h.b16 %v5250
    %v5734 = vunpack.c.l.b16 %v5251
    %v5735 = vunpack.c.h.b16 %v5251
    %v5736 = vunpack.c.l.b16 %v5252
    %v5737 = vunpack.c.h.b16 %v5252
    %v5738 = vunpack.c.l.b16 %v5253
    %v5739 = vunpack.c.h.b16 %v5253
    %v5740 = vunpack.c.l.b16 %v5254
    %v5741 = vunpack.c.h.b16 %v5254
    %v5742 = vunpack.c.l.b16 %v5255
    %v5743 = vunpack.c.h.b16 %v5255
    %v5744 = vunpack.c.l.b16 %v5256
    %v5745 = vunpack.c.h.b16 %v5256
    %v5746 = vunpack.c.l.b16 %v5257
    %v5747 = vunpack.c.h.b16 %v5257
    %v5748 = vunpack.c.l.b16 %v5258
    %v5749 = vunpack.c.h.b16 %v5258
    %v5750 = vunpack.c.l.b16 %v5259
    %v5751 = vunpack.c.h.b16 %v5259
    %v5752 = vunpack.c.l.b16 %v5260
    %v5753 = vunpack.c.h.b16 %v5260
    %v5754 = vunpack.c.l.b16 %v5261
    %v5755 = vunpack.c.h.b16 %v5261
    %v5756 = vunpack.c.l.b16 %v5262
    %v5757 = vunpack.c.h.b16 %v5262
    %v5758 = vunpack.c.l.b16 %v5263
    %v5759 = vunpack.c.h.b16 %v5263
    %v5760 = vunpack.c.l.b16 %v5264
    %v5761 = vunpack.c.h.b16 %v5264
    %v5762 = vunpack.c.l.b16 %v5265
    %v5763 = vunpack.c.h.b16 %v5265
    %v5764 = vunpack.c.l.b16 %v5266
    %v5765 = vunpack.c.h.b16 %v5266
    %v5766 = vunpack.c.l.b16 %v5267
    %v5767 = vunpack.c.h.b16 %v5267
    %v5768 = vunpack.c.l.b16 %v5268
    %v5769 = vunpack.c.h.b16 %v5268
    %v5770 = vunpack.c.l.b16 %v5269
    %v5771 = vunpack.c.h.b16 %v5269
    %v5772 = vunpack.c.l.b16 %v5270
    %v5773 = vunpack.c.h.b16 %v5270
    %v5774 = vunpack.c.l.b16 %v5271
    %v5775 = vunpack.c.h.b16 %v5271
    %v5776 = vunpack.c.l.b16 %v5272
    %v5777 = vunpack.c.h.b16 %v5272
    %v5778 = vunpack.c.l.b16 %v5273
    %v5779 = vunpack.c.h.b16 %v5273
    %v5780 = vunpack.c.l.b16 %v5274
    %v5781 = vunpack.c.h.b16 %v5274
    %v5782 = vunpack.c.l.b16 %v5275
    %v5783 = vunpack.c.h.b16 %v5275
    %v5784 = vunpack.c.l.b16 %v5276
    %v5785 = vunpack.c.h.b16 %v5276
    %v5786 = vunpack.c.l.b16 %v5277
    %v5787 = vunpack.c.h.b16 %v5277
    %v5788 = vunpack.c.l.b16 %v5278
    %v5789 = vunpack.c.h.b16 %v5278
    %v5790 = vunpack.c.l.b16 %v5279
    %v5791 = vunpack.c.h.b16 %v5279
    %v5792 = vunpack.c.l.b16 %v5280
    %v5793 = vunpack.c.h.b16 %v5280
    %v5794 = vunpack.c.l.b16 %v5281
    %v5795 = vunpack.c.h.b16 %v5281
    %v5796 = vunpack.c.l.b16 %v5282
    %v5797 = vunpack.c.h.b16 %v5282
    %v5798 = vunpack.c.l.b16 %v5283
    %v5799 = vunpack.c.h.b16 %v5283
    %v5800 = vunpack.c.l.b16 %v5284
    %v5801 = vunpack.c.h.b16 %v5284
    %v5802 = vunpack.c.l.b16 %v5285
    %v5803 = vunpack.c.h.b16 %v5285
    %v5804 = vunpack.c.l.b16 %v5286
    %v5805 = vunpack.c.h.b16 %v5286
    %v5806 = vunpack.c.l.b16 %v5287
    %v5807 = vunpack.c.h.b16 %v5287
    %v5808 = vunpack.c.l.b16 %v5288
    %v5809 = vunpack.c.h.b16 %v5288
    %v5810 = vunpack.c.l.b16 %v5289
    %v5811 = vunpack.c.h.b16 %v5289
    %v5812 = vunpack.c.l.b16 %v5290
    %v5813 = vunpack.c.h.b16 %v5290
    %v5814 = vunpack.c.l.b16 %v5291
    %v5815 = vunpack.c.h.b16 %v5291
    %v5816 = vunpack.c.l.b16 %v5292
    %v5817 = vunpack.c.h.b16 %v5292
    %v5818 = vunpack.c.l.b16 %v5293
    %v5819 = vunpack.c.h.b16 %v5293
    %v5820 = vunpack.c.l.b16 %v5294
    %v5821 = vunpack.c.h.b16 %v5294
    %v5822 = vunpack.c.l.b16 %v5295
    %v5823 = vunpack.c.h.b16 %v5295
    %v5824 = vunpack.c.l.b16 %v5296
    %v5825 = vunpack.c.h.b16 %v5296
    %v5826 = vunpack.c.l.b16 %v5297
    %v5827 = vunpack.c.h.b16 %v5297
    %v5828 = vunpack.c.l.b16 %v5298
    %v5829 = vunpack.c.h.b16 %v5298
    %v5830 = vunpack.c.l.b16 %v5299
    %v5831 = vunpack.c.h.b16 %v5299
    %v5832 = vunpack.c.l.b16 %v5300
    %v5833 = vunpack.c.h.b16 %v5300
    %v5834 = vunpack.c.l.b16 %v5301
    %v5835 = vunpack.c.h.b16 %v5301
    %v5836 = vunpack.c.l.b16 %v5302
    %v5837 = vunpack.c.h.b16 %v5302
    %v5838 = vunpack.c.l.b16 %v5303
    %v5839 = vunpack.c.h.b16 %v5303
    %v5840 = vunpack.c.l.b16 %v5304
    %v5841 = vunpack.c.h.b16 %v5304
    %v5842 = vunpack.c.l.b16 %v5305
    %v5843 = vunpack.c.h.b16 %v5305
    %v5844 = vunpack.c.l.b16 %v5306
    %v5845 = vunpack.c.h.b16 %v5306
    %v5846 = vunpack.c.l.b16 %v5307
    %v5847 = vunpack.c.h.b16 %v5307
    %v5848 = vunpack.c.l.b16 %v5308
    %v5849 = vunpack.c.h.b16 %v5308
    %v5850 = vunpack.c.l.b16 %v5309
    %v5851 = vunpack.c.h.b16 %v5309
    %v5852 = vunpack.c.l.b16 %v5310
    %v5853 = vunpack.c.h.b16 %v5310
    %v5854 = vunpack.c.l.b16 %v5311
    %v5855 = vunpack.c.h.b16 %v5311
    %v5856 = vunpack.c.l.b16 %v5312
    %v5857 = vunpack.c.h.b16 %v5312
    %v5858 = vunpack.c.l.b16 %v5313
    %v5859 = vunpack.c.h.b16 %v5313
    %v5860 = vunpack.c.l.b16 %v5314
    %v5861 = vunpack.c.h.b16 %v5314
    %v5862 = vunpack.c.l.b16 %v5315
    %v5863 = vunpack.c.h.b16 %v5315
    %v5864 = vunpack.c.l.b16 %v5316
    %v5865 = vunpack.c.h.b16 %v5316
    %v5866 = vunpack.c.l.b16 %v5317
    %v5867 = vunpack.c.h.b16 %v5317
    %v5868 = vunpack.c.l.b16 %v5318
    %v5869 = vunpack.c.h.b16 %v5318
    %v5870 = vunpack.c.l.b16 %v5319
    %v5871 = vunpack.c.h.b16 %v5319
    %v5872 = vunpack.c.l.b16 %v5320
    %v5873 = vunpack.c.h.b16 %v5320
    %v5874 = vunpack.c.l.b16 %v5321
    %v5875 = vunpack.c.h.b16 %v5321
    %v5876 = vunpack.c.l.b16 %v5322
    %v5877 = vunpack.c.h.b16 %v5322
    %v5878 = vunpack.c.l.b16 %v5323
    %v5879 = vunpack.c.h.b16 %v5323
    %v5880 = vunpack.c.l.b16 %v5324
    %v5881 = vunpack.c.h.b16 %v5324
    %v5882 = vunpack.c.l.b16 %v5325
    %v5883 = vunpack.c.h.b16 %v5325
    %v5884 = vunpack.c.l.b16 %v5326
    %v5885 = vunpack.c.h.b16 %v5326
    %v5886 = vunpack.c.l.b16 %v5327
    %v5887 = vunpack.c.h.b16 %v5327
    %v5888 = vunpack.c.l.b16 %v5328
    %v5889 = vunpack.c.h.b16 %v5328
    %v5890 = vunpack.c.l.b16 %v5329
    %v5891 = vunpack.c.h.b16 %v5329
    %v5892 = vunpack.c.l.b16 %v5330
    %v5893 = vunpack.c.h.b16 %v5330
    %v5894 = vunpack.c.l.b16 %v5331
    %v5895 = vunpack.c.h.b16 %v5331
    %v5896 = vunpack.c.l.b16 %v5332
    %v5897 = vunpack.c.h.b16 %v5332
    %v5898 = vunpack.c.l.b16 %v5333
    %v5899 = vunpack.c.h.b16 %v5333
    %v5900 = vunpack.c.l.b16 %v5334
    %v5901 = vunpack.c.h.b16 %v5334
    %v5902 = vunpack.c.l.b16 %v5335
    %v5903 = vunpack.c.h.b16 %v5335
    %v5904 = vunpack.c.l.b16 %v5336
    %v5905 = vunpack.c.h.b16 %v5336
    %v5906 = vunpack.c.l.b16 %v5337
    %v5907 = vunpack.c.h.b16 %v5337
    %v5908 = vunpack.c.l.b16 %v5338
    %v5909 = vunpack.c.h.b16 %v5338
    %v5910 = vunpack.c.l.b16 %v5339
    %v5911 = vunpack.c.h.b16 %v5339
    %v5912 = vunpack.c.l.b16 %v5340
    %v5913 = vunpack.c.h.b16 %v5340
    %v5914 = vunpack.c.l.b16 %v5341
    %v5915 = vunpack.c.h.b16 %v5341
    %v5916 = vunpack.c.l.b16 %v5342
    %v5917 = vunpack.c.h.b16 %v5342
    %v5918 = vunpack.c.l.b16 %v5343
    %v5919 = vunpack.c.h.b16 %v5343
    %v5920 = vpack.c.b16 %v5540, %v5536
    %v5921 = vpack.c.b16 %v5541, %v5537
    %v5922 = vpack.c.b16 %v5542, %v5538
    %v5923 = vpack.c.b16 %v5543, %v5539
    %v5924 = vpack.c.b16 %v5548, %v5544
    %v5925 = vpack.c.b16 %v5549, %v5545
    %v5926 = vpack.c.b16 %v5550, %v5546
    %v5927 = vpack.c.b16 %v5551, %v5547
    %v5928 = vpack.c.b16 %v5556, %v5552
    %v5929 = vpack.c.b16 %v5557, %v5553
    %v5930 = vpack.c.b16 %v5558, %v5554
    %v5931 = vpack.c.b16 %v5559, %v5555
    %v5932 = vpack.c.b16 %v5564, %v5560
    %v5933 = vpack.c.b16 %v5565, %v5561
    %v5934 = vpack.c.b16 %v5566, %v5562
    %v5935 = vpack.c.b16 %v5567, %v5563
    %v5936 = vpack.c.b16 %v5572, %v5568
    %v5937 = vpack.c.b16 %v5573, %v5569
    %v5938 = vpack.c.b16 %v5574, %v5570
    %v5939 = vpack.c.b16 %v5575, %v5571
    %v5940 = vpack.c.b16 %v5580, %v5576
    %v5941 = vpack.c.b16 %v5581, %v5577
    %v5942 = vpack.c.b16 %v5582, %v5578
    %v5943 = vpack.c.b16 %v5583, %v5579
    %v5944 = vpack.c.b16 %v5588, %v5584
    %v5945 = vpack.c.b16 %v5589, %v5585
    %v5946 = vpack.c.b16 %v5590, %v5586
    %v5947 = vpack.c.b16 %v5591, %v5587
    %v5948 = vpack.c.b16 %v5596, %v5592
    %v5949 = vpack.c.b16 %v5597, %v5593
    %v5950 = vpack.c.b16 %v5598, %v5594
    %v5951 = vpack.c.b16 %v5599, %v5595
    %v5952 = vpack.c.b16 %v5604, %v5600
    %v5953 = vpack.c.b16 %v5605, %v5601
    %v5954 = vpack.c.b16 %v5606, %v5602
    %v5955 = vpack.c.b16 %v5607, %v5603
    %v5956 = vpack.c.b16 %v5612, %v5608
    %v5957 = vpack.c.b16 %v5613, %v5609
    %v5958 = vpack.c.b16 %v5614, %v5610
    %v5959 = vpack.c.b16 %v5615, %v5611
    %v5960 = vpack.c.b16 %v5620, %v5616
    %v5961 = vpack.c.b16 %v5621, %v5617
    %v5962 = vpack.c.b16 %v5622, %v5618
    %v5963 = vpack.c.b16 %v5623, %v5619
    %v5964 = vpack.c.b16 %v5628, %v5624
    %v5965 = vpack.c.b16 %v5629, %v5625
    %v5966 = vpack.c.b16 %v5630, %v5626
    %v5967 = vpack.c.b16 %v5631, %v5627
    %v5968 = vpack.c.b16 %v5636, %v5632
    %v5969 = vpack.c.b16 %v5637, %v5633
    %v5970 = vpack.c.b16 %v5638, %v5634
    %v5971 = vpack.c.b16 %v5639, %v5635
    %v5972 = vpack.c.b16 %v5644, %v5640
    %v5973 = vpack.c.b16 %v5645, %v5641
    %v5974 = vpack.c.b16 %v5646, %v5642
    %v5975 = vpack.c.b16 %v5647, %v5643
    %v5976 = vpack.c.b16 %v5652, %v5648
    %v5977 = vpack.c.b16 %v5653, %v5649
    %v5978 = vpack.c.b16 %v5654, %v5650
    %v5979 = vpack.c.b16 %v5655, %v5651
    %v5980 = vpack.c.b16 %v5660, %v5656
    %v5981 = vpack.c.b16 %v5661, %v5657
    %v5982 = vpack.c.b16 %v5662, %v5658
    %v5983 = vpack.c.b16 %v5663, %v5659
    %v5984 = vpack.c.b16 %v5668, %v5664
    %v5985 = vpack.c.b16 %v5669, %v5665
    %v5986 = vpack.c.b16 %v5670, %v5666
    %v5987 = vpack.c.b16 %v5671, %v5667
    %v5988 = vpack.c.b16 %v5676, %v5672
    %v5989 = vpack.c.b16 %v5677, %v5673
    %v5990 = vpack.c.b16 %v5678, %v5674
    %v5991 = vpack.c.b16 %v5679, %v5675
    %v5992 = vpack.c.b16 %v5684, %v5680
    %v5993 = vpack.c.b16 %v5685, %v5681
    %v5994 = vpack.c.b16 %v5686, %v5682
    %v5995 = vpack.c.b16 %v5687, %v5683
    %v5996 = vpack.c.b16 %v5692, %v5688
    %v5997 = vpack.c.b16 %v5693, %v5689
    %v5998 = vpack.c.b16 %v5694, %v5690
    %v5999 = vpack.c.b16 %v5695, %v5691
    %v6000 = vpack.c.b16 %v5700, %v5696
    %v6001 = vpack.c.b16 %v5701, %v5697
    %v6002 = vpack.c.b16 %v5702, %v5698
    %v6003 = vpack.c.b16 %v5703, %v5699
    %v6004 = vpack.c.b16 %v5708, %v5704
    %v6005 = vpack.c.b16 %v5709, %v5705
    %v6006 = vpack.c.b16 %v5710, %v5706
    %v6007 = vpack.c.b16 %v5711, %v5707
    %v6008 = vpack.c.b16 %v5716, %v5712
    %v6009 = vpack.c.b16 %v5717, %v5713
    %v6010 = vpack.c.b16 %v5718, %v5714
    %v6011 = vpack.c.b16 %v5719, %v5715
    %v6012 = vpack.c.b16 %v5724, %v5720
    %v6013 = vpack.c.b16 %v5725, %v5721
    %v6014 = vpack.c.b16 %v5726, %v5722
    %v6015 = vpack.c.b16 %v5727, %v5723
    %v6016 = vpack.c.b16 %v5732, %v5728
    %v6017 = vpack.c.b16 %v5733, %v5729
    %v6018 = vpack.c.b16 %v5734, %v5730
    %v6019 = vpack.c.b16 %v5735, %v5731
    %v6020 = vpack.c.b16 %v5740, %v5736
    %v6021 = vpack.c.b16 %v5741, %v5737
    %v6022 = vpack.c.b16 %v5742, %v5738
    %v6023 = vpack.c.b16 %v5743, %v5739
    %v6024 = vpack.c.b16 %v5748, %v5744
    %v6025 = vpack.c.b16 %v5749, %v5745
    %v6026 = vpack.c.b16 %v5750, %v5746
    %v6027 = vpack.c.b16 %v5751, %v5747
    %v6028 = vpack.c.b16 %v5756, %v5752
    %v6029 = vpack.c.b16 %v5757, %v5753
    %v6030 = vpack.c.b16 %v5758, %v5754
    %v6031 = vpack.c.b16 %v5759, %v5755
    %v6032 = vpack.c.b16 %v5764, %v5760
    %v6033 = vpack.c.b16 %v5765, %v5761
    %v6034 = vpack.c.b16 %v5766, %v5762
    %v6035 = vpack.c.b16 %v5767, %v5763
    %v6036 = vpack.c.b16 %v5772, %v5768
    %v6037 = vpack.c.b16 %v5773, %v5769
    %v6038 = vpack.c.b16 %v5774, %v5770
    %v6039 = vpack.c.b16 %v5775, %v5771
    %v6040 = vpack.c.b16 %v5780, %v5776
    %v6041 = vpack.c.b16 %v5781, %v5777
    %v6042 = vpack.c.b16 %v5782, %v5778
    %v6043 = vpack.c.b16 %v5783, %v5779
    %v6044 = vpack.c.b16 %v5788, %v5784
    %v6045 = vpack.c.b16 %v5789, %v5785
    %v6046 = vpack.c.b16 %v5790, %v5786
    %v6047 = vpack.c.b16 %v5791, %v5787
    %v6048 = vpack.c.b16 %v5796, %v5792
    %v6049 = vpack.c.b16 %v5797, %v5793
    %v6050 = vpack.c.b16 %v5798, %v5794
    %v6051 = vpack.c.b16 %v5799, %v5795
    %v6052 = vpack.c.b16 %v5804, %v5800
    %v6053 = vpack.c.b16 %v5805, %v5801
    %v6054 = vpack.c.b16 %v5806, %v5802
    %v6055 = vpack.c.b16 %v5807, %v5803
    %v6056 = vpack.c.b16 %v5812, %v5808
    %v6057 = vpack.c.b16 %v5813, %v5809
    %v6058 = vpack.c.b16 %v5814, %v5810
    %v6059 = vpack.c.b16 %v5815, %v5811
    %v6060 = vpack.c.b16 %v5820, %v5816
    %v6061 = vpack.c.b16 %v5821, %v5817
    %v6062 = vpack.c.b16 %v5822, %v5818
    %v6063 = vpack.c.b16 %v5823, %v5819
    %v6064 = vpack.c.b16 %v5828, %v5824
    %v6065 = vpack.c.b16 %v5829, %v5825
    %v6066 = vpack.c.b16 %v5830, %v5826
    %v6067 = vpack.c.b16 %v5831, %v5827
    %v6068 = vpack.c.b16 %v5836, %v5832
    %v6069 = vpack.c.b16 %v5837, %v5833
    %v6070 = vpack.c.b16 %v5838, %v5834
    %v6071 = vpack.c.b16 %v5839, %v5835
    %v6072 = vpack.c.b16 %v5844, %v5840
    %v6073 = vpack.c.b16 %v5845, %v5841
    %v6074 = vpack.c.b16 %v5846, %v5842
    %v6075 = vpack.c.b16 %v5847, %v5843
    %v6076 = vpack.c.b16 %v5852, %v5848
    %v6077 = vpack.c.b16 %v5853, %v5849
    %v6078 = vpack.c.b16 %v5854, %v5850
    %v6079 = vpack.c.b16 %v5855, %v5851
    %v6080 = vpack.c.b16 %v5860, %v5856
    %v6081 = vpack.c.b16 %v5861, %v5857
    %v6082 = vpack.c.b16 %v5862, %v5858
    %v6083 = vpack.c.b16 %v5863, %v5859
    %v6084 = vpack.c.b16 %v5868, %v5864
    %v6085 = vpack.c.b16 %v5869, %v5865
    %v6086 = vpack.c.b16 %v5870, %v5866
    %v6087 = vpack.c.b16 %v5871, %v5867
    %v6088 = vpack.c.b16 %v5876, %v5872
    %v6089 = vpack.c.b16 %v5877, %v5873
    %v6090 = vpack.c.b16 %v5878, %v5874
    %v6091 = vpack.c.b16 %v5879, %v5875
    %v6092 = vpack.c.b16 %v5884, %v5880
    %v6093 = vpack.c.b16 %v5885, %v5881
    %v6094 = vpack.c.b16 %v5886, %v5882
    %v6095 = vpack.c.b16 %v5887, %v5883
    %v6096 = vpack.c.b16 %v5892, %v5888
    %v6097 = vpack.c.b16 %v5893, %v5889
    %v6098 = vpack.c.b16 %v5894, %v5890
    %v6099 = vpack.c.b16 %v5895, %v5891
    %v6100 = vpack.c.b16 %v5900, %v5896
    %v6101 = vpack.c.b16 %v5901, %v5897
    %v6102 = vpack.c.b16 %v5902, %v5898
    %v6103 = vpack.c.b16 %v5903, %v5899
    %v6104 = vpack.c.b16 %v5908, %v5904
    %v6105 = vpack.c.b16 %v5909, %v5905
    %v6106 = vpack.c.b16 %v5910, %v5906
    %v6107 = vpack.c.b16 %v5911, %v5907
    %v6108 = vpack.c.b16 %v5916, %v5912
    %v6109 = vpack.c.b16 %v5917, %v5913
    %v6110 = vpack.c.b16 %v5918, %v5914
    %v6111 = vpack.c.b16 %v5919, %v5915
    %6304 = vmatprep.subr.bf16.mxu0 %v5921
    %6305 = vmatpush1.bf16.msra.mxu0 %v5920
    %6306 = vmatprep.subr.bf16.mxu0 %v5925
    %6307 = vmatpush1.bf16.msra.mxu0 %v5924
    %6308 = vmatprep.subr.bf16.mxu0 %v5929
    %6309 = vmatpush1.bf16.msra.mxu0 %v5928
    %6310 = vmatprep.subr.bf16.mxu0 %v5933
    %6311 = vmatpush1.bf16.msra.mxu0 %v5932
    %6312 = vmatprep.subr.bf16.mxu0 %v5937
    %6313 = vmatpush1.bf16.msra.mxu0 %v5936
    %6314 = vmatprep.subr.bf16.mxu0 %v5941
    %6315 = vmatpush1.bf16.msra.mxu0 %v5940
    %6316 = vmatprep.subr.bf16.mxu0 %v5945
    %6317 = vmatpush1.bf16.msra.mxu0 %v5944
    %6318 = vmatprep.subr.bf16.mxu0 %v5949
    %6319 = vmatpush1.bf16.msra.mxu0 %v5948
    %6320 = vmatprep.subr.bf16.mxu0 %v5953
    %6321 = vmatpush1.bf16.msra.mxu0 %v5952
    %6322 = vmatprep.subr.bf16.mxu0 %v5957
    %6323 = vmatpush1.bf16.msra.mxu0 %v5956
    %6324 = vmatprep.subr.bf16.mxu0 %v5961
    %6325 = vmatpush1.bf16.msra.mxu0 %v5960
    %6326 = vmatprep.subr.bf16.mxu0 %v5965
    %6327 = vmatpush1.bf16.msra.mxu0 %v5964
    %6328 = vmatprep.subr.bf16.mxu0 %v5969
    %6329 = vmatpush1.bf16.msra.mxu0 %v5968
    %6330 = vmatprep.subr.bf16.mxu0 %v5973
    %6331 = vmatpush1.bf16.msra.mxu0 %v5972
    %6332 = vmatprep.subr.bf16.mxu0 %v5977
    %6333 = vmatpush1.bf16.msra.mxu0 %v5976
    %6334 = vmatprep.subr.bf16.mxu0 %v5981
    %6335 = vmatpush1.bf16.msra.mxu0 %v5980
    %6336 = vmatprep.mubr.bf16.mxu0 %v5147
    %6337 = vmatmul.mubr.bf16.gmra.mrb[0].mxu0 %v5146
    %v6338 = vpop.f32.mrb[0].mxu0
    %v6339 = vadd.f32 0.0, %v6338
    %v6340 = vpop.f32.mrb[0].mxu0
    %v6341 = vadd.f32 0.0, %v6340
    %v6342 = vpop.f32.mrb[0].mxu0
    %v6343 = vpop.f32.mrb[0].mxu0
    %6344 = vdwg.mxu0
    %6345 = vmatprep.subr.bf16.mxu0 %v5985
    %6346 = vmatpush1.bf16.msra.mxu0 %v5984
    %6347 = vmatprep.subr.bf16.mxu0 %v5989
    %6348 = vmatpush1.bf16.msra.mxu0 %v5988
    %6349 = vmatprep.subr.bf16.mxu0 %v5993
    %6350 = vmatpush1.bf16.msra.mxu0 %v5992
    %6351 = vmatprep.subr.bf16.mxu0 %v5997
    %6352 = vmatpush1.bf16.msra.mxu0 %v5996
    %6353 = vmatprep.subr.bf16.mxu0 %v6001
    %6354 = vmatpush1.bf16.msra.mxu0 %v6000
    %6355 = vmatprep.subr.bf16.mxu0 %v6005
    %6356 = vmatpush1.bf16.msra.mxu0 %v6004
    %6357 = vmatprep.subr.bf16.mxu0 %v6009
    %6358 = vmatpush1.bf16.msra.mxu0 %v6008
    %6359 = vmatprep.subr.bf16.mxu0 %v6013
    %6360 = vmatpush1.bf16.msra.mxu0 %v6012
    %6361 = vmatprep.subr.bf16.mxu0 %v6017
    %6362 = vmatpush1.bf16.msra.mxu0 %v6016
    %6363 = vmatprep.subr.bf16.mxu0 %v6021
    %6364 = vmatpush1.bf16.msra.mxu0 %v6020
    %6365 = vmatprep.subr.bf16.mxu0 %v6025
    %6366 = vmatpush1.bf16.msra.mxu0 %v6024
    %6367 = vmatprep.subr.bf16.mxu0 %v6029
    %6368 = vmatpush1.bf16.msra.mxu0 %v6028
    %6369 = vmatprep.subr.bf16.mxu0 %v6033
    %6370 = vmatpush1.bf16.msra.mxu0 %v6032
    %6371 = vmatprep.subr.bf16.mxu0 %v6037
    %6372 = vmatpush1.bf16.msra.mxu0 %v6036
    %6373 = vmatprep.subr.bf16.mxu0 %v6041
    %6374 = vmatpush1.bf16.msra.mxu0 %v6040
    %6375 = vmatprep.subr.bf16.mxu0 %v6045
    %6376 = vmatpush1.bf16.msra.mxu0 %v6044
    %6377 = vmatprep.mubr.bf16.mxu0 %v5149
    %6378 = vmatmul.mubr.bf16.gmra.mrb[0].mxu0 %v5148
    %v6379 = vpop.f32.mrb[0].mxu0
    %v6380 = vadd.f32 %v6339, %v6379
    %v6381 = vpop.f32.mrb[0].mxu0
    %v6382 = vadd.f32 %v6341, %v6381
    %v6383 = vpop.f32.mrb[0].mxu0
    %v6384 = vpop.f32.mrb[0].mxu0
    %6385 = vdwg.mxu0
    %6386 = vmatprep.subr.bf16.mxu0 %v6049
    %6387 = vmatpush1.bf16.msra.mxu0 %v6048
    %6388 = vmatprep.subr.bf16.mxu0 %v6053
    %6389 = vmatpush1.bf16.msra.mxu0 %v6052
    %6390 = vmatprep.subr.bf16.mxu0 %v6057
    %6391 = vmatpush1.bf16.msra.mxu0 %v6056
    %6392 = vmatprep.subr.bf16.mxu0 %v6061
    %6393 = vmatpush1.bf16.msra.mxu0 %v6060
    %6394 = vmatprep.subr.bf16.mxu0 %v6065
    %6395 = vmatpush1.bf16.msra.mxu0 %v6064
    %6396 = vmatprep.subr.bf16.mxu0 %v6069
    %6397 = vmatpush1.bf16.msra.mxu0 %v6068
    %6398 = vmatprep.subr.bf16.mxu0 %v6073
    %6399 = vmatpush1.bf16.msra.mxu0 %v6072
    %6400 = vmatprep.subr.bf16.mxu0 %v6077
    %6401 = vmatpush1.bf16.msra.mxu0 %v6076
    %6402 = vmatprep.subr.bf16.mxu0 %v6081
    %6403 = vmatpush1.bf16.msra.mxu0 %v6080
    %6404 = vmatprep.subr.bf16.mxu0 %v6085
    %6405 = vmatpush1.bf16.msra.mxu0 %v6084
    %6406 = vmatprep.subr.bf16.mxu0 %v6089
    %6407 = vmatpush1.bf16.msra.mxu0 %v6088
    %6408 = vmatprep.subr.bf16.mxu0 %v6093
    %6409 = vmatpush1.bf16.msra.mxu0 %v6092
    %6410 = vmatprep.subr.bf16.mxu0 %v6097
    %6411 = vmatpush1.bf16.msra.mxu0 %v6096
    %6412 = vmatprep.subr.bf16.mxu0 %v6101
    %6413 = vmatpush1.bf16.msra.mxu0 %v6100
    %6414 = vmatprep.subr.bf16.mxu0 %v6105
    %6415 = vmatpush1.bf16.msra.mxu0 %v6104
    %6416 = vmatprep.subr.bf16.mxu0 %v6109
    %6417 = vmatpush1.bf16.msra.mxu0 %v6108
    %6418 = vmatprep.mubr.bf16.mxu0 %v5151
    %6419 = vmatmul.mubr.bf16.gmra.mrb[0].mxu0 %v5150
    %v6420 = vpop.f32.mrb[0].mxu0
    %v6421 = vadd.f32 %v6380, %v6420
    %v6422 = vpop.f32.mrb[0].mxu0
    %v6423 = vadd.f32 %v6382, %v6422
    %v6424 = vpop.f32.mrb[0].mxu0
    %v6425 = vpop.f32.mrb[0].mxu0
    %6426 = vdwg.mxu0
    %6427 = vmatprep.subr.bf16.mxu0 %v5923
    %6428 = vmatpush1.bf16.msra.mxu0 %v5922
    %6429 = vmatprep.subr.bf16.mxu0 %v5927
    %6430 = vmatpush1.bf16.msra.mxu0 %v5926
    %6431 = vmatprep.subr.bf16.mxu0 %v5931
    %6432 = vmatpush1.bf16.msra.mxu0 %v5930
    %6433 = vmatprep.subr.bf16.mxu0 %v5935
    %6434 = vmatpush1.bf16.msra.mxu0 %v5934
    %6435 = vmatprep.subr.bf16.mxu0 %v5939
    %6436 = vmatpush1.bf16.msra.mxu0 %v5938
    %6437 = vmatprep.subr.bf16.mxu0 %v5943
    %6438 = vmatpush1.bf16.msra.mxu0 %v5942
    %6439 = vmatprep.subr.bf16.mxu0 %v5947
    %6440 = vmatpush1.bf16.msra.mxu0 %v5946
    %6441 = vmatprep.subr.bf16.mxu0 %v5951
    %6442 = vmatpush1.bf16.msra.mxu0 %v5950
    %6443 = vmatprep.subr.bf16.mxu0 %v5955
    %6444 = vmatpush1.bf16.msra.mxu0 %v5954
    %6445 = vmatprep.subr.bf16.mxu0 %v5959
    %6446 = vmatpush1.bf16.msra.mxu0 %v5958
    %6447 = vmatprep.subr.bf16.mxu0 %v5963
    %6448 = vmatpush1.bf16.msra.mxu0 %v5962
    %6449 = vmatprep.subr.bf16.mxu0 %v5967
    %6450 = vmatpush1.bf16.msra.mxu0 %v5966
    %6451 = vmatprep.subr.bf16.mxu0 %v5971
    %6452 = vmatpush1.bf16.msra.mxu0 %v5970
    %6453 = vmatprep.subr.bf16.mxu0 %v5975
    %6454 = vmatpush1.bf16.msra.mxu0 %v5974
    %6455 = vmatprep.subr.bf16.mxu0 %v5979
    %6456 = vmatpush1.bf16.msra.mxu0 %v5978
    %6457 = vmatprep.subr.bf16.mxu0 %v5983
    %6458 = vmatpush1.bf16.msra.mxu0 %v5982
    %6459 = vmatprep.mubr.bf16.mxu0 %v5147
    %6460 = vmatmul.mubr.bf16.gmra.mrb[0].mxu0 %v5146
    %v6461 = vpop.f32.mrb[0].mxu0
    %v6462 = vadd.f32 0.0, %v6461
    %v6463 = vpop.f32.mrb[0].mxu0
    %v6464 = vadd.f32 0.0, %v6463
    %v6465 = vpop.f32.mrb[0].mxu0
    %v6466 = vpop.f32.mrb[0].mxu0
    %6467 = vdwg.mxu0
    %6468 = vmatprep.subr.bf16.mxu0 %v5987
    %6469 = vmatpush1.bf16.msra.mxu0 %v5986
    %6470 = vmatprep.subr.bf16.mxu0 %v5991
    %6471 = vmatpush1.bf16.msra.mxu0 %v5990
    %6472 = vmatprep.subr.bf16.mxu0 %v5995
    %6473 = vmatpush1.bf16.msra.mxu0 %v5994
    %6474 = vmatprep.subr.bf16.mxu0 %v5999
    %6475 = vmatpush1.bf16.msra.mxu0 %v5998
    %6476 = vmatprep.subr.bf16.mxu0 %v6003
    %6477 = vmatpush1.bf16.msra.mxu0 %v6002
    %6478 = vmatprep.subr.bf16.mxu0 %v6007
    %6479 = vmatpush1.bf16.msra.mxu0 %v6006
    %6480 = vmatprep.subr.bf16.mxu0 %v6011
    %6481 = vmatpush1.bf16.msra.mxu0 %v6010
    %6482 = vmatprep.subr.bf16.mxu0 %v6015
    %6483 = vmatpush1.bf16.msra.mxu0 %v6014
    %6484 = vmatprep.subr.bf16.mxu0 %v6019
    %6485 = vmatpush1.bf16.msra.mxu0 %v6018
    %6486 = vmatprep.subr.bf16.mxu0 %v6023
    %6487 = vmatpush1.bf16.msra.mxu0 %v6022
    %6488 = vmatprep.subr.bf16.mxu0 %v6027
    %6489 = vmatpush1.bf16.msra.mxu0 %v6026
    %6490 = vmatprep.subr.bf16.mxu0 %v6031
    %6491 = vmatpush1.bf16.msra.mxu0 %v6030
    %6492 = vmatprep.subr.bf16.mxu0 %v6035
    %6493 = vmatpush1.bf16.msra.mxu0 %v6034
    %6494 = vmatprep.subr.bf16.mxu0 %v6039
    %6495 = vmatpush1.bf16.msra.mxu0 %v6038
    %6496 = vmatprep.subr.bf16.mxu0 %v6043
    %6497 = vmatpush1.bf16.msra.mxu0 %v6042
    %6498 = vmatprep.subr.bf16.mxu0 %v6047
    %6499 = vmatpush1.bf16.msra.mxu0 %v6046
    %6500 = vmatprep.mubr.bf16.mxu0 %v5149
    %6501 = vmatmul.mubr.bf16.gmra.mrb[0].mxu0 %v5148
    %v6502 = vpop.f32.mrb[0].mxu0
    %v6503 = vadd.f32 %v6462, %v6502
    %v6504 = vpop.f32.mrb[0].mxu0
    %v6505 = vadd.f32 %v6464, %v6504
    %v6506 = vpop.f32.mrb[0].mxu0
    %v6507 = vpop.f32.mrb[0].mxu0
    %6508 = vdwg.mxu0
    %6509 = vmatprep.subr.bf16.mxu0 %v6051
    %6510 = vmatpush1.bf16.msra.mxu0 %v6050
    %6511 = vmatprep.subr.bf16.mxu0 %v6055
    %6512 = vmatpush1.bf16.msra.mxu0 %v6054
    %6513 = vmatprep.subr.bf16.mxu0 %v6059
    %6514 = vmatpush1.bf16.msra.mxu0 %v6058
    %6515 = vmatprep.subr.bf16.mxu0 %v6063
    %6516 = vmatpush1.bf16.msra.mxu0 %v6062
    %6517 = vmatprep.subr.bf16.mxu0 %v6067
    %6518 = vmatpush1.bf16.msra.mxu0 %v6066
    %6519 = vmatprep.subr.bf16.mxu0 %v6071
    %6520 = vmatpush1.bf16.msra.mxu0 %v6070
    %6521 = vmatprep.subr.bf16.mxu0 %v6075
    %6522 = vmatpush1.bf16.msra.mxu0 %v6074
    %6523 = vmatprep.subr.bf16.mxu0 %v6079
    %6524 = vmatpush1.bf16.msra.mxu0 %v6078
    %6525 = vmatprep.subr.bf16.mxu0 %v6083
    %6526 = vmatpush1.bf16.msra.mxu0 %v6082
    %6527 = vmatprep.subr.bf16.mxu0 %v6087
    %6528 = vmatpush1.bf16.msra.mxu0 %v6086
    %6529 = vmatprep.subr.bf16.mxu0 %v6091
    %6530 = vmatpush1.bf16.msra.mxu0 %v6090
    %6531 = vmatprep.subr.bf16.mxu0 %v6095
    %6532 = vmatpush1.bf16.msra.mxu0 %v6094
    %6533 = vmatprep.subr.bf16.mxu0 %v6099
    %6534 = vmatpush1.bf16.msra.mxu0 %v6098
    %6535 = vmatprep.subr.bf16.mxu0 %v6103
    %6536 = vmatpush1.bf16.msra.mxu0 %v6102
    %6537 = vmatprep.subr.bf16.mxu0 %v6107
    %6538 = vmatpush1.bf16.msra.mxu0 %v6106
    %6539 = vmatprep.subr.bf16.mxu0 %v6111
    %6540 = vmatpush1.bf16.msra.mxu0 %v6110
    %6541 = vmatprep.mubr.bf16.mxu0 %v5151
    %6542 = vmatmul.mubr.bf16.gmra.mrb[0].mxu0 %v5150
    %v6543 = vpop.f32.mrb[0].mxu0
    %v6544 = vadd.f32 %v6503, %v6543
    %v6545 = vpop.f32.mrb[0].mxu0
    %v6546 = vadd.f32 %v6505, %v6545
    %v6547 = vpop.f32.mrb[0].mxu0
    %v6548 = vpop.f32.mrb[0].mxu0
    %6549 = vdwg.mxu0
    %v6550 = vld [vmem:[%s11] sm:$0xf]
    %v6552 = vlaneseq
    %v6553 = vshrl.u32 %v6552, 7
    %v6554 = vsub.s32 0, %v6553
    %v6555 = vrot.slane %v6550, %v6554
    %v6556 = vlaneseq
    %v6557 = vshrl.u32 %v6556, 7
    %v6558 = vsub.s32 1, %v6557
    %v6559 = vrot.slane %v6550, %v6558
    %v6560 = vlaneseq
    %v6561 = vshrl.u32 %v6560, 7
    %v6562 = vsub.s32 2, %v6561
    %v6563 = vrot.slane %v6550, %v6562
    %v6564 = vlaneseq
    %v6565 = vshrl.u32 %v6564, 7
    %v6566 = vsub.s32 3, %v6565
    %v6567 = vrot.slane %v6550, %v6566
    %v6572 = vmul.f32 %v6421, %v6555
    %v6573 = vmul.f32 %v6423, %v6559
    %v6574 = vmul.f32 %v6544, %v6563
    %v6575 = vmul.f32 %v6546, %v6567
    %v6576 = vld [vmem:[%s12] sm:$0xf]
    %v6578 = vlaneseq
    %v6579 = vshrl.u32 %v6578, 7
    %v6580 = vsub.s32 0, %v6579
    %v6581 = vrot.slane %v6576, %v6580
    %v6582 = vlaneseq
    %v6583 = vshrl.u32 %v6582, 7
    %v6584 = vsub.s32 1, %v6583
    %v6585 = vrot.slane %v6576, %v6584
    %v6586 = vlaneseq
    %v6587 = vshrl.u32 %v6586, 7
    %v6588 = vsub.s32 2, %v6587
    %v6589 = vrot.slane %v6576, %v6588
    %v6590 = vlaneseq
    %v6591 = vshrl.u32 %v6590, 7
    %v6592 = vsub.s32 3, %v6591
    %v6593 = vrot.slane %v6576, %v6592
    %v6598 = vadd.f32 %v6572, %v6581
    %v6599 = vadd.f32 %v6573, %v6585
    %v6600 = vadd.f32 %v6574, %v6589
    %v6601 = vadd.f32 %v6575, %v6593
    %v6602 = vmax.f32 %v6598, 0.0
    %v6603 = vmax.f32 %v6599, 0.0
    %v6604 = vmax.f32 %v6600, 0.0
    %v6605 = vmax.f32 %v6601, 0.0
    %v6606 = vpack.c.bf16 %v6602, %v6602
    %v6607 = vpack.c.bf16 %v6603, %v6603
    %v6608 = vpack.c.bf16 %v6604, %v6604
    %v6609 = vpack.c.bf16 %v6605, %v6605
    %v6610 = vld [vmem:[%s13] sm:$0xf]
    %v6611 = vld [vmem:[%s13 + $0x4] sm:$0xf]
    %v6612 = vld [vmem:[%s13 + $0x8] sm:$0xf]
    %v6613 = vld [vmem:[%s13 + $0xc] sm:$0xf]
    %v6614 = vld [vmem:[%s13 + $0x10] sm:$0xf]
    %v6615 = vld [vmem:[%s13 + $0x14] sm:$0xf]
    %v6616 = vld [vmem:[%s13 + $0x18] sm:$0xf]
    %v6617 = vld [vmem:[%s13 + $0x1c] sm:$0xf]
    %v6618 = vld [vmem:[%s13 + $0x20] sm:$0xf]
    %v6619 = vld [vmem:[%s13 + $0x24] sm:$0xf]
    %v6620 = vld [vmem:[%s13 + $0x28] sm:$0xf]
    %v6621 = vld [vmem:[%s13 + $0x2c] sm:$0xf]
    %v6622 = vld [vmem:[%s13 + $0x30] sm:$0xf]
    %v6623 = vld [vmem:[%s13 + $0x34] sm:$0xf]
    %v6624 = vld [vmem:[%s13 + $0x38] sm:$0xf]
    %v6625 = vld [vmem:[%s13 + $0x3c] sm:$0xf]
    %v6626 = vld [vmem:[%s13 + $0x40] sm:$0xf]
    %v6627 = vld [vmem:[%s13 + $0x44] sm:$0xf]
    %v6628 = vld [vmem:[%s13 + $0x48] sm:$0xf]
    %v6629 = vld [vmem:[%s13 + $0x4c] sm:$0xf]
    %v6630 = vld [vmem:[%s13 + $0x50] sm:$0xf]
    %v6631 = vld [vmem:[%s13 + $0x54] sm:$0xf]
    %v6632 = vld [vmem:[%s13 + $0x58] sm:$0xf]
    %v6633 = vld [vmem:[%s13 + $0x5c] sm:$0xf]
    %v6634 = vld [vmem:[%s13 + $0x60] sm:$0xf]
    %v6635 = vld [vmem:[%s13 + $0x64] sm:$0xf]
    %v6636 = vld [vmem:[%s13 + $0x68] sm:$0xf]
    %v6637 = vld [vmem:[%s13 + $0x6c] sm:$0xf]
    %v6638 = vld [vmem:[%s13 + $0x70] sm:$0xf]
    %v6639 = vld [vmem:[%s13 + $0x74] sm:$0xf]
    %v6640 = vld [vmem:[%s13 + $0x78] sm:$0xf]
    %v6641 = vld [vmem:[%s13 + $0x7c] sm:$0xf]
    %v6642 = vld [vmem:[%s13 + $0x80] sm:$0xf]
    %v6643 = vld [vmem:[%s13 + $0x84] sm:$0xf]
    %v6644 = vld [vmem:[%s13 + $0x88] sm:$0xf]
    %v6645 = vld [vmem:[%s13 + $0x8c] sm:$0xf]
    %v6646 = vld [vmem:[%s13 + $0x90] sm:$0xf]
    %v6647 = vld [vmem:[%s13 + $0x94] sm:$0xf]
    %v6648 = vld [vmem:[%s13 + $0x98] sm:$0xf]
    %v6649 = vld [vmem:[%s13 + $0x9c] sm:$0xf]
    %v6650 = vld [vmem:[%s13 + $0xa0] sm:$0xf]
    %v6651 = vld [vmem:[%s13 + $0xa4] sm:$0xf]
    %v6652 = vld [vmem:[%s13 + $0xa8] sm:$0xf]
    %v6653 = vld [vmem:[%s13 + $0xac] sm:$0xf]
    %v6654 = vld [vmem:[%s13 + $0xb0] sm:$0xf]
    %v6655 = vld [vmem:[%s13 + $0xb4] sm:$0xf]
    %v6656 = vld [vmem:[%s13 + $0xb8] sm:$0xf]
    %v6657 = vld [vmem:[%s13 + $0xbc] sm:$0xf]
    %v6658 = vld [vmem:[%s13 + $0xc0] sm:$0xf]
    %v6659 = vld [vmem:[%s13 + $0xc4] sm:$0xf]
    %v6660 = vld [vmem:[%s13 + $0xc8] sm:$0xf]
    %v6661 = vld [vmem:[%s13 + $0xcc] sm:$0xf]
    %v6662 = vld [vmem:[%s13 + $0xd0] sm:$0xf]
    %v6663 = vld [vmem:[%s13 + $0xd4] sm:$0xf]
    %v6664 = vld [vmem:[%s13 + $0xd8] sm:$0xf]
    %v6665 = vld [vmem:[%s13 + $0xdc] sm:$0xf]
    %v6666 = vld [vmem:[%s13 + $0xe0] sm:$0xf]
    %v6667 = vld [vmem:[%s13 + $0xe4] sm:$0xf]
    %v6668 = vld [vmem:[%s13 + $0xe8] sm:$0xf]
    %v6669 = vld [vmem:[%s13 + $0xec] sm:$0xf]
    %v6670 = vld [vmem:[%s13 + $0xf0] sm:$0xf]
    %v6671 = vld [vmem:[%s13 + $0xf4] sm:$0xf]
    %v6672 = vld [vmem:[%s13 + $0xf8] sm:$0xf]
    %v6673 = vld [vmem:[%s13 + $0xfc] sm:$0xf]
    %v6738 = vunpack.c.l.b16 %v6610
    %v6739 = vunpack.c.l.b16 %v6611
    %v6740 = vunpack.c.l.b16 %v6612
    %v6741 = vunpack.c.l.b16 %v6613
    %v6742 = vunpack.c.l.b16 %v6614
    %v6743 = vunpack.c.l.b16 %v6615
    %v6744 = vunpack.c.l.b16 %v6616
    %v6745 = vunpack.c.l.b16 %v6617
    %v6746 = vunpack.c.l.b16 %v6618
    %v6747 = vunpack.c.l.b16 %v6619
    %v6748 = vunpack.c.l.b16 %v6620
    %v6749 = vunpack.c.l.b16 %v6621
    %v6750 = vunpack.c.l.b16 %v6622
    %v6751 = vunpack.c.l.b16 %v6623
    %v6752 = vunpack.c.l.b16 %v6624
    %v6753 = vunpack.c.l.b16 %v6625
    %v6754 = vunpack.c.l.b16 %v6626
    %v6755 = vunpack.c.l.b16 %v6627
    %v6756 = vunpack.c.l.b16 %v6628
    %v6757 = vunpack.c.l.b16 %v6629
    %v6758 = vunpack.c.l.b16 %v6630
    %v6759 = vunpack.c.l.b16 %v6631
    %v6760 = vunpack.c.l.b16 %v6632
    %v6761 = vunpack.c.l.b16 %v6633
    %v6762 = vunpack.c.l.b16 %v6634
    %v6763 = vunpack.c.l.b16 %v6635
    %v6764 = vunpack.c.l.b16 %v6636
    %v6765 = vunpack.c.l.b16 %v6637
    %v6766 = vunpack.c.l.b16 %v6638
    %v6767 = vunpack.c.l.b16 %v6639
    %v6768 = vunpack.c.l.b16 %v6640
    %v6769 = vunpack.c.l.b16 %v6641
    %v6770 = vunpack.c.l.b16 %v6642
    %v6771 = vunpack.c.l.b16 %v6643
    %v6772 = vunpack.c.l.b16 %v6644
    %v6773 = vunpack.c.l.b16 %v6645
    %v6774 = vunpack.c.l.b16 %v6646
    %v6775 = vunpack.c.l.b16 %v6647
    %v6776 = vunpack.c.l.b16 %v6648
    %v6777 = vunpack.c.l.b16 %v6649
    %v6778 = vunpack.c.l.b16 %v6650
    %v6779 = vunpack.c.l.b16 %v6651
    %v6780 = vunpack.c.l.b16 %v6652
    %v6781 = vunpack.c.l.b16 %v6653
    %v6782 = vunpack.c.l.b16 %v6654
    %v6783 = vunpack.c.l.b16 %v6655
    %v6784 = vunpack.c.l.b16 %v6656
    %v6785 = vunpack.c.l.b16 %v6657
    %v6786 = vunpack.c.l.b16 %v6658
    %v6787 = vunpack.c.l.b16 %v6659
    %v6788 = vunpack.c.l.b16 %v6660
    %v6789 = vunpack.c.l.b16 %v6661
    %v6790 = vunpack.c.l.b16 %v6662
    %v6791 = vunpack.c.l.b16 %v6663
    %v6792 = vunpack.c.l.b16 %v6664
    %v6793 = vunpack.c.l.b16 %v6665
    %v6794 = vunpack.c.l.b16 %v6666
    %v6795 = vunpack.c.l.b16 %v6667
    %v6796 = vunpack.c.l.b16 %v6668
    %v6797 = vunpack.c.l.b16 %v6669
    %v6798 = vunpack.c.l.b16 %v6670
    %v6799 = vunpack.c.l.b16 %v6671
    %v6800 = vunpack.c.l.b16 %v6672
    %v6801 = vunpack.c.l.b16 %v6673
    %v6802 = vpack.c.b16 %v6739, %v6738
    %v6803 = vpack.c.b16 %v6741, %v6740
    %v6804 = vpack.c.b16 %v6743, %v6742
    %v6805 = vpack.c.b16 %v6745, %v6744
    %v6806 = vpack.c.b16 %v6747, %v6746
    %v6807 = vpack.c.b16 %v6749, %v6748
    %v6808 = vpack.c.b16 %v6751, %v6750
    %v6809 = vpack.c.b16 %v6753, %v6752
    %v6810 = vpack.c.b16 %v6755, %v6754
    %v6811 = vpack.c.b16 %v6757, %v6756
    %v6812 = vpack.c.b16 %v6759, %v6758
    %v6813 = vpack.c.b16 %v6761, %v6760
    %v6814 = vpack.c.b16 %v6763, %v6762
    %v6815 = vpack.c.b16 %v6765, %v6764
    %v6816 = vpack.c.b16 %v6767, %v6766
    %v6817 = vpack.c.b16 %v6769, %v6768
    %v6818 = vpack.c.b16 %v6771, %v6770
    %v6819 = vpack.c.b16 %v6773, %v6772
    %v6820 = vpack.c.b16 %v6775, %v6774
    %v6821 = vpack.c.b16 %v6777, %v6776
    %v6822 = vpack.c.b16 %v6779, %v6778
    %v6823 = vpack.c.b16 %v6781, %v6780
    %v6824 = vpack.c.b16 %v6783, %v6782
    %v6825 = vpack.c.b16 %v6785, %v6784
    %v6826 = vpack.c.b16 %v6787, %v6786
    %v6827 = vpack.c.b16 %v6789, %v6788
    %v6828 = vpack.c.b16 %v6791, %v6790
    %v6829 = vpack.c.b16 %v6793, %v6792
    %v6830 = vpack.c.b16 %v6795, %v6794
    %v6831 = vpack.c.b16 %v6797, %v6796
    %v6832 = vpack.c.b16 %v6799, %v6798
    %v6833 = vpack.c.b16 %v6801, %v6800
    %6866 = vmatprep.subr.bf16.mxu0 0
    %6867 = vmatpush1.bf16.msra.mxu0 %v6802
    %6868 = vmatprep.subr.bf16.mxu0 0
    %6869 = vmatpush1.bf16.msra.mxu0 %v6803
    %6870 = vmatprep.subr.bf16.mxu0 0
    %6871 = vmatpush1.bf16.msra.mxu0 %v6804
    %6872 = vmatprep.subr.bf16.mxu0 0
    %6873 = vmatpush1.bf16.msra.mxu0 %v6805
    %6874 = vmatprep.subr.bf16.mxu0 0
    %6875 = vmatpush1.bf16.msra.mxu0 %v6806
    %6876 = vmatprep.subr.bf16.mxu0 0
    %6877 = vmatpush1.bf16.msra.mxu0 %v6807
    %6878 = vmatprep.subr.bf16.mxu0 0
    %6879 = vmatpush1.bf16.msra.mxu0 %v6808
    %6880 = vmatprep.subr.bf16.mxu0 0
    %6881 = vmatpush1.bf16.msra.mxu0 %v6809
    %6882 = vmatprep.subr.bf16.mxu0 0
    %6883 = vmatpush1.bf16.msra.mxu0 %v6810
    %6884 = vmatprep.subr.bf16.mxu0 0
    %6885 = vmatpush1.bf16.msra.mxu0 %v6811
    %6886 = vmatprep.subr.bf16.mxu0 0
    %6887 = vmatpush1.bf16.msra.mxu0 %v6812
    %6888 = vmatprep.subr.bf16.mxu0 0
    %6889 = vmatpush1.bf16.msra.mxu0 %v6813
    %6890 = vmatprep.subr.bf16.mxu0 0
    %6891 = vmatpush1.bf16.msra.mxu0 %v6814
    %6892 = vmatprep.subr.bf16.mxu0 0
    %6893 = vmatpush1.bf16.msra.mxu0 %v6815
    %6894 = vmatprep.subr.bf16.mxu0 0
    %6895 = vmatpush1.bf16.msra.mxu0 %v6816
    %6896 = vmatprep.subr.bf16.mxu0 0
    %6897 = vmatpush1.bf16.msra.mxu0 %v6817
    %6898 = vmatprep.mubr.bf16.mxu0 %v6607
    %6899 = vmatmul.mubr.bf16.gmra.mrb[0].mxu0 %v6606
    %v6900 = vpop.f32.mrb[0].mxu0
    %v6901 = vadd.f32 0.0, %v6900
    %v6902 = vpop.f32.mrb[0].mxu0
    %v6903 = vpop.f32.mrb[0].mxu0
    %v6904 = vpop.f32.mrb[0].mxu0
    %6905 = vdwg.mxu0
    %6906 = vmatprep.subr.bf16.mxu0 0
    %6907 = vmatpush1.bf16.msra.mxu0 %v6818
    %6908 = vmatprep.subr.bf16.mxu0 0
    %6909 = vmatpush1.bf16.msra.mxu0 %v6819
    %6910 = vmatprep.subr.bf16.mxu0 0
    %6911 = vmatpush1.bf16.msra.mxu0 %v6820
    %6912 = vmatprep.subr.bf16.mxu0 0
    %6913 = vmatpush1.bf16.msra.mxu0 %v6821
    %6914 = vmatprep.subr.bf16.mxu0 0
    %6915 = vmatpush1.bf16.msra.mxu0 %v6822
    %6916 = vmatprep.subr.bf16.mxu0 0
    %6917 = vmatpush1.bf16.msra.mxu0 %v6823
    %6918 = vmatprep.subr.bf16.mxu0 0
    %6919 = vmatpush1.bf16.msra.mxu0 %v6824
    %6920 = vmatprep.subr.bf16.mxu0 0
    %6921 = vmatpush1.bf16.msra.mxu0 %v6825
    %6922 = vmatprep.subr.bf16.mxu0 0
    %6923 = vmatpush1.bf16.msra.mxu0 %v6826
    %6924 = vmatprep.subr.bf16.mxu0 0
    %6925 = vmatpush1.bf16.msra.mxu0 %v6827
    %6926 = vmatprep.subr.bf16.mxu0 0
    %6927 = vmatpush1.bf16.msra.mxu0 %v6828
    %6928 = vmatprep.subr.bf16.mxu0 0
    %6929 = vmatpush1.bf16.msra.mxu0 %v6829
    %6930 = vmatprep.subr.bf16.mxu0 0
    %6931 = vmatpush1.bf16.msra.mxu0 %v6830
    %6932 = vmatprep.subr.bf16.mxu0 0
    %6933 = vmatpush1.bf16.msra.mxu0 %v6831
    %6934 = vmatprep.subr.bf16.mxu0 0
    %6935 = vmatpush1.bf16.msra.mxu0 %v6832
    %6936 = vmatprep.subr.bf16.mxu0 0
    %6937 = vmatpush1.bf16.msra.mxu0 %v6833
    %6938 = vmatprep.mubr.bf16.mxu0 %v6609
    %6939 = vmatmul.mubr.bf16.gmra.mrb[0].mxu0 %v6608
    %v6940 = vpop.f32.mrb[0].mxu0
    %v6941 = vadd.f32 %v6901, %v6940
    %v6942 = vpop.f32.mrb[0].mxu0
    %v6943 = vpop.f32.mrb[0].mxu0
    %v6944 = vpop.f32.mrb[0].mxu0
    %6945 = vdwg.mxu0
    %v6946 = vld [vmem:[%s14] sm:$0x1]
    %v6948 = vlaneseq
    %v6949 = vshrl.u32 %v6948, 7
    %v6950 = vsub.s32 0, %v6949
    %v6951 = vrot.slane %v6946, %v6950
    %v6953 = vmul.f32 %v6941, %v6951
    %v6954 = vld [vmem:[%s15] sm:$0x1]
    %v6956 = vlaneseq
    %v6957 = vshrl.u32 %v6956, 7
    %v6958 = vsub.s32 0, %v6957
    %v6959 = vrot.slane %v6954, %v6958
    %v6961 = vadd.f32 %v6953, %v6959
    %6962 = vst [vmem:[#allocation11] sm:$0x3] %v6961
    // Predicated region
    $region78: #{drug_conv_1d_forward.1} parent=1 // pred_check
      _
    $region79: #{drug_conv_1d_forward.1} parent=1 // pred_check_branch
      %6964 = sbr.rel (0) target = $region81
    $region80: #{drug_conv_1d_forward.1} parent=1 // pred_region
      %s6966 = ssub.s32 32, 32
      %6967 = vsyncadd [#allocation7], %s6966
      %s6969 = sshll.u32 [#allocation11], 4
      %s6970 = int_to_ptr.vmem [resolvable:$true] %s6969
      %6972 = dma.vmem_to_hbm [thread:$0]  %s6970, 32, %s16, [#allocation7]
    $region81: #{drug_conv_1d_forward.1} parent=1 // pred_fallthru
      _
    // Predicated region
    $region82: #{drug_conv_1d_forward.1} parent=1 // pred_check
      _
    $region83: #{drug_conv_1d_forward.1} parent=1 // pred_check_branch
      %6974 = sbr.rel (0) target = $region85
    $region84: #{drug_conv_1d_forward.1} parent=1 // pred_region
      %6975 = dma.done [#allocation7], 32
    $region85: #{drug_conv_1d_forward.1} parent=1 // pred_fallthru
      _
    %6976 = vsyncpa [#allocation6], 1
    %6977 = vsyncpa [#allocation9], 1
    %6978 = vsyncpa [#allocation7], 1

</llo_original>
